<compile_context>
chip_gen: v7x
topology: tpu7x:2x2x1
jax: 0.10.0
libtpu: 0.0.40
codegen_flags: <defaults>
</compile_context>

<pallas_src>
import jax
import jax.numpy as jnp
from jax import lax
from jax.experimental import pallas as pl
from jax.experimental.pallas import tpu as pltpu

# ---- module constants (from RNNPre / TransferedClassifier __init__) ----
NODE_EMBED_DIM = 128
TIME_DIM = 2
D_IN = NODE_EMBED_DIM + TIME_DIM          # 130 = GRU input size
HIDDEN = 256                              # GRU hidden size
NUM_LAYERS = 2
CLF_DIM = 168                             # TransferedClassifier fc0 out_features
CLF_PAD = 256                             # fc0 output padded to 2 clean vregs

# ---- small example sizes ----
NUM_NODE = 50
NUM_ETA_SLOTS = 48
T = 8
B = 8
TB = T * B

# Augmented gather table: rows 0..NUM_NODE hold node_embed @ Wih0_emb.T,
# rows NODE_PAD-2 / NODE_PAD-1 hold the two ts-projection rows.
NODE_PAD = 128
assert NUM_NODE + 1 <= NODE_PAD - TIME_DIM


def _selu(x):
    alpha = 1.6732632423543772
    scale = 1.0507009873554805
    return scale * jnp.where(x > 0, x, alpha * (jnp.exp(x) - 1.0))


def _gru_cell_from_gx(gx, h, whh_ref, bhh_n):
    """One GRU cell given the precomputed input projection gx (f32, r/z/n input
    biases already folded in).  Matmul operands bf16, gate math f32.
    PyTorch gate order: r, z, n;  n = tanh(Wx+b_in + r*(Wh+b_hn))."""
    gh = jnp.dot(h.astype(jnp.bfloat16), whh_ref[...],
                 preferred_element_type=jnp.float32)            # (B, 3H) f32
    r = jax.nn.sigmoid(gx[:, 0:HIDDEN] + gh[:, 0:HIDDEN])
    z = jax.nn.sigmoid(gx[:, HIDDEN:2 * HIDDEN] + gh[:, HIDDEN:2 * HIDDEN])
    n = jnp.tanh(gx[:, 2 * HIDDEN:] + r * (gh[:, 2 * HIDDEN:] + bhh_n))
    return (1.0 - z) * n + z * h


def _classifier_kernel(node_ref, ts_ref, len_ref,
                       embgx_ref, b0c_ref, whh0_ref, bhh0n_ref,
                       b1c_ref, bhh1n_ref, bfc0_ref, bfc1_ref,
                       wih1_hbm, whh1_hbm, wfc0_hbm, wfc1_hbm,
                       out_ref,
                       gx_s, wih1_s, whh1_s, wfc0_s, wfc1_s, sem):
    # ---- kick off DMAs for weights used later; hide them behind early work --
    cp_wih1 = pltpu.make_async_copy(wih1_hbm, wih1_s, sem.at[0])
    cp_whh1 = pltpu.make_async_copy(whh1_hbm, whh1_s, sem.at[1])
    cp_wfc0 = pltpu.make_async_copy(wfc0_hbm, wfc0_s, sem.at[2])
    cp_wfc1 = pltpu.make_async_copy(wfc1_hbm, wfc1_s, sem.at[3])
    cp_wih1.start(); cp_whh1.start(); cp_wfc0.start(); cp_wfc1.start()

    # ---- fused embedding gather + ts concat + layer-0 input projection ------
    # one-hot(node) with ts placed in the last two columns, one MXU matmul:
    # (T*B,128)bf16 @ (128,768)bf16 -> (64,768) f32, stored to VMEM scratch so
    # the 48-vreg value is not live across the unrolled recurrence.
    lane = lax.broadcasted_iota(jnp.int32, (TB, NODE_PAD), 1)
    node_col = node_ref[...]                         # (TB, 1) int32
    ts = ts_ref[...]                                 # (TB, 2) f32
    x = ((lane == node_col).astype(jnp.float32)
         + jnp.where(lane == NODE_PAD - 2, ts[:, 0:1], 0.0)
         + jnp.where(lane == NODE_PAD - 1, ts[:, 1:2], 0.0))
    gx_s[...] = (jnp.dot(x.astype(jnp.bfloat16), embgx_ref[...],
                         preferred_element_type=jnp.float32)
                 + b0c_ref[...])

    # loop-invariant operands, loaded once (pre-broadcast on the host)
    lengths_b = len_ref[...]                         # (B, HIDDEN) int32
    bhh0_n = bhh0n_ref[...]                          # (B, HIDDEN) f32
    bhh1_n = bhh1n_ref[...]                          # (B, HIDDEN) f32
    b1_comb = b1c_ref[...]                           # (B, 3H) f32

    h0 = jnp.zeros((B, HIDDEN), jnp.float32)
    h1 = jnp.zeros((B, HIDDEN), jnp.float32)

    # ---- fully unrolled recurrence (T is static) ----------------------------
    for t in range(T):
        gx0 = gx_s[t * B:(t + 1) * B, :]             # static (B, 3H) slice
        h0_new = _gru_cell_from_gx(gx0, h0, whh0_ref, bhh0_n)

        if t == 0:  # layer-1 weights must have landed before first use
            cp_wih1.wait()
            cp_whh1.wait()
        gx1 = jnp.dot(h0_new.astype(jnp.bfloat16), wih1_s[...],
                      preferred_element_type=jnp.float32) + b1_comb
        h1_new = _gru_cell_from_gx(gx1, h1, whh1_s, bhh1_n)

        # pack_padded_sequence semantics: freeze state past each seq's length
        valid = t < lengths_b
        h0 = jnp.where(valid, h0_new, h0)
        h1 = jnp.where(valid, h1_new, h1)

    # ---- fc0 -> SELU -> fc1 -> log_softmax on hn[-1] -------------------------
    cp_wfc0.wait()
    cp_wfc1.wait()
    hidden = _selu(jnp.dot(h1.astype(jnp.bfloat16), wfc0_s[...],
                           preferred_element_type=jnp.float32) + bfc0_ref[...])
    logits = jnp.dot(hidden.astype(jnp.bfloat16), wfc1_s[...],
                     preferred_element_type=jnp.float32) + bfc1_ref[...]
    m = jnp.max(logits, axis=-1, keepdims=True)
    lse = m + jnp.log(jnp.sum(jnp.exp(logits - m), axis=-1, keepdims=True))
    out_ref[...] = logits - lse


def transfered_classifier_forward(node, ts, seq_lengths, params):
    """node: (T, B) int32, ts: (T, B, 2) f32, seq_lengths: (B,) int32."""
    # Only trivial glue remains on the host (a few KiB of reshapes/broadcasts);
    # the embedding gather / concat / pad / cast are fused into the kernel.
    node_col = node.reshape(TB, 1).astype(jnp.int32)
    ts2d = ts.reshape(TB, TIME_DIM).astype(jnp.float32)
    lengths_b = jnp.broadcast_to(
        seq_lengths.astype(jnp.int32).reshape(B, 1), (B, HIDDEN))

    vmem = pl.BlockSpec(memory_space=pltpu.MemorySpace.VMEM)
    hbm = pl.BlockSpec(memory_space=pl.ANY)
    args = (
        node_col, ts2d, lengths_b,
        params["emb_gx"], params["b0_comb"], params["whh0_t"], params["bhh0_n"],
        params["b1_comb"], params["bhh1_n"], params["bfc0"], params["bfc1"],
        params["wih1_t"], params["whh1_t"], params["wfc0_t"], params["wfc1_t"],
    )
    return pl.pallas_call(
        _classifier_kernel,
        out_shape=jax.ShapeDtypeStruct((B, NUM_ETA_SLOTS), jnp.float32),
        in_specs=[vmem] * 11 + [hbm] * 4,
        out_specs=vmem,
        scratch_shapes=[
            pltpu.VMEM((TB, 3 * HIDDEN), jnp.float32),        # gx0 slab
            pltpu.VMEM((HIDDEN, 3 * HIDDEN), jnp.bfloat16),   # wih1
            pltpu.VMEM((HIDDEN, 3 * HIDDEN), jnp.bfloat16),   # whh1
            pltpu.VMEM((HIDDEN, CLF_PAD), jnp.bfloat16),      # wfc0
            pltpu.VMEM((CLF_PAD, NUM_ETA_SLOTS), jnp.bfloat16),  # wfc1
            pltpu.SemaphoreType.DMA((4,)),
        ],
    )(*args)


def make_params(key):
    """Returns (kernel_params, reference_params). Kernel params are bf16 matmul
    operands with padded / pre-combined / pre-broadcast biases and the fused
    embedding->gx table; reference params are plain f32."""
    ks = jax.random.split(key, 13)
    k_hid = 1.0 / jnp.sqrt(HIDDEN)
    k_clf = 1.0 / jnp.sqrt(CLF_DIM)

    def u(k, shape, bound):
        return jax.random.uniform(k, shape, jnp.float32, -bound, bound)

    node_embed = jax.random.normal(ks[0], (NUM_NODE + 1, NODE_EMBED_DIM), jnp.float32)

    # GRU layer 0 (input 130), layer 1 (input 256); PyTorch shapes (3H, in)
    wih0 = u(ks[1], (3 * HIDDEN, D_IN), k_hid)
    whh0 = u(ks[2], (3 * HIDDEN, HIDDEN), k_hid)
    bih0 = u(ks[3], (3 * HIDDEN,), k_hid)
    bhh0 = u(ks[4], (3 * HIDDEN,), k_hid)
    wih1 = u(ks[5], (3 * HIDDEN, HIDDEN), k_hid)
    whh1 = u(ks[6], (3 * HIDDEN, HIDDEN), k_hid)
    bih1 = u(ks[7], (3 * HIDDEN,), k_hid)
    bhh1 = u(ks[8], (3 * HIDDEN,), k_hid)
    # fc0: Linear(256, 168), fc1: Linear(168, NUM_ETA_SLOTS)
    wfc0 = u(ks[9], (CLF_DIM, HIDDEN), k_hid)
    bfc0 = u(ks[10], (CLF_DIM,), k_hid)
    wfc1 = u(ks[11], (NUM_ETA_SLOTS, CLF_DIM), k_clf)
    bfc1 = u(ks[12], (NUM_ETA_SLOTS,), k_clf)

    # ---- pure-f32 reference params (x @ W.T convention) ----
    ref = dict(
        node_embed=node_embed,
        wih0_t=wih0.T, whh0_t=whh0.T, bih0=bih0[None], bhh0=bhh0[None],
        wih1_t=wih1.T, whh1_t=whh1.T, bih1=bih1[None], bhh1=bhh1[None],
        wfc0_t=wfc0.T, bfc0=bfc0[None], wfc1_t=wfc1.T, bfc1=bfc1[None],
    )

    # ---- kernel params ----
    zeros_h = jnp.zeros((HIDDEN,), jnp.float32)
    # r/z biases pre-summed (b_ih + b_hh); n-gate keeps b_ih in the combined
    # bias and b_hh_n separate (it is multiplied by r inside the cell).
    b0_comb = bih0 + jnp.concatenate([bhh0[:2 * HIDDEN], zeros_h])
    b1_comb = bih1 + jnp.concatenate([bhh1[:2 * HIDDEN], zeros_h])

    # Fused embedding->gx table: row n = node_embed[n] @ Wih0_emb.T (f32, then
    # bf16 once); last two rows carry the ts projection so the kernel's single
    # one-hot matmul covers the whole 130-wide input projection.
    w_emb_t = wih0[:, :NODE_EMBED_DIM].T            # (128, 768)
    w_ts_t = wih0[:, NODE_EMBED_DIM:].T             # (2, 768)
    emb_gx = jnp.zeros((NODE_PAD, 3 * HIDDEN), jnp.float32)
    emb_gx = emb_gx.at[:NUM_NODE + 1].set(node_embed @ w_emb_t)
    emb_gx = emb_gx.at[NODE_PAD - 2:].set(w_ts_t)

    # zero-pad classifier dim 168 -> 256 (SELU(0)=0 and zero fc1 rows keep the
    # logits identical)
    wfc0_pad = jnp.zeros((HIDDEN, CLF_PAD), jnp.float32).at[:, :CLF_DIM].set(wfc0.T)
    bfc0_pad = jnp.zeros((CLF_PAD,), jnp.float32).at[:CLF_DIM].set(bfc0)
    wfc1_pad = jnp.zeros((CLF_PAD, NUM_ETA_SLOTS), jnp.float32).at[:CLF_DIM].set(wfc1.T)

    bf16 = jnp.bfloat16
    kern = dict(
        emb_gx=emb_gx.astype(bf16),
        b0_comb=b0_comb[None],
        whh0_t=whh0.T.astype(bf16),
        bhh0_n=jnp.broadcast_to(bhh0[2 * HIDDEN:][None], (B, HIDDEN)),
        wih1_t=wih1.T.astype(bf16),
        whh1_t=whh1.T.astype(bf16),
        b1_comb=jnp.broadcast_to(b1_comb[None], (B, 3 * HIDDEN)),
        bhh1_n=jnp.broadcast_to(bhh1[2 * HIDDEN:][None], (B, HIDDEN)),
        wfc0_t=wfc0_pad.astype(bf16), bfc0=bfc0_pad[None],
        wfc1_t=wfc1_pad.astype(bf16), bfc1=bfc1[None],
    )
    return kern, ref


def reference_forward(node, ts, seq_lengths, p):
    """Pure-JAX f32 reference mirroring the PyTorch forward."""
    emb = jnp.take(p["node_embed"], node, axis=0)
    x = jnp.concatenate([emb, ts], axis=-1)                     # (T, B, 130)

    def cell(xt, h, wih_t, whh_t, bih, bhh):
        gx = xt @ wih_t + bih
        gh = h @ whh_t + bhh
        r = jax.nn.sigmoid(gx[:, :HIDDEN] + gh[:, :HIDDEN])
        z = jax.nn.sigmoid(gx[:, HIDDEN:2 * HIDDEN] + gh[:, HIDDEN:2 * HIDDEN])
        n = jnp.tanh(gx[:, 2 * HIDDEN:] + r * gh[:, 2 * HIDDEN:])
        return (1.0 - z) * n + z * h

    h0 = jnp.zeros((B, HIDDEN)); h1 = jnp.zeros((B, HIDDEN))
    lengths = seq_lengths.reshape(B, 1)
    for t in range(T):
        h0n = cell(x[t], h0, p["wih0_t"], p["whh0_t"], p["bih0"], p["bhh0"])
        h1n = cell(h0n, h1, p["wih1_t"], p["whh1_t"], p["bih1"], p["bhh1"])
        valid = t < lengths
        h0 = jnp.where(valid, h0n, h0)
        h1 = jnp.where(valid, h1n, h1)
    hid = _selu(h1 @ p["wfc0_t"] + p["bfc0"])
    logits = hid @ p["wfc1_t"] + p["bfc1"]
    return jax.nn.log_softmax(logits, axis=-1)


if __name__ == "__main__":
    key = jax.random.PRNGKey(0)
    k_p, k_node, k_ts = jax.random.split(key, 3)
    kern_params, ref_params = make_params(k_p)

    node = jax.random.randint(k_node, (T, B), 0, NUM_NODE + 1, dtype=jnp.int32)
    ts = jax.random.uniform(k_ts, (T, B, TIME_DIM), jnp.float32)
    seq_lengths = jnp.array([8, 7, 6, 5, 4, 3, 2, 1], dtype=jnp.int32)  # sorted desc.

    fwd = jax.jit(transfered_classifier_forward)
    log_probs = fwd(node, ts, seq_lengths, kern_params)
    log_probs = jax.block_until_ready(log_probs)

    ref = reference_forward(node, ts, seq_lengths, ref_params)
    assert log_probs.shape == (B, NUM_ETA_SLOTS)
    assert bool(jnp.all(jnp.isfinite(log_probs)))
    # tolerance slightly relaxed for bf16 matmul operands (f32 accumulation)
    assert bool(jnp.allclose(log_probs, ref, atol=2e-2, rtol=2e-2))
    print("KERNEL_OK")
</pallas_src>

<mosaic_0001>
module attributes {stable_mosaic.version = 11 : i64} {
  func.func @_classifier_kernel(%arg0: memref<64x1xi32, #tpu.memory_space<vmem>>, %arg1: memref<64x2xf32, #tpu.memory_space<vmem>>, %arg2: memref<8x256xi32, #tpu.memory_space<vmem>>, %arg3: memref<128x768xbf16, #tpu.memory_space<vmem>>, %arg4: memref<1x768xf32, #tpu.memory_space<vmem>>, %arg5: memref<256x768xbf16, #tpu.memory_space<vmem>>, %arg6: memref<8x256xf32, #tpu.memory_space<vmem>>, %arg7: memref<8x768xf32, #tpu.memory_space<vmem>>, %arg8: memref<8x256xf32, #tpu.memory_space<vmem>>, %arg9: memref<1x256xf32, #tpu.memory_space<vmem>>, %arg10: memref<1x48xf32, #tpu.memory_space<vmem>>, %arg11: memref<256x768xbf16, #tpu.memory_space<any>>, %arg12: memref<256x768xbf16, #tpu.memory_space<any>>, %arg13: memref<256x256xbf16, #tpu.memory_space<any>>, %arg14: memref<256x48xbf16, #tpu.memory_space<any>>, %arg15: memref<8x48xf32, #tpu.memory_space<vmem>>, %arg16: memref<64x768xf32, #tpu.memory_space<vmem>>, %arg17: memref<256x768xbf16, #tpu.memory_space<vmem>>, %arg18: memref<256x768xbf16, #tpu.memory_space<vmem>>, %arg19: memref<256x256xbf16, #tpu.memory_space<vmem>>, %arg20: memref<256x48xbf16, #tpu.memory_space<vmem>>, %arg21: memref<4x!tpu.dma_semaphore, #tpu.memory_space<semaphore_mem>>) attributes {dimension_semantics = [], scalar_prefetch = 0 : i64, scratch_operands = 6 : i64, tpu.core_type = #tpu.core_type<tc>} {
    %c0_i32 = arith.constant 0 : i32
    %0 = tpu.memref_slice %arg21[%c0_i32] : memref<4x!tpu.dma_semaphore, #tpu.memory_space<semaphore_mem>> -> memref<1x!tpu.dma_semaphore, #tpu.memory_space<semaphore_mem>>
    %1 = tpu.memref_squeeze %0 : memref<1x!tpu.dma_semaphore, #tpu.memory_space<semaphore_mem>> -> memref<!tpu.dma_semaphore, #tpu.memory_space<semaphore_mem>>
    tpu.enqueue_dma source(%arg11 : memref<256x768xbf16, #tpu.memory_space<any>>) target(%arg17 : memref<256x768xbf16, #tpu.memory_space<vmem>>) target_semaphore(%1 : memref<!tpu.dma_semaphore, #tpu.memory_space<semaphore_mem>>)
    %c1_i32 = arith.constant 1 : i32
    %2 = tpu.memref_slice %arg21[%c1_i32] : memref<4x!tpu.dma_semaphore, #tpu.memory_space<semaphore_mem>> -> memref<1x!tpu.dma_semaphore, #tpu.memory_space<semaphore_mem>>
    %3 = tpu.memref_squeeze %2 : memref<1x!tpu.dma_semaphore, #tpu.memory_space<semaphore_mem>> -> memref<!tpu.dma_semaphore, #tpu.memory_space<semaphore_mem>>
    tpu.enqueue_dma source(%arg12 : memref<256x768xbf16, #tpu.memory_space<any>>) target(%arg18 : memref<256x768xbf16, #tpu.memory_space<vmem>>) target_semaphore(%3 : memref<!tpu.dma_semaphore, #tpu.memory_space<semaphore_mem>>)
    %c2_i32 = arith.constant 2 : i32
    %4 = tpu.memref_slice %arg21[%c2_i32] : memref<4x!tpu.dma_semaphore, #tpu.memory_space<semaphore_mem>> -> memref<1x!tpu.dma_semaphore, #tpu.memory_space<semaphore_mem>>
    %5 = tpu.memref_squeeze %4 : memref<1x!tpu.dma_semaphore, #tpu.memory_space<semaphore_mem>> -> memref<!tpu.dma_semaphore, #tpu.memory_space<semaphore_mem>>
    tpu.enqueue_dma source(%arg13 : memref<256x256xbf16, #tpu.memory_space<any>>) target(%arg19 : memref<256x256xbf16, #tpu.memory_space<vmem>>) target_semaphore(%5 : memref<!tpu.dma_semaphore, #tpu.memory_space<semaphore_mem>>)
    %c3_i32 = arith.constant 3 : i32
    %6 = tpu.memref_slice %arg21[%c3_i32] : memref<4x!tpu.dma_semaphore, #tpu.memory_space<semaphore_mem>> -> memref<1x!tpu.dma_semaphore, #tpu.memory_space<semaphore_mem>>
    %7 = tpu.memref_squeeze %6 : memref<1x!tpu.dma_semaphore, #tpu.memory_space<semaphore_mem>> -> memref<!tpu.dma_semaphore, #tpu.memory_space<semaphore_mem>>
    tpu.enqueue_dma source(%arg14 : memref<256x48xbf16, #tpu.memory_space<any>>) target(%arg20 : memref<256x48xbf16, #tpu.memory_space<vmem>>) target_semaphore(%7 : memref<!tpu.dma_semaphore, #tpu.memory_space<semaphore_mem>>)
    %8 = tpu.iota {dimensions = array<i32: 1>} : vector<64x128xi32>
    %c0 = arith.constant 0 : index
    %c0_0 = arith.constant 0 : index
    %9 = vector.load %arg0[%c0, %c0_0] : memref<64x1xi32, #tpu.memory_space<vmem>>, vector<64x1xi32>
    %c0_1 = arith.constant 0 : index
    %c0_2 = arith.constant 0 : index
    %10 = vector.load %arg1[%c0_1, %c0_2] : memref<64x2xf32, #tpu.memory_space<vmem>>, vector<64x2xf32>
    %11 = vector.broadcast %9 : vector<64x1xi32> to vector<64x128xi32>
    %12 = arith.cmpi eq, %8, %11 : vector<64x128xi32>
    %13 = arith.extui %12 : vector<64x128xi1> to vector<64x128xi32>
    %14 = arith.sitofp %13 : vector<64x128xi32> to vector<64x128xf32>
    %c126_i32 = arith.constant 126 : i32
    %15 = vector.broadcast %c126_i32 : i32 to vector<64x128xi32>
    %16 = arith.cmpi eq, %8, %15 : vector<64x128xi32>
    %17 = vector.extract_strided_slice %10 {offsets = [0, 0], sizes = [64, 1], strides = [1, 1]} : vector<64x2xf32> to vector<64x1xf32>
    %cst = arith.constant 0.000000e+00 : f32
    %18 = vector.shape_cast %17 : vector<64x1xf32> to vector<64x1xf32>
    %19 = vector.broadcast %18 : vector<64x1xf32> to vector<64x128xf32>
    %20 = vector.broadcast %cst : f32 to vector<64x128xf32>
    %21 = arith.select %16, %19, %20 : vector<64x128xi1>, vector<64x128xf32>
    %22 = arith.addf %14, %21 : vector<64x128xf32>
    %c127_i32 = arith.constant 127 : i32
    %23 = vector.broadcast %c127_i32 : i32 to vector<64x128xi32>
    %24 = arith.cmpi eq, %8, %23 : vector<64x128xi32>
    %25 = vector.extract_strided_slice %10 {offsets = [0, 1], sizes = [64, 1], strides = [1, 1]} : vector<64x2xf32> to vector<64x1xf32>
    %cst_3 = arith.constant 0.000000e+00 : f32
    %26 = vector.shape_cast %25 : vector<64x1xf32> to vector<64x1xf32>
    %27 = vector.broadcast %26 : vector<64x1xf32> to vector<64x128xf32>
    %28 = vector.broadcast %cst_3 : f32 to vector<64x128xf32>
    %29 = arith.select %24, %27, %28 : vector<64x128xi1>, vector<64x128xf32>
    %30 = arith.addf %22, %29 : vector<64x128xf32>
    %31 = arith.truncf %30 : vector<64x128xf32> to vector<64x128xbf16>
    %c0_4 = arith.constant 0 : index
    %c0_5 = arith.constant 0 : index
    %32 = vector.load %arg3[%c0_4, %c0_5] : memref<128x768xbf16, #tpu.memory_space<vmem>>, vector<128x768xbf16>
    %cst_6 = arith.constant dense<0.000000e+00> : vector<64x768xf32>
    %33 = tpu.matmul %31, %32, %cst_6 {dimension_numbers = #tpu.dot_dimension_numbers<[1], [0], [0], [1], [0, 0, 1, 1], [], []>} : vector<64x128xbf16>, vector<128x768xbf16>, vector<64x768xf32> -> vector<64x768xf32>
    %c0_7 = arith.constant 0 : index
    %c0_8 = arith.constant 0 : index
    %34 = vector.load %arg4[%c0_7, %c0_8] : memref<1x768xf32, #tpu.memory_space<vmem>>, vector<1x768xf32>
    %35 = vector.broadcast %34 : vector<1x768xf32> to vector<64x768xf32>
    %36 = arith.addf %33, %35 : vector<64x768xf32>
    %c0_9 = arith.constant 0 : index
    %c0_10 = arith.constant 0 : index
    %37 = vector.load %arg16[%c0_9, %c0_10] : memref<64x768xf32, #tpu.memory_space<vmem>>, vector<64x768xf32>
    tpu.vector_store %arg16[%c0_9, %c0_10], %36 {strides = array<i32>} : memref<64x768xf32, #tpu.memory_space<vmem>>, vector<64x768xf32>,
    %c0_11 = arith.constant 0 : index
    %c0_12 = arith.constant 0 : index
    %38 = vector.load %arg2[%c0_11, %c0_12] : memref<8x256xi32, #tpu.memory_space<vmem>>, vector<8x256xi32>
    %c0_13 = arith.constant 0 : index
    %c0_14 = arith.constant 0 : index
    %39 = vector.load %arg6[%c0_13, %c0_14] : memref<8x256xf32, #tpu.memory_space<vmem>>, vector<8x256xf32>
    %c0_15 = arith.constant 0 : index
    %c0_16 = arith.constant 0 : index
    %40 = vector.load %arg8[%c0_15, %c0_16] : memref<8x256xf32, #tpu.memory_space<vmem>>, vector<8x256xf32>
    %c0_17 = arith.constant 0 : index
    %c0_18 = arith.constant 0 : index
    %41 = vector.load %arg7[%c0_17, %c0_18] : memref<8x768xf32, #tpu.memory_space<vmem>>, vector<8x768xf32>
    %cst_19 = arith.constant 0.000000e+00 : f32
    %42 = vector.broadcast %cst_19 : f32 to vector<8x256xf32>
    %cst_20 = arith.constant 0.000000e+00 : f32
    %43 = vector.broadcast %cst_20 : f32 to vector<8x256xf32>
    %c0_21 = arith.constant 0 : index
    %c0_22 = arith.constant 0 : index
    %44 = vector.load %arg16[%c0_21, %c0_22] : memref<64x768xf32, #tpu.memory_space<vmem>>, vector<8x768xf32>
    %45 = arith.truncf %42 : vector<8x256xf32> to vector<8x256xbf16>
    %c0_23 = arith.constant 0 : index
    %c0_24 = arith.constant 0 : index
    %46 = vector.load %arg5[%c0_23, %c0_24] : memref<256x768xbf16, #tpu.memory_space<vmem>>, vector<256x768xbf16>
    %cst_25 = arith.constant dense<0.000000e+00> : vector<8x768xf32>
    %47 = tpu.matmul %45, %46, %cst_25 {dimension_numbers = #tpu.dot_dimension_numbers<[1], [0], [0], [1], [0, 0, 1, 1], [], []>} : vector<8x256xbf16>, vector<256x768xbf16>, vector<8x768xf32> -> vector<8x768xf32>
    %48 = vector.extract_strided_slice %44 {offsets = [0, 0], sizes = [8, 256], strides = [1, 1]} : vector<8x768xf32> to vector<8x256xf32>
    %49 = vector.extract_strided_slice %47 {offsets = [0, 0], sizes = [8, 256], strides = [1, 1]} : vector<8x768xf32> to vector<8x256xf32>
    %50 = arith.addf %48, %49 : vector<8x256xf32>
    %51 = arith.negf %50 : vector<8x256xf32>
    %52 = math.exp %51 : vector<8x256xf32>
    %cst_26 = arith.constant 1.000000e+00 : f32
    %53 = vector.broadcast %cst_26 : f32 to vector<8x256xf32>
    %54 = arith.addf %53, %52 : vector<8x256xf32>
    %55 = arith.divf %53, %54 : vector<8x256xf32>
    %56 = vector.extract_strided_slice %44 {offsets = [0, 256], sizes = [8, 256], strides = [1, 1]} : vector<8x768xf32> to vector<8x256xf32>
    %57 = vector.extract_strided_slice %47 {offsets = [0, 256], sizes = [8, 256], strides = [1, 1]} : vector<8x768xf32> to vector<8x256xf32>
    %58 = arith.addf %56, %57 : vector<8x256xf32>
    %59 = arith.negf %58 : vector<8x256xf32>
    %60 = math.exp %59 : vector<8x256xf32>
    %cst_27 = arith.constant 1.000000e+00 : f32
    %61 = vector.broadcast %cst_27 : f32 to vector<8x256xf32>
    %62 = arith.addf %61, %60 : vector<8x256xf32>
    %63 = arith.divf %61, %62 : vector<8x256xf32>
    %64 = vector.extract_strided_slice %44 {offsets = [0, 512], sizes = [8, 256], strides = [1, 1]} : vector<8x768xf32> to vector<8x256xf32>
    %65 = vector.extract_strided_slice %47 {offsets = [0, 512], sizes = [8, 256], strides = [1, 1]} : vector<8x768xf32> to vector<8x256xf32>
    %66 = arith.addf %65, %39 : vector<8x256xf32>
    %67 = arith.mulf %55, %66 : vector<8x256xf32>
    %68 = arith.addf %64, %67 : vector<8x256xf32>
    %69 = math.tanh %68 : vector<8x256xf32>
    %cst_28 = arith.constant 1.000000e+00 : f32
    %70 = vector.broadcast %cst_28 : f32 to vector<8x256xf32>
    %71 = arith.subf %70, %63 : vector<8x256xf32>
    %72 = arith.mulf %71, %69 : vector<8x256xf32>
    %73 = arith.mulf %63, %42 : vector<8x256xf32>
    %74 = arith.addf %72, %73 : vector<8x256xf32>
    %c0_i32_29 = arith.constant 0 : i32
    %75 = tpu.memref_slice %arg21[%c0_i32_29] : memref<4x!tpu.dma_semaphore, #tpu.memory_space<semaphore_mem>> -> memref<1x!tpu.dma_semaphore, #tpu.memory_space<semaphore_mem>>
    %76 = tpu.memref_squeeze %75 : memref<1x!tpu.dma_semaphore, #tpu.memory_space<semaphore_mem>> -> memref<!tpu.dma_semaphore, #tpu.memory_space<semaphore_mem>>
    tpu.wait_dma2 semaphore(%76 : memref<!tpu.dma_semaphore, #tpu.memory_space<semaphore_mem>>) src(%arg11 : memref<256x768xbf16, #tpu.memory_space<any>>) dst(%arg17 : memref<256x768xbf16, #tpu.memory_space<vmem>>)
    %c1_i32_30 = arith.constant 1 : i32
    %77 = tpu.memref_slice %arg21[%c1_i32_30] : memref<4x!tpu.dma_semaphore, #tpu.memory_space<semaphore_mem>> -> memref<1x!tpu.dma_semaphore, #tpu.memory_space<semaphore_mem>>
    %78 = tpu.memref_squeeze %77 : memref<1x!tpu.dma_semaphore, #tpu.memory_space<semaphore_mem>> -> memref<!tpu.dma_semaphore, #tpu.memory_space<semaphore_mem>>
    tpu.wait_dma2 semaphore(%78 : memref<!tpu.dma_semaphore, #tpu.memory_space<semaphore_mem>>) src(%arg12 : memref<256x768xbf16, #tpu.memory_space<any>>) dst(%arg18 : memref<256x768xbf16, #tpu.memory_space<vmem>>)
    %79 = arith.truncf %74 : vector<8x256xf32> to vector<8x256xbf16>
    %c0_31 = arith.constant 0 : index
    %c0_32 = arith.constant 0 : index
    %80 = vector.load %arg17[%c0_31, %c0_32] : memref<256x768xbf16, #tpu.memory_space<vmem>>, vector<256x768xbf16>
    %cst_33 = arith.constant dense<0.000000e+00> : vector<8x768xf32>
    %81 = tpu.matmul %79, %80, %cst_33 {dimension_numbers = #tpu.dot_dimension_numbers<[1], [0], [0], [1], [0, 0, 1, 1], [], []>} : vector<8x256xbf16>, vector<256x768xbf16>, vector<8x768xf32> -> vector<8x768xf32>
    %82 = arith.addf %81, %41 : vector<8x768xf32>
    %83 = arith.truncf %43 : vector<8x256xf32> to vector<8x256xbf16>
    %c0_34 = arith.constant 0 : index
    %c0_35 = arith.constant 0 : index
    %84 = vector.load %arg18[%c0_34, %c0_35] : memref<256x768xbf16, #tpu.memory_space<vmem>>, vector<256x768xbf16>
    %cst_36 = arith.constant dense<0.000000e+00> : vector<8x768xf32>
    %85 = tpu.matmul %83, %84, %cst_36 {dimension_numbers = #tpu.dot_dimension_numbers<[1], [0], [0], [1], [0, 0, 1, 1], [], []>} : vector<8x256xbf16>, vector<256x768xbf16>, vector<8x768xf32> -> vector<8x768xf32>
    %86 = vector.extract_strided_slice %82 {offsets = [0, 0], sizes = [8, 256], strides = [1, 1]} : vector<8x768xf32> to vector<8x256xf32>
    %87 = vector.extract_strided_slice %85 {offsets = [0, 0], sizes = [8, 256], strides = [1, 1]} : vector<8x768xf32> to vector<8x256xf32>
    %88 = arith.addf %86, %87 : vector<8x256xf32>
    %89 = arith.negf %88 : vector<8x256xf32>
    %90 = math.exp %89 : vector<8x256xf32>
    %cst_37 = arith.constant 1.000000e+00 : f32
    %91 = vector.broadcast %cst_37 : f32 to vector<8x256xf32>
    %92 = arith.addf %91, %90 : vector<8x256xf32>
    %93 = arith.divf %91, %92 : vector<8x256xf32>
    %94 = vector.extract_strided_slice %82 {offsets = [0, 256], sizes = [8, 256], strides = [1, 1]} : vector<8x768xf32> to vector<8x256xf32>
    %95 = vector.extract_strided_slice %85 {offsets = [0, 256], sizes = [8, 256], strides = [1, 1]} : vector<8x768xf32> to vector<8x256xf32>
    %96 = arith.addf %94, %95 : vector<8x256xf32>
    %97 = arith.negf %96 : vector<8x256xf32>
    %98 = math.exp %97 : vector<8x256xf32>
    %cst_38 = arith.constant 1.000000e+00 : f32
    %99 = vector.broadcast %cst_38 : f32 to vector<8x256xf32>
    %100 = arith.addf %99, %98 : vector<8x256xf32>
    %101 = arith.divf %99, %100 : vector<8x256xf32>
    %102 = vector.extract_strided_slice %82 {offsets = [0, 512], sizes = [8, 256], strides = [1, 1]} : vector<8x768xf32> to vector<8x256xf32>
    %103 = vector.extract_strided_slice %85 {offsets = [0, 512], sizes = [8, 256], strides = [1, 1]} : vector<8x768xf32> to vector<8x256xf32>
    %104 = arith.addf %103, %40 : vector<8x256xf32>
    %105 = arith.mulf %93, %104 : vector<8x256xf32>
    %106 = arith.addf %102, %105 : vector<8x256xf32>
    %107 = math.tanh %106 : vector<8x256xf32>
    %cst_39 = arith.constant 1.000000e+00 : f32
    %108 = vector.broadcast %cst_39 : f32 to vector<8x256xf32>
    %109 = arith.subf %108, %101 : vector<8x256xf32>
    %110 = arith.mulf %109, %107 : vector<8x256xf32>
    %111 = arith.mulf %101, %43 : vector<8x256xf32>
    %112 = arith.addf %110, %111 : vector<8x256xf32>
    %c0_i32_40 = arith.constant 0 : i32
    %113 = vector.broadcast %c0_i32_40 : i32 to vector<8x256xi32>
    %114 = arith.cmpi sgt, %38, %113 : vector<8x256xi32>
    %115 = arith.select %114, %74, %42 : vector<8x256xi1>, vector<8x256xf32>
    %116 = arith.select %114, %112, %43 : vector<8x256xi1>, vector<8x256xf32>
    %c8 = arith.constant 8 : index
    %c0_41 = arith.constant 0 : index
    %117 = vector.load %arg16[%c8, %c0_41] : memref<64x768xf32, #tpu.memory_space<vmem>>, vector<8x768xf32>
    %118 = arith.truncf %115 : vector<8x256xf32> to vector<8x256xbf16>
    %c0_42 = arith.constant 0 : index
    %c0_43 = arith.constant 0 : index
    %119 = vector.load %arg5[%c0_42, %c0_43] : memref<256x768xbf16, #tpu.memory_space<vmem>>, vector<256x768xbf16>
    %cst_44 = arith.constant dense<0.000000e+00> : vector<8x768xf32>
    %120 = tpu.matmul %118, %119, %cst_44 {dimension_numbers = #tpu.dot_dimension_numbers<[1], [0], [0], [1], [0, 0, 1, 1], [], []>} : vector<8x256xbf16>, vector<256x768xbf16>, vector<8x768xf32> -> vector<8x768xf32>
    %121 = vector.extract_strided_slice %117 {offsets = [0, 0], sizes = [8, 256], strides = [1, 1]} : vector<8x768xf32> to vector<8x256xf32>
    %122 = vector.extract_strided_slice %120 {offsets = [0, 0], sizes = [8, 256], strides = [1, 1]} : vector<8x768xf32> to vector<8x256xf32>
    %123 = arith.addf %121, %122 : vector<8x256xf32>
    %124 = arith.negf %123 : vector<8x256xf32>
    %125 = math.exp %124 : vector<8x256xf32>
    %cst_45 = arith.constant 1.000000e+00 : f32
    %126 = vector.broadcast %cst_45 : f32 to vector<8x256xf32>
    %127 = arith.addf %126, %125 : vector<8x256xf32>
    %128 = arith.divf %126, %127 : vector<8x256xf32>
    %129 = vector.extract_strided_slice %117 {offsets = [0, 256], sizes = [8, 256], strides = [1, 1]} : vector<8x768xf32> to vector<8x256xf32>
    %130 = vector.extract_strided_slice %120 {offsets = [0, 256], sizes = [8, 256], strides = [1, 1]} : vector<8x768xf32> to vector<8x256xf32>
    %131 = arith.addf %129, %130 : vector<8x256xf32>
    %132 = arith.negf %131 : vector<8x256xf32>
    %133 = math.exp %132 : vector<8x256xf32>
    %cst_46 = arith.constant 1.000000e+00 : f32
    %134 = vector.broadcast %cst_46 : f32 to vector<8x256xf32>
    %135 = arith.addf %134, %133 : vector<8x256xf32>
    %136 = arith.divf %134, %135 : vector<8x256xf32>
    %137 = vector.extract_strided_slice %117 {offsets = [0, 512], sizes = [8, 256], strides = [1, 1]} : vector<8x768xf32> to vector<8x256xf32>
    %138 = vector.extract_strided_slice %120 {offsets = [0, 512], sizes = [8, 256], strides = [1, 1]} : vector<8x768xf32> to vector<8x256xf32>
    %139 = arith.addf %138, %39 : vector<8x256xf32>
    %140 = arith.mulf %128, %139 : vector<8x256xf32>
    %141 = arith.addf %137, %140 : vector<8x256xf32>
    %142 = math.tanh %141 : vector<8x256xf32>
    %cst_47 = arith.constant 1.000000e+00 : f32
    %143 = vector.broadcast %cst_47 : f32 to vector<8x256xf32>
    %144 = arith.subf %143, %136 : vector<8x256xf32>
    %145 = arith.mulf %144, %142 : vector<8x256xf32>
    %146 = arith.mulf %136, %115 : vector<8x256xf32>
    %147 = arith.addf %145, %146 : vector<8x256xf32>
    %148 = arith.truncf %147 : vector<8x256xf32> to vector<8x256xbf16>
    %c0_48 = arith.constant 0 : index
    %c0_49 = arith.constant 0 : index
    %149 = vector.load %arg17[%c0_48, %c0_49] : memref<256x768xbf16, #tpu.memory_space<vmem>>, vector<256x768xbf16>
    %cst_50 = arith.constant dense<0.000000e+00> : vector<8x768xf32>
    %150 = tpu.matmul %148, %149, %cst_50 {dimension_numbers = #tpu.dot_dimension_numbers<[1], [0], [0], [1], [0, 0, 1, 1], [], []>} : vector<8x256xbf16>, vector<256x768xbf16>, vector<8x768xf32> -> vector<8x768xf32>
    %151 = arith.addf %150, %41 : vector<8x768xf32>
    %152 = arith.truncf %116 : vector<8x256xf32> to vector<8x256xbf16>
    %c0_51 = arith.constant 0 : index
    %c0_52 = arith.constant 0 : index
    %153 = vector.load %arg18[%c0_51, %c0_52] : memref<256x768xbf16, #tpu.memory_space<vmem>>, vector<256x768xbf16>
    %cst_53 = arith.constant dense<0.000000e+00> : vector<8x768xf32>
    %154 = tpu.matmul %152, %153, %cst_53 {dimension_numbers = #tpu.dot_dimension_numbers<[1], [0], [0], [1], [0, 0, 1, 1], [], []>} : vector<8x256xbf16>, vector<256x768xbf16>, vector<8x768xf32> -> vector<8x768xf32>
    %155 = vector.extract_strided_slice %151 {offsets = [0, 0], sizes = [8, 256], strides = [1, 1]} : vector<8x768xf32> to vector<8x256xf32>
    %156 = vector.extract_strided_slice %154 {offsets = [0, 0], sizes = [8, 256], strides = [1, 1]} : vector<8x768xf32> to vector<8x256xf32>
    %157 = arith.addf %155, %156 : vector<8x256xf32>
    %158 = arith.negf %157 : vector<8x256xf32>
    %159 = math.exp %158 : vector<8x256xf32>
    %cst_54 = arith.constant 1.000000e+00 : f32
    %160 = vector.broadcast %cst_54 : f32 to vector<8x256xf32>
    %161 = arith.addf %160, %159 : vector<8x256xf32>
    %162 = arith.divf %160, %161 : vector<8x256xf32>
    %163 = vector.extract_strided_slice %151 {offsets = [0, 256], sizes = [8, 256], strides = [1, 1]} : vector<8x768xf32> to vector<8x256xf32>
    %164 = vector.extract_strided_slice %154 {offsets = [0, 256], sizes = [8, 256], strides = [1, 1]} : vector<8x768xf32> to vector<8x256xf32>
    %165 = arith.addf %163, %164 : vector<8x256xf32>
    %166 = arith.negf %165 : vector<8x256xf32>
    %167 = math.exp %166 : vector<8x256xf32>
    %cst_55 = arith.constant 1.000000e+00 : f32
    %168 = vector.broadcast %cst_55 : f32 to vector<8x256xf32>
    %169 = arith.addf %168, %167 : vector<8x256xf32>
    %170 = arith.divf %168, %169 : vector<8x256xf32>
    %171 = vector.extract_strided_slice %151 {offsets = [0, 512], sizes = [8, 256], strides = [1, 1]} : vector<8x768xf32> to vector<8x256xf32>
    %172 = vector.extract_strided_slice %154 {offsets = [0, 512], sizes = [8, 256], strides = [1, 1]} : vector<8x768xf32> to vector<8x256xf32>
    %173 = arith.addf %172, %40 : vector<8x256xf32>
    %174 = arith.mulf %162, %173 : vector<8x256xf32>
    %175 = arith.addf %171, %174 : vector<8x256xf32>
    %176 = math.tanh %175 : vector<8x256xf32>
    %cst_56 = arith.constant 1.000000e+00 : f32
    %177 = vector.broadcast %cst_56 : f32 to vector<8x256xf32>
    %178 = arith.subf %177, %170 : vector<8x256xf32>
    %179 = arith.mulf %178, %176 : vector<8x256xf32>
    %180 = arith.mulf %170, %116 : vector<8x256xf32>
    %181 = arith.addf %179, %180 : vector<8x256xf32>
    %c1_i32_57 = arith.constant 1 : i32
    %182 = vector.broadcast %c1_i32_57 : i32 to vector<8x256xi32>
    %183 = arith.cmpi sgt, %38, %182 : vector<8x256xi32>
    %184 = arith.select %183, %147, %115 : vector<8x256xi1>, vector<8x256xf32>
    %185 = arith.select %183, %181, %116 : vector<8x256xi1>, vector<8x256xf32>
    %c16 = arith.constant 16 : index
    %c0_58 = arith.constant 0 : index
    %186 = vector.load %arg16[%c16, %c0_58] : memref<64x768xf32, #tpu.memory_space<vmem>>, vector<8x768xf32>
    %187 = arith.truncf %184 : vector<8x256xf32> to vector<8x256xbf16>
    %c0_59 = arith.constant 0 : index
    %c0_60 = arith.constant 0 : index
    %188 = vector.load %arg5[%c0_59, %c0_60] : memref<256x768xbf16, #tpu.memory_space<vmem>>, vector<256x768xbf16>
    %cst_61 = arith.constant dense<0.000000e+00> : vector<8x768xf32>
    %189 = tpu.matmul %187, %188, %cst_61 {dimension_numbers = #tpu.dot_dimension_numbers<[1], [0], [0], [1], [0, 0, 1, 1], [], []>} : vector<8x256xbf16>, vector<256x768xbf16>, vector<8x768xf32> -> vector<8x768xf32>
    %190 = vector.extract_strided_slice %186 {offsets = [0, 0], sizes = [8, 256], strides = [1, 1]} : vector<8x768xf32> to vector<8x256xf32>
    %191 = vector.extract_strided_slice %189 {offsets = [0, 0], sizes = [8, 256], strides = [1, 1]} : vector<8x768xf32> to vector<8x256xf32>
    %192 = arith.addf %190, %191 : vector<8x256xf32>
    %193 = arith.negf %192 : vector<8x256xf32>
    %194 = math.exp %193 : vector<8x256xf32>
    %cst_62 = arith.constant 1.000000e+00 : f32
    %195 = vector.broadcast %cst_62 : f32 to vector<8x256xf32>
    %196 = arith.addf %195, %194 : vector<8x256xf32>
    %197 = arith.divf %195, %196 : vector<8x256xf32>
    %198 = vector.extract_strided_slice %186 {offsets = [0, 256], sizes = [8, 256], strides = [1, 1]} : vector<8x768xf32> to vector<8x256xf32>
    %199 = vector.extract_strided_slice %189 {offsets = [0, 256], sizes = [8, 256], strides = [1, 1]} : vector<8x768xf32> to vector<8x256xf32>
    %200 = arith.addf %198, %199 : vector<8x256xf32>
    %201 = arith.negf %200 : vector<8x256xf32>
    %202 = math.exp %201 : vector<8x256xf32>
    %cst_63 = arith.constant 1.000000e+00 : f32
    %203 = vector.broadcast %cst_63 : f32 to vector<8x256xf32>
    %204 = arith.addf %203, %202 : vector<8x256xf32>
    %205 = arith.divf %203, %204 : vector<8x256xf32>
    %206 = vector.extract_strided_slice %186 {offsets = [0, 512], sizes = [8, 256], strides = [1, 1]} : vector<8x768xf32> to vector<8x256xf32>
    %207 = vector.extract_strided_slice %189 {offsets = [0, 512], sizes = [8, 256], strides = [1, 1]} : vector<8x768xf32> to vector<8x256xf32>
    %208 = arith.addf %207, %39 : vector<8x256xf32>
    %209 = arith.mulf %197, %208 : vector<8x256xf32>
    %210 = arith.addf %206, %209 : vector<8x256xf32>
    %211 = math.tanh %210 : vector<8x256xf32>
    %cst_64 = arith.constant 1.000000e+00 : f32
    %212 = vector.broadcast %cst_64 : f32 to vector<8x256xf32>
    %213 = arith.subf %212, %205 : vector<8x256xf32>
    %214 = arith.mulf %213, %211 : vector<8x256xf32>
    %215 = arith.mulf %205, %184 : vector<8x256xf32>
    %216 = arith.addf %214, %215 : vector<8x256xf32>
    %217 = arith.truncf %216 : vector<8x256xf32> to vector<8x256xbf16>
    %c0_65 = arith.constant 0 : index
    %c0_66 = arith.constant 0 : index
    %218 = vector.load %arg17[%c0_65, %c0_66] : memref<256x768xbf16, #tpu.memory_space<vmem>>, vector<256x768xbf16>
    %cst_67 = arith.constant dense<0.000000e+00> : vector<8x768xf32>
    %219 = tpu.matmul %217, %218, %cst_67 {dimension_numbers = #tpu.dot_dimension_numbers<[1], [0], [0], [1], [0, 0, 1, 1], [], []>} : vector<8x256xbf16>, vector<256x768xbf16>, vector<8x768xf32> -> vector<8x768xf32>
    %220 = arith.addf %219, %41 : vector<8x768xf32>
    %221 = arith.truncf %185 : vector<8x256xf32> to vector<8x256xbf16>
    %c0_68 = arith.constant 0 : index
    %c0_69 = arith.constant 0 : index
    %222 = vector.load %arg18[%c0_68, %c0_69] : memref<256x768xbf16, #tpu.memory_space<vmem>>, vector<256x768xbf16>
    %cst_70 = arith.constant dense<0.000000e+00> : vector<8x768xf32>
    %223 = tpu.matmul %221, %222, %cst_70 {dimension_numbers = #tpu.dot_dimension_numbers<[1], [0], [0], [1], [0, 0, 1, 1], [], []>} : vector<8x256xbf16>, vector<256x768xbf16>, vector<8x768xf32> -> vector<8x768xf32>
    %224 = vector.extract_strided_slice %220 {offsets = [0, 0], sizes = [8, 256], strides = [1, 1]} : vector<8x768xf32> to vector<8x256xf32>
    %225 = vector.extract_strided_slice %223 {offsets = [0, 0], sizes = [8, 256], strides = [1, 1]} : vector<8x768xf32> to vector<8x256xf32>
    %226 = arith.addf %224, %225 : vector<8x256xf32>
    %227 = arith.negf %226 : vector<8x256xf32>
    %228 = math.exp %227 : vector<8x256xf32>
    %cst_71 = arith.constant 1.000000e+00 : f32
    %229 = vector.broadcast %cst_71 : f32 to vector<8x256xf32>
    %230 = arith.addf %229, %228 : vector<8x256xf32>
    %231 = arith.divf %229, %230 : vector<8x256xf32>
    %232 = vector.extract_strided_slice %220 {offsets = [0, 256], sizes = [8, 256], strides = [1, 1]} : vector<8x768xf32> to vector<8x256xf32>
    %233 = vector.extract_strided_slice %223 {offsets = [0, 256], sizes = [8, 256], strides = [1, 1]} : vector<8x768xf32> to vector<8x256xf32>
    %234 = arith.addf %232, %233 : vector<8x256xf32>
    %235 = arith.negf %234 : vector<8x256xf32>
    %236 = math.exp %235 : vector<8x256xf32>
    %cst_72 = arith.constant 1.000000e+00 : f32
    %237 = vector.broadcast %cst_72 : f32 to vector<8x256xf32>
    %238 = arith.addf %237, %236 : vector<8x256xf32>
    %239 = arith.divf %237, %238 : vector<8x256xf32>
    %240 = vector.extract_strided_slice %220 {offsets = [0, 512], sizes = [8, 256], strides = [1, 1]} : vector<8x768xf32> to vector<8x256xf32>
    %241 = vector.extract_strided_slice %223 {offsets = [0, 512], sizes = [8, 256], strides = [1, 1]} : vector<8x768xf32> to vector<8x256xf32>
    %242 = arith.addf %241, %40 : vector<8x256xf32>
    %243 = arith.mulf %231, %242 : vector<8x256xf32>
    %244 = arith.addf %240, %243 : vector<8x256xf32>
    %245 = math.tanh %244 : vector<8x256xf32>
    %cst_73 = arith.constant 1.000000e+00 : f32
    %246 = vector.broadcast %cst_73 : f32 to vector<8x256xf32>
    %247 = arith.subf %246, %239 : vector<8x256xf32>
    %248 = arith.mulf %247, %245 : vector<8x256xf32>
    %249 = arith.mulf %239, %185 : vector<8x256xf32>
    %250 = arith.addf %248, %249 : vector<8x256xf32>
    %c2_i32_74 = arith.constant 2 : i32
    %251 = vector.broadcast %c2_i32_74 : i32 to vector<8x256xi32>
    %252 = arith.cmpi sgt, %38, %251 : vector<8x256xi32>
    %253 = arith.select %252, %216, %184 : vector<8x256xi1>, vector<8x256xf32>
    %254 = arith.select %252, %250, %185 : vector<8x256xi1>, vector<8x256xf32>
    %c24 = arith.constant 24 : index
    %c0_75 = arith.constant 0 : index
    %255 = vector.load %arg16[%c24, %c0_75] : memref<64x768xf32, #tpu.memory_space<vmem>>, vector<8x768xf32>
    %256 = arith.truncf %253 : vector<8x256xf32> to vector<8x256xbf16>
    %c0_76 = arith.constant 0 : index
    %c0_77 = arith.constant 0 : index
    %257 = vector.load %arg5[%c0_76, %c0_77] : memref<256x768xbf16, #tpu.memory_space<vmem>>, vector<256x768xbf16>
    %cst_78 = arith.constant dense<0.000000e+00> : vector<8x768xf32>
    %258 = tpu.matmul %256, %257, %cst_78 {dimension_numbers = #tpu.dot_dimension_numbers<[1], [0], [0], [1], [0, 0, 1, 1], [], []>} : vector<8x256xbf16>, vector<256x768xbf16>, vector<8x768xf32> -> vector<8x768xf32>
    %259 = vector.extract_strided_slice %255 {offsets = [0, 0], sizes = [8, 256], strides = [1, 1]} : vector<8x768xf32> to vector<8x256xf32>
    %260 = vector.extract_strided_slice %258 {offsets = [0, 0], sizes = [8, 256], strides = [1, 1]} : vector<8x768xf32> to vector<8x256xf32>
    %261 = arith.addf %259, %260 : vector<8x256xf32>
    %262 = arith.negf %261 : vector<8x256xf32>
    %263 = math.exp %262 : vector<8x256xf32>
    %cst_79 = arith.constant 1.000000e+00 : f32
    %264 = vector.broadcast %cst_79 : f32 to vector<8x256xf32>
    %265 = arith.addf %264, %263 : vector<8x256xf32>
    %266 = arith.divf %264, %265 : vector<8x256xf32>
    %267 = vector.extract_strided_slice %255 {offsets = [0, 256], sizes = [8, 256], strides = [1, 1]} : vector<8x768xf32> to vector<8x256xf32>
    %268 = vector.extract_strided_slice %258 {offsets = [0, 256], sizes = [8, 256], strides = [1, 1]} : vector<8x768xf32> to vector<8x256xf32>
    %269 = arith.addf %267, %268 : vector<8x256xf32>
    %270 = arith.negf %269 : vector<8x256xf32>
    %271 = math.exp %270 : vector<8x256xf32>
    %cst_80 = arith.constant 1.000000e+00 : f32
    %272 = vector.broadcast %cst_80 : f32 to vector<8x256xf32>
    %273 = arith.addf %272, %271 : vector<8x256xf32>
    %274 = arith.divf %272, %273 : vector<8x256xf32>
    %275 = vector.extract_strided_slice %255 {offsets = [0, 512], sizes = [8, 256], strides = [1, 1]} : vector<8x768xf32> to vector<8x256xf32>
    %276 = vector.extract_strided_slice %258 {offsets = [0, 512], sizes = [8, 256], strides = [1, 1]} : vector<8x768xf32> to vector<8x256xf32>
    %277 = arith.addf %276, %39 : vector<8x256xf32>
    %278 = arith.mulf %266, %277 : vector<8x256xf32>
    %279 = arith.addf %275, %278 : vector<8x256xf32>
    %280 = math.tanh %279 : vector<8x256xf32>
    %cst_81 = arith.constant 1.000000e+00 : f32
    %281 = vector.broadcast %cst_81 : f32 to vector<8x256xf32>
    %282 = arith.subf %281, %274 : vector<8x256xf32>
    %283 = arith.mulf %282, %280 : vector<8x256xf32>
    %284 = arith.mulf %274, %253 : vector<8x256xf32>
    %285 = arith.addf %283, %284 : vector<8x256xf32>
    %286 = arith.truncf %285 : vector<8x256xf32> to vector<8x256xbf16>
    %c0_82 = arith.constant 0 : index
    %c0_83 = arith.constant 0 : index
    %287 = vector.load %arg17[%c0_82, %c0_83] : memref<256x768xbf16, #tpu.memory_space<vmem>>, vector<256x768xbf16>
    %cst_84 = arith.constant dense<0.000000e+00> : vector<8x768xf32>
    %288 = tpu.matmul %286, %287, %cst_84 {dimension_numbers = #tpu.dot_dimension_numbers<[1], [0], [0], [1], [0, 0, 1, 1], [], []>} : vector<8x256xbf16>, vector<256x768xbf16>, vector<8x768xf32> -> vector<8x768xf32>
    %289 = arith.addf %288, %41 : vector<8x768xf32>
    %290 = arith.truncf %254 : vector<8x256xf32> to vector<8x256xbf16>
    %c0_85 = arith.constant 0 : index
    %c0_86 = arith.constant 0 : index
    %291 = vector.load %arg18[%c0_85, %c0_86] : memref<256x768xbf16, #tpu.memory_space<vmem>>, vector<256x768xbf16>
    %cst_87 = arith.constant dense<0.000000e+00> : vector<8x768xf32>
    %292 = tpu.matmul %290, %291, %cst_87 {dimension_numbers = #tpu.dot_dimension_numbers<[1], [0], [0], [1], [0, 0, 1, 1], [], []>} : vector<8x256xbf16>, vector<256x768xbf16>, vector<8x768xf32> -> vector<8x768xf32>
    %293 = vector.extract_strided_slice %289 {offsets = [0, 0], sizes = [8, 256], strides = [1, 1]} : vector<8x768xf32> to vector<8x256xf32>
    %294 = vector.extract_strided_slice %292 {offsets = [0, 0], sizes = [8, 256], strides = [1, 1]} : vector<8x768xf32> to vector<8x256xf32>
    %295 = arith.addf %293, %294 : vector<8x256xf32>
    %296 = arith.negf %295 : vector<8x256xf32>
    %297 = math.exp %296 : vector<8x256xf32>
    %cst_88 = arith.constant 1.000000e+00 : f32
    %298 = vector.broadcast %cst_88 : f32 to vector<8x256xf32>
    %299 = arith.addf %298, %297 : vector<8x256xf32>
    %300 = arith.divf %298, %299 : vector<8x256xf32>
    %301 = vector.extract_strided_slice %289 {offsets = [0, 256], sizes = [8, 256], strides = [1, 1]} : vector<8x768xf32> to vector<8x256xf32>
    %302 = vector.extract_strided_slice %292 {offsets = [0, 256], sizes = [8, 256], strides = [1, 1]} : vector<8x768xf32> to vector<8x256xf32>
    %303 = arith.addf %301, %302 : vector<8x256xf32>
    %304 = arith.negf %303 : vector<8x256xf32>
    %305 = math.exp %304 : vector<8x256xf32>
    %cst_89 = arith.constant 1.000000e+00 : f32
    %306 = vector.broadcast %cst_89 : f32 to vector<8x256xf32>
    %307 = arith.addf %306, %305 : vector<8x256xf32>
    %308 = arith.divf %306, %307 : vector<8x256xf32>
    %309 = vector.extract_strided_slice %289 {offsets = [0, 512], sizes = [8, 256], strides = [1, 1]} : vector<8x768xf32> to vector<8x256xf32>
    %310 = vector.extract_strided_slice %292 {offsets = [0, 512], sizes = [8, 256], strides = [1, 1]} : vector<8x768xf32> to vector<8x256xf32>
    %311 = arith.addf %310, %40 : vector<8x256xf32>
    %312 = arith.mulf %300, %311 : vector<8x256xf32>
    %313 = arith.addf %309, %312 : vector<8x256xf32>
    %314 = math.tanh %313 : vector<8x256xf32>
    %cst_90 = arith.constant 1.000000e+00 : f32
    %315 = vector.broadcast %cst_90 : f32 to vector<8x256xf32>
    %316 = arith.subf %315, %308 : vector<8x256xf32>
    %317 = arith.mulf %316, %314 : vector<8x256xf32>
    %318 = arith.mulf %308, %254 : vector<8x256xf32>
    %319 = arith.addf %317, %318 : vector<8x256xf32>
    %c3_i32_91 = arith.constant 3 : i32
    %320 = vector.broadcast %c3_i32_91 : i32 to vector<8x256xi32>
    %321 = arith.cmpi sgt, %38, %320 : vector<8x256xi32>
    %322 = arith.select %321, %285, %253 : vector<8x256xi1>, vector<8x256xf32>
    %323 = arith.select %321, %319, %254 : vector<8x256xi1>, vector<8x256xf32>
    %c32 = arith.constant 32 : index
    %c0_92 = arith.constant 0 : index
    %324 = vector.load %arg16[%c32, %c0_92] : memref<64x768xf32, #tpu.memory_space<vmem>>, vector<8x768xf32>
    %325 = arith.truncf %322 : vector<8x256xf32> to vector<8x256xbf16>
    %c0_93 = arith.constant 0 : index
    %c0_94 = arith.constant 0 : index
    %326 = vector.load %arg5[%c0_93, %c0_94] : memref<256x768xbf16, #tpu.memory_space<vmem>>, vector<256x768xbf16>
    %cst_95 = arith.constant dense<0.000000e+00> : vector<8x768xf32>
    %327 = tpu.matmul %325, %326, %cst_95 {dimension_numbers = #tpu.dot_dimension_numbers<[1], [0], [0], [1], [0, 0, 1, 1], [], []>} : vector<8x256xbf16>, vector<256x768xbf16>, vector<8x768xf32> -> vector<8x768xf32>
    %328 = vector.extract_strided_slice %324 {offsets = [0, 0], sizes = [8, 256], strides = [1, 1]} : vector<8x768xf32> to vector<8x256xf32>
    %329 = vector.extract_strided_slice %327 {offsets = [0, 0], sizes = [8, 256], strides = [1, 1]} : vector<8x768xf32> to vector<8x256xf32>
    %330 = arith.addf %328, %329 : vector<8x256xf32>
    %331 = arith.negf %330 : vector<8x256xf32>
    %332 = math.exp %331 : vector<8x256xf32>
    %cst_96 = arith.constant 1.000000e+00 : f32
    %333 = vector.broadcast %cst_96 : f32 to vector<8x256xf32>
    %334 = arith.addf %333, %332 : vector<8x256xf32>
    %335 = arith.divf %333, %334 : vector<8x256xf32>
    %336 = vector.extract_strided_slice %324 {offsets = [0, 256], sizes = [8, 256], strides = [1, 1]} : vector<8x768xf32> to vector<8x256xf32>
    %337 = vector.extract_strided_slice %327 {offsets = [0, 256], sizes = [8, 256], strides = [1, 1]} : vector<8x768xf32> to vector<8x256xf32>
    %338 = arith.addf %336, %337 : vector<8x256xf32>
    %339 = arith.negf %338 : vector<8x256xf32>
    %340 = math.exp %339 : vector<8x256xf32>
    %cst_97 = arith.constant 1.000000e+00 : f32
    %341 = vector.broadcast %cst_97 : f32 to vector<8x256xf32>
    %342 = arith.addf %341, %340 : vector<8x256xf32>
    %343 = arith.divf %341, %342 : vector<8x256xf32>
    %344 = vector.extract_strided_slice %324 {offsets = [0, 512], sizes = [8, 256], strides = [1, 1]} : vector<8x768xf32> to vector<8x256xf32>
    %345 = vector.extract_strided_slice %327 {offsets = [0, 512], sizes = [8, 256], strides = [1, 1]} : vector<8x768xf32> to vector<8x256xf32>
    %346 = arith.addf %345, %39 : vector<8x256xf32>
    %347 = arith.mulf %335, %346 : vector<8x256xf32>
    %348 = arith.addf %344, %347 : vector<8x256xf32>
    %349 = math.tanh %348 : vector<8x256xf32>
    %cst_98 = arith.constant 1.000000e+00 : f32
    %350 = vector.broadcast %cst_98 : f32 to vector<8x256xf32>
    %351 = arith.subf %350, %343 : vector<8x256xf32>
    %352 = arith.mulf %351, %349 : vector<8x256xf32>
    %353 = arith.mulf %343, %322 : vector<8x256xf32>
    %354 = arith.addf %352, %353 : vector<8x256xf32>
    %355 = arith.truncf %354 : vector<8x256xf32> to vector<8x256xbf16>
    %c0_99 = arith.constant 0 : index
    %c0_100 = arith.constant 0 : index
    %356 = vector.load %arg17[%c0_99, %c0_100] : memref<256x768xbf16, #tpu.memory_space<vmem>>, vector<256x768xbf16>
    %cst_101 = arith.constant dense<0.000000e+00> : vector<8x768xf32>
    %357 = tpu.matmul %355, %356, %cst_101 {dimension_numbers = #tpu.dot_dimension_numbers<[1], [0], [0], [1], [0, 0, 1, 1], [], []>} : vector<8x256xbf16>, vector<256x768xbf16>, vector<8x768xf32> -> vector<8x768xf32>
    %358 = arith.addf %357, %41 : vector<8x768xf32>
    %359 = arith.truncf %323 : vector<8x256xf32> to vector<8x256xbf16>
    %c0_102 = arith.constant 0 : index
    %c0_103 = arith.constant 0 : index
    %360 = vector.load %arg18[%c0_102, %c0_103] : memref<256x768xbf16, #tpu.memory_space<vmem>>, vector<256x768xbf16>
    %cst_104 = arith.constant dense<0.000000e+00> : vector<8x768xf32>
    %361 = tpu.matmul %359, %360, %cst_104 {dimension_numbers = #tpu.dot_dimension_numbers<[1], [0], [0], [1], [0, 0, 1, 1], [], []>} : vector<8x256xbf16>, vector<256x768xbf16>, vector<8x768xf32> -> vector<8x768xf32>
    %362 = vector.extract_strided_slice %358 {offsets = [0, 0], sizes = [8, 256], strides = [1, 1]} : vector<8x768xf32> to vector<8x256xf32>
    %363 = vector.extract_strided_slice %361 {offsets = [0, 0], sizes = [8, 256], strides = [1, 1]} : vector<8x768xf32> to vector<8x256xf32>
    %364 = arith.addf %362, %363 : vector<8x256xf32>
    %365 = arith.negf %364 : vector<8x256xf32>
    %366 = math.exp %365 : vector<8x256xf32>
    %cst_105 = arith.constant 1.000000e+00 : f32
    %367 = vector.broadcast %cst_105 : f32 to vector<8x256xf32>
    %368 = arith.addf %367, %366 : vector<8x256xf32>
    %369 = arith.divf %367, %368 : vector<8x256xf32>
    %370 = vector.extract_strided_slice %358 {offsets = [0, 256], sizes = [8, 256], strides = [1, 1]} : vector<8x768xf32> to vector<8x256xf32>
    %371 = vector.extract_strided_slice %361 {offsets = [0, 256], sizes = [8, 256], strides = [1, 1]} : vector<8x768xf32> to vector<8x256xf32>
    %372 = arith.addf %370, %371 : vector<8x256xf32>
    %373 = arith.negf %372 : vector<8x256xf32>
    %374 = math.exp %373 : vector<8x256xf32>
    %cst_106 = arith.constant 1.000000e+00 : f32
    %375 = vector.broadcast %cst_106 : f32 to vector<8x256xf32>
    %376 = arith.addf %375, %374 : vector<8x256xf32>
    %377 = arith.divf %375, %376 : vector<8x256xf32>
    %378 = vector.extract_strided_slice %358 {offsets = [0, 512], sizes = [8, 256], strides = [1, 1]} : vector<8x768xf32> to vector<8x256xf32>
    %379 = vector.extract_strided_slice %361 {offsets = [0, 512], sizes = [8, 256], strides = [1, 1]} : vector<8x768xf32> to vector<8x256xf32>
    %380 = arith.addf %379, %40 : vector<8x256xf32>
    %381 = arith.mulf %369, %380 : vector<8x256xf32>
    %382 = arith.addf %378, %381 : vector<8x256xf32>
    %383 = math.tanh %382 : vector<8x256xf32>
    %cst_107 = arith.constant 1.000000e+00 : f32
    %384 = vector.broadcast %cst_107 : f32 to vector<8x256xf32>
    %385 = arith.subf %384, %377 : vector<8x256xf32>
    %386 = arith.mulf %385, %383 : vector<8x256xf32>
    %387 = arith.mulf %377, %323 : vector<8x256xf32>
    %388 = arith.addf %386, %387 : vector<8x256xf32>
    %c4_i32 = arith.constant 4 : i32
    %389 = vector.broadcast %c4_i32 : i32 to vector<8x256xi32>
    %390 = arith.cmpi sgt, %38, %389 : vector<8x256xi32>
    %391 = arith.select %390, %354, %322 : vector<8x256xi1>, vector<8x256xf32>
    %392 = arith.select %390, %388, %323 : vector<8x256xi1>, vector<8x256xf32>
    %c40 = arith.constant 40 : index
    %c0_108 = arith.constant 0 : index
    %393 = vector.load %arg16[%c40, %c0_108] : memref<64x768xf32, #tpu.memory_space<vmem>>, vector<8x768xf32>
    %394 = arith.truncf %391 : vector<8x256xf32> to vector<8x256xbf16>
    %c0_109 = arith.constant 0 : index
    %c0_110 = arith.constant 0 : index
    %395 = vector.load %arg5[%c0_109, %c0_110] : memref<256x768xbf16, #tpu.memory_space<vmem>>, vector<256x768xbf16>
    %cst_111 = arith.constant dense<0.000000e+00> : vector<8x768xf32>
    %396 = tpu.matmul %394, %395, %cst_111 {dimension_numbers = #tpu.dot_dimension_numbers<[1], [0], [0], [1], [0, 0, 1, 1], [], []>} : vector<8x256xbf16>, vector<256x768xbf16>, vector<8x768xf32> -> vector<8x768xf32>
    %397 = vector.extract_strided_slice %393 {offsets = [0, 0], sizes = [8, 256], strides = [1, 1]} : vector<8x768xf32> to vector<8x256xf32>
    %398 = vector.extract_strided_slice %396 {offsets = [0, 0], sizes = [8, 256], strides = [1, 1]} : vector<8x768xf32> to vector<8x256xf32>
    %399 = arith.addf %397, %398 : vector<8x256xf32>
    %400 = arith.negf %399 : vector<8x256xf32>
    %401 = math.exp %400 : vector<8x256xf32>
    %cst_112 = arith.constant 1.000000e+00 : f32
    %402 = vector.broadcast %cst_112 : f32 to vector<8x256xf32>
    %403 = arith.addf %402, %401 : vector<8x256xf32>
    %404 = arith.divf %402, %403 : vector<8x256xf32>
    %405 = vector.extract_strided_slice %393 {offsets = [0, 256], sizes = [8, 256], strides = [1, 1]} : vector<8x768xf32> to vector<8x256xf32>
    %406 = vector.extract_strided_slice %396 {offsets = [0, 256], sizes = [8, 256], strides = [1, 1]} : vector<8x768xf32> to vector<8x256xf32>
    %407 = arith.addf %405, %406 : vector<8x256xf32>
    %408 = arith.negf %407 : vector<8x256xf32>
    %409 = math.exp %408 : vector<8x256xf32>
    %cst_113 = arith.constant 1.000000e+00 : f32
    %410 = vector.broadcast %cst_113 : f32 to vector<8x256xf32>
    %411 = arith.addf %410, %409 : vector<8x256xf32>
    %412 = arith.divf %410, %411 : vector<8x256xf32>
    %413 = vector.extract_strided_slice %393 {offsets = [0, 512], sizes = [8, 256], strides = [1, 1]} : vector<8x768xf32> to vector<8x256xf32>
    %414 = vector.extract_strided_slice %396 {offsets = [0, 512], sizes = [8, 256], strides = [1, 1]} : vector<8x768xf32> to vector<8x256xf32>
    %415 = arith.addf %414, %39 : vector<8x256xf32>
    %416 = arith.mulf %404, %415 : vector<8x256xf32>
    %417 = arith.addf %413, %416 : vector<8x256xf32>
    %418 = math.tanh %417 : vector<8x256xf32>
    %cst_114 = arith.constant 1.000000e+00 : f32
    %419 = vector.broadcast %cst_114 : f32 to vector<8x256xf32>
    %420 = arith.subf %419, %412 : vector<8x256xf32>
    %421 = arith.mulf %420, %418 : vector<8x256xf32>
    %422 = arith.mulf %412, %391 : vector<8x256xf32>
    %423 = arith.addf %421, %422 : vector<8x256xf32>
    %424 = arith.truncf %423 : vector<8x256xf32> to vector<8x256xbf16>
    %c0_115 = arith.constant 0 : index
    %c0_116 = arith.constant 0 : index
    %425 = vector.load %arg17[%c0_115, %c0_116] : memref<256x768xbf16, #tpu.memory_space<vmem>>, vector<256x768xbf16>
    %cst_117 = arith.constant dense<0.000000e+00> : vector<8x768xf32>
    %426 = tpu.matmul %424, %425, %cst_117 {dimension_numbers = #tpu.dot_dimension_numbers<[1], [0], [0], [1], [0, 0, 1, 1], [], []>} : vector<8x256xbf16>, vector<256x768xbf16>, vector<8x768xf32> -> vector<8x768xf32>
    %427 = arith.addf %426, %41 : vector<8x768xf32>
    %428 = arith.truncf %392 : vector<8x256xf32> to vector<8x256xbf16>
    %c0_118 = arith.constant 0 : index
    %c0_119 = arith.constant 0 : index
    %429 = vector.load %arg18[%c0_118, %c0_119] : memref<256x768xbf16, #tpu.memory_space<vmem>>, vector<256x768xbf16>
    %cst_120 = arith.constant dense<0.000000e+00> : vector<8x768xf32>
    %430 = tpu.matmul %428, %429, %cst_120 {dimension_numbers = #tpu.dot_dimension_numbers<[1], [0], [0], [1], [0, 0, 1, 1], [], []>} : vector<8x256xbf16>, vector<256x768xbf16>, vector<8x768xf32> -> vector<8x768xf32>
    %431 = vector.extract_strided_slice %427 {offsets = [0, 0], sizes = [8, 256], strides = [1, 1]} : vector<8x768xf32> to vector<8x256xf32>
    %432 = vector.extract_strided_slice %430 {offsets = [0, 0], sizes = [8, 256], strides = [1, 1]} : vector<8x768xf32> to vector<8x256xf32>
    %433 = arith.addf %431, %432 : vector<8x256xf32>
    %434 = arith.negf %433 : vector<8x256xf32>
    %435 = math.exp %434 : vector<8x256xf32>
    %cst_121 = arith.constant 1.000000e+00 : f32
    %436 = vector.broadcast %cst_121 : f32 to vector<8x256xf32>
    %437 = arith.addf %436, %435 : vector<8x256xf32>
    %438 = arith.divf %436, %437 : vector<8x256xf32>
    %439 = vector.extract_strided_slice %427 {offsets = [0, 256], sizes = [8, 256], strides = [1, 1]} : vector<8x768xf32> to vector<8x256xf32>
    %440 = vector.extract_strided_slice %430 {offsets = [0, 256], sizes = [8, 256], strides = [1, 1]} : vector<8x768xf32> to vector<8x256xf32>
    %441 = arith.addf %439, %440 : vector<8x256xf32>
    %442 = arith.negf %441 : vector<8x256xf32>
    %443 = math.exp %442 : vector<8x256xf32>
    %cst_122 = arith.constant 1.000000e+00 : f32
    %444 = vector.broadcast %cst_122 : f32 to vector<8x256xf32>
    %445 = arith.addf %444, %443 : vector<8x256xf32>
    %446 = arith.divf %444, %445 : vector<8x256xf32>
    %447 = vector.extract_strided_slice %427 {offsets = [0, 512], sizes = [8, 256], strides = [1, 1]} : vector<8x768xf32> to vector<8x256xf32>
    %448 = vector.extract_strided_slice %430 {offsets = [0, 512], sizes = [8, 256], strides = [1, 1]} : vector<8x768xf32> to vector<8x256xf32>
    %449 = arith.addf %448, %40 : vector<8x256xf32>
    %450 = arith.mulf %438, %449 : vector<8x256xf32>
    %451 = arith.addf %447, %450 : vector<8x256xf32>
    %452 = math.tanh %451 : vector<8x256xf32>
    %cst_123 = arith.constant 1.000000e+00 : f32
    %453 = vector.broadcast %cst_123 : f32 to vector<8x256xf32>
    %454 = arith.subf %453, %446 : vector<8x256xf32>
    %455 = arith.mulf %454, %452 : vector<8x256xf32>
    %456 = arith.mulf %446, %392 : vector<8x256xf32>
    %457 = arith.addf %455, %456 : vector<8x256xf32>
    %c5_i32 = arith.constant 5 : i32
    %458 = vector.broadcast %c5_i32 : i32 to vector<8x256xi32>
    %459 = arith.cmpi sgt, %38, %458 : vector<8x256xi32>
    %460 = arith.select %459, %423, %391 : vector<8x256xi1>, vector<8x256xf32>
    %461 = arith.select %459, %457, %392 : vector<8x256xi1>, vector<8x256xf32>
    %c48 = arith.constant 48 : index
    %c0_124 = arith.constant 0 : index
    %462 = vector.load %arg16[%c48, %c0_124] : memref<64x768xf32, #tpu.memory_space<vmem>>, vector<8x768xf32>
    %463 = arith.truncf %460 : vector<8x256xf32> to vector<8x256xbf16>
    %c0_125 = arith.constant 0 : index
    %c0_126 = arith.constant 0 : index
    %464 = vector.load %arg5[%c0_125, %c0_126] : memref<256x768xbf16, #tpu.memory_space<vmem>>, vector<256x768xbf16>
    %cst_127 = arith.constant dense<0.000000e+00> : vector<8x768xf32>
    %465 = tpu.matmul %463, %464, %cst_127 {dimension_numbers = #tpu.dot_dimension_numbers<[1], [0], [0], [1], [0, 0, 1, 1], [], []>} : vector<8x256xbf16>, vector<256x768xbf16>, vector<8x768xf32> -> vector<8x768xf32>
    %466 = vector.extract_strided_slice %462 {offsets = [0, 0], sizes = [8, 256], strides = [1, 1]} : vector<8x768xf32> to vector<8x256xf32>
    %467 = vector.extract_strided_slice %465 {offsets = [0, 0], sizes = [8, 256], strides = [1, 1]} : vector<8x768xf32> to vector<8x256xf32>
    %468 = arith.addf %466, %467 : vector<8x256xf32>
    %469 = arith.negf %468 : vector<8x256xf32>
    %470 = math.exp %469 : vector<8x256xf32>
    %cst_128 = arith.constant 1.000000e+00 : f32
    %471 = vector.broadcast %cst_128 : f32 to vector<8x256xf32>
    %472 = arith.addf %471, %470 : vector<8x256xf32>
    %473 = arith.divf %471, %472 : vector<8x256xf32>
    %474 = vector.extract_strided_slice %462 {offsets = [0, 256], sizes = [8, 256], strides = [1, 1]} : vector<8x768xf32> to vector<8x256xf32>
    %475 = vector.extract_strided_slice %465 {offsets = [0, 256], sizes = [8, 256], strides = [1, 1]} : vector<8x768xf32> to vector<8x256xf32>
    %476 = arith.addf %474, %475 : vector<8x256xf32>
    %477 = arith.negf %476 : vector<8x256xf32>
    %478 = math.exp %477 : vector<8x256xf32>
    %cst_129 = arith.constant 1.000000e+00 : f32
    %479 = vector.broadcast %cst_129 : f32 to vector<8x256xf32>
    %480 = arith.addf %479, %478 : vector<8x256xf32>
    %481 = arith.divf %479, %480 : vector<8x256xf32>
    %482 = vector.extract_strided_slice %462 {offsets = [0, 512], sizes = [8, 256], strides = [1, 1]} : vector<8x768xf32> to vector<8x256xf32>
    %483 = vector.extract_strided_slice %465 {offsets = [0, 512], sizes = [8, 256], strides = [1, 1]} : vector<8x768xf32> to vector<8x256xf32>
    %484 = arith.addf %483, %39 : vector<8x256xf32>
    %485 = arith.mulf %473, %484 : vector<8x256xf32>
    %486 = arith.addf %482, %485 : vector<8x256xf32>
    %487 = math.tanh %486 : vector<8x256xf32>
    %cst_130 = arith.constant 1.000000e+00 : f32
    %488 = vector.broadcast %cst_130 : f32 to vector<8x256xf32>
    %489 = arith.subf %488, %481 : vector<8x256xf32>
    %490 = arith.mulf %489, %487 : vector<8x256xf32>
    %491 = arith.mulf %481, %460 : vector<8x256xf32>
    %492 = arith.addf %490, %491 : vector<8x256xf32>
    %493 = arith.truncf %492 : vector<8x256xf32> to vector<8x256xbf16>
    %c0_131 = arith.constant 0 : index
    %c0_132 = arith.constant 0 : index
    %494 = vector.load %arg17[%c0_131, %c0_132] : memref<256x768xbf16, #tpu.memory_space<vmem>>, vector<256x768xbf16>
    %cst_133 = arith.constant dense<0.000000e+00> : vector<8x768xf32>
    %495 = tpu.matmul %493, %494, %cst_133 {dimension_numbers = #tpu.dot_dimension_numbers<[1], [0], [0], [1], [0, 0, 1, 1], [], []>} : vector<8x256xbf16>, vector<256x768xbf16>, vector<8x768xf32> -> vector<8x768xf32>
    %496 = arith.addf %495, %41 : vector<8x768xf32>
    %497 = arith.truncf %461 : vector<8x256xf32> to vector<8x256xbf16>
    %c0_134 = arith.constant 0 : index
    %c0_135 = arith.constant 0 : index
    %498 = vector.load %arg18[%c0_134, %c0_135] : memref<256x768xbf16, #tpu.memory_space<vmem>>, vector<256x768xbf16>
    %cst_136 = arith.constant dense<0.000000e+00> : vector<8x768xf32>
    %499 = tpu.matmul %497, %498, %cst_136 {dimension_numbers = #tpu.dot_dimension_numbers<[1], [0], [0], [1], [0, 0, 1, 1], [], []>} : vector<8x256xbf16>, vector<256x768xbf16>, vector<8x768xf32> -> vector<8x768xf32>
    %500 = vector.extract_strided_slice %496 {offsets = [0, 0], sizes = [8, 256], strides = [1, 1]} : vector<8x768xf32> to vector<8x256xf32>
    %501 = vector.extract_strided_slice %499 {offsets = [0, 0], sizes = [8, 256], strides = [1, 1]} : vector<8x768xf32> to vector<8x256xf32>
    %502 = arith.addf %500, %501 : vector<8x256xf32>
    %503 = arith.negf %502 : vector<8x256xf32>
    %504 = math.exp %503 : vector<8x256xf32>
    %cst_137 = arith.constant 1.000000e+00 : f32
    %505 = vector.broadcast %cst_137 : f32 to vector<8x256xf32>
    %506 = arith.addf %505, %504 : vector<8x256xf32>
    %507 = arith.divf %505, %506 : vector<8x256xf32>
    %508 = vector.extract_strided_slice %496 {offsets = [0, 256], sizes = [8, 256], strides = [1, 1]} : vector<8x768xf32> to vector<8x256xf32>
    %509 = vector.extract_strided_slice %499 {offsets = [0, 256], sizes = [8, 256], strides = [1, 1]} : vector<8x768xf32> to vector<8x256xf32>
    %510 = arith.addf %508, %509 : vector<8x256xf32>
    %511 = arith.negf %510 : vector<8x256xf32>
    %512 = math.exp %511 : vector<8x256xf32>
    %cst_138 = arith.constant 1.000000e+00 : f32
    %513 = vector.broadcast %cst_138 : f32 to vector<8x256xf32>
    %514 = arith.addf %513, %512 : vector<8x256xf32>
    %515 = arith.divf %513, %514 : vector<8x256xf32>
    %516 = vector.extract_strided_slice %496 {offsets = [0, 512], sizes = [8, 256], strides = [1, 1]} : vector<8x768xf32> to vector<8x256xf32>
    %517 = vector.extract_strided_slice %499 {offsets = [0, 512], sizes = [8, 256], strides = [1, 1]} : vector<8x768xf32> to vector<8x256xf32>
    %518 = arith.addf %517, %40 : vector<8x256xf32>
    %519 = arith.mulf %507, %518 : vector<8x256xf32>
    %520 = arith.addf %516, %519 : vector<8x256xf32>
    %521 = math.tanh %520 : vector<8x256xf32>
    %cst_139 = arith.constant 1.000000e+00 : f32
    %522 = vector.broadcast %cst_139 : f32 to vector<8x256xf32>
    %523 = arith.subf %522, %515 : vector<8x256xf32>
    %524 = arith.mulf %523, %521 : vector<8x256xf32>
    %525 = arith.mulf %515, %461 : vector<8x256xf32>
    %526 = arith.addf %524, %525 : vector<8x256xf32>
    %c6_i32 = arith.constant 6 : i32
    %527 = vector.broadcast %c6_i32 : i32 to vector<8x256xi32>
    %528 = arith.cmpi sgt, %38, %527 : vector<8x256xi32>
    %529 = arith.select %528, %492, %460 : vector<8x256xi1>, vector<8x256xf32>
    %530 = arith.select %528, %526, %461 : vector<8x256xi1>, vector<8x256xf32>
    %c56 = arith.constant 56 : index
    %c0_140 = arith.constant 0 : index
    %531 = vector.load %arg16[%c56, %c0_140] : memref<64x768xf32, #tpu.memory_space<vmem>>, vector<8x768xf32>
    %532 = arith.truncf %529 : vector<8x256xf32> to vector<8x256xbf16>
    %c0_141 = arith.constant 0 : index
    %c0_142 = arith.constant 0 : index
    %533 = vector.load %arg5[%c0_141, %c0_142] : memref<256x768xbf16, #tpu.memory_space<vmem>>, vector<256x768xbf16>
    %cst_143 = arith.constant dense<0.000000e+00> : vector<8x768xf32>
    %534 = tpu.matmul %532, %533, %cst_143 {dimension_numbers = #tpu.dot_dimension_numbers<[1], [0], [0], [1], [0, 0, 1, 1], [], []>} : vector<8x256xbf16>, vector<256x768xbf16>, vector<8x768xf32> -> vector<8x768xf32>
    %535 = vector.extract_strided_slice %531 {offsets = [0, 0], sizes = [8, 256], strides = [1, 1]} : vector<8x768xf32> to vector<8x256xf32>
    %536 = vector.extract_strided_slice %534 {offsets = [0, 0], sizes = [8, 256], strides = [1, 1]} : vector<8x768xf32> to vector<8x256xf32>
    %537 = arith.addf %535, %536 : vector<8x256xf32>
    %538 = arith.negf %537 : vector<8x256xf32>
    %539 = math.exp %538 : vector<8x256xf32>
    %cst_144 = arith.constant 1.000000e+00 : f32
    %540 = vector.broadcast %cst_144 : f32 to vector<8x256xf32>
    %541 = arith.addf %540, %539 : vector<8x256xf32>
    %542 = arith.divf %540, %541 : vector<8x256xf32>
    %543 = vector.extract_strided_slice %531 {offsets = [0, 256], sizes = [8, 256], strides = [1, 1]} : vector<8x768xf32> to vector<8x256xf32>
    %544 = vector.extract_strided_slice %534 {offsets = [0, 256], sizes = [8, 256], strides = [1, 1]} : vector<8x768xf32> to vector<8x256xf32>
    %545 = arith.addf %543, %544 : vector<8x256xf32>
    %546 = arith.negf %545 : vector<8x256xf32>
    %547 = math.exp %546 : vector<8x256xf32>
    %cst_145 = arith.constant 1.000000e+00 : f32
    %548 = vector.broadcast %cst_145 : f32 to vector<8x256xf32>
    %549 = arith.addf %548, %547 : vector<8x256xf32>
    %550 = arith.divf %548, %549 : vector<8x256xf32>
    %551 = vector.extract_strided_slice %531 {offsets = [0, 512], sizes = [8, 256], strides = [1, 1]} : vector<8x768xf32> to vector<8x256xf32>
    %552 = vector.extract_strided_slice %534 {offsets = [0, 512], sizes = [8, 256], strides = [1, 1]} : vector<8x768xf32> to vector<8x256xf32>
    %553 = arith.addf %552, %39 : vector<8x256xf32>
    %554 = arith.mulf %542, %553 : vector<8x256xf32>
    %555 = arith.addf %551, %554 : vector<8x256xf32>
    %556 = math.tanh %555 : vector<8x256xf32>
    %cst_146 = arith.constant 1.000000e+00 : f32
    %557 = vector.broadcast %cst_146 : f32 to vector<8x256xf32>
    %558 = arith.subf %557, %550 : vector<8x256xf32>
    %559 = arith.mulf %558, %556 : vector<8x256xf32>
    %560 = arith.mulf %550, %529 : vector<8x256xf32>
    %561 = arith.addf %559, %560 : vector<8x256xf32>
    %562 = arith.truncf %561 : vector<8x256xf32> to vector<8x256xbf16>
    %c0_147 = arith.constant 0 : index
    %c0_148 = arith.constant 0 : index
    %563 = vector.load %arg17[%c0_147, %c0_148] : memref<256x768xbf16, #tpu.memory_space<vmem>>, vector<256x768xbf16>
    %cst_149 = arith.constant dense<0.000000e+00> : vector<8x768xf32>
    %564 = tpu.matmul %562, %563, %cst_149 {dimension_numbers = #tpu.dot_dimension_numbers<[1], [0], [0], [1], [0, 0, 1, 1], [], []>} : vector<8x256xbf16>, vector<256x768xbf16>, vector<8x768xf32> -> vector<8x768xf32>
    %565 = arith.addf %564, %41 : vector<8x768xf32>
    %566 = arith.truncf %530 : vector<8x256xf32> to vector<8x256xbf16>
    %c0_150 = arith.constant 0 : index
    %c0_151 = arith.constant 0 : index
    %567 = vector.load %arg18[%c0_150, %c0_151] : memref<256x768xbf16, #tpu.memory_space<vmem>>, vector<256x768xbf16>
    %cst_152 = arith.constant dense<0.000000e+00> : vector<8x768xf32>
    %568 = tpu.matmul %566, %567, %cst_152 {dimension_numbers = #tpu.dot_dimension_numbers<[1], [0], [0], [1], [0, 0, 1, 1], [], []>} : vector<8x256xbf16>, vector<256x768xbf16>, vector<8x768xf32> -> vector<8x768xf32>
    %569 = vector.extract_strided_slice %565 {offsets = [0, 0], sizes = [8, 256], strides = [1, 1]} : vector<8x768xf32> to vector<8x256xf32>
    %570 = vector.extract_strided_slice %568 {offsets = [0, 0], sizes = [8, 256], strides = [1, 1]} : vector<8x768xf32> to vector<8x256xf32>
    %571 = arith.addf %569, %570 : vector<8x256xf32>
    %572 = arith.negf %571 : vector<8x256xf32>
    %573 = math.exp %572 : vector<8x256xf32>
    %cst_153 = arith.constant 1.000000e+00 : f32
    %574 = vector.broadcast %cst_153 : f32 to vector<8x256xf32>
    %575 = arith.addf %574, %573 : vector<8x256xf32>
    %576 = arith.divf %574, %575 : vector<8x256xf32>
    %577 = vector.extract_strided_slice %565 {offsets = [0, 256], sizes = [8, 256], strides = [1, 1]} : vector<8x768xf32> to vector<8x256xf32>
    %578 = vector.extract_strided_slice %568 {offsets = [0, 256], sizes = [8, 256], strides = [1, 1]} : vector<8x768xf32> to vector<8x256xf32>
    %579 = arith.addf %577, %578 : vector<8x256xf32>
    %580 = arith.negf %579 : vector<8x256xf32>
    %581 = math.exp %580 : vector<8x256xf32>
    %cst_154 = arith.constant 1.000000e+00 : f32
    %582 = vector.broadcast %cst_154 : f32 to vector<8x256xf32>
    %583 = arith.addf %582, %581 : vector<8x256xf32>
    %584 = arith.divf %582, %583 : vector<8x256xf32>
    %585 = vector.extract_strided_slice %565 {offsets = [0, 512], sizes = [8, 256], strides = [1, 1]} : vector<8x768xf32> to vector<8x256xf32>
    %586 = vector.extract_strided_slice %568 {offsets = [0, 512], sizes = [8, 256], strides = [1, 1]} : vector<8x768xf32> to vector<8x256xf32>
    %587 = arith.addf %586, %40 : vector<8x256xf32>
    %588 = arith.mulf %576, %587 : vector<8x256xf32>
    %589 = arith.addf %585, %588 : vector<8x256xf32>
    %590 = math.tanh %589 : vector<8x256xf32>
    %cst_155 = arith.constant 1.000000e+00 : f32
    %591 = vector.broadcast %cst_155 : f32 to vector<8x256xf32>
    %592 = arith.subf %591, %584 : vector<8x256xf32>
    %593 = arith.mulf %592, %590 : vector<8x256xf32>
    %594 = arith.mulf %584, %530 : vector<8x256xf32>
    %595 = arith.addf %593, %594 : vector<8x256xf32>
    %c7_i32 = arith.constant 7 : i32
    %596 = vector.broadcast %c7_i32 : i32 to vector<8x256xi32>
    %597 = arith.cmpi sgt, %38, %596 : vector<8x256xi32>
    %598 = arith.select %597, %595, %530 : vector<8x256xi1>, vector<8x256xf32>
    %c2_i32_156 = arith.constant 2 : i32
    %599 = tpu.memref_slice %arg21[%c2_i32_156] : memref<4x!tpu.dma_semaphore, #tpu.memory_space<semaphore_mem>> -> memref<1x!tpu.dma_semaphore, #tpu.memory_space<semaphore_mem>>
    %600 = tpu.memref_squeeze %599 : memref<1x!tpu.dma_semaphore, #tpu.memory_space<semaphore_mem>> -> memref<!tpu.dma_semaphore, #tpu.memory_space<semaphore_mem>>
    tpu.wait_dma2 semaphore(%600 : memref<!tpu.dma_semaphore, #tpu.memory_space<semaphore_mem>>) src(%arg13 : memref<256x256xbf16, #tpu.memory_space<any>>) dst(%arg19 : memref<256x256xbf16, #tpu.memory_space<vmem>>)
    %c3_i32_157 = arith.constant 3 : i32
    %601 = tpu.memref_slice %arg21[%c3_i32_157] : memref<4x!tpu.dma_semaphore, #tpu.memory_space<semaphore_mem>> -> memref<1x!tpu.dma_semaphore, #tpu.memory_space<semaphore_mem>>
    %602 = tpu.memref_squeeze %601 : memref<1x!tpu.dma_semaphore, #tpu.memory_space<semaphore_mem>> -> memref<!tpu.dma_semaphore, #tpu.memory_space<semaphore_mem>>
    tpu.wait_dma2 semaphore(%602 : memref<!tpu.dma_semaphore, #tpu.memory_space<semaphore_mem>>) src(%arg14 : memref<256x48xbf16, #tpu.memory_space<any>>) dst(%arg20 : memref<256x48xbf16, #tpu.memory_space<vmem>>)
    %603 = arith.truncf %598 : vector<8x256xf32> to vector<8x256xbf16>
    %c0_158 = arith.constant 0 : index
    %c0_159 = arith.constant 0 : index
    %604 = vector.load %arg19[%c0_158, %c0_159] : memref<256x256xbf16, #tpu.memory_space<vmem>>, vector<256x256xbf16>
    %cst_160 = arith.constant dense<0.000000e+00> : vector<8x256xf32>
    %605 = tpu.matmul %603, %604, %cst_160 {dimension_numbers = #tpu.dot_dimension_numbers<[1], [0], [0], [1], [0, 0, 1, 1], [], []>} : vector<8x256xbf16>, vector<256x256xbf16>, vector<8x256xf32> -> vector<8x256xf32>
    %c0_161 = arith.constant 0 : index
    %c0_162 = arith.constant 0 : index
    %606 = vector.load %arg9[%c0_161, %c0_162] : memref<1x256xf32, #tpu.memory_space<vmem>>, vector<1x256xf32>
    %607 = vector.broadcast %606 : vector<1x256xf32> to vector<8x256xf32>
    %608 = arith.addf %605, %607 : vector<8x256xf32>
    %cst_163 = arith.constant 0.000000e+00 : f32
    %609 = vector.broadcast %cst_163 : f32 to vector<8x256xf32>
    %610 = arith.cmpf ogt, %608, %609 : vector<8x256xf32>
    %611 = math.exp %608 : vector<8x256xf32>
    %cst_164 = arith.constant 1.000000e+00 : f32
    %612 = vector.broadcast %cst_164 : f32 to vector<8x256xf32>
    %613 = arith.subf %611, %612 : vector<8x256xf32>
    %cst_165 = arith.constant 1.67326319 : f32
    %614 = vector.broadcast %cst_165 : f32 to vector<8x256xf32>
    %615 = arith.mulf %614, %613 : vector<8x256xf32>
    %616 = arith.select %610, %608, %615 : vector<8x256xi1>, vector<8x256xf32>
    %cst_166 = arith.constant 1.05070102 : f32
    %617 = vector.broadcast %cst_166 : f32 to vector<8x256xf32>
    %618 = arith.mulf %617, %616 : vector<8x256xf32>
    %619 = arith.truncf %618 : vector<8x256xf32> to vector<8x256xbf16>
    %c0_167 = arith.constant 0 : index
    %c0_168 = arith.constant 0 : index
    %620 = vector.load %arg20[%c0_167, %c0_168] : memref<256x48xbf16, #tpu.memory_space<vmem>>, vector<256x48xbf16>
    %cst_169 = arith.constant dense<0.000000e+00> : vector<8x48xf32>
    %621 = tpu.matmul %619, %620, %cst_169 {dimension_numbers = #tpu.dot_dimension_numbers<[1], [0], [0], [1], [0, 0, 1, 1], [], []>} : vector<8x256xbf16>, vector<256x48xbf16>, vector<8x48xf32> -> vector<8x48xf32>
    %c0_170 = arith.constant 0 : index
    %c0_171 = arith.constant 0 : index
    %622 = vector.load %arg10[%c0_170, %c0_171] : memref<1x48xf32, #tpu.memory_space<vmem>>, vector<1x48xf32>
    %623 = vector.broadcast %622 : vector<1x48xf32> to vector<8x48xf32>
    %624 = arith.addf %621, %623 : vector<8x48xf32>
    %cst_172 = arith.constant dense<0xFF800000> : vector<8xf32>
    %625 = vector.multi_reduction <maximumf>, %624, %cst_172 [1] : vector<8x48xf32> to vector<8xf32>
    %626 = vector.shape_cast %625 : vector<8xf32> to vector<8x1xf32>
    %627 = vector.broadcast %626 : vector<8x1xf32> to vector<8x48xf32>
    %628 = arith.subf %624, %627 : vector<8x48xf32>
    %629 = math.exp %628 : vector<8x48xf32>
    %cst_173 = arith.constant dense<0.000000e+00> : vector<8xf32>
    %630 = vector.multi_reduction <add>, %629, %cst_173 [1] : vector<8x48xf32> to vector<8xf32>
    %631 = vector.shape_cast %630 : vector<8xf32> to vector<8x1xf32>
    %632 = math.log %631 : vector<8x1xf32>
    %633 = arith.addf %626, %632 : vector<8x1xf32>
    %634 = vector.broadcast %633 : vector<8x1xf32> to vector<8x48xf32>
    %635 = arith.subf %624, %634 : vector<8x48xf32>
    %c0_174 = arith.constant 0 : index
    %c0_175 = arith.constant 0 : index
    %636 = vector.load %arg15[%c0_174, %c0_175] : memref<8x48xf32, #tpu.memory_space<vmem>>, vector<8x48xf32>
    tpu.vector_store %arg15[%c0_174, %c0_175], %635 {strides = array<i32>} : memref<8x48xf32, #tpu.memory_space<vmem>>, vector<8x48xf32>,
    return
  }
}

</mosaic_0001>

<llo_original>
// kernel: transfered_classifier_forward.1
$region0: #{transfered_classifier_forward.1}
  #allocation0 [shape = 'u32[]', space=smem, size = 0x4, offset = 0x4, fixed_abs, tag = 'smem constant byte address 0x4 - core index']
  #allocation1 [shape = 'u32[144,128]{1,0:T(1,128)}', space=vmem, size = 0x12000, scoped, tag = 'internal scratch']
  #allocation2 [shape = 'f32[64,768]{1,0:T(8,128)}', space=vmem, size = 0x30000, scoped, tag = 'scratch operand']
  #allocation3 [shape = 'bf16[256,768]{1,0:T(16,128)(2,1)}', space=vmem, size = 0x60000, scoped, tag = 'scratch operand']
  #allocation4 [shape = 'bf16[256,768]{1,0:T(16,128)(2,1)}', space=vmem, size = 0x60000, scoped, tag = 'scratch operand']
  #allocation5 [shape = 'bf16[256,256]{1,0:T(16,128)(2,1)}', space=vmem, size = 0x20000, scoped, tag = 'scratch operand']
  #allocation6 [shape = 'bf16[256,48]{1,0:T(16,128)(2,1)}', space=vmem, size = 0x10000, scoped, tag = 'scratch operand']
  #allocation7 [shape = 's32[4]{0}', space=sflag, size = 0x10, scoped, tag = 'scratch operand']
  #allocation17 [shape = 's32[]', space=sflag, size = 0x4, offset = 0, fixed_abs, tag = 'sflag constant byte address 0x0 - dummy sync flag']
  #allocation19 [shape = 's32[]', space=sflag, size = 0x4, offset = 0, fixed_abs, tag = 'sflag constant byte address 0x0 - dummy sync flag']
  #allocation21 [shape = 's32[]', space=sflag, size = 0x4, offset = 0, fixed_abs, tag = 'sflag constant byte address 0x0 - dummy sync flag']
  #allocation22 [shape = 's32[]', space=sflag, size = 0x4, offset = 0, fixed_abs, tag = 'sflag constant byte address 0x0 - dummy sync flag']
  %s0 = inlined_call_operand.vmem [shape: s32[64,1], index: 0, kind: input, shape index: {}]
  %s1 = inlined_call_operand.vmem [shape: f32[64,2], index: 1, kind: input, shape index: {}]
  %s2 = inlined_call_operand.vmem [shape: s32[8,256], index: 2, kind: input, shape index: {}]
  %s3 = inlined_call_operand.hbm [shape: bf16[128,768], index: 3, kind: input, shape index: {}]
  %s4 = inlined_call_operand.vmem [shape: f32[1,768], index: 4, kind: input, shape index: {}]
  %s5 = inlined_call_operand.hbm [shape: bf16[256,768], index: 5, kind: input, shape index: {}]
  %s6 = inlined_call_operand.vmem [shape: f32[8,256], index: 6, kind: input, shape index: {}]
  %s7 = inlined_call_operand.vmem [shape: f32[8,768], index: 7, kind: input, shape index: {}]
  %s8 = inlined_call_operand.vmem [shape: f32[8,256], index: 8, kind: input, shape index: {}]
  %s9 = inlined_call_operand.hbm [shape: f32[1,256], index: 9, kind: input, shape index: {}]
  %s10 = inlined_call_operand.hbm [shape: f32[1,48], index: 10, kind: input, shape index: {}]
  %s11 = inlined_call_operand.hbm [shape: bf16[256,768], index: 11, kind: input, shape index: {}]
  %s12 = inlined_call_operand.hbm [shape: bf16[256,768], index: 12, kind: input, shape index: {}]
  %s13 = inlined_call_operand.vmem [shape: bf16[256,256], index: 13, kind: input, shape index: {}]
  %s14 = inlined_call_operand.vmem [shape: bf16[256,48], index: 14, kind: input, shape index: {}]
  %s15 = inlined_call_operand.hbm [shape: f32[8,48], index: 15, kind: output, shape index: {}]
  %s16 = sld [smem:[#allocation0]]
  $region141: #{transfered_classifier_forward.1} parent=0
    _
  %s18 = ssub.s32 1, %s16
  %s19 = scalar_select 0, %s18, %s16
  $region1: #{transfered_classifier_forward.1} parent=0
    #allocation8 [shape = 'u8[196608]{0}', space=vmem, size = 0x30000, scoped, tag = 'input window, operand 3, single buffered']
    #allocation9 [shape = 's32[1]{0}', space=sflag, size = 0x4, scoped, tag = 'scoped memory for transfered_classifier_forward.1']
    #allocation10 [shape = 's32[1]{0}', space=sflag, size = 0x4, scoped, tag = 'scoped memory for transfered_classifier_forward.1']
    #allocation11 [shape = 'u8[393216]{0}', space=vmem, size = 0x60000, scoped, tag = 'input window, operand 5, single buffered']
    #allocation12 [shape = 's32[1]{0}', space=sflag, size = 0x4, scoped, tag = 'scoped memory for transfered_classifier_forward.1']
    #allocation13 [shape = 'u8[1024]{0}', space=vmem, size = 0x400, scoped, tag = 'input window, operand 9, single buffered']
    #allocation14 [shape = 'u8[512]{0}', space=vmem, size = 0x400, scoped, tag = 'input window, operand 10, single buffered']
    #allocation15 [shape = 's32[1]{0}', space=sflag, size = 0x4, scoped, tag = 'scoped memory for transfered_classifier_forward.1']
    #allocation16 [shape = 'u8[4096]{0}', space=vmem, size = 0x1000, scoped, tag = 'output window, operand 0, single buffered']
    #allocation18 [shape = 'u32[9]{0}', space=smem, size = 0x24, scoped, tag = 'DMA stride descriptor']
    #allocation20 [shape = 'u32[9]{0}', space=smem, size = 0x24, scoped, tag = 'DMA stride descriptor']
    %20 = vsyncpa [#allocation9], 0
    %21 = vsyncpa [#allocation12], 0
    %22 = vsyncpa [#allocation15], 0
    %23 = vsyncpa [#allocation10], 0
    // Predicated region
    $region2: #{transfered_classifier_forward.1} parent=1 // pred_check
      _
    $region3: #{transfered_classifier_forward.1} parent=1 // pred_check_branch
      %25 = sbr.rel (0) target = $region5
    $region4: #{transfered_classifier_forward.1} parent=1 // pred_region
      _
    $region5: #{transfered_classifier_forward.1} parent=1 // pred_fallthru
      _
    // Predicated region
    $region6: #{transfered_classifier_forward.1} parent=1 // pred_check
      _
    $region7: #{transfered_classifier_forward.1} parent=1 // pred_check_branch
      %27 = sbr.rel (0) target = $region9
    $region8: #{transfered_classifier_forward.1} parent=1 // pred_region
      _
    $region9: #{transfered_classifier_forward.1} parent=1 // pred_fallthru
      _
    // Predicated region
    $region10: #{transfered_classifier_forward.1} parent=1 // pred_check
      _
    $region11: #{transfered_classifier_forward.1} parent=1 // pred_check_branch
      %29 = sbr.rel (0) target = $region13
    $region12: #{transfered_classifier_forward.1} parent=1 // pred_region
      _
    $region13: #{transfered_classifier_forward.1} parent=1 // pred_fallthru
      _
    // Predicated region
    $region14: #{transfered_classifier_forward.1} parent=1 // pred_check
      _
    $region15: #{transfered_classifier_forward.1} parent=1 // pred_check_branch
      %31 = sbr.rel (0) target = $region17
    $region16: #{transfered_classifier_forward.1} parent=1 // pred_region
      %s33 = ssub.s32 6144, 6144
      %34 = vsyncadd [#allocation9], %s33
      %s35 = sshll.u32 [#allocation8], 4
      %s36 = int_to_ptr.vmem [resolvable:$true] %s35
      %41 = dma.hbm_to_vmem [thread:$0]  %s3, 6144, %s36, [#allocation9], 384, 384, 24
    $region17: #{transfered_classifier_forward.1} parent=1 // pred_fallthru
      _
    // Predicated region
    $region18: #{transfered_classifier_forward.1} parent=1 // pred_check
      _
    $region19: #{transfered_classifier_forward.1} parent=1 // pred_check_branch
      %43 = sbr.rel (0) target = $region21
    $region20: #{transfered_classifier_forward.1} parent=1 // pred_region
      _
    $region21: #{transfered_classifier_forward.1} parent=1 // pred_fallthru
      _
    // Predicated region
    $region22: #{transfered_classifier_forward.1} parent=1 // pred_check
      _
    $region23: #{transfered_classifier_forward.1} parent=1 // pred_check_branch
      %45 = sbr.rel (0) target = $region25
    $region24: #{transfered_classifier_forward.1} parent=1 // pred_region
      %s47 = ssub.s32 12288, 12288
      %48 = vsyncadd [#allocation12], %s47
      %s49 = sshll.u32 [#allocation11], 4
      %s50 = int_to_ptr.vmem [resolvable:$true] %s49
      %55 = dma.hbm_to_vmem [thread:$0]  %s5, 12288, %s50, [#allocation12], 384, 384, 24
    $region25: #{transfered_classifier_forward.1} parent=1 // pred_fallthru
      _
    // Predicated region
    $region26: #{transfered_classifier_forward.1} parent=1 // pred_check
      _
    $region27: #{transfered_classifier_forward.1} parent=1 // pred_check_branch
      %57 = sbr.rel (0) target = $region29
    $region28: #{transfered_classifier_forward.1} parent=1 // pred_region
      _
    $region29: #{transfered_classifier_forward.1} parent=1 // pred_fallthru
      _
    // Predicated region
    $region30: #{transfered_classifier_forward.1} parent=1 // pred_check
      _
    $region31: #{transfered_classifier_forward.1} parent=1 // pred_check_branch
      %59 = sbr.rel (0) target = $region33
    $region32: #{transfered_classifier_forward.1} parent=1 // pred_region
      _
    $region33: #{transfered_classifier_forward.1} parent=1 // pred_fallthru
      _
    // Predicated region
    $region34: #{transfered_classifier_forward.1} parent=1 // pred_check
      _
    $region35: #{transfered_classifier_forward.1} parent=1 // pred_check_branch
      %61 = sbr.rel (0) target = $region37
    $region36: #{transfered_classifier_forward.1} parent=1 // pred_region
      _
    $region37: #{transfered_classifier_forward.1} parent=1 // pred_fallthru
      _
    // Predicated region
    $region38: #{transfered_classifier_forward.1} parent=1 // pred_check
      _
    $region39: #{transfered_classifier_forward.1} parent=1 // pred_check_branch
      %63 = sbr.rel (0) target = $region41
    $region40: #{transfered_classifier_forward.1} parent=1 // pred_region
      %s65 = ssub.s32 32, 32
      %66 = vsyncadd [#allocation12], %s65
      %s68 = sshll.u32 [#allocation13], 4
      %s69 = int_to_ptr.vmem [resolvable:$true] %s68
      %71 = dma.hbm_to_vmem [thread:$0]  %s9, 32, %s69, [#allocation12]
    $region41: #{transfered_classifier_forward.1} parent=1 // pred_fallthru
      _
    // Predicated region
    $region42: #{transfered_classifier_forward.1} parent=1 // pred_check
      _
    $region43: #{transfered_classifier_forward.1} parent=1 // pred_check_branch
      %73 = sbr.rel (0) target = $region45
    $region44: #{transfered_classifier_forward.1} parent=1 // pred_region
      %s75 = ssub.s32 16, 16
      %76 = vsyncadd [#allocation15], %s75
      %s78 = sshll.u32 [#allocation14], 4
      %s79 = int_to_ptr.vmem [resolvable:$true] %s78
      %81 = dma.hbm_to_vmem [thread:$0]  %s10, 16, %s79, [#allocation15]
    $region45: #{transfered_classifier_forward.1} parent=1 // pred_fallthru
      _
    // Predicated region
    $region46: #{transfered_classifier_forward.1} parent=1 // pred_check
      _
    $region47: #{transfered_classifier_forward.1} parent=1 // pred_check_branch
      %83 = sbr.rel (0) target = $region49
    $region48: #{transfered_classifier_forward.1} parent=1 // pred_region
      %84 = dma.done [#allocation9], 6144
    $region49: #{transfered_classifier_forward.1} parent=1 // pred_fallthru
      _
    // Predicated region
    $region50: #{transfered_classifier_forward.1} parent=1 // pred_check
      _
    $region51: #{transfered_classifier_forward.1} parent=1 // pred_check_branch
      %86 = sbr.rel (0) target = $region53
    $region52: #{transfered_classifier_forward.1} parent=1 // pred_region
      %87 = dma.done [#allocation12], 12288
    $region53: #{transfered_classifier_forward.1} parent=1 // pred_fallthru
      _
    // Predicated region
    $region54: #{transfered_classifier_forward.1} parent=1 // pred_check
      _
    $region55: #{transfered_classifier_forward.1} parent=1 // pred_check_branch
      %89 = sbr.rel (0) target = $region57
    $region56: #{transfered_classifier_forward.1} parent=1 // pred_region
      %90 = dma.done [#allocation12], 32
    $region57: #{transfered_classifier_forward.1} parent=1 // pred_fallthru
      _
    // Predicated region
    $region58: #{transfered_classifier_forward.1} parent=1 // pred_check
      _
    $region59: #{transfered_classifier_forward.1} parent=1 // pred_check_branch
      %92 = sbr.rel (0) target = $region61
    $region60: #{transfered_classifier_forward.1} parent=1 // pred_region
      %93 = dma.done [#allocation15], 16
    $region61: #{transfered_classifier_forward.1} parent=1 // pred_fallthru
      _
    %s96 = sshll.u32 1, 14
    %s97 = sxor.u32 4294967295, %s96
    %s99 = sld [smem:[#allocation0]]
    %s100 = sadd.s32 2, %s99
    %s102 = sshll.u32 7, 26
    %s103 = sxor.u32 4294967295, %s102
    %s104 = sand.u32 0, %s103
    %s105 = sshll.u32 %s100, 26
    %s106 = sor.u32 %s104, %s105
    %s107 = sshll.u32 [#allocation3], 4
    %s108 = int_to_ptr.vmem [resolvable:$true] %s107
    %111 = sst [smem:[#allocation18]] 768
    %s112 = scalar_lea.smem [#allocation18], 1
    %113 = sst [smem:[%s112]] 768
    %s114 = scalar_lea.smem [#allocation18], 2
    %115 = sst [smem:[%s114]] 6
    %s116 = scalar_lea.smem [#allocation18], 3
    %117 = sst [smem:[%s116]] 64
    %s118 = scalar_lea.smem [#allocation18], 4
    %119 = sst [smem:[%s118]] 128
    %s120 = scalar_lea.smem [#allocation18], 5
    %121 = sst [smem:[%s120]] 2
    %s122 = scalar_lea.smem [#allocation18], 6
    %123 = sst [smem:[%s122]] 384
    %s124 = scalar_lea.smem [#allocation18], 7
    %125 = sst [smem:[%s124]] 64
    %s126 = scalar_lea.smem [#allocation18], 8
    %127 = sst [smem:[%s126]] 4
    %129 = dma.general %s11, 12288, %s108, [#allocation7], [#allocation17], [#allocation18], %s106, 0
    %s130 = scalar_lea.sflag [#allocation7], 1
    %s132 = sshll.u32 1, 14
    %s133 = sxor.u32 4294967295, %s132
    %s135 = sadd.s32 2, %s99
    %s137 = sshll.u32 7, 26
    %s138 = sxor.u32 4294967295, %s137
    %s139 = sand.u32 0, %s138
    %s140 = sshll.u32 %s135, 26
    %s141 = sor.u32 %s139, %s140
    %s142 = sshll.u32 [#allocation4], 4
    %s143 = int_to_ptr.vmem [resolvable:$true] %s142
    %146 = sst [smem:[#allocation20]] 768
    %s147 = scalar_lea.smem [#allocation20], 1
    %148 = sst [smem:[%s147]] 768
    %s149 = scalar_lea.smem [#allocation20], 2
    %150 = sst [smem:[%s149]] 6
    %s151 = scalar_lea.smem [#allocation20], 3
    %152 = sst [smem:[%s151]] 64
    %s153 = scalar_lea.smem [#allocation20], 4
    %154 = sst [smem:[%s153]] 128
    %s155 = scalar_lea.smem [#allocation20], 5
    %156 = sst [smem:[%s155]] 2
    %s157 = scalar_lea.smem [#allocation20], 6
    %158 = sst [smem:[%s157]] 384
    %s159 = scalar_lea.smem [#allocation20], 7
    %160 = sst [smem:[%s159]] 64
    %s161 = scalar_lea.smem [#allocation20], 8
    %162 = sst [smem:[%s161]] 4
    %164 = dma.general %s12, 12288, %s143, %s130, [#allocation19], [#allocation20], %s141, 0
    %s165 = scalar_lea.sflag [#allocation7], 2
    %p167 = scmp.lt.u32.totalorder 4, 8
    %p168 = pneg %p167
    // Predicated region
    $region62: #{transfered_classifier_forward.1} parent=1 // pred_check
      _
    $region63: #{transfered_classifier_forward.1} parent=1 // pred_check_branch
      %170 = sbr.rel (%p167) target = $region65
    $region64: #{transfered_classifier_forward.1} parent=1 // pred_region
      %s311 = sand.u32 4, 7
      %p312 = scmp.eq.s32.totalorder %s311, 0
      %p313 = pneg %p312
      // Predicated region
      $region77: #{transfered_classifier_forward.1} parent=64 // pred_check
        _
      $region78: #{transfered_classifier_forward.1} parent=64 // pred_check_branch
        %315 = sbr.rel (%p312) target = $region80
      $region79: #{transfered_classifier_forward.1} parent=64 // pred_region
        %s316 = sand.u32 4, 7
        %s317 = ssub.s32 4, %s316
        %s318 = scalar_lea.vmem %s13, %s317
        %s319 = ssub.s32 4, %s316
        %s320 = scalar_lea.vmem [#allocation5], %s319
        loop: start=0, step=1, limit=1
        $region81: #{transfered_classifier_forward.1} parent=79 // loop_pre_header
          _
        $region82: #{transfered_classifier_forward.1} parent=79 // loop_header
          %s322 = sphi 0, %s326
          %p323 = scmp.ge.s32.totalorder %s322, 1
          %s327 = sphi %s13, %s13
          %s328 = sphi [#allocation5], [#allocation5]
        $region83: #{transfered_classifier_forward.1} parent=79 // loop_header_branch
          %325 = sbr.rel (%p323) target = $region87
        $region84: #{transfered_classifier_forward.1} parent=79 // loop_body
          _
        $region85: #{transfered_classifier_forward.1} parent=79 // loop_footer
          %s326 = sadd.s32 1, %s322
        $region86: #{transfered_classifier_forward.1} parent=79 // loop_footer_branch
          %321 = sbr.rel target = $region82
        $region87: #{transfered_classifier_forward.1} parent=79 // loop_exit
          _
        %s329 = sshllo.u32 0, %s316
        loop: start=0, step=1, limit=1
        $region88: #{transfered_classifier_forward.1} parent=79 // loop_pre_header
          _
        $region89: #{transfered_classifier_forward.1} parent=79 // loop_header
          %s331 = sphi 0, %s335
          %p332 = scmp.ge.s32.totalorder %s331, 1
          %s336 = sphi %s318, %s318
          %s337 = sphi %s320, %s320
        $region90: #{transfered_classifier_forward.1} parent=79 // loop_header_branch
          %334 = sbr.rel (%p332) target = $region94
        $region91: #{transfered_classifier_forward.1} parent=79 // loop_body
          %v338 = vld [vmem:[%s336] sm:%s329]
          %339 = vst [vmem:[%s337] sm:%s329] %v338
          %v340 = vld [vmem:[%s336 + $0x8] sm:%s329]
          %341 = vst [vmem:[%s337 + $0x4] sm:%s329] %v340
          %v342 = vld [vmem:[%s336 + $0x4] sm:%s329]
          %343 = vst [vmem:[%s337 + $0x8] sm:%s329] %v342
          %v344 = vld [vmem:[%s336 + $0xc] sm:%s329]
          %345 = vst [vmem:[%s337 + $0xc] sm:%s329] %v344
          %v346 = vld [vmem:[%s336 + $0x10] sm:%s329]
          %347 = vst [vmem:[%s337 + $0x10] sm:%s329] %v346
          %v348 = vld [vmem:[%s336 + $0x18] sm:%s329]
          %349 = vst [vmem:[%s337 + $0x14] sm:%s329] %v348
          %v350 = vld [vmem:[%s336 + $0x14] sm:%s329]
          %351 = vst [vmem:[%s337 + $0x18] sm:%s329] %v350
          %v352 = vld [vmem:[%s336 + $0x1c] sm:%s329]
          %353 = vst [vmem:[%s337 + $0x1c] sm:%s329] %v352
          %v354 = vld [vmem:[%s336 + $0x20] sm:%s329]
          %355 = vst [vmem:[%s337 + $0x20] sm:%s329] %v354
          %v356 = vld [vmem:[%s336 + $0x28] sm:%s329]
          %357 = vst [vmem:[%s337 + $0x24] sm:%s329] %v356
          %v358 = vld [vmem:[%s336 + $0x24] sm:%s329]
          %359 = vst [vmem:[%s337 + $0x28] sm:%s329] %v358
          %v360 = vld [vmem:[%s336 + $0x2c] sm:%s329]
          %361 = vst [vmem:[%s337 + $0x2c] sm:%s329] %v360
          %v362 = vld [vmem:[%s336 + $0x30] sm:%s329]
          %363 = vst [vmem:[%s337 + $0x30] sm:%s329] %v362
          %v364 = vld [vmem:[%s336 + $0x38] sm:%s329]
          %365 = vst [vmem:[%s337 + $0x34] sm:%s329] %v364
          %v366 = vld [vmem:[%s336 + $0x34] sm:%s329]
          %367 = vst [vmem:[%s337 + $0x38] sm:%s329] %v366
          %v368 = vld [vmem:[%s336 + $0x3c] sm:%s329]
          %369 = vst [vmem:[%s337 + $0x3c] sm:%s329] %v368
          %v370 = vld [vmem:[%s336 + $0x40] sm:%s329]
          %371 = vst [vmem:[%s337 + $0x40] sm:%s329] %v370
          %v372 = vld [vmem:[%s336 + $0x48] sm:%s329]
          %373 = vst [vmem:[%s337 + $0x44] sm:%s329] %v372
          %v374 = vld [vmem:[%s336 + $0x44] sm:%s329]
          %375 = vst [vmem:[%s337 + $0x48] sm:%s329] %v374
          %v376 = vld [vmem:[%s336 + $0x4c] sm:%s329]
          %377 = vst [vmem:[%s337 + $0x4c] sm:%s329] %v376
          %v378 = vld [vmem:[%s336 + $0x50] sm:%s329]
          %379 = vst [vmem:[%s337 + $0x50] sm:%s329] %v378
          %v380 = vld [vmem:[%s336 + $0x58] sm:%s329]
          %381 = vst [vmem:[%s337 + $0x54] sm:%s329] %v380
          %v382 = vld [vmem:[%s336 + $0x54] sm:%s329]
          %383 = vst [vmem:[%s337 + $0x58] sm:%s329] %v382
          %v384 = vld [vmem:[%s336 + $0x5c] sm:%s329]
          %385 = vst [vmem:[%s337 + $0x5c] sm:%s329] %v384
          %v386 = vld [vmem:[%s336 + $0x60] sm:%s329]
          %387 = vst [vmem:[%s337 + $0x60] sm:%s329] %v386
          %v388 = vld [vmem:[%s336 + $0x68] sm:%s329]
          %389 = vst [vmem:[%s337 + $0x64] sm:%s329] %v388
          %v390 = vld [vmem:[%s336 + $0x64] sm:%s329]
          %391 = vst [vmem:[%s337 + $0x68] sm:%s329] %v390
          %v392 = vld [vmem:[%s336 + $0x6c] sm:%s329]
          %393 = vst [vmem:[%s337 + $0x6c] sm:%s329] %v392
          %v394 = vld [vmem:[%s336 + $0x70] sm:%s329]
          %395 = vst [vmem:[%s337 + $0x70] sm:%s329] %v394
          %v396 = vld [vmem:[%s336 + $0x78] sm:%s329]
          %397 = vst [vmem:[%s337 + $0x74] sm:%s329] %v396
          %v398 = vld [vmem:[%s336 + $0x74] sm:%s329]
          %399 = vst [vmem:[%s337 + $0x78] sm:%s329] %v398
          %v400 = vld [vmem:[%s336 + $0x7c] sm:%s329]
          %401 = vst [vmem:[%s337 + $0x7c] sm:%s329] %v400
          %v402 = vld [vmem:[%s336 + $0x80] sm:%s329]
          %403 = vst [vmem:[%s337 + $0x80] sm:%s329] %v402
          %v404 = vld [vmem:[%s336 + $0x88] sm:%s329]
          %405 = vst [vmem:[%s337 + $0x84] sm:%s329] %v404
          %v406 = vld [vmem:[%s336 + $0x84] sm:%s329]
          %407 = vst [vmem:[%s337 + $0x88] sm:%s329] %v406
          %v408 = vld [vmem:[%s336 + $0x8c] sm:%s329]
          %409 = vst [vmem:[%s337 + $0x8c] sm:%s329] %v408
          %v410 = vld [vmem:[%s336 + $0x90] sm:%s329]
          %411 = vst [vmem:[%s337 + $0x90] sm:%s329] %v410
          %v412 = vld [vmem:[%s336 + $0x98] sm:%s329]
          %413 = vst [vmem:[%s337 + $0x94] sm:%s329] %v412
          %v414 = vld [vmem:[%s336 + $0x94] sm:%s329]
          %415 = vst [vmem:[%s337 + $0x98] sm:%s329] %v414
          %v416 = vld [vmem:[%s336 + $0x9c] sm:%s329]
          %417 = vst [vmem:[%s337 + $0x9c] sm:%s329] %v416
          %v418 = vld [vmem:[%s336 + $0xa0] sm:%s329]
          %419 = vst [vmem:[%s337 + $0xa0] sm:%s329] %v418
          %v420 = vld [vmem:[%s336 + $0xa8] sm:%s329]
          %421 = vst [vmem:[%s337 + $0xa4] sm:%s329] %v420
          %v422 = vld [vmem:[%s336 + $0xa4] sm:%s329]
          %423 = vst [vmem:[%s337 + $0xa8] sm:%s329] %v422
          %v424 = vld [vmem:[%s336 + $0xac] sm:%s329]
          %425 = vst [vmem:[%s337 + $0xac] sm:%s329] %v424
          %v426 = vld [vmem:[%s336 + $0xb0] sm:%s329]
          %427 = vst [vmem:[%s337 + $0xb0] sm:%s329] %v426
          %v428 = vld [vmem:[%s336 + $0xb8] sm:%s329]
          %429 = vst [vmem:[%s337 + $0xb4] sm:%s329] %v428
          %v430 = vld [vmem:[%s336 + $0xb4] sm:%s329]
          %431 = vst [vmem:[%s337 + $0xb8] sm:%s329] %v430
          %v432 = vld [vmem:[%s336 + $0xbc] sm:%s329]
          %433 = vst [vmem:[%s337 + $0xbc] sm:%s329] %v432
          %v434 = vld [vmem:[%s336 + $0xc0] sm:%s329]
          %435 = vst [vmem:[%s337 + $0xc0] sm:%s329] %v434
          %v436 = vld [vmem:[%s336 + $0xc8] sm:%s329]
          %437 = vst [vmem:[%s337 + $0xc4] sm:%s329] %v436
          %v438 = vld [vmem:[%s336 + $0xc4] sm:%s329]
          %439 = vst [vmem:[%s337 + $0xc8] sm:%s329] %v438
          %v440 = vld [vmem:[%s336 + $0xcc] sm:%s329]
          %441 = vst [vmem:[%s337 + $0xcc] sm:%s329] %v440
          %v442 = vld [vmem:[%s336 + $0xd0] sm:%s329]
          %443 = vst [vmem:[%s337 + $0xd0] sm:%s329] %v442
          %v444 = vld [vmem:[%s336 + $0xd8] sm:%s329]
          %445 = vst [vmem:[%s337 + $0xd4] sm:%s329] %v444
          %v446 = vld [vmem:[%s336 + $0xd4] sm:%s329]
          %447 = vst [vmem:[%s337 + $0xd8] sm:%s329] %v446
          %v448 = vld [vmem:[%s336 + $0xdc] sm:%s329]
          %449 = vst [vmem:[%s337 + $0xdc] sm:%s329] %v448
          %v450 = vld [vmem:[%s336 + $0xe0] sm:%s329]
          %451 = vst [vmem:[%s337 + $0xe0] sm:%s329] %v450
          %v452 = vld [vmem:[%s336 + $0xe8] sm:%s329]
          %453 = vst [vmem:[%s337 + $0xe4] sm:%s329] %v452
          %v454 = vld [vmem:[%s336 + $0xe4] sm:%s329]
          %455 = vst [vmem:[%s337 + $0xe8] sm:%s329] %v454
          %v456 = vld [vmem:[%s336 + $0xec] sm:%s329]
          %457 = vst [vmem:[%s337 + $0xec] sm:%s329] %v456
          %v458 = vld [vmem:[%s336 + $0xf0] sm:%s329]
          %459 = vst [vmem:[%s337 + $0xf0] sm:%s329] %v458
          %v460 = vld [vmem:[%s336 + $0xf8] sm:%s329]
          %461 = vst [vmem:[%s337 + $0xf4] sm:%s329] %v460
          %v462 = vld [vmem:[%s336 + $0xf4] sm:%s329]
          %463 = vst [vmem:[%s337 + $0xf8] sm:%s329] %v462
          %v464 = vld [vmem:[%s336 + $0xfc] sm:%s329]
          %465 = vst [vmem:[%s337 + $0xfc] sm:%s329] %v464
        $region92: #{transfered_classifier_forward.1} parent=79 // loop_footer
          %s335 = sadd.s32 1, %s331
        $region93: #{transfered_classifier_forward.1} parent=79 // loop_footer_branch
          %330 = sbr.rel target = $region89
        $region94: #{transfered_classifier_forward.1} parent=79 // loop_exit
          _
      $region80: #{transfered_classifier_forward.1} parent=64 // pred_fallthru
        _
    $region65: #{transfered_classifier_forward.1} parent=1 // pred_fallthru
      _
    // Predicated region
    $region66: #{transfered_classifier_forward.1} parent=1 // pred_check
      %p171 = pneg %p167
    $region67: #{transfered_classifier_forward.1} parent=1 // pred_check_branch
      %173 = sbr.rel (%p171) target = $region69
    $region68: #{transfered_classifier_forward.1} parent=1 // pred_region
      %s174 = sshllo.u32 0, 4
      loop: start=0, step=1, limit=1
      $region70: #{transfered_classifier_forward.1} parent=68 // loop_pre_header
        _
      $region71: #{transfered_classifier_forward.1} parent=68 // loop_header
        %s176 = sphi 0, %s180
        %p177 = scmp.ge.s32.totalorder %s176, 1
        %s181 = sphi %s13, %s13
        %s182 = sphi [#allocation5], [#allocation5]
      $region72: #{transfered_classifier_forward.1} parent=68 // loop_header_branch
        %179 = sbr.rel (%p177) target = $region76
      $region73: #{transfered_classifier_forward.1} parent=68 // loop_body
        %v183 = vld [vmem:[%s181] sm:%s174]
        %184 = vst [vmem:[%s182] sm:%s174] %v183
        %v185 = vld [vmem:[%s181 + $0x8] sm:%s174]
        %186 = vst [vmem:[%s182 + $0x4] sm:%s174] %v185
        %v187 = vld [vmem:[%s181 + $0x4] sm:%s174]
        %188 = vst [vmem:[%s182 + $0x8] sm:%s174] %v187
        %v189 = vld [vmem:[%s181 + $0xc] sm:%s174]
        %190 = vst [vmem:[%s182 + $0xc] sm:%s174] %v189
        %v191 = vld [vmem:[%s181 + $0x10] sm:%s174]
        %192 = vst [vmem:[%s182 + $0x10] sm:%s174] %v191
        %v193 = vld [vmem:[%s181 + $0x18] sm:%s174]
        %194 = vst [vmem:[%s182 + $0x14] sm:%s174] %v193
        %v195 = vld [vmem:[%s181 + $0x14] sm:%s174]
        %196 = vst [vmem:[%s182 + $0x18] sm:%s174] %v195
        %v197 = vld [vmem:[%s181 + $0x1c] sm:%s174]
        %198 = vst [vmem:[%s182 + $0x1c] sm:%s174] %v197
        %v199 = vld [vmem:[%s181 + $0x20] sm:%s174]
        %200 = vst [vmem:[%s182 + $0x20] sm:%s174] %v199
        %v201 = vld [vmem:[%s181 + $0x28] sm:%s174]
        %202 = vst [vmem:[%s182 + $0x24] sm:%s174] %v201
        %v203 = vld [vmem:[%s181 + $0x24] sm:%s174]
        %204 = vst [vmem:[%s182 + $0x28] sm:%s174] %v203
        %v205 = vld [vmem:[%s181 + $0x2c] sm:%s174]
        %206 = vst [vmem:[%s182 + $0x2c] sm:%s174] %v205
        %v207 = vld [vmem:[%s181 + $0x30] sm:%s174]
        %208 = vst [vmem:[%s182 + $0x30] sm:%s174] %v207
        %v209 = vld [vmem:[%s181 + $0x38] sm:%s174]
        %210 = vst [vmem:[%s182 + $0x34] sm:%s174] %v209
        %v211 = vld [vmem:[%s181 + $0x34] sm:%s174]
        %212 = vst [vmem:[%s182 + $0x38] sm:%s174] %v211
        %v213 = vld [vmem:[%s181 + $0x3c] sm:%s174]
        %214 = vst [vmem:[%s182 + $0x3c] sm:%s174] %v213
        %v215 = vld [vmem:[%s181 + $0x40] sm:%s174]
        %216 = vst [vmem:[%s182 + $0x40] sm:%s174] %v215
        %v217 = vld [vmem:[%s181 + $0x48] sm:%s174]
        %218 = vst [vmem:[%s182 + $0x44] sm:%s174] %v217
        %v219 = vld [vmem:[%s181 + $0x44] sm:%s174]
        %220 = vst [vmem:[%s182 + $0x48] sm:%s174] %v219
        %v221 = vld [vmem:[%s181 + $0x4c] sm:%s174]
        %222 = vst [vmem:[%s182 + $0x4c] sm:%s174] %v221
        %v223 = vld [vmem:[%s181 + $0x50] sm:%s174]
        %224 = vst [vmem:[%s182 + $0x50] sm:%s174] %v223
        %v225 = vld [vmem:[%s181 + $0x58] sm:%s174]
        %226 = vst [vmem:[%s182 + $0x54] sm:%s174] %v225
        %v227 = vld [vmem:[%s181 + $0x54] sm:%s174]
        %228 = vst [vmem:[%s182 + $0x58] sm:%s174] %v227
        %v229 = vld [vmem:[%s181 + $0x5c] sm:%s174]
        %230 = vst [vmem:[%s182 + $0x5c] sm:%s174] %v229
        %v231 = vld [vmem:[%s181 + $0x60] sm:%s174]
        %232 = vst [vmem:[%s182 + $0x60] sm:%s174] %v231
        %v233 = vld [vmem:[%s181 + $0x68] sm:%s174]
        %234 = vst [vmem:[%s182 + $0x64] sm:%s174] %v233
        %v235 = vld [vmem:[%s181 + $0x64] sm:%s174]
        %236 = vst [vmem:[%s182 + $0x68] sm:%s174] %v235
        %v237 = vld [vmem:[%s181 + $0x6c] sm:%s174]
        %238 = vst [vmem:[%s182 + $0x6c] sm:%s174] %v237
        %v239 = vld [vmem:[%s181 + $0x70] sm:%s174]
        %240 = vst [vmem:[%s182 + $0x70] sm:%s174] %v239
        %v241 = vld [vmem:[%s181 + $0x78] sm:%s174]
        %242 = vst [vmem:[%s182 + $0x74] sm:%s174] %v241
        %v243 = vld [vmem:[%s181 + $0x74] sm:%s174]
        %244 = vst [vmem:[%s182 + $0x78] sm:%s174] %v243
        %v245 = vld [vmem:[%s181 + $0x7c] sm:%s174]
        %246 = vst [vmem:[%s182 + $0x7c] sm:%s174] %v245
        %v247 = vld [vmem:[%s181 + $0x80] sm:%s174]
        %248 = vst [vmem:[%s182 + $0x80] sm:%s174] %v247
        %v249 = vld [vmem:[%s181 + $0x88] sm:%s174]
        %250 = vst [vmem:[%s182 + $0x84] sm:%s174] %v249
        %v251 = vld [vmem:[%s181 + $0x84] sm:%s174]
        %252 = vst [vmem:[%s182 + $0x88] sm:%s174] %v251
        %v253 = vld [vmem:[%s181 + $0x8c] sm:%s174]
        %254 = vst [vmem:[%s182 + $0x8c] sm:%s174] %v253
        %v255 = vld [vmem:[%s181 + $0x90] sm:%s174]
        %256 = vst [vmem:[%s182 + $0x90] sm:%s174] %v255
        %v257 = vld [vmem:[%s181 + $0x98] sm:%s174]
        %258 = vst [vmem:[%s182 + $0x94] sm:%s174] %v257
        %v259 = vld [vmem:[%s181 + $0x94] sm:%s174]
        %260 = vst [vmem:[%s182 + $0x98] sm:%s174] %v259
        %v261 = vld [vmem:[%s181 + $0x9c] sm:%s174]
        %262 = vst [vmem:[%s182 + $0x9c] sm:%s174] %v261
        %v263 = vld [vmem:[%s181 + $0xa0] sm:%s174]
        %264 = vst [vmem:[%s182 + $0xa0] sm:%s174] %v263
        %v265 = vld [vmem:[%s181 + $0xa8] sm:%s174]
        %266 = vst [vmem:[%s182 + $0xa4] sm:%s174] %v265
        %v267 = vld [vmem:[%s181 + $0xa4] sm:%s174]
        %268 = vst [vmem:[%s182 + $0xa8] sm:%s174] %v267
        %v269 = vld [vmem:[%s181 + $0xac] sm:%s174]
        %270 = vst [vmem:[%s182 + $0xac] sm:%s174] %v269
        %v271 = vld [vmem:[%s181 + $0xb0] sm:%s174]
        %272 = vst [vmem:[%s182 + $0xb0] sm:%s174] %v271
        %v273 = vld [vmem:[%s181 + $0xb8] sm:%s174]
        %274 = vst [vmem:[%s182 + $0xb4] sm:%s174] %v273
        %v275 = vld [vmem:[%s181 + $0xb4] sm:%s174]
        %276 = vst [vmem:[%s182 + $0xb8] sm:%s174] %v275
        %v277 = vld [vmem:[%s181 + $0xbc] sm:%s174]
        %278 = vst [vmem:[%s182 + $0xbc] sm:%s174] %v277
        %v279 = vld [vmem:[%s181 + $0xc0] sm:%s174]
        %280 = vst [vmem:[%s182 + $0xc0] sm:%s174] %v279
        %v281 = vld [vmem:[%s181 + $0xc8] sm:%s174]
        %282 = vst [vmem:[%s182 + $0xc4] sm:%s174] %v281
        %v283 = vld [vmem:[%s181 + $0xc4] sm:%s174]
        %284 = vst [vmem:[%s182 + $0xc8] sm:%s174] %v283
        %v285 = vld [vmem:[%s181 + $0xcc] sm:%s174]
        %286 = vst [vmem:[%s182 + $0xcc] sm:%s174] %v285
        %v287 = vld [vmem:[%s181 + $0xd0] sm:%s174]
        %288 = vst [vmem:[%s182 + $0xd0] sm:%s174] %v287
        %v289 = vld [vmem:[%s181 + $0xd8] sm:%s174]
        %290 = vst [vmem:[%s182 + $0xd4] sm:%s174] %v289
        %v291 = vld [vmem:[%s181 + $0xd4] sm:%s174]
        %292 = vst [vmem:[%s182 + $0xd8] sm:%s174] %v291
        %v293 = vld [vmem:[%s181 + $0xdc] sm:%s174]
        %294 = vst [vmem:[%s182 + $0xdc] sm:%s174] %v293
        %v295 = vld [vmem:[%s181 + $0xe0] sm:%s174]
        %296 = vst [vmem:[%s182 + $0xe0] sm:%s174] %v295
        %v297 = vld [vmem:[%s181 + $0xe8] sm:%s174]
        %298 = vst [vmem:[%s182 + $0xe4] sm:%s174] %v297
        %v299 = vld [vmem:[%s181 + $0xe4] sm:%s174]
        %300 = vst [vmem:[%s182 + $0xe8] sm:%s174] %v299
        %v301 = vld [vmem:[%s181 + $0xec] sm:%s174]
        %302 = vst [vmem:[%s182 + $0xec] sm:%s174] %v301
        %v303 = vld [vmem:[%s181 + $0xf0] sm:%s174]
        %304 = vst [vmem:[%s182 + $0xf0] sm:%s174] %v303
        %v305 = vld [vmem:[%s181 + $0xf8] sm:%s174]
        %306 = vst [vmem:[%s182 + $0xf4] sm:%s174] %v305
        %v307 = vld [vmem:[%s181 + $0xf4] sm:%s174]
        %308 = vst [vmem:[%s182 + $0xf8] sm:%s174] %v307
        %v309 = vld [vmem:[%s181 + $0xfc] sm:%s174]
        %310 = vst [vmem:[%s182 + $0xfc] sm:%s174] %v309
      $region74: #{transfered_classifier_forward.1} parent=68 // loop_footer
        %s180 = sadd.s32 1, %s176
      $region75: #{transfered_classifier_forward.1} parent=68 // loop_footer_branch
        %175 = sbr.rel target = $region71
      $region76: #{transfered_classifier_forward.1} parent=68 // loop_exit
        _
    $region69: #{transfered_classifier_forward.1} parent=1 // pred_fallthru
      _
    // Predicated region
    $region95: #{transfered_classifier_forward.1} parent=1 // pred_check
      _
    $region96: #{transfered_classifier_forward.1} parent=1 // pred_check_branch
      %468 = sbr.rel (0) target = $region98
    $region97: #{transfered_classifier_forward.1} parent=1 // pred_region
      %469 = vsyncadd %s165, 4096
    $region98: #{transfered_classifier_forward.1} parent=1 // pred_fallthru
      _
    %s470 = scalar_lea.sflag [#allocation7], 3
    %p472 = scmp.lt.u32.totalorder 128, 8
    %p473 = pneg %p472
    // Predicated region
    $region99: #{transfered_classifier_forward.1} parent=1 // pred_check
      _
    $region100: #{transfered_classifier_forward.1} parent=1 // pred_check_branch
      %475 = sbr.rel (%p472) target = $region102
    $region101: #{transfered_classifier_forward.1} parent=1 // pred_region
      %s490 = sand.u32 128, 7
      %p491 = scmp.eq.s32.totalorder %s490, 0
      // Predicated region
      $region114: #{transfered_classifier_forward.1} parent=101 // pred_check
        %p492 = pneg %p491
      $region115: #{transfered_classifier_forward.1} parent=101 // pred_check_branch
        %494 = sbr.rel (%p492) target = $region117
      $region116: #{transfered_classifier_forward.1} parent=101 // pred_region
        loop: start=0, step=1, limit=1
        $region118: #{transfered_classifier_forward.1} parent=116 // loop_pre_header
          _
        $region119: #{transfered_classifier_forward.1} parent=116 // loop_header
          %s496 = sphi 0, %s500
          %p497 = scmp.ge.s32.totalorder %s496, 1
          %s501 = sphi %s14, %s14
          %s502 = sphi [#allocation6], [#allocation6]
        $region120: #{transfered_classifier_forward.1} parent=116 // loop_header_branch
          %499 = sbr.rel (%p497) target = $region124
        $region121: #{transfered_classifier_forward.1} parent=116 // loop_body
          %v503 = vld [vmem:[%s501] sm:$0xff]
          %504 = vst [vmem:[%s502] sm:$0xff] %v503
          %v505 = vld [vmem:[%s501 + $0x8] sm:$0xff]
          %506 = vst [vmem:[%s502 + $0x8] sm:$0xff] %v505
          %v507 = vld [vmem:[%s501 + $0x10] sm:$0xff]
          %508 = vst [vmem:[%s502 + $0x10] sm:$0xff] %v507
          %v509 = vld [vmem:[%s501 + $0x18] sm:$0xff]
          %510 = vst [vmem:[%s502 + $0x18] sm:$0xff] %v509
          %v511 = vld [vmem:[%s501 + $0x20] sm:$0xff]
          %512 = vst [vmem:[%s502 + $0x20] sm:$0xff] %v511
          %v513 = vld [vmem:[%s501 + $0x28] sm:$0xff]
          %514 = vst [vmem:[%s502 + $0x28] sm:$0xff] %v513
          %v515 = vld [vmem:[%s501 + $0x30] sm:$0xff]
          %516 = vst [vmem:[%s502 + $0x30] sm:$0xff] %v515
          %v517 = vld [vmem:[%s501 + $0x38] sm:$0xff]
          %518 = vst [vmem:[%s502 + $0x38] sm:$0xff] %v517
          %v519 = vld [vmem:[%s501 + $0x40] sm:$0xff]
          %520 = vst [vmem:[%s502 + $0x40] sm:$0xff] %v519
          %v521 = vld [vmem:[%s501 + $0x48] sm:$0xff]
          %522 = vst [vmem:[%s502 + $0x48] sm:$0xff] %v521
          %v523 = vld [vmem:[%s501 + $0x50] sm:$0xff]
          %524 = vst [vmem:[%s502 + $0x50] sm:$0xff] %v523
          %v525 = vld [vmem:[%s501 + $0x58] sm:$0xff]
          %526 = vst [vmem:[%s502 + $0x58] sm:$0xff] %v525
          %v527 = vld [vmem:[%s501 + $0x60] sm:$0xff]
          %528 = vst [vmem:[%s502 + $0x60] sm:$0xff] %v527
          %v529 = vld [vmem:[%s501 + $0x68] sm:$0xff]
          %530 = vst [vmem:[%s502 + $0x68] sm:$0xff] %v529
          %v531 = vld [vmem:[%s501 + $0x70] sm:$0xff]
          %532 = vst [vmem:[%s502 + $0x70] sm:$0xff] %v531
          %v533 = vld [vmem:[%s501 + $0x78] sm:$0xff]
          %534 = vst [vmem:[%s502 + $0x78] sm:$0xff] %v533
        $region122: #{transfered_classifier_forward.1} parent=116 // loop_footer
          %s500 = sadd.s32 1, %s496
        $region123: #{transfered_classifier_forward.1} parent=116 // loop_footer_branch
          %495 = sbr.rel target = $region119
        $region124: #{transfered_classifier_forward.1} parent=116 // loop_exit
          _
      $region117: #{transfered_classifier_forward.1} parent=101 // pred_fallthru
        _
      %p535 = pneg %p491
      // Predicated region
      $region125: #{transfered_classifier_forward.1} parent=101 // pred_check
        _
      $region126: #{transfered_classifier_forward.1} parent=101 // pred_check_branch
        %537 = sbr.rel (%p491) target = $region128
      $region127: #{transfered_classifier_forward.1} parent=101 // pred_region
        %s538 = sand.u32 128, 7
      $region128: #{transfered_classifier_forward.1} parent=101 // pred_fallthru
        _
    $region102: #{transfered_classifier_forward.1} parent=1 // pred_fallthru
      _
    // Predicated region
    $region103: #{transfered_classifier_forward.1} parent=1 // pred_check
      %p476 = pneg %p472
    $region104: #{transfered_classifier_forward.1} parent=1 // pred_check_branch
      %478 = sbr.rel (%p476) target = $region106
    $region105: #{transfered_classifier_forward.1} parent=1 // pred_region
      %s479 = sshllo.u32 0, 128
      loop: start=0, step=1, limit=1
      $region107: #{transfered_classifier_forward.1} parent=105 // loop_pre_header
        _
      $region108: #{transfered_classifier_forward.1} parent=105 // loop_header
        %s481 = sphi 0, %s485
        %p482 = scmp.ge.s32.totalorder %s481, 1
        %s486 = sphi %s14, %s14
        %s487 = sphi [#allocation6], [#allocation6]
      $region109: #{transfered_classifier_forward.1} parent=105 // loop_header_branch
        %484 = sbr.rel (%p482) target = $region113
      $region110: #{transfered_classifier_forward.1} parent=105 // loop_body
        %v488 = vld [vmem:[%s486] sm:%s479]
        %489 = vst [vmem:[%s487] sm:%s479] %v488
      $region111: #{transfered_classifier_forward.1} parent=105 // loop_footer
        %s485 = sadd.s32 1, %s481
      $region112: #{transfered_classifier_forward.1} parent=105 // loop_footer_branch
        %480 = sbr.rel target = $region108
      $region113: #{transfered_classifier_forward.1} parent=105 // loop_exit
        _
    $region106: #{transfered_classifier_forward.1} parent=1 // pred_fallthru
      _
    // Predicated region
    $region129: #{transfered_classifier_forward.1} parent=1 // pred_check
      _
    $region130: #{transfered_classifier_forward.1} parent=1 // pred_check_branch
      %541 = sbr.rel (0) target = $region132
    $region131: #{transfered_classifier_forward.1} parent=1 // pred_region
      %542 = vsyncadd %s470, 2048
    $region132: #{transfered_classifier_forward.1} parent=1 // pred_fallthru
      _
    %v543 = vlaneseq
    %v544 = vand.u32 %v543, 127
    %v545 = vld [vmem:[%s0] sm:$0xff]
    %v546 = vld [vmem:[%s0 + $0x8] sm:$0xff]
    %v547 = vld [vmem:[%s0 + $0x10] sm:$0xff]
    %v548 = vld [vmem:[%s0 + $0x18] sm:$0xff]
    %v549 = vld [vmem:[%s0 + $0x20] sm:$0xff]
    %v550 = vld [vmem:[%s0 + $0x28] sm:$0xff]
    %v551 = vld [vmem:[%s0 + $0x30] sm:$0xff]
    %v552 = vld [vmem:[%s0 + $0x38] sm:$0xff]
    %v553 = vld [vmem:[%s1] sm:$0xff]
    %v554 = vld [vmem:[%s1 + $0x8] sm:$0xff]
    %v555 = vld [vmem:[%s1 + $0x10] sm:$0xff]
    %v556 = vld [vmem:[%s1 + $0x18] sm:$0xff]
    %v557 = vld [vmem:[%s1 + $0x20] sm:$0xff]
    %v558 = vld [vmem:[%s1 + $0x28] sm:$0xff]
    %v559 = vld [vmem:[%s1 + $0x30] sm:$0xff]
    %v560 = vld [vmem:[%s1 + $0x38] sm:$0xff]
    %561 = vset.pattern.permute.xlu0 0
    %562 = vperm.xlu0 %561, %v545
    %v563 = vpop.permute.xlu0 %562
    %564 = vset.pattern.permute.xlu0 0
    %565 = vperm.xlu0 %564, %v546
    %v566 = vpop.permute.xlu0 %565
    %567 = vset.pattern.permute.xlu0 0
    %568 = vperm.xlu0 %567, %v547
    %v569 = vpop.permute.xlu0 %568
    %570 = vset.pattern.permute.xlu0 0
    %571 = vperm.xlu0 %570, %v548
    %v572 = vpop.permute.xlu0 %571
    %573 = vset.pattern.permute.xlu0 0
    %574 = vperm.xlu0 %573, %v549
    %v575 = vpop.permute.xlu0 %574
    %576 = vset.pattern.permute.xlu0 0
    %577 = vperm.xlu0 %576, %v550
    %v578 = vpop.permute.xlu0 %577
    %579 = vset.pattern.permute.xlu0 0
    %580 = vperm.xlu0 %579, %v551
    %v581 = vpop.permute.xlu0 %580
    %582 = vset.pattern.permute.xlu0 0
    %583 = vperm.xlu0 %582, %v552
    %v584 = vpop.permute.xlu0 %583
    %vm585 = vcmp.eq.s32.totalorder %v544, %v563
    %vm586 = vcmp.eq.s32.totalorder %v544, %v566
    %vm587 = vcmp.eq.s32.totalorder %v544, %v569
    %vm588 = vcmp.eq.s32.totalorder %v544, %v572
    %vm589 = vcmp.eq.s32.totalorder %v544, %v575
    %vm590 = vcmp.eq.s32.totalorder %v544, %v578
    %vm591 = vcmp.eq.s32.totalorder %v544, %v581
    %vm592 = vcmp.eq.s32.totalorder %v544, %v584
    %v593 = vsel %vm585, 1, 0
    %v594 = vsel %vm586, 1, 0
    %v595 = vsel %vm587, 1, 0
    %v596 = vsel %vm588, 1, 0
    %v597 = vsel %vm589, 1, 0
    %v598 = vsel %vm590, 1, 0
    %v599 = vsel %vm591, 1, 0
    %v600 = vsel %vm592, 1, 0
    %v601 = vcvt.s32.f32 %v593
    %v602 = vcvt.s32.f32 %v594
    %v603 = vcvt.s32.f32 %v595
    %v604 = vcvt.s32.f32 %v596
    %v605 = vcvt.s32.f32 %v597
    %v606 = vcvt.s32.f32 %v598
    %v607 = vcvt.s32.f32 %v599
    %v608 = vcvt.s32.f32 %v600
    %vm609 = vcmp.eq.s32.totalorder %v544, 126
    %611 = vset.pattern.permute.xlu0 0
    %612 = vperm.xlu0 %611, %v553
    %v613 = vpop.permute.xlu0 %612
    %616 = vset.pattern.permute.xlu0 0
    %617 = vperm.xlu0 %616, %v554
    %v618 = vpop.permute.xlu0 %617
    %621 = vset.pattern.permute.xlu0 0
    %622 = vperm.xlu0 %621, %v555
    %v623 = vpop.permute.xlu0 %622
    %626 = vset.pattern.permute.xlu0 0
    %627 = vperm.xlu0 %626, %v556
    %v628 = vpop.permute.xlu0 %627
    %631 = vset.pattern.permute.xlu0 0
    %632 = vperm.xlu0 %631, %v557
    %v633 = vpop.permute.xlu0 %632
    %636 = vset.pattern.permute.xlu0 0
    %637 = vperm.xlu0 %636, %v558
    %v638 = vpop.permute.xlu0 %637
    %641 = vset.pattern.permute.xlu0 0
    %642 = vperm.xlu0 %641, %v559
    %v643 = vpop.permute.xlu0 %642
    %646 = vset.pattern.permute.xlu0 0
    %647 = vperm.xlu0 %646, %v560
    %v648 = vpop.permute.xlu0 %647
    %v650 = vsel %vm609, %v613, 0.0
    %v651 = vsel %vm609, %v618, 0.0
    %v652 = vsel %vm609, %v623, 0.0
    %v653 = vsel %vm609, %v628, 0.0
    %v654 = vsel %vm609, %v633, 0.0
    %v655 = vsel %vm609, %v638, 0.0
    %v656 = vsel %vm609, %v643, 0.0
    %v657 = vsel %vm609, %v648, 0.0
    %v658 = vadd.f32 %v601, %v650
    %v659 = vadd.f32 %v602, %v651
    %v660 = vadd.f32 %v603, %v652
    %v661 = vadd.f32 %v604, %v653
    %v662 = vadd.f32 %v605, %v654
    %v663 = vadd.f32 %v606, %v655
    %v664 = vadd.f32 %v607, %v656
    %v665 = vadd.f32 %v608, %v657
    %vm666 = vcmp.eq.s32.totalorder %v544, 127
    %667 = vset.pattern.permute.xlu0 1
    %668 = vperm.xlu0 %667, %v553
    %v669 = vpop.permute.xlu0 %668
    %671 = vset.pattern.permute.xlu0 1
    %672 = vperm.xlu0 %671, %v554
    %v673 = vpop.permute.xlu0 %672
    %675 = vset.pattern.permute.xlu0 1
    %676 = vperm.xlu0 %675, %v555
    %v677 = vpop.permute.xlu0 %676
    %679 = vset.pattern.permute.xlu0 1
    %680 = vperm.xlu0 %679, %v556
    %v681 = vpop.permute.xlu0 %680
    %683 = vset.pattern.permute.xlu0 1
    %684 = vperm.xlu0 %683, %v557
    %v685 = vpop.permute.xlu0 %684
    %687 = vset.pattern.permute.xlu0 1
    %688 = vperm.xlu0 %687, %v558
    %v689 = vpop.permute.xlu0 %688
    %691 = vset.pattern.permute.xlu0 1
    %692 = vperm.xlu0 %691, %v559
    %v693 = vpop.permute.xlu0 %692
    %695 = vset.pattern.permute.xlu0 1
    %696 = vperm.xlu0 %695, %v560
    %v697 = vpop.permute.xlu0 %696
    %v699 = vsel %vm666, %v669, 0.0
    %v700 = vsel %vm666, %v673, 0.0
    %v701 = vsel %vm666, %v677, 0.0
    %v702 = vsel %vm666, %v681, 0.0
    %v703 = vsel %vm666, %v685, 0.0
    %v704 = vsel %vm666, %v689, 0.0
    %v705 = vsel %vm666, %v693, 0.0
    %v706 = vsel %vm666, %v697, 0.0
    %v707 = vadd.f32 %v658, %v699
    %v708 = vadd.f32 %v659, %v700
    %v709 = vadd.f32 %v660, %v701
    %v710 = vadd.f32 %v661, %v702
    %v711 = vadd.f32 %v662, %v703
    %v712 = vadd.f32 %v663, %v704
    %v713 = vadd.f32 %v664, %v705
    %v714 = vadd.f32 %v665, %v706
    %v715 = vpack.c.bf16 %v708, %v707
    %v716 = vpack.c.bf16 %v710, %v709
    %v717 = vpack.c.bf16 %v712, %v711
    %v718 = vpack.c.bf16 %v714, %v713
    %v719 = vld [vmem:[#allocation8] sm:$0xff]
    %v720 = vld [vmem:[#allocation8 + $0x8] sm:$0xff]
    %v721 = vld [vmem:[#allocation8 + $0x10] sm:$0xff]
    %v722 = vld [vmem:[#allocation8 + $0x18] sm:$0xff]
    %v723 = vld [vmem:[#allocation8 + $0x20] sm:$0xff]
    %v724 = vld [vmem:[#allocation8 + $0x28] sm:$0xff]
    %v725 = vld [vmem:[#allocation8 + $0x30] sm:$0xff]
    %v726 = vld [vmem:[#allocation8 + $0x38] sm:$0xff]
    %v727 = vld [vmem:[#allocation8 + $0x40] sm:$0xff]
    %v728 = vld [vmem:[#allocation8 + $0x48] sm:$0xff]
    %v729 = vld [vmem:[#allocation8 + $0x50] sm:$0xff]
    %v730 = vld [vmem:[#allocation8 + $0x58] sm:$0xff]
    %v731 = vld [vmem:[#allocation8 + $0x60] sm:$0xff]
    %v732 = vld [vmem:[#allocation8 + $0x68] sm:$0xff]
    %v733 = vld [vmem:[#allocation8 + $0x70] sm:$0xff]
    %v734 = vld [vmem:[#allocation8 + $0x78] sm:$0xff]
    %v735 = vld [vmem:[#allocation8 + $0x80] sm:$0xff]
    %v736 = vld [vmem:[#allocation8 + $0x88] sm:$0xff]
    %v737 = vld [vmem:[#allocation8 + $0x90] sm:$0xff]
    %v738 = vld [vmem:[#allocation8 + $0x98] sm:$0xff]
    %v739 = vld [vmem:[#allocation8 + $0xa0] sm:$0xff]
    %v740 = vld [vmem:[#allocation8 + $0xa8] sm:$0xff]
    %v741 = vld [vmem:[#allocation8 + $0xb0] sm:$0xff]
    %v742 = vld [vmem:[#allocation8 + $0xb8] sm:$0xff]
    %v743 = vld [vmem:[#allocation8 + $0xc0] sm:$0xff]
    %v744 = vld [vmem:[#allocation8 + $0xc8] sm:$0xff]
    %v745 = vld [vmem:[#allocation8 + $0xd0] sm:$0xff]
    %v746 = vld [vmem:[#allocation8 + $0xd8] sm:$0xff]
    %v747 = vld [vmem:[#allocation8 + $0xe0] sm:$0xff]
    %v748 = vld [vmem:[#allocation8 + $0xe8] sm:$0xff]
    %v749 = vld [vmem:[#allocation8 + $0xf0] sm:$0xff]
    %v750 = vld [vmem:[#allocation8 + $0xf8] sm:$0xff]
    %v751 = vld [vmem:[#allocation8 + $0x100] sm:$0xff]
    %v752 = vld [vmem:[#allocation8 + $0x108] sm:$0xff]
    %v753 = vld [vmem:[#allocation8 + $0x110] sm:$0xff]
    %v754 = vld [vmem:[#allocation8 + $0x118] sm:$0xff]
    %v755 = vld [vmem:[#allocation8 + $0x120] sm:$0xff]
    %v756 = vld [vmem:[#allocation8 + $0x128] sm:$0xff]
    %v757 = vld [vmem:[#allocation8 + $0x130] sm:$0xff]
    %v758 = vld [vmem:[#allocation8 + $0x138] sm:$0xff]
    %v759 = vld [vmem:[#allocation8 + $0x140] sm:$0xff]
    %v760 = vld [vmem:[#allocation8 + $0x148] sm:$0xff]
    %v761 = vld [vmem:[#allocation8 + $0x150] sm:$0xff]
    %v762 = vld [vmem:[#allocation8 + $0x158] sm:$0xff]
    %v763 = vld [vmem:[#allocation8 + $0x160] sm:$0xff]
    %v764 = vld [vmem:[#allocation8 + $0x168] sm:$0xff]
    %v765 = vld [vmem:[#allocation8 + $0x170] sm:$0xff]
    %v766 = vld [vmem:[#allocation8 + $0x178] sm:$0xff]
    %v767 = vld [vmem:[%s4] sm:$0x3f]
    %v769 = vlaneseq
    %v770 = vshrl.u32 %v769, 7
    %v771 = vsub.s32 0, %v770
    %v772 = vrot.slane %v767, %v771
    %v773 = vlaneseq
    %v774 = vshrl.u32 %v773, 7
    %v775 = vsub.s32 1, %v774
    %v776 = vrot.slane %v767, %v775
    %v777 = vlaneseq
    %v778 = vshrl.u32 %v777, 7
    %v779 = vsub.s32 2, %v778
    %v780 = vrot.slane %v767, %v779
    %v781 = vlaneseq
    %v782 = vshrl.u32 %v781, 7
    %v783 = vsub.s32 3, %v782
    %v784 = vrot.slane %v767, %v783
    %v785 = vlaneseq
    %v786 = vshrl.u32 %v785, 7
    %v787 = vsub.s32 4, %v786
    %v788 = vrot.slane %v767, %v787
    %v789 = vlaneseq
    %v790 = vshrl.u32 %v789, 7
    %v791 = vsub.s32 5, %v790
    %v792 = vrot.slane %v767, %v791
    %v847 = vunpack.c.l.b16 %v719
    %v848 = vunpack.c.h.b16 %v719
    %v849 = vunpack.c.l.b16 %v720
    %v850 = vunpack.c.h.b16 %v720
    %v851 = vunpack.c.l.b16 %v721
    %v852 = vunpack.c.h.b16 %v721
    %v853 = vunpack.c.l.b16 %v722
    %v854 = vunpack.c.h.b16 %v722
    %v855 = vunpack.c.l.b16 %v723
    %v856 = vunpack.c.h.b16 %v723
    %v857 = vunpack.c.l.b16 %v724
    %v858 = vunpack.c.h.b16 %v724
    %v859 = vunpack.c.l.b16 %v725
    %v860 = vunpack.c.h.b16 %v725
    %v861 = vunpack.c.l.b16 %v726
    %v862 = vunpack.c.h.b16 %v726
    %v863 = vunpack.c.l.b16 %v727
    %v864 = vunpack.c.h.b16 %v727
    %v865 = vunpack.c.l.b16 %v728
    %v866 = vunpack.c.h.b16 %v728
    %v867 = vunpack.c.l.b16 %v729
    %v868 = vunpack.c.h.b16 %v729
    %v869 = vunpack.c.l.b16 %v730
    %v870 = vunpack.c.h.b16 %v730
    %v871 = vunpack.c.l.b16 %v731
    %v872 = vunpack.c.h.b16 %v731
    %v873 = vunpack.c.l.b16 %v732
    %v874 = vunpack.c.h.b16 %v732
    %v875 = vunpack.c.l.b16 %v733
    %v876 = vunpack.c.h.b16 %v733
    %v877 = vunpack.c.l.b16 %v734
    %v878 = vunpack.c.h.b16 %v734
    %v879 = vunpack.c.l.b16 %v735
    %v880 = vunpack.c.h.b16 %v735
    %v881 = vunpack.c.l.b16 %v736
    %v882 = vunpack.c.h.b16 %v736
    %v883 = vunpack.c.l.b16 %v737
    %v884 = vunpack.c.h.b16 %v737
    %v885 = vunpack.c.l.b16 %v738
    %v886 = vunpack.c.h.b16 %v738
    %v887 = vunpack.c.l.b16 %v739
    %v888 = vunpack.c.h.b16 %v739
    %v889 = vunpack.c.l.b16 %v740
    %v890 = vunpack.c.h.b16 %v740
    %v891 = vunpack.c.l.b16 %v741
    %v892 = vunpack.c.h.b16 %v741
    %v893 = vunpack.c.l.b16 %v742
    %v894 = vunpack.c.h.b16 %v742
    %v895 = vunpack.c.l.b16 %v743
    %v896 = vunpack.c.h.b16 %v743
    %v897 = vunpack.c.l.b16 %v744
    %v898 = vunpack.c.h.b16 %v744
    %v899 = vunpack.c.l.b16 %v745
    %v900 = vunpack.c.h.b16 %v745
    %v901 = vunpack.c.l.b16 %v746
    %v902 = vunpack.c.h.b16 %v746
    %v903 = vunpack.c.l.b16 %v747
    %v904 = vunpack.c.h.b16 %v747
    %v905 = vunpack.c.l.b16 %v748
    %v906 = vunpack.c.h.b16 %v748
    %v907 = vunpack.c.l.b16 %v749
    %v908 = vunpack.c.h.b16 %v749
    %v909 = vunpack.c.l.b16 %v750
    %v910 = vunpack.c.h.b16 %v750
    %v911 = vunpack.c.l.b16 %v751
    %v912 = vunpack.c.h.b16 %v751
    %v913 = vunpack.c.l.b16 %v752
    %v914 = vunpack.c.h.b16 %v752
    %v915 = vunpack.c.l.b16 %v753
    %v916 = vunpack.c.h.b16 %v753
    %v917 = vunpack.c.l.b16 %v754
    %v918 = vunpack.c.h.b16 %v754
    %v919 = vunpack.c.l.b16 %v755
    %v920 = vunpack.c.h.b16 %v755
    %v921 = vunpack.c.l.b16 %v756
    %v922 = vunpack.c.h.b16 %v756
    %v923 = vunpack.c.l.b16 %v757
    %v924 = vunpack.c.h.b16 %v757
    %v925 = vunpack.c.l.b16 %v758
    %v926 = vunpack.c.h.b16 %v758
    %v927 = vunpack.c.l.b16 %v759
    %v928 = vunpack.c.h.b16 %v759
    %v929 = vunpack.c.l.b16 %v760
    %v930 = vunpack.c.h.b16 %v760
    %v931 = vunpack.c.l.b16 %v761
    %v932 = vunpack.c.h.b16 %v761
    %v933 = vunpack.c.l.b16 %v762
    %v934 = vunpack.c.h.b16 %v762
    %v935 = vunpack.c.l.b16 %v763
    %v936 = vunpack.c.h.b16 %v763
    %v937 = vunpack.c.l.b16 %v764
    %v938 = vunpack.c.h.b16 %v764
    %v939 = vunpack.c.l.b16 %v765
    %v940 = vunpack.c.h.b16 %v765
    %v941 = vunpack.c.l.b16 %v766
    %v942 = vunpack.c.h.b16 %v766
    %v943 = vpack.c.b16 %v853, %v847
    %v944 = vpack.c.b16 %v854, %v848
    %v945 = vpack.c.b16 %v855, %v849
    %v946 = vpack.c.b16 %v856, %v850
    %v947 = vpack.c.b16 %v857, %v851
    %v948 = vpack.c.b16 %v858, %v852
    %v949 = vpack.c.b16 %v865, %v859
    %v950 = vpack.c.b16 %v866, %v860
    %v951 = vpack.c.b16 %v867, %v861
    %v952 = vpack.c.b16 %v868, %v862
    %v953 = vpack.c.b16 %v869, %v863
    %v954 = vpack.c.b16 %v870, %v864
    %v955 = vpack.c.b16 %v877, %v871
    %v956 = vpack.c.b16 %v878, %v872
    %v957 = vpack.c.b16 %v879, %v873
    %v958 = vpack.c.b16 %v880, %v874
    %v959 = vpack.c.b16 %v881, %v875
    %v960 = vpack.c.b16 %v882, %v876
    %v961 = vpack.c.b16 %v889, %v883
    %v962 = vpack.c.b16 %v890, %v884
    %v963 = vpack.c.b16 %v891, %v885
    %v964 = vpack.c.b16 %v892, %v886
    %v965 = vpack.c.b16 %v893, %v887
    %v966 = vpack.c.b16 %v894, %v888
    %v967 = vpack.c.b16 %v901, %v895
    %v968 = vpack.c.b16 %v902, %v896
    %v969 = vpack.c.b16 %v903, %v897
    %v970 = vpack.c.b16 %v904, %v898
    %v971 = vpack.c.b16 %v905, %v899
    %v972 = vpack.c.b16 %v906, %v900
    %v973 = vpack.c.b16 %v913, %v907
    %v974 = vpack.c.b16 %v914, %v908
    %v975 = vpack.c.b16 %v915, %v909
    %v976 = vpack.c.b16 %v916, %v910
    %v977 = vpack.c.b16 %v917, %v911
    %v978 = vpack.c.b16 %v918, %v912
    %v979 = vpack.c.b16 %v925, %v919
    %v980 = vpack.c.b16 %v926, %v920
    %v981 = vpack.c.b16 %v927, %v921
    %v982 = vpack.c.b16 %v928, %v922
    %v983 = vpack.c.b16 %v929, %v923
    %v984 = vpack.c.b16 %v930, %v924
    %v985 = vpack.c.b16 %v937, %v931
    %v986 = vpack.c.b16 %v938, %v932
    %v987 = vpack.c.b16 %v939, %v933
    %v988 = vpack.c.b16 %v940, %v934
    %v989 = vpack.c.b16 %v941, %v935
    %v990 = vpack.c.b16 %v942, %v936
    %1039 = vmatprep.subr.bf16.mxu0 %v944
    %1040 = vmatpush1.bf16.msra.mxu0 %v943
    %1041 = vmatprep.subr.bf16.mxu0 %v950
    %1042 = vmatpush1.bf16.msra.mxu0 %v949
    %1043 = vmatprep.subr.bf16.mxu0 %v956
    %1044 = vmatpush1.bf16.msra.mxu0 %v955
    %1045 = vmatprep.subr.bf16.mxu0 %v962
    %1046 = vmatpush1.bf16.msra.mxu0 %v961
    %1047 = vmatprep.subr.bf16.mxu0 %v968
    %1048 = vmatpush1.bf16.msra.mxu0 %v967
    %1049 = vmatprep.subr.bf16.mxu0 %v974
    %1050 = vmatpush1.bf16.msra.mxu0 %v973
    %1051 = vmatprep.subr.bf16.mxu0 %v980
    %1052 = vmatpush1.bf16.msra.mxu0 %v979
    %1053 = vmatprep.subr.bf16.mxu0 %v986
    %1054 = vmatpush1.bf16.msra.mxu0 %v985
    %1055 = vmatprep.subr.bf16.mxu0 0
    %1056 = vmatpush1.bf16.msra.mxu0 0
    %1057 = vmatprep.subr.bf16.mxu0 0
    %1058 = vmatpush1.bf16.msra.mxu0 0
    %1059 = vmatprep.subr.bf16.mxu0 0
    %1060 = vmatpush1.bf16.msra.mxu0 0
    %1061 = vmatprep.subr.bf16.mxu0 0
    %1062 = vmatpush1.bf16.msra.mxu0 0
    %1063 = vmatprep.subr.bf16.mxu0 0
    %1064 = vmatpush1.bf16.msra.mxu0 0
    %1065 = vmatprep.subr.bf16.mxu0 0
    %1066 = vmatpush1.bf16.msra.mxu0 0
    %1067 = vmatprep.subr.bf16.mxu0 0
    %1068 = vmatpush1.bf16.msra.mxu0 0
    %1069 = vmatprep.subr.bf16.mxu0 0
    %1070 = vmatpush1.bf16.msra.mxu0 0
    %1071 = vmatprep.mubr.bf16.mxu0 0
    %1072 = vmatmul.mubr.bf16.gmra.mrb[0].mxu0 %v715
    %v1073 = vpop.f32.mrb[0].mxu0
    %v1074 = vadd.f32 %v772, %v1073
    %v1075 = vpop.f32.mrb[0].mxu0
    %v1076 = vadd.f32 %v776, %v1075
    %v1077 = vpop.f32.mrb[0].mxu0
    %v1078 = vadd.f32 %v772, %v1077
    %v1079 = vpop.f32.mrb[0].mxu0
    %v1080 = vadd.f32 %v776, %v1079
    %1081 = vmatprep.mubr.bf16.mxu0 0
    %1082 = vmatmul.mubr.bf16.gmra.mrb[0].mxu0 %v716
    %v1083 = vpop.f32.mrb[0].mxu0
    %v1084 = vadd.f32 %v772, %v1083
    %v1085 = vpop.f32.mrb[0].mxu0
    %v1086 = vadd.f32 %v776, %v1085
    %v1087 = vpop.f32.mrb[0].mxu0
    %v1088 = vadd.f32 %v772, %v1087
    %v1089 = vpop.f32.mrb[0].mxu0
    %v1090 = vadd.f32 %v776, %v1089
    %1091 = vmatprep.mubr.bf16.mxu0 0
    %1092 = vmatmul.mubr.bf16.gmra.mrb[0].mxu0 %v717
    %v1093 = vpop.f32.mrb[0].mxu0
    %v1094 = vadd.f32 %v772, %v1093
    %v1095 = vpop.f32.mrb[0].mxu0
    %v1096 = vadd.f32 %v776, %v1095
    %v1097 = vpop.f32.mrb[0].mxu0
    %v1098 = vadd.f32 %v772, %v1097
    %v1099 = vpop.f32.mrb[0].mxu0
    %v1100 = vadd.f32 %v776, %v1099
    %1101 = vmatprep.mubr.bf16.mxu0 0
    %1102 = vmatmul.mubr.bf16.gmra.mrb[0].mxu0 %v718
    %v1103 = vpop.f32.mrb[0].mxu0
    %v1104 = vadd.f32 %v772, %v1103
    %v1105 = vpop.f32.mrb[0].mxu0
    %v1106 = vadd.f32 %v776, %v1105
    %v1107 = vpop.f32.mrb[0].mxu0
    %v1108 = vadd.f32 %v772, %v1107
    %v1109 = vpop.f32.mrb[0].mxu0
    %v1110 = vadd.f32 %v776, %v1109
    %1111 = vdwg.mxu0
    %1112 = vmatprep.subr.bf16.mxu0 %v946
    %1113 = vmatpush1.bf16.msra.mxu0 %v945
    %1114 = vmatprep.subr.bf16.mxu0 %v952
    %1115 = vmatpush1.bf16.msra.mxu0 %v951
    %1116 = vmatprep.subr.bf16.mxu0 %v958
    %1117 = vmatpush1.bf16.msra.mxu0 %v957
    %1118 = vmatprep.subr.bf16.mxu0 %v964
    %1119 = vmatpush1.bf16.msra.mxu0 %v963
    %1120 = vmatprep.subr.bf16.mxu0 %v970
    %1121 = vmatpush1.bf16.msra.mxu0 %v969
    %1122 = vmatprep.subr.bf16.mxu0 %v976
    %1123 = vmatpush1.bf16.msra.mxu0 %v975
    %1124 = vmatprep.subr.bf16.mxu0 %v982
    %1125 = vmatpush1.bf16.msra.mxu0 %v981
    %1126 = vmatprep.subr.bf16.mxu0 %v988
    %1127 = vmatpush1.bf16.msra.mxu0 %v987
    %1128 = vmatprep.subr.bf16.mxu0 0
    %1129 = vmatpush1.bf16.msra.mxu0 0
    %1130 = vmatprep.subr.bf16.mxu0 0
    %1131 = vmatpush1.bf16.msra.mxu0 0
    %1132 = vmatprep.subr.bf16.mxu0 0
    %1133 = vmatpush1.bf16.msra.mxu0 0
    %1134 = vmatprep.subr.bf16.mxu0 0
    %1135 = vmatpush1.bf16.msra.mxu0 0
    %1136 = vmatprep.subr.bf16.mxu0 0
    %1137 = vmatpush1.bf16.msra.mxu0 0
    %1138 = vmatprep.subr.bf16.mxu0 0
    %1139 = vmatpush1.bf16.msra.mxu0 0
    %1140 = vmatprep.subr.bf16.mxu0 0
    %1141 = vmatpush1.bf16.msra.mxu0 0
    %1142 = vmatprep.subr.bf16.mxu0 0
    %1143 = vmatpush1.bf16.msra.mxu0 0
    %1144 = vmatprep.mubr.bf16.mxu0 0
    %1145 = vmatmul.mubr.bf16.gmra.mrb[0].mxu0 %v715
    %v1146 = vpop.f32.mrb[0].mxu0
    %v1147 = vadd.f32 %v780, %v1146
    %v1148 = vpop.f32.mrb[0].mxu0
    %v1149 = vadd.f32 %v784, %v1148
    %v1150 = vpop.f32.mrb[0].mxu0
    %v1151 = vadd.f32 %v780, %v1150
    %v1152 = vpop.f32.mrb[0].mxu0
    %v1153 = vadd.f32 %v784, %v1152
    %1154 = vmatprep.mubr.bf16.mxu0 0
    %1155 = vmatmul.mubr.bf16.gmra.mrb[0].mxu0 %v716
    %v1156 = vpop.f32.mrb[0].mxu0
    %v1157 = vadd.f32 %v780, %v1156
    %v1158 = vpop.f32.mrb[0].mxu0
    %v1159 = vadd.f32 %v784, %v1158
    %v1160 = vpop.f32.mrb[0].mxu0
    %v1161 = vadd.f32 %v780, %v1160
    %v1162 = vpop.f32.mrb[0].mxu0
    %v1163 = vadd.f32 %v784, %v1162
    %1164 = vmatprep.mubr.bf16.mxu0 0
    %1165 = vmatmul.mubr.bf16.gmra.mrb[0].mxu0 %v717
    %v1166 = vpop.f32.mrb[0].mxu0
    %v1167 = vadd.f32 %v780, %v1166
    %v1168 = vpop.f32.mrb[0].mxu0
    %v1169 = vadd.f32 %v784, %v1168
    %v1170 = vpop.f32.mrb[0].mxu0
    %v1171 = vadd.f32 %v780, %v1170
    %v1172 = vpop.f32.mrb[0].mxu0
    %v1173 = vadd.f32 %v784, %v1172
    %1174 = vmatprep.mubr.bf16.mxu0 0
    %1175 = vmatmul.mubr.bf16.gmra.mrb[0].mxu0 %v718
    %v1176 = vpop.f32.mrb[0].mxu0
    %v1177 = vadd.f32 %v780, %v1176
    %v1178 = vpop.f32.mrb[0].mxu0
    %v1179 = vadd.f32 %v784, %v1178
    %v1180 = vpop.f32.mrb[0].mxu0
    %v1181 = vadd.f32 %v780, %v1180
    %v1182 = vpop.f32.mrb[0].mxu0
    %v1183 = vadd.f32 %v784, %v1182
    %1184 = vdwg.mxu0
    %1185 = vmatprep.subr.bf16.mxu0 %v948
    %1186 = vmatpush1.bf16.msra.mxu0 %v947
    %1187 = vmatprep.subr.bf16.mxu0 %v954
    %1188 = vmatpush1.bf16.msra.mxu0 %v953
    %1189 = vmatprep.subr.bf16.mxu0 %v960
    %1190 = vmatpush1.bf16.msra.mxu0 %v959
    %1191 = vmatprep.subr.bf16.mxu0 %v966
    %1192 = vmatpush1.bf16.msra.mxu0 %v965
    %1193 = vmatprep.subr.bf16.mxu0 %v972
    %1194 = vmatpush1.bf16.msra.mxu0 %v971
    %1195 = vmatprep.subr.bf16.mxu0 %v978
    %1196 = vmatpush1.bf16.msra.mxu0 %v977
    %1197 = vmatprep.subr.bf16.mxu0 %v984
    %1198 = vmatpush1.bf16.msra.mxu0 %v983
    %1199 = vmatprep.subr.bf16.mxu0 %v990
    %1200 = vmatpush1.bf16.msra.mxu0 %v989
    %1201 = vmatprep.subr.bf16.mxu0 0
    %1202 = vmatpush1.bf16.msra.mxu0 0
    %1203 = vmatprep.subr.bf16.mxu0 0
    %1204 = vmatpush1.bf16.msra.mxu0 0
    %1205 = vmatprep.subr.bf16.mxu0 0
    %1206 = vmatpush1.bf16.msra.mxu0 0
    %1207 = vmatprep.subr.bf16.mxu0 0
    %1208 = vmatpush1.bf16.msra.mxu0 0
    %1209 = vmatprep.subr.bf16.mxu0 0
    %1210 = vmatpush1.bf16.msra.mxu0 0
    %1211 = vmatprep.subr.bf16.mxu0 0
    %1212 = vmatpush1.bf16.msra.mxu0 0
    %1213 = vmatprep.subr.bf16.mxu0 0
    %1214 = vmatpush1.bf16.msra.mxu0 0
    %1215 = vmatprep.subr.bf16.mxu0 0
    %1216 = vmatpush1.bf16.msra.mxu0 0
    %1217 = vmatprep.mubr.bf16.mxu0 0
    %1218 = vmatmul.mubr.bf16.gmra.mrb[0].mxu0 %v715
    %v1219 = vpop.f32.mrb[0].mxu0
    %v1220 = vadd.f32 %v788, %v1219
    %v1221 = vpop.f32.mrb[0].mxu0
    %v1222 = vadd.f32 %v792, %v1221
    %v1223 = vpop.f32.mrb[0].mxu0
    %v1224 = vadd.f32 %v788, %v1223
    %v1225 = vpop.f32.mrb[0].mxu0
    %v1226 = vadd.f32 %v792, %v1225
    %1227 = vmatprep.mubr.bf16.mxu0 0
    %1228 = vmatmul.mubr.bf16.gmra.mrb[0].mxu0 %v716
    %v1229 = vpop.f32.mrb[0].mxu0
    %v1230 = vadd.f32 %v788, %v1229
    %v1231 = vpop.f32.mrb[0].mxu0
    %v1232 = vadd.f32 %v792, %v1231
    %v1233 = vpop.f32.mrb[0].mxu0
    %v1234 = vadd.f32 %v788, %v1233
    %v1235 = vpop.f32.mrb[0].mxu0
    %v1236 = vadd.f32 %v792, %v1235
    %1237 = vmatprep.mubr.bf16.mxu0 0
    %1238 = vmatmul.mubr.bf16.gmra.mrb[0].mxu0 %v717
    %v1239 = vpop.f32.mrb[0].mxu0
    %v1240 = vadd.f32 %v788, %v1239
    %v1241 = vpop.f32.mrb[0].mxu0
    %v1242 = vadd.f32 %v792, %v1241
    %v1243 = vpop.f32.mrb[0].mxu0
    %v1244 = vadd.f32 %v788, %v1243
    %v1245 = vpop.f32.mrb[0].mxu0
    %v1246 = vadd.f32 %v792, %v1245
    %1247 = vmatprep.mubr.bf16.mxu0 0
    %1248 = vmatmul.mubr.bf16.gmra.mrb[0].mxu0 %v718
    %v1249 = vpop.f32.mrb[0].mxu0
    %v1250 = vadd.f32 %v788, %v1249
    %v1251 = vpop.f32.mrb[0].mxu0
    %v1252 = vadd.f32 %v792, %v1251
    %v1253 = vpop.f32.mrb[0].mxu0
    %v1254 = vadd.f32 %v788, %v1253
    %v1255 = vpop.f32.mrb[0].mxu0
    %v1256 = vadd.f32 %v792, %v1255
    %1257 = vdwg.mxu0
    %1258 = vst [vmem:[#allocation2] sm:$0xff] %v1074
    %1259 = vst [vmem:[#allocation2 + $0x8] sm:$0xff] %v1076
    %1260 = vst [vmem:[#allocation2 + $0x10] sm:$0xff] %v1147
    %1261 = vst [vmem:[#allocation2 + $0x18] sm:$0xff] %v1149
    %1262 = vst [vmem:[#allocation2 + $0x20] sm:$0xff] %v1220
    %1263 = vst [vmem:[#allocation2 + $0x28] sm:$0xff] %v1222
    %1264 = vst [vmem:[#allocation2 + $0x30] sm:$0xff] %v1078
    %1265 = vst [vmem:[#allocation2 + $0x38] sm:$0xff] %v1080
    %1266 = vst [vmem:[#allocation2 + $0x40] sm:$0xff] %v1151
    %1267 = vst [vmem:[#allocation2 + $0x48] sm:$0xff] %v1153
    %1268 = vst [vmem:[#allocation2 + $0x50] sm:$0xff] %v1224
    %1269 = vst [vmem:[#allocation2 + $0x58] sm:$0xff] %v1226
    %1270 = vst [vmem:[#allocation2 + $0x60] sm:$0xff] %v1084
    %1271 = vst [vmem:[#allocation2 + $0x68] sm:$0xff] %v1086
    %1272 = vst [vmem:[#allocation2 + $0x70] sm:$0xff] %v1157
    %1273 = vst [vmem:[#allocation2 + $0x78] sm:$0xff] %v1159
    %1274 = vst [vmem:[#allocation2 + $0x80] sm:$0xff] %v1230
    %1275 = vst [vmem:[#allocation2 + $0x88] sm:$0xff] %v1232
    %1276 = vst [vmem:[#allocation2 + $0x90] sm:$0xff] %v1088
    %1277 = vst [vmem:[#allocation2 + $0x98] sm:$0xff] %v1090
    %1278 = vst [vmem:[#allocation2 + $0xa0] sm:$0xff] %v1161
    %1279 = vst [vmem:[#allocation2 + $0xa8] sm:$0xff] %v1163
    %1280 = vst [vmem:[#allocation2 + $0xb0] sm:$0xff] %v1234
    %1281 = vst [vmem:[#allocation2 + $0xb8] sm:$0xff] %v1236
    %1282 = vst [vmem:[#allocation2 + $0xc0] sm:$0xff] %v1094
    %1283 = vst [vmem:[#allocation2 + $0xc8] sm:$0xff] %v1096
    %1284 = vst [vmem:[#allocation2 + $0xd0] sm:$0xff] %v1167
    %1285 = vst [vmem:[#allocation2 + $0xd8] sm:$0xff] %v1169
    %1286 = vst [vmem:[#allocation2 + $0xe0] sm:$0xff] %v1240
    %1287 = vst [vmem:[#allocation2 + $0xe8] sm:$0xff] %v1242
    %1288 = vst [vmem:[#allocation2 + $0xf0] sm:$0xff] %v1098
    %1289 = vst [vmem:[#allocation2 + $0xf8] sm:$0xff] %v1100
    %1290 = vst [vmem:[#allocation2 + $0x100] sm:$0xff] %v1171
    %1291 = vst [vmem:[#allocation2 + $0x108] sm:$0xff] %v1173
    %1292 = vst [vmem:[#allocation2 + $0x110] sm:$0xff] %v1244
    %1293 = vst [vmem:[#allocation2 + $0x118] sm:$0xff] %v1246
    %1294 = vst [vmem:[#allocation2 + $0x120] sm:$0xff] %v1104
    %1295 = vst [vmem:[#allocation2 + $0x128] sm:$0xff] %v1106
    %1296 = vst [vmem:[#allocation2 + $0x130] sm:$0xff] %v1177
    %1297 = vst [vmem:[#allocation2 + $0x138] sm:$0xff] %v1179
    %1298 = vst [vmem:[#allocation2 + $0x140] sm:$0xff] %v1250
    %1299 = vst [vmem:[#allocation2 + $0x148] sm:$0xff] %v1252
    %1300 = vst [vmem:[#allocation2 + $0x150] sm:$0xff] %v1108
    %1301 = vst [vmem:[#allocation2 + $0x158] sm:$0xff] %v1110
    %1302 = vst [vmem:[#allocation2 + $0x160] sm:$0xff] %v1181
    %1303 = vst [vmem:[#allocation2 + $0x168] sm:$0xff] %v1183
    %1304 = vst [vmem:[#allocation2 + $0x170] sm:$0xff] %v1254
    %1305 = vst [vmem:[#allocation2 + $0x178] sm:$0xff] %v1256
    %v1306 = vld [vmem:[%s2] sm:$0xff]
    %v1307 = vld [vmem:[%s2 + $0x8] sm:$0xff]
    %v1308 = vld [vmem:[%s6] sm:$0xff]
    %v1309 = vld [vmem:[%s6 + $0x8] sm:$0xff]
    %v1310 = vld [vmem:[%s8] sm:$0xff]
    %v1311 = vld [vmem:[%s8 + $0x8] sm:$0xff]
    %v1312 = vld [vmem:[%s7] sm:$0xff]
    %v1313 = vld [vmem:[%s7 + $0x8] sm:$0xff]
    %v1314 = vld [vmem:[%s7 + $0x10] sm:$0xff]
    %v1315 = vld [vmem:[%s7 + $0x18] sm:$0xff]
    %v1316 = vld [vmem:[%s7 + $0x20] sm:$0xff]
    %v1317 = vld [vmem:[%s7 + $0x28] sm:$0xff]
    %v1318 = vld [vmem:[#allocation2] sm:$0xff]
    %v1319 = vld [vmem:[#allocation2 + $0x8] sm:$0xff]
    %v1320 = vld [vmem:[#allocation2 + $0x10] sm:$0xff]
    %v1321 = vld [vmem:[#allocation2 + $0x18] sm:$0xff]
    %v1322 = vld [vmem:[#allocation2 + $0x20] sm:$0xff]
    %v1323 = vld [vmem:[#allocation2 + $0x28] sm:$0xff]
    %v1324 = vld [vmem:[#allocation11] sm:$0xff]
    %v1325 = vld [vmem:[#allocation11 + $0x8] sm:$0xff]
    %v1326 = vld [vmem:[#allocation11 + $0x10] sm:$0xff]
    %v1327 = vld [vmem:[#allocation11 + $0x18] sm:$0xff]
    %v1328 = vld [vmem:[#allocation11 + $0x20] sm:$0xff]
    %v1329 = vld [vmem:[#allocation11 + $0x28] sm:$0xff]
    %v1330 = vld [vmem:[#allocation11 + $0x30] sm:$0xff]
    %v1331 = vld [vmem:[#allocation11 + $0x38] sm:$0xff]
    %v1332 = vld [vmem:[#allocation11 + $0x40] sm:$0xff]
    %v1333 = vld [vmem:[#allocation11 + $0x48] sm:$0xff]
    %v1334 = vld [vmem:[#allocation11 + $0x50] sm:$0xff]
    %v1335 = vld [vmem:[#allocation11 + $0x58] sm:$0xff]
    %v1336 = vld [vmem:[#allocation11 + $0x60] sm:$0xff]
    %v1337 = vld [vmem:[#allocation11 + $0x68] sm:$0xff]
    %v1338 = vld [vmem:[#allocation11 + $0x70] sm:$0xff]
    %v1339 = vld [vmem:[#allocation11 + $0x78] sm:$0xff]
    %v1340 = vld [vmem:[#allocation11 + $0x80] sm:$0xff]
    %v1341 = vld [vmem:[#allocation11 + $0x88] sm:$0xff]
    %v1342 = vld [vmem:[#allocation11 + $0x90] sm:$0xff]
    %v1343 = vld [vmem:[#allocation11 + $0x98] sm:$0xff]
    %v1344 = vld [vmem:[#allocation11 + $0xa0] sm:$0xff]
    %v1345 = vld [vmem:[#allocation11 + $0xa8] sm:$0xff]
    %v1346 = vld [vmem:[#allocation11 + $0xb0] sm:$0xff]
    %v1347 = vld [vmem:[#allocation11 + $0xb8] sm:$0xff]
    %v1348 = vld [vmem:[#allocation11 + $0xc0] sm:$0xff]
    %v1349 = vld [vmem:[#allocation11 + $0xc8] sm:$0xff]
    %v1350 = vld [vmem:[#allocation11 + $0xd0] sm:$0xff]
    %v1351 = vld [vmem:[#allocation11 + $0xd8] sm:$0xff]
    %v1352 = vld [vmem:[#allocation11 + $0xe0] sm:$0xff]
    %v1353 = vld [vmem:[#allocation11 + $0xe8] sm:$0xff]
    %v1354 = vld [vmem:[#allocation11 + $0xf0] sm:$0xff]
    %v1355 = vld [vmem:[#allocation11 + $0xf8] sm:$0xff]
    %v1356 = vld [vmem:[#allocation11 + $0x100] sm:$0xff]
    %v1357 = vld [vmem:[#allocation11 + $0x108] sm:$0xff]
    %v1358 = vld [vmem:[#allocation11 + $0x110] sm:$0xff]
    %v1359 = vld [vmem:[#allocation11 + $0x118] sm:$0xff]
    %v1360 = vld [vmem:[#allocation11 + $0x120] sm:$0xff]
    %v1361 = vld [vmem:[#allocation11 + $0x128] sm:$0xff]
    %v1362 = vld [vmem:[#allocation11 + $0x130] sm:$0xff]
    %v1363 = vld [vmem:[#allocation11 + $0x138] sm:$0xff]
    %v1364 = vld [vmem:[#allocation11 + $0x140] sm:$0xff]
    %v1365 = vld [vmem:[#allocation11 + $0x148] sm:$0xff]
    %v1366 = vld [vmem:[#allocation11 + $0x150] sm:$0xff]
    %v1367 = vld [vmem:[#allocation11 + $0x158] sm:$0xff]
    %v1368 = vld [vmem:[#allocation11 + $0x160] sm:$0xff]
    %v1369 = vld [vmem:[#allocation11 + $0x168] sm:$0xff]
    %v1370 = vld [vmem:[#allocation11 + $0x170] sm:$0xff]
    %v1371 = vld [vmem:[#allocation11 + $0x178] sm:$0xff]
    %v1372 = vld [vmem:[#allocation11 + $0x180] sm:$0xff]
    %v1373 = vld [vmem:[#allocation11 + $0x188] sm:$0xff]
    %v1374 = vld [vmem:[#allocation11 + $0x190] sm:$0xff]
    %v1375 = vld [vmem:[#allocation11 + $0x198] sm:$0xff]
    %v1376 = vld [vmem:[#allocation11 + $0x1a0] sm:$0xff]
    %v1377 = vld [vmem:[#allocation11 + $0x1a8] sm:$0xff]
    %v1378 = vld [vmem:[#allocation11 + $0x1b0] sm:$0xff]
    %v1379 = vld [vmem:[#allocation11 + $0x1b8] sm:$0xff]
    %v1380 = vld [vmem:[#allocation11 + $0x1c0] sm:$0xff]
    %v1381 = vld [vmem:[#allocation11 + $0x1c8] sm:$0xff]
    %v1382 = vld [vmem:[#allocation11 + $0x1d0] sm:$0xff]
    %v1383 = vld [vmem:[#allocation11 + $0x1d8] sm:$0xff]
    %v1384 = vld [vmem:[#allocation11 + $0x1e0] sm:$0xff]
    %v1385 = vld [vmem:[#allocation11 + $0x1e8] sm:$0xff]
    %v1386 = vld [vmem:[#allocation11 + $0x1f0] sm:$0xff]
    %v1387 = vld [vmem:[#allocation11 + $0x1f8] sm:$0xff]
    %v1388 = vld [vmem:[#allocation11 + $0x200] sm:$0xff]
    %v1389 = vld [vmem:[#allocation11 + $0x208] sm:$0xff]
    %v1390 = vld [vmem:[#allocation11 + $0x210] sm:$0xff]
    %v1391 = vld [vmem:[#allocation11 + $0x218] sm:$0xff]
    %v1392 = vld [vmem:[#allocation11 + $0x220] sm:$0xff]
    %v1393 = vld [vmem:[#allocation11 + $0x228] sm:$0xff]
    %v1394 = vld [vmem:[#allocation11 + $0x230] sm:$0xff]
    %v1395 = vld [vmem:[#allocation11 + $0x238] sm:$0xff]
    %v1396 = vld [vmem:[#allocation11 + $0x240] sm:$0xff]
    %v1397 = vld [vmem:[#allocation11 + $0x248] sm:$0xff]
    %v1398 = vld [vmem:[#allocation11 + $0x250] sm:$0xff]
    %v1399 = vld [vmem:[#allocation11 + $0x258] sm:$0xff]
    %v1400 = vld [vmem:[#allocation11 + $0x260] sm:$0xff]
    %v1401 = vld [vmem:[#allocation11 + $0x268] sm:$0xff]
    %v1402 = vld [vmem:[#allocation11 + $0x270] sm:$0xff]
    %v1403 = vld [vmem:[#allocation11 + $0x278] sm:$0xff]
    %v1404 = vld [vmem:[#allocation11 + $0x280] sm:$0xff]
    %v1405 = vld [vmem:[#allocation11 + $0x288] sm:$0xff]
    %v1406 = vld [vmem:[#allocation11 + $0x290] sm:$0xff]
    %v1407 = vld [vmem:[#allocation11 + $0x298] sm:$0xff]
    %v1408 = vld [vmem:[#allocation11 + $0x2a0] sm:$0xff]
    %v1409 = vld [vmem:[#allocation11 + $0x2a8] sm:$0xff]
    %v1410 = vld [vmem:[#allocation11 + $0x2b0] sm:$0xff]
    %v1411 = vld [vmem:[#allocation11 + $0x2b8] sm:$0xff]
    %v1412 = vld [vmem:[#allocation11 + $0x2c0] sm:$0xff]
    %v1413 = vld [vmem:[#allocation11 + $0x2c8] sm:$0xff]
    %v1414 = vld [vmem:[#allocation11 + $0x2d0] sm:$0xff]
    %v1415 = vld [vmem:[#allocation11 + $0x2d8] sm:$0xff]
    %v1416 = vld [vmem:[#allocation11 + $0x2e0] sm:$0xff]
    %v1417 = vld [vmem:[#allocation11 + $0x2e8] sm:$0xff]
    %v1418 = vld [vmem:[#allocation11 + $0x2f0] sm:$0xff]
    %v1419 = vld [vmem:[#allocation11 + $0x2f8] sm:$0xff]
    %v1516 = vunpack.c.l.b16 %v1324
    %v1517 = vunpack.c.h.b16 %v1324
    %v1518 = vunpack.c.l.b16 %v1325
    %v1519 = vunpack.c.h.b16 %v1325
    %v1520 = vunpack.c.l.b16 %v1326
    %v1521 = vunpack.c.h.b16 %v1326
    %v1522 = vunpack.c.l.b16 %v1327
    %v1523 = vunpack.c.h.b16 %v1327
    %v1524 = vunpack.c.l.b16 %v1328
    %v1525 = vunpack.c.h.b16 %v1328
    %v1526 = vunpack.c.l.b16 %v1329
    %v1527 = vunpack.c.h.b16 %v1329
    %v1528 = vunpack.c.l.b16 %v1330
    %v1529 = vunpack.c.h.b16 %v1330
    %v1530 = vunpack.c.l.b16 %v1331
    %v1531 = vunpack.c.h.b16 %v1331
    %v1532 = vunpack.c.l.b16 %v1332
    %v1533 = vunpack.c.h.b16 %v1332
    %v1534 = vunpack.c.l.b16 %v1333
    %v1535 = vunpack.c.h.b16 %v1333
    %v1536 = vunpack.c.l.b16 %v1334
    %v1537 = vunpack.c.h.b16 %v1334
    %v1538 = vunpack.c.l.b16 %v1335
    %v1539 = vunpack.c.h.b16 %v1335
    %v1540 = vunpack.c.l.b16 %v1336
    %v1541 = vunpack.c.h.b16 %v1336
    %v1542 = vunpack.c.l.b16 %v1337
    %v1543 = vunpack.c.h.b16 %v1337
    %v1544 = vunpack.c.l.b16 %v1338
    %v1545 = vunpack.c.h.b16 %v1338
    %v1546 = vunpack.c.l.b16 %v1339
    %v1547 = vunpack.c.h.b16 %v1339
    %v1548 = vunpack.c.l.b16 %v1340
    %v1549 = vunpack.c.h.b16 %v1340
    %v1550 = vunpack.c.l.b16 %v1341
    %v1551 = vunpack.c.h.b16 %v1341
    %v1552 = vunpack.c.l.b16 %v1342
    %v1553 = vunpack.c.h.b16 %v1342
    %v1554 = vunpack.c.l.b16 %v1343
    %v1555 = vunpack.c.h.b16 %v1343
    %v1556 = vunpack.c.l.b16 %v1344
    %v1557 = vunpack.c.h.b16 %v1344
    %v1558 = vunpack.c.l.b16 %v1345
    %v1559 = vunpack.c.h.b16 %v1345
    %v1560 = vunpack.c.l.b16 %v1346
    %v1561 = vunpack.c.h.b16 %v1346
    %v1562 = vunpack.c.l.b16 %v1347
    %v1563 = vunpack.c.h.b16 %v1347
    %v1564 = vunpack.c.l.b16 %v1348
    %v1565 = vunpack.c.h.b16 %v1348
    %v1566 = vunpack.c.l.b16 %v1349
    %v1567 = vunpack.c.h.b16 %v1349
    %v1568 = vunpack.c.l.b16 %v1350
    %v1569 = vunpack.c.h.b16 %v1350
    %v1570 = vunpack.c.l.b16 %v1351
    %v1571 = vunpack.c.h.b16 %v1351
    %v1572 = vunpack.c.l.b16 %v1352
    %v1573 = vunpack.c.h.b16 %v1352
    %v1574 = vunpack.c.l.b16 %v1353
    %v1575 = vunpack.c.h.b16 %v1353
    %v1576 = vunpack.c.l.b16 %v1354
    %v1577 = vunpack.c.h.b16 %v1354
    %v1578 = vunpack.c.l.b16 %v1355
    %v1579 = vunpack.c.h.b16 %v1355
    %v1580 = vunpack.c.l.b16 %v1356
    %v1581 = vunpack.c.h.b16 %v1356
    %v1582 = vunpack.c.l.b16 %v1357
    %v1583 = vunpack.c.h.b16 %v1357
    %v1584 = vunpack.c.l.b16 %v1358
    %v1585 = vunpack.c.h.b16 %v1358
    %v1586 = vunpack.c.l.b16 %v1359
    %v1587 = vunpack.c.h.b16 %v1359
    %v1588 = vunpack.c.l.b16 %v1360
    %v1589 = vunpack.c.h.b16 %v1360
    %v1590 = vunpack.c.l.b16 %v1361
    %v1591 = vunpack.c.h.b16 %v1361
    %v1592 = vunpack.c.l.b16 %v1362
    %v1593 = vunpack.c.h.b16 %v1362
    %v1594 = vunpack.c.l.b16 %v1363
    %v1595 = vunpack.c.h.b16 %v1363
    %v1596 = vunpack.c.l.b16 %v1364
    %v1597 = vunpack.c.h.b16 %v1364
    %v1598 = vunpack.c.l.b16 %v1365
    %v1599 = vunpack.c.h.b16 %v1365
    %v1600 = vunpack.c.l.b16 %v1366
    %v1601 = vunpack.c.h.b16 %v1366
    %v1602 = vunpack.c.l.b16 %v1367
    %v1603 = vunpack.c.h.b16 %v1367
    %v1604 = vunpack.c.l.b16 %v1368
    %v1605 = vunpack.c.h.b16 %v1368
    %v1606 = vunpack.c.l.b16 %v1369
    %v1607 = vunpack.c.h.b16 %v1369
    %v1608 = vunpack.c.l.b16 %v1370
    %v1609 = vunpack.c.h.b16 %v1370
    %v1610 = vunpack.c.l.b16 %v1371
    %v1611 = vunpack.c.h.b16 %v1371
    %v1612 = vunpack.c.l.b16 %v1372
    %v1613 = vunpack.c.h.b16 %v1372
    %v1614 = vunpack.c.l.b16 %v1373
    %v1615 = vunpack.c.h.b16 %v1373
    %v1616 = vunpack.c.l.b16 %v1374
    %v1617 = vunpack.c.h.b16 %v1374
    %v1618 = vunpack.c.l.b16 %v1375
    %v1619 = vunpack.c.h.b16 %v1375
    %v1620 = vunpack.c.l.b16 %v1376
    %v1621 = vunpack.c.h.b16 %v1376
    %v1622 = vunpack.c.l.b16 %v1377
    %v1623 = vunpack.c.h.b16 %v1377
    %v1624 = vunpack.c.l.b16 %v1378
    %v1625 = vunpack.c.h.b16 %v1378
    %v1626 = vunpack.c.l.b16 %v1379
    %v1627 = vunpack.c.h.b16 %v1379
    %v1628 = vunpack.c.l.b16 %v1380
    %v1629 = vunpack.c.h.b16 %v1380
    %v1630 = vunpack.c.l.b16 %v1381
    %v1631 = vunpack.c.h.b16 %v1381
    %v1632 = vunpack.c.l.b16 %v1382
    %v1633 = vunpack.c.h.b16 %v1382
    %v1634 = vunpack.c.l.b16 %v1383
    %v1635 = vunpack.c.h.b16 %v1383
    %v1636 = vunpack.c.l.b16 %v1384
    %v1637 = vunpack.c.h.b16 %v1384
    %v1638 = vunpack.c.l.b16 %v1385
    %v1639 = vunpack.c.h.b16 %v1385
    %v1640 = vunpack.c.l.b16 %v1386
    %v1641 = vunpack.c.h.b16 %v1386
    %v1642 = vunpack.c.l.b16 %v1387
    %v1643 = vunpack.c.h.b16 %v1387
    %v1644 = vunpack.c.l.b16 %v1388
    %v1645 = vunpack.c.h.b16 %v1388
    %v1646 = vunpack.c.l.b16 %v1389
    %v1647 = vunpack.c.h.b16 %v1389
    %v1648 = vunpack.c.l.b16 %v1390
    %v1649 = vunpack.c.h.b16 %v1390
    %v1650 = vunpack.c.l.b16 %v1391
    %v1651 = vunpack.c.h.b16 %v1391
    %v1652 = vunpack.c.l.b16 %v1392
    %v1653 = vunpack.c.h.b16 %v1392
    %v1654 = vunpack.c.l.b16 %v1393
    %v1655 = vunpack.c.h.b16 %v1393
    %v1656 = vunpack.c.l.b16 %v1394
    %v1657 = vunpack.c.h.b16 %v1394
    %v1658 = vunpack.c.l.b16 %v1395
    %v1659 = vunpack.c.h.b16 %v1395
    %v1660 = vunpack.c.l.b16 %v1396
    %v1661 = vunpack.c.h.b16 %v1396
    %v1662 = vunpack.c.l.b16 %v1397
    %v1663 = vunpack.c.h.b16 %v1397
    %v1664 = vunpack.c.l.b16 %v1398
    %v1665 = vunpack.c.h.b16 %v1398
    %v1666 = vunpack.c.l.b16 %v1399
    %v1667 = vunpack.c.h.b16 %v1399
    %v1668 = vunpack.c.l.b16 %v1400
    %v1669 = vunpack.c.h.b16 %v1400
    %v1670 = vunpack.c.l.b16 %v1401
    %v1671 = vunpack.c.h.b16 %v1401
    %v1672 = vunpack.c.l.b16 %v1402
    %v1673 = vunpack.c.h.b16 %v1402
    %v1674 = vunpack.c.l.b16 %v1403
    %v1675 = vunpack.c.h.b16 %v1403
    %v1676 = vunpack.c.l.b16 %v1404
    %v1677 = vunpack.c.h.b16 %v1404
    %v1678 = vunpack.c.l.b16 %v1405
    %v1679 = vunpack.c.h.b16 %v1405
    %v1680 = vunpack.c.l.b16 %v1406
    %v1681 = vunpack.c.h.b16 %v1406
    %v1682 = vunpack.c.l.b16 %v1407
    %v1683 = vunpack.c.h.b16 %v1407
    %v1684 = vunpack.c.l.b16 %v1408
    %v1685 = vunpack.c.h.b16 %v1408
    %v1686 = vunpack.c.l.b16 %v1409
    %v1687 = vunpack.c.h.b16 %v1409
    %v1688 = vunpack.c.l.b16 %v1410
    %v1689 = vunpack.c.h.b16 %v1410
    %v1690 = vunpack.c.l.b16 %v1411
    %v1691 = vunpack.c.h.b16 %v1411
    %v1692 = vunpack.c.l.b16 %v1412
    %v1693 = vunpack.c.h.b16 %v1412
    %v1694 = vunpack.c.l.b16 %v1413
    %v1695 = vunpack.c.h.b16 %v1413
    %v1696 = vunpack.c.l.b16 %v1414
    %v1697 = vunpack.c.h.b16 %v1414
    %v1698 = vunpack.c.l.b16 %v1415
    %v1699 = vunpack.c.h.b16 %v1415
    %v1700 = vunpack.c.l.b16 %v1416
    %v1701 = vunpack.c.h.b16 %v1416
    %v1702 = vunpack.c.l.b16 %v1417
    %v1703 = vunpack.c.h.b16 %v1417
    %v1704 = vunpack.c.l.b16 %v1418
    %v1705 = vunpack.c.h.b16 %v1418
    %v1706 = vunpack.c.l.b16 %v1419
    %v1707 = vunpack.c.h.b16 %v1419
    %v1708 = vpack.c.b16 %v1522, %v1516
    %v1709 = vpack.c.b16 %v1523, %v1517
    %v1710 = vpack.c.b16 %v1524, %v1518
    %v1711 = vpack.c.b16 %v1525, %v1519
    %v1712 = vpack.c.b16 %v1526, %v1520
    %v1713 = vpack.c.b16 %v1527, %v1521
    %v1714 = vpack.c.b16 %v1534, %v1528
    %v1715 = vpack.c.b16 %v1535, %v1529
    %v1716 = vpack.c.b16 %v1536, %v1530
    %v1717 = vpack.c.b16 %v1537, %v1531
    %v1718 = vpack.c.b16 %v1538, %v1532
    %v1719 = vpack.c.b16 %v1539, %v1533
    %v1720 = vpack.c.b16 %v1546, %v1540
    %v1721 = vpack.c.b16 %v1547, %v1541
    %v1722 = vpack.c.b16 %v1548, %v1542
    %v1723 = vpack.c.b16 %v1549, %v1543
    %v1724 = vpack.c.b16 %v1550, %v1544
    %v1725 = vpack.c.b16 %v1551, %v1545
    %v1726 = vpack.c.b16 %v1558, %v1552
    %v1727 = vpack.c.b16 %v1559, %v1553
    %v1728 = vpack.c.b16 %v1560, %v1554
    %v1729 = vpack.c.b16 %v1561, %v1555
    %v1730 = vpack.c.b16 %v1562, %v1556
    %v1731 = vpack.c.b16 %v1563, %v1557
    %v1732 = vpack.c.b16 %v1570, %v1564
    %v1733 = vpack.c.b16 %v1571, %v1565
    %v1734 = vpack.c.b16 %v1572, %v1566
    %v1735 = vpack.c.b16 %v1573, %v1567
    %v1736 = vpack.c.b16 %v1574, %v1568
    %v1737 = vpack.c.b16 %v1575, %v1569
    %v1738 = vpack.c.b16 %v1582, %v1576
    %v1739 = vpack.c.b16 %v1583, %v1577
    %v1740 = vpack.c.b16 %v1584, %v1578
    %v1741 = vpack.c.b16 %v1585, %v1579
    %v1742 = vpack.c.b16 %v1586, %v1580
    %v1743 = vpack.c.b16 %v1587, %v1581
    %v1744 = vpack.c.b16 %v1594, %v1588
    %v1745 = vpack.c.b16 %v1595, %v1589
    %v1746 = vpack.c.b16 %v1596, %v1590
    %v1747 = vpack.c.b16 %v1597, %v1591
    %v1748 = vpack.c.b16 %v1598, %v1592
    %v1749 = vpack.c.b16 %v1599, %v1593
    %v1750 = vpack.c.b16 %v1606, %v1600
    %v1751 = vpack.c.b16 %v1607, %v1601
    %v1752 = vpack.c.b16 %v1608, %v1602
    %v1753 = vpack.c.b16 %v1609, %v1603
    %v1754 = vpack.c.b16 %v1610, %v1604
    %v1755 = vpack.c.b16 %v1611, %v1605
    %v1756 = vpack.c.b16 %v1618, %v1612
    %v1757 = vpack.c.b16 %v1619, %v1613
    %v1758 = vpack.c.b16 %v1620, %v1614
    %v1759 = vpack.c.b16 %v1621, %v1615
    %v1760 = vpack.c.b16 %v1622, %v1616
    %v1761 = vpack.c.b16 %v1623, %v1617
    %v1762 = vpack.c.b16 %v1630, %v1624
    %v1763 = vpack.c.b16 %v1631, %v1625
    %v1764 = vpack.c.b16 %v1632, %v1626
    %v1765 = vpack.c.b16 %v1633, %v1627
    %v1766 = vpack.c.b16 %v1634, %v1628
    %v1767 = vpack.c.b16 %v1635, %v1629
    %v1768 = vpack.c.b16 %v1642, %v1636
    %v1769 = vpack.c.b16 %v1643, %v1637
    %v1770 = vpack.c.b16 %v1644, %v1638
    %v1771 = vpack.c.b16 %v1645, %v1639
    %v1772 = vpack.c.b16 %v1646, %v1640
    %v1773 = vpack.c.b16 %v1647, %v1641
    %v1774 = vpack.c.b16 %v1654, %v1648
    %v1775 = vpack.c.b16 %v1655, %v1649
    %v1776 = vpack.c.b16 %v1656, %v1650
    %v1777 = vpack.c.b16 %v1657, %v1651
    %v1778 = vpack.c.b16 %v1658, %v1652
    %v1779 = vpack.c.b16 %v1659, %v1653
    %v1780 = vpack.c.b16 %v1666, %v1660
    %v1781 = vpack.c.b16 %v1667, %v1661
    %v1782 = vpack.c.b16 %v1668, %v1662
    %v1783 = vpack.c.b16 %v1669, %v1663
    %v1784 = vpack.c.b16 %v1670, %v1664
    %v1785 = vpack.c.b16 %v1671, %v1665
    %v1786 = vpack.c.b16 %v1678, %v1672
    %v1787 = vpack.c.b16 %v1679, %v1673
    %v1788 = vpack.c.b16 %v1680, %v1674
    %v1789 = vpack.c.b16 %v1681, %v1675
    %v1790 = vpack.c.b16 %v1682, %v1676
    %v1791 = vpack.c.b16 %v1683, %v1677
    %v1792 = vpack.c.b16 %v1690, %v1684
    %v1793 = vpack.c.b16 %v1691, %v1685
    %v1794 = vpack.c.b16 %v1692, %v1686
    %v1795 = vpack.c.b16 %v1693, %v1687
    %v1796 = vpack.c.b16 %v1694, %v1688
    %v1797 = vpack.c.b16 %v1695, %v1689
    %v1798 = vpack.c.b16 %v1702, %v1696
    %v1799 = vpack.c.b16 %v1703, %v1697
    %v1800 = vpack.c.b16 %v1704, %v1698
    %v1801 = vpack.c.b16 %v1705, %v1699
    %v1802 = vpack.c.b16 %v1706, %v1700
    %v1803 = vpack.c.b16 %v1707, %v1701
    %1900 = vmatprep.subr.bf16.mxu0 %v1709
    %1901 = vmatpush1.bf16.msra.mxu0 %v1708
    %1902 = vmatprep.subr.bf16.mxu0 %v1715
    %1903 = vmatpush1.bf16.msra.mxu0 %v1714
    %1904 = vmatprep.subr.bf16.mxu0 %v1721
    %1905 = vmatpush1.bf16.msra.mxu0 %v1720
    %1906 = vmatprep.subr.bf16.mxu0 %v1727
    %1907 = vmatpush1.bf16.msra.mxu0 %v1726
    %1908 = vmatprep.subr.bf16.mxu0 %v1733
    %1909 = vmatpush1.bf16.msra.mxu0 %v1732
    %1910 = vmatprep.subr.bf16.mxu0 %v1739
    %1911 = vmatpush1.bf16.msra.mxu0 %v1738
    %1912 = vmatprep.subr.bf16.mxu0 %v1745
    %1913 = vmatpush1.bf16.msra.mxu0 %v1744
    %1914 = vmatprep.subr.bf16.mxu0 %v1751
    %1915 = vmatpush1.bf16.msra.mxu0 %v1750
    %1916 = vmatprep.subr.bf16.mxu0 %v1757
    %1917 = vmatpush1.bf16.msra.mxu0 %v1756
    %1918 = vmatprep.subr.bf16.mxu0 %v1763
    %1919 = vmatpush1.bf16.msra.mxu0 %v1762
    %1920 = vmatprep.subr.bf16.mxu0 %v1769
    %1921 = vmatpush1.bf16.msra.mxu0 %v1768
    %1922 = vmatprep.subr.bf16.mxu0 %v1775
    %1923 = vmatpush1.bf16.msra.mxu0 %v1774
    %1924 = vmatprep.subr.bf16.mxu0 %v1781
    %1925 = vmatpush1.bf16.msra.mxu0 %v1780
    %1926 = vmatprep.subr.bf16.mxu0 %v1787
    %1927 = vmatpush1.bf16.msra.mxu0 %v1786
    %1928 = vmatprep.subr.bf16.mxu0 %v1793
    %1929 = vmatpush1.bf16.msra.mxu0 %v1792
    %1930 = vmatprep.subr.bf16.mxu0 %v1799
    %1931 = vmatpush1.bf16.msra.mxu0 %v1798
    %1932 = vmatprep.mubr.bf16.mxu0 0
    %1933 = vmatmul.mubr.bf16.gmra.mrb[0].mxu0 0
    %v1934 = vpop.f32.mrb[0].mxu0
    %v1935 = vadd.f32 0.0, %v1934
    %v1936 = vpop.f32.mrb[0].mxu0
    %v1937 = vadd.f32 0.0, %v1936
    %v1938 = vpop.f32.mrb[0].mxu0
    %v1939 = vpop.f32.mrb[0].mxu0
    %1940 = vdwg.mxu0
    %1941 = vmatprep.subr.bf16.mxu0 %v1711
    %1942 = vmatpush1.bf16.msra.mxu0 %v1710
    %1943 = vmatprep.subr.bf16.mxu0 %v1717
    %1944 = vmatpush1.bf16.msra.mxu0 %v1716
    %1945 = vmatprep.subr.bf16.mxu0 %v1723
    %1946 = vmatpush1.bf16.msra.mxu0 %v1722
    %1947 = vmatprep.subr.bf16.mxu0 %v1729
    %1948 = vmatpush1.bf16.msra.mxu0 %v1728
    %1949 = vmatprep.subr.bf16.mxu0 %v1735
    %1950 = vmatpush1.bf16.msra.mxu0 %v1734
    %1951 = vmatprep.subr.bf16.mxu0 %v1741
    %1952 = vmatpush1.bf16.msra.mxu0 %v1740
    %1953 = vmatprep.subr.bf16.mxu0 %v1747
    %1954 = vmatpush1.bf16.msra.mxu0 %v1746
    %1955 = vmatprep.subr.bf16.mxu0 %v1753
    %1956 = vmatpush1.bf16.msra.mxu0 %v1752
    %1957 = vmatprep.subr.bf16.mxu0 %v1759
    %1958 = vmatpush1.bf16.msra.mxu0 %v1758
    %1959 = vmatprep.subr.bf16.mxu0 %v1765
    %1960 = vmatpush1.bf16.msra.mxu0 %v1764
    %1961 = vmatprep.subr.bf16.mxu0 %v1771
    %1962 = vmatpush1.bf16.msra.mxu0 %v1770
    %1963 = vmatprep.subr.bf16.mxu0 %v1777
    %1964 = vmatpush1.bf16.msra.mxu0 %v1776
    %1965 = vmatprep.subr.bf16.mxu0 %v1783
    %1966 = vmatpush1.bf16.msra.mxu0 %v1782
    %1967 = vmatprep.subr.bf16.mxu0 %v1789
    %1968 = vmatpush1.bf16.msra.mxu0 %v1788
    %1969 = vmatprep.subr.bf16.mxu0 %v1795
    %1970 = vmatpush1.bf16.msra.mxu0 %v1794
    %1971 = vmatprep.subr.bf16.mxu0 %v1801
    %1972 = vmatpush1.bf16.msra.mxu0 %v1800
    %1973 = vmatprep.mubr.bf16.mxu0 0
    %1974 = vmatmul.mubr.bf16.gmra.mrb[0].mxu0 0
    %v1975 = vpop.f32.mrb[0].mxu0
    %v1976 = vadd.f32 0.0, %v1975
    %v1977 = vpop.f32.mrb[0].mxu0
    %v1978 = vadd.f32 0.0, %v1977
    %v1979 = vpop.f32.mrb[0].mxu0
    %v1980 = vpop.f32.mrb[0].mxu0
    %1981 = vdwg.mxu0
    %1982 = vmatprep.subr.bf16.mxu0 %v1713
    %1983 = vmatpush1.bf16.msra.mxu0 %v1712
    %1984 = vmatprep.subr.bf16.mxu0 %v1719
    %1985 = vmatpush1.bf16.msra.mxu0 %v1718
    %1986 = vmatprep.subr.bf16.mxu0 %v1725
    %1987 = vmatpush1.bf16.msra.mxu0 %v1724
    %1988 = vmatprep.subr.bf16.mxu0 %v1731
    %1989 = vmatpush1.bf16.msra.mxu0 %v1730
    %1990 = vmatprep.subr.bf16.mxu0 %v1737
    %1991 = vmatpush1.bf16.msra.mxu0 %v1736
    %1992 = vmatprep.subr.bf16.mxu0 %v1743
    %1993 = vmatpush1.bf16.msra.mxu0 %v1742
    %1994 = vmatprep.subr.bf16.mxu0 %v1749
    %1995 = vmatpush1.bf16.msra.mxu0 %v1748
    %1996 = vmatprep.subr.bf16.mxu0 %v1755
    %1997 = vmatpush1.bf16.msra.mxu0 %v1754
    %1998 = vmatprep.subr.bf16.mxu0 %v1761
    %1999 = vmatpush1.bf16.msra.mxu0 %v1760
    %2000 = vmatprep.subr.bf16.mxu0 %v1767
    %2001 = vmatpush1.bf16.msra.mxu0 %v1766
    %2002 = vmatprep.subr.bf16.mxu0 %v1773
    %2003 = vmatpush1.bf16.msra.mxu0 %v1772
    %2004 = vmatprep.subr.bf16.mxu0 %v1779
    %2005 = vmatpush1.bf16.msra.mxu0 %v1778
    %2006 = vmatprep.subr.bf16.mxu0 %v1785
    %2007 = vmatpush1.bf16.msra.mxu0 %v1784
    %2008 = vmatprep.subr.bf16.mxu0 %v1791
    %2009 = vmatpush1.bf16.msra.mxu0 %v1790
    %2010 = vmatprep.subr.bf16.mxu0 %v1797
    %2011 = vmatpush1.bf16.msra.mxu0 %v1796
    %2012 = vmatprep.subr.bf16.mxu0 %v1803
    %2013 = vmatpush1.bf16.msra.mxu0 %v1802
    %2014 = vmatprep.mubr.bf16.mxu0 0
    %2015 = vmatmul.mubr.bf16.gmra.mrb[0].mxu0 0
    %v2016 = vpop.f32.mrb[0].mxu0
    %v2017 = vadd.f32 0.0, %v2016
    %v2018 = vpop.f32.mrb[0].mxu0
    %v2019 = vadd.f32 0.0, %v2018
    %v2020 = vpop.f32.mrb[0].mxu0
    %v2021 = vpop.f32.mrb[0].mxu0
    %2022 = vdwg.mxu0
    %v2023 = vadd.f32 %v1318, %v1935
    %v2024 = vadd.f32 %v1319, %v1937
    %v2025 = vxor.u32 %v2023, 2147483648
    %v2026 = vxor.u32 %v2024, 2147483648
    %v2027 = vmul.f32 %v2025, 1.442695
    %v2028 = vpow.pop %v2027
    %v2029 = vmul.f32 %v2026, 1.442695
    %v2030 = vpow.pop %v2029
    %v2031 = vadd.f32 %v2028, 1.0
    %v2032 = vadd.f32 %v2030, 1.0
    %v2033 = vrcp.pop %v2031
    %v2034 = vmul.f32 1.0, %v2033
    %v2035 = vrcp.pop %v2032
    %v2036 = vmul.f32 1.0, %v2035
    %v2037 = vadd.f32 %v1320, %v1976
    %v2038 = vadd.f32 %v1321, %v1978
    %v2039 = vxor.u32 %v2037, 2147483648
    %v2040 = vxor.u32 %v2038, 2147483648
    %v2041 = vmul.f32 %v2039, 1.442695
    %v2042 = vpow.pop %v2041
    %v2043 = vmul.f32 %v2040, 1.442695
    %v2044 = vpow.pop %v2043
    %v2045 = vadd.f32 %v2042, 1.0
    %v2046 = vadd.f32 %v2044, 1.0
    %v2047 = vrcp.pop %v2045
    %v2048 = vmul.f32 1.0, %v2047
    %v2049 = vrcp.pop %v2046
    %v2050 = vmul.f32 1.0, %v2049
    %v2051 = vadd.f32 %v2017, %v1308
    %v2052 = vadd.f32 %v2019, %v1309
    %v2053 = vmul.f32 %v2034, %v2051
    %v2054 = vmul.f32 %v2036, %v2052
    %v2055 = vadd.f32 %v1322, %v2053
    %v2056 = vadd.f32 %v1323, %v2054
    %v2057 = vtanh.pop %v2055
    %v2058 = vtanh.pop %v2056
    %v2059 = vsub.f32 1.0, %v2048
    %v2060 = vsub.f32 1.0, %v2050
    %v2061 = vmul.f32 %v2059, %v2057
    %v2062 = vmul.f32 %v2060, %v2058
    %v2063 = vmul.f32 %v2048, 0.0
    %v2064 = vmul.f32 %v2050, 0.0
    %v2065 = vadd.f32 %v2061, %v2063
    %v2066 = vadd.f32 %v2062, %v2064
    %s2067 = smul.u32 4, 32
    %s2068 = smul.u32 %s2067, 6
    %s2069 = sshll.u32 %s2068, 4
    %2070 = dma.done [#allocation7], %s2069
    %s2071 = sshll.u32 %s2068, 4
    %2072 = dma.done %s130, %s2071
    %v2073 = vpack.c.bf16 %v2065, %v2065
    %v2074 = vpack.c.bf16 %v2066, %v2066
    %v2075 = vld [vmem:[#allocation3] sm:$0xff]
    %v2076 = vld [vmem:[#allocation3 + $0x8] sm:$0xff]
    %v2077 = vld [vmem:[#allocation3 + $0x10] sm:$0xff]
    %v2078 = vld [vmem:[#allocation3 + $0x18] sm:$0xff]
    %v2079 = vld [vmem:[#allocation3 + $0x20] sm:$0xff]
    %v2080 = vld [vmem:[#allocation3 + $0x28] sm:$0xff]
    %v2081 = vld [vmem:[#allocation3 + $0x30] sm:$0xff]
    %v2082 = vld [vmem:[#allocation3 + $0x38] sm:$0xff]
    %v2083 = vld [vmem:[#allocation3 + $0x40] sm:$0xff]
    %v2084 = vld [vmem:[#allocation3 + $0x48] sm:$0xff]
    %v2085 = vld [vmem:[#allocation3 + $0x50] sm:$0xff]
    %v2086 = vld [vmem:[#allocation3 + $0x58] sm:$0xff]
    %v2087 = vld [vmem:[#allocation3 + $0x60] sm:$0xff]
    %v2088 = vld [vmem:[#allocation3 + $0x68] sm:$0xff]
    %v2089 = vld [vmem:[#allocation3 + $0x70] sm:$0xff]
    %v2090 = vld [vmem:[#allocation3 + $0x78] sm:$0xff]
    %v2091 = vld [vmem:[#allocation3 + $0x80] sm:$0xff]
    %v2092 = vld [vmem:[#allocation3 + $0x88] sm:$0xff]
    %v2093 = vld [vmem:[#allocation3 + $0x90] sm:$0xff]
    %v2094 = vld [vmem:[#allocation3 + $0x98] sm:$0xff]
    %v2095 = vld [vmem:[#allocation3 + $0xa0] sm:$0xff]
    %v2096 = vld [vmem:[#allocation3 + $0xa8] sm:$0xff]
    %v2097 = vld [vmem:[#allocation3 + $0xb0] sm:$0xff]
    %v2098 = vld [vmem:[#allocation3 + $0xb8] sm:$0xff]
    %v2099 = vld [vmem:[#allocation3 + $0xc0] sm:$0xff]
    %v2100 = vld [vmem:[#allocation3 + $0xc8] sm:$0xff]
    %v2101 = vld [vmem:[#allocation3 + $0xd0] sm:$0xff]
    %v2102 = vld [vmem:[#allocation3 + $0xd8] sm:$0xff]
    %v2103 = vld [vmem:[#allocation3 + $0xe0] sm:$0xff]
    %v2104 = vld [vmem:[#allocation3 + $0xe8] sm:$0xff]
    %v2105 = vld [vmem:[#allocation3 + $0xf0] sm:$0xff]
    %v2106 = vld [vmem:[#allocation3 + $0xf8] sm:$0xff]
    %v2107 = vld [vmem:[#allocation3 + $0x100] sm:$0xff]
    %v2108 = vld [vmem:[#allocation3 + $0x108] sm:$0xff]
    %v2109 = vld [vmem:[#allocation3 + $0x110] sm:$0xff]
    %v2110 = vld [vmem:[#allocation3 + $0x118] sm:$0xff]
    %v2111 = vld [vmem:[#allocation3 + $0x120] sm:$0xff]
    %v2112 = vld [vmem:[#allocation3 + $0x128] sm:$0xff]
    %v2113 = vld [vmem:[#allocation3 + $0x130] sm:$0xff]
    %v2114 = vld [vmem:[#allocation3 + $0x138] sm:$0xff]
    %v2115 = vld [vmem:[#allocation3 + $0x140] sm:$0xff]
    %v2116 = vld [vmem:[#allocation3 + $0x148] sm:$0xff]
    %v2117 = vld [vmem:[#allocation3 + $0x150] sm:$0xff]
    %v2118 = vld [vmem:[#allocation3 + $0x158] sm:$0xff]
    %v2119 = vld [vmem:[#allocation3 + $0x160] sm:$0xff]
    %v2120 = vld [vmem:[#allocation3 + $0x168] sm:$0xff]
    %v2121 = vld [vmem:[#allocation3 + $0x170] sm:$0xff]
    %v2122 = vld [vmem:[#allocation3 + $0x178] sm:$0xff]
    %v2123 = vld [vmem:[#allocation3 + $0x180] sm:$0xff]
    %v2124 = vld [vmem:[#allocation3 + $0x188] sm:$0xff]
    %v2125 = vld [vmem:[#allocation3 + $0x190] sm:$0xff]
    %v2126 = vld [vmem:[#allocation3 + $0x198] sm:$0xff]
    %v2127 = vld [vmem:[#allocation3 + $0x1a0] sm:$0xff]
    %v2128 = vld [vmem:[#allocation3 + $0x1a8] sm:$0xff]
    %v2129 = vld [vmem:[#allocation3 + $0x1b0] sm:$0xff]
    %v2130 = vld [vmem:[#allocation3 + $0x1b8] sm:$0xff]
    %v2131 = vld [vmem:[#allocation3 + $0x1c0] sm:$0xff]
    %v2132 = vld [vmem:[#allocation3 + $0x1c8] sm:$0xff]
    %v2133 = vld [vmem:[#allocation3 + $0x1d0] sm:$0xff]
    %v2134 = vld [vmem:[#allocation3 + $0x1d8] sm:$0xff]
    %v2135 = vld [vmem:[#allocation3 + $0x1e0] sm:$0xff]
    %v2136 = vld [vmem:[#allocation3 + $0x1e8] sm:$0xff]
    %v2137 = vld [vmem:[#allocation3 + $0x1f0] sm:$0xff]
    %v2138 = vld [vmem:[#allocation3 + $0x1f8] sm:$0xff]
    %v2139 = vld [vmem:[#allocation3 + $0x200] sm:$0xff]
    %v2140 = vld [vmem:[#allocation3 + $0x208] sm:$0xff]
    %v2141 = vld [vmem:[#allocation3 + $0x210] sm:$0xff]
    %v2142 = vld [vmem:[#allocation3 + $0x218] sm:$0xff]
    %v2143 = vld [vmem:[#allocation3 + $0x220] sm:$0xff]
    %v2144 = vld [vmem:[#allocation3 + $0x228] sm:$0xff]
    %v2145 = vld [vmem:[#allocation3 + $0x230] sm:$0xff]
    %v2146 = vld [vmem:[#allocation3 + $0x238] sm:$0xff]
    %v2147 = vld [vmem:[#allocation3 + $0x240] sm:$0xff]
    %v2148 = vld [vmem:[#allocation3 + $0x248] sm:$0xff]
    %v2149 = vld [vmem:[#allocation3 + $0x250] sm:$0xff]
    %v2150 = vld [vmem:[#allocation3 + $0x258] sm:$0xff]
    %v2151 = vld [vmem:[#allocation3 + $0x260] sm:$0xff]
    %v2152 = vld [vmem:[#allocation3 + $0x268] sm:$0xff]
    %v2153 = vld [vmem:[#allocation3 + $0x270] sm:$0xff]
    %v2154 = vld [vmem:[#allocation3 + $0x278] sm:$0xff]
    %v2155 = vld [vmem:[#allocation3 + $0x280] sm:$0xff]
    %v2156 = vld [vmem:[#allocation3 + $0x288] sm:$0xff]
    %v2157 = vld [vmem:[#allocation3 + $0x290] sm:$0xff]
    %v2158 = vld [vmem:[#allocation3 + $0x298] sm:$0xff]
    %v2159 = vld [vmem:[#allocation3 + $0x2a0] sm:$0xff]
    %v2160 = vld [vmem:[#allocation3 + $0x2a8] sm:$0xff]
    %v2161 = vld [vmem:[#allocation3 + $0x2b0] sm:$0xff]
    %v2162 = vld [vmem:[#allocation3 + $0x2b8] sm:$0xff]
    %v2163 = vld [vmem:[#allocation3 + $0x2c0] sm:$0xff]
    %v2164 = vld [vmem:[#allocation3 + $0x2c8] sm:$0xff]
    %v2165 = vld [vmem:[#allocation3 + $0x2d0] sm:$0xff]
    %v2166 = vld [vmem:[#allocation3 + $0x2d8] sm:$0xff]
    %v2167 = vld [vmem:[#allocation3 + $0x2e0] sm:$0xff]
    %v2168 = vld [vmem:[#allocation3 + $0x2e8] sm:$0xff]
    %v2169 = vld [vmem:[#allocation3 + $0x2f0] sm:$0xff]
    %v2170 = vld [vmem:[#allocation3 + $0x2f8] sm:$0xff]
    %2171 = vmatprep.subr.bf16.mxu0 %v2076
    %2172 = vmatpush1.bf16.msra.mxu0 %v2075
    %2173 = vmatprep.subr.bf16.mxu0 %v2082
    %2174 = vmatpush1.bf16.msra.mxu0 %v2081
    %2175 = vmatprep.subr.bf16.mxu0 %v2088
    %2176 = vmatpush1.bf16.msra.mxu0 %v2087
    %2177 = vmatprep.subr.bf16.mxu0 %v2094
    %2178 = vmatpush1.bf16.msra.mxu0 %v2093
    %2179 = vmatprep.subr.bf16.mxu0 %v2100
    %2180 = vmatpush1.bf16.msra.mxu0 %v2099
    %2181 = vmatprep.subr.bf16.mxu0 %v2106
    %2182 = vmatpush1.bf16.msra.mxu0 %v2105
    %2183 = vmatprep.subr.bf16.mxu0 %v2112
    %2184 = vmatpush1.bf16.msra.mxu0 %v2111
    %2185 = vmatprep.subr.bf16.mxu0 %v2118
    %2186 = vmatpush1.bf16.msra.mxu0 %v2117
    %2187 = vmatprep.subr.bf16.mxu0 %v2124
    %2188 = vmatpush1.bf16.msra.mxu0 %v2123
    %2189 = vmatprep.subr.bf16.mxu0 %v2130
    %2190 = vmatpush1.bf16.msra.mxu0 %v2129
    %2191 = vmatprep.subr.bf16.mxu0 %v2136
    %2192 = vmatpush1.bf16.msra.mxu0 %v2135
    %2193 = vmatprep.subr.bf16.mxu0 %v2142
    %2194 = vmatpush1.bf16.msra.mxu0 %v2141
    %2195 = vmatprep.subr.bf16.mxu0 %v2148
    %2196 = vmatpush1.bf16.msra.mxu0 %v2147
    %2197 = vmatprep.subr.bf16.mxu0 %v2154
    %2198 = vmatpush1.bf16.msra.mxu0 %v2153
    %2199 = vmatprep.subr.bf16.mxu0 %v2160
    %2200 = vmatpush1.bf16.msra.mxu0 %v2159
    %2201 = vmatprep.subr.bf16.mxu0 %v2166
    %2202 = vmatpush1.bf16.msra.mxu0 %v2165
    %2203 = vmatprep.mubr.bf16.mxu0 %v2074
    %2204 = vmatmul.mubr.bf16.gmra.mrb[0].mxu0 %v2073
    %v2205 = vpop.f32.mrb[0].mxu0
    %v2206 = vadd.f32 %v1312, %v2205
    %v2207 = vpop.f32.mrb[0].mxu0
    %v2208 = vadd.f32 %v1313, %v2207
    %v2209 = vpop.f32.mrb[0].mxu0
    %v2210 = vpop.f32.mrb[0].mxu0
    %2211 = vdwg.mxu0
    %2212 = vmatprep.subr.bf16.mxu0 %v2078
    %2213 = vmatpush1.bf16.msra.mxu0 %v2077
    %2214 = vmatprep.subr.bf16.mxu0 %v2084
    %2215 = vmatpush1.bf16.msra.mxu0 %v2083
    %2216 = vmatprep.subr.bf16.mxu0 %v2090
    %2217 = vmatpush1.bf16.msra.mxu0 %v2089
    %2218 = vmatprep.subr.bf16.mxu0 %v2096
    %2219 = vmatpush1.bf16.msra.mxu0 %v2095
    %2220 = vmatprep.subr.bf16.mxu0 %v2102
    %2221 = vmatpush1.bf16.msra.mxu0 %v2101
    %2222 = vmatprep.subr.bf16.mxu0 %v2108
    %2223 = vmatpush1.bf16.msra.mxu0 %v2107
    %2224 = vmatprep.subr.bf16.mxu0 %v2114
    %2225 = vmatpush1.bf16.msra.mxu0 %v2113
    %2226 = vmatprep.subr.bf16.mxu0 %v2120
    %2227 = vmatpush1.bf16.msra.mxu0 %v2119
    %2228 = vmatprep.subr.bf16.mxu0 %v2126
    %2229 = vmatpush1.bf16.msra.mxu0 %v2125
    %2230 = vmatprep.subr.bf16.mxu0 %v2132
    %2231 = vmatpush1.bf16.msra.mxu0 %v2131
    %2232 = vmatprep.subr.bf16.mxu0 %v2138
    %2233 = vmatpush1.bf16.msra.mxu0 %v2137
    %2234 = vmatprep.subr.bf16.mxu0 %v2144
    %2235 = vmatpush1.bf16.msra.mxu0 %v2143
    %2236 = vmatprep.subr.bf16.mxu0 %v2150
    %2237 = vmatpush1.bf16.msra.mxu0 %v2149
    %2238 = vmatprep.subr.bf16.mxu0 %v2156
    %2239 = vmatpush1.bf16.msra.mxu0 %v2155
    %2240 = vmatprep.subr.bf16.mxu0 %v2162
    %2241 = vmatpush1.bf16.msra.mxu0 %v2161
    %2242 = vmatprep.subr.bf16.mxu0 %v2168
    %2243 = vmatpush1.bf16.msra.mxu0 %v2167
    %2244 = vmatprep.mubr.bf16.mxu0 %v2074
    %2245 = vmatmul.mubr.bf16.gmra.mrb[0].mxu0 %v2073
    %v2246 = vpop.f32.mrb[0].mxu0
    %v2247 = vadd.f32 %v1314, %v2246
    %v2248 = vpop.f32.mrb[0].mxu0
    %v2249 = vadd.f32 %v1315, %v2248
    %v2250 = vpop.f32.mrb[0].mxu0
    %v2251 = vpop.f32.mrb[0].mxu0
    %2252 = vdwg.mxu0
    %2253 = vmatprep.subr.bf16.mxu0 %v2080
    %2254 = vmatpush1.bf16.msra.mxu0 %v2079
    %2255 = vmatprep.subr.bf16.mxu0 %v2086
    %2256 = vmatpush1.bf16.msra.mxu0 %v2085
    %2257 = vmatprep.subr.bf16.mxu0 %v2092
    %2258 = vmatpush1.bf16.msra.mxu0 %v2091
    %2259 = vmatprep.subr.bf16.mxu0 %v2098
    %2260 = vmatpush1.bf16.msra.mxu0 %v2097
    %2261 = vmatprep.subr.bf16.mxu0 %v2104
    %2262 = vmatpush1.bf16.msra.mxu0 %v2103
    %2263 = vmatprep.subr.bf16.mxu0 %v2110
    %2264 = vmatpush1.bf16.msra.mxu0 %v2109
    %2265 = vmatprep.subr.bf16.mxu0 %v2116
    %2266 = vmatpush1.bf16.msra.mxu0 %v2115
    %2267 = vmatprep.subr.bf16.mxu0 %v2122
    %2268 = vmatpush1.bf16.msra.mxu0 %v2121
    %2269 = vmatprep.subr.bf16.mxu0 %v2128
    %2270 = vmatpush1.bf16.msra.mxu0 %v2127
    %2271 = vmatprep.subr.bf16.mxu0 %v2134
    %2272 = vmatpush1.bf16.msra.mxu0 %v2133
    %2273 = vmatprep.subr.bf16.mxu0 %v2140
    %2274 = vmatpush1.bf16.msra.mxu0 %v2139
    %2275 = vmatprep.subr.bf16.mxu0 %v2146
    %2276 = vmatpush1.bf16.msra.mxu0 %v2145
    %2277 = vmatprep.subr.bf16.mxu0 %v2152
    %2278 = vmatpush1.bf16.msra.mxu0 %v2151
    %2279 = vmatprep.subr.bf16.mxu0 %v2158
    %2280 = vmatpush1.bf16.msra.mxu0 %v2157
    %2281 = vmatprep.subr.bf16.mxu0 %v2164
    %2282 = vmatpush1.bf16.msra.mxu0 %v2163
    %2283 = vmatprep.subr.bf16.mxu0 %v2170
    %2284 = vmatpush1.bf16.msra.mxu0 %v2169
    %2285 = vmatprep.mubr.bf16.mxu0 %v2074
    %2286 = vmatmul.mubr.bf16.gmra.mrb[0].mxu0 %v2073
    %v2287 = vpop.f32.mrb[0].mxu0
    %v2288 = vadd.f32 %v1316, %v2287
    %v2289 = vpop.f32.mrb[0].mxu0
    %v2290 = vadd.f32 %v1317, %v2289
    %v2291 = vpop.f32.mrb[0].mxu0
    %v2292 = vpop.f32.mrb[0].mxu0
    %2293 = vdwg.mxu0
    %v2294 = vld [vmem:[#allocation4] sm:$0xff]
    %v2295 = vld [vmem:[#allocation4 + $0x8] sm:$0xff]
    %v2296 = vld [vmem:[#allocation4 + $0x10] sm:$0xff]
    %v2297 = vld [vmem:[#allocation4 + $0x18] sm:$0xff]
    %v2298 = vld [vmem:[#allocation4 + $0x20] sm:$0xff]
    %v2299 = vld [vmem:[#allocation4 + $0x28] sm:$0xff]
    %v2300 = vld [vmem:[#allocation4 + $0x30] sm:$0xff]
    %v2301 = vld [vmem:[#allocation4 + $0x38] sm:$0xff]
    %v2302 = vld [vmem:[#allocation4 + $0x40] sm:$0xff]
    %v2303 = vld [vmem:[#allocation4 + $0x48] sm:$0xff]
    %v2304 = vld [vmem:[#allocation4 + $0x50] sm:$0xff]
    %v2305 = vld [vmem:[#allocation4 + $0x58] sm:$0xff]
    %v2306 = vld [vmem:[#allocation4 + $0x60] sm:$0xff]
    %v2307 = vld [vmem:[#allocation4 + $0x68] sm:$0xff]
    %v2308 = vld [vmem:[#allocation4 + $0x70] sm:$0xff]
    %v2309 = vld [vmem:[#allocation4 + $0x78] sm:$0xff]
    %v2310 = vld [vmem:[#allocation4 + $0x80] sm:$0xff]
    %v2311 = vld [vmem:[#allocation4 + $0x88] sm:$0xff]
    %v2312 = vld [vmem:[#allocation4 + $0x90] sm:$0xff]
    %v2313 = vld [vmem:[#allocation4 + $0x98] sm:$0xff]
    %v2314 = vld [vmem:[#allocation4 + $0xa0] sm:$0xff]
    %v2315 = vld [vmem:[#allocation4 + $0xa8] sm:$0xff]
    %v2316 = vld [vmem:[#allocation4 + $0xb0] sm:$0xff]
    %v2317 = vld [vmem:[#allocation4 + $0xb8] sm:$0xff]
    %v2318 = vld [vmem:[#allocation4 + $0xc0] sm:$0xff]
    %v2319 = vld [vmem:[#allocation4 + $0xc8] sm:$0xff]
    %v2320 = vld [vmem:[#allocation4 + $0xd0] sm:$0xff]
    %v2321 = vld [vmem:[#allocation4 + $0xd8] sm:$0xff]
    %v2322 = vld [vmem:[#allocation4 + $0xe0] sm:$0xff]
    %v2323 = vld [vmem:[#allocation4 + $0xe8] sm:$0xff]
    %v2324 = vld [vmem:[#allocation4 + $0xf0] sm:$0xff]
    %v2325 = vld [vmem:[#allocation4 + $0xf8] sm:$0xff]
    %v2326 = vld [vmem:[#allocation4 + $0x100] sm:$0xff]
    %v2327 = vld [vmem:[#allocation4 + $0x108] sm:$0xff]
    %v2328 = vld [vmem:[#allocation4 + $0x110] sm:$0xff]
    %v2329 = vld [vmem:[#allocation4 + $0x118] sm:$0xff]
    %v2330 = vld [vmem:[#allocation4 + $0x120] sm:$0xff]
    %v2331 = vld [vmem:[#allocation4 + $0x128] sm:$0xff]
    %v2332 = vld [vmem:[#allocation4 + $0x130] sm:$0xff]
    %v2333 = vld [vmem:[#allocation4 + $0x138] sm:$0xff]
    %v2334 = vld [vmem:[#allocation4 + $0x140] sm:$0xff]
    %v2335 = vld [vmem:[#allocation4 + $0x148] sm:$0xff]
    %v2336 = vld [vmem:[#allocation4 + $0x150] sm:$0xff]
    %v2337 = vld [vmem:[#allocation4 + $0x158] sm:$0xff]
    %v2338 = vld [vmem:[#allocation4 + $0x160] sm:$0xff]
    %v2339 = vld [vmem:[#allocation4 + $0x168] sm:$0xff]
    %v2340 = vld [vmem:[#allocation4 + $0x170] sm:$0xff]
    %v2341 = vld [vmem:[#allocation4 + $0x178] sm:$0xff]
    %v2342 = vld [vmem:[#allocation4 + $0x180] sm:$0xff]
    %v2343 = vld [vmem:[#allocation4 + $0x188] sm:$0xff]
    %v2344 = vld [vmem:[#allocation4 + $0x190] sm:$0xff]
    %v2345 = vld [vmem:[#allocation4 + $0x198] sm:$0xff]
    %v2346 = vld [vmem:[#allocation4 + $0x1a0] sm:$0xff]
    %v2347 = vld [vmem:[#allocation4 + $0x1a8] sm:$0xff]
    %v2348 = vld [vmem:[#allocation4 + $0x1b0] sm:$0xff]
    %v2349 = vld [vmem:[#allocation4 + $0x1b8] sm:$0xff]
    %v2350 = vld [vmem:[#allocation4 + $0x1c0] sm:$0xff]
    %v2351 = vld [vmem:[#allocation4 + $0x1c8] sm:$0xff]
    %v2352 = vld [vmem:[#allocation4 + $0x1d0] sm:$0xff]
    %v2353 = vld [vmem:[#allocation4 + $0x1d8] sm:$0xff]
    %v2354 = vld [vmem:[#allocation4 + $0x1e0] sm:$0xff]
    %v2355 = vld [vmem:[#allocation4 + $0x1e8] sm:$0xff]
    %v2356 = vld [vmem:[#allocation4 + $0x1f0] sm:$0xff]
    %v2357 = vld [vmem:[#allocation4 + $0x1f8] sm:$0xff]
    %v2358 = vld [vmem:[#allocation4 + $0x200] sm:$0xff]
    %v2359 = vld [vmem:[#allocation4 + $0x208] sm:$0xff]
    %v2360 = vld [vmem:[#allocation4 + $0x210] sm:$0xff]
    %v2361 = vld [vmem:[#allocation4 + $0x218] sm:$0xff]
    %v2362 = vld [vmem:[#allocation4 + $0x220] sm:$0xff]
    %v2363 = vld [vmem:[#allocation4 + $0x228] sm:$0xff]
    %v2364 = vld [vmem:[#allocation4 + $0x230] sm:$0xff]
    %v2365 = vld [vmem:[#allocation4 + $0x238] sm:$0xff]
    %v2366 = vld [vmem:[#allocation4 + $0x240] sm:$0xff]
    %v2367 = vld [vmem:[#allocation4 + $0x248] sm:$0xff]
    %v2368 = vld [vmem:[#allocation4 + $0x250] sm:$0xff]
    %v2369 = vld [vmem:[#allocation4 + $0x258] sm:$0xff]
    %v2370 = vld [vmem:[#allocation4 + $0x260] sm:$0xff]
    %v2371 = vld [vmem:[#allocation4 + $0x268] sm:$0xff]
    %v2372 = vld [vmem:[#allocation4 + $0x270] sm:$0xff]
    %v2373 = vld [vmem:[#allocation4 + $0x278] sm:$0xff]
    %v2374 = vld [vmem:[#allocation4 + $0x280] sm:$0xff]
    %v2375 = vld [vmem:[#allocation4 + $0x288] sm:$0xff]
    %v2376 = vld [vmem:[#allocation4 + $0x290] sm:$0xff]
    %v2377 = vld [vmem:[#allocation4 + $0x298] sm:$0xff]
    %v2378 = vld [vmem:[#allocation4 + $0x2a0] sm:$0xff]
    %v2379 = vld [vmem:[#allocation4 + $0x2a8] sm:$0xff]
    %v2380 = vld [vmem:[#allocation4 + $0x2b0] sm:$0xff]
    %v2381 = vld [vmem:[#allocation4 + $0x2b8] sm:$0xff]
    %v2382 = vld [vmem:[#allocation4 + $0x2c0] sm:$0xff]
    %v2383 = vld [vmem:[#allocation4 + $0x2c8] sm:$0xff]
    %v2384 = vld [vmem:[#allocation4 + $0x2d0] sm:$0xff]
    %v2385 = vld [vmem:[#allocation4 + $0x2d8] sm:$0xff]
    %v2386 = vld [vmem:[#allocation4 + $0x2e0] sm:$0xff]
    %v2387 = vld [vmem:[#allocation4 + $0x2e8] sm:$0xff]
    %v2388 = vld [vmem:[#allocation4 + $0x2f0] sm:$0xff]
    %v2389 = vld [vmem:[#allocation4 + $0x2f8] sm:$0xff]
    %2390 = vmatprep.subr.bf16.mxu0 %v2295
    %2391 = vmatpush1.bf16.msra.mxu0 %v2294
    %2392 = vmatprep.subr.bf16.mxu0 %v2301
    %2393 = vmatpush1.bf16.msra.mxu0 %v2300
    %2394 = vmatprep.subr.bf16.mxu0 %v2307
    %2395 = vmatpush1.bf16.msra.mxu0 %v2306
    %2396 = vmatprep.subr.bf16.mxu0 %v2313
    %2397 = vmatpush1.bf16.msra.mxu0 %v2312
    %2398 = vmatprep.subr.bf16.mxu0 %v2319
    %2399 = vmatpush1.bf16.msra.mxu0 %v2318
    %2400 = vmatprep.subr.bf16.mxu0 %v2325
    %2401 = vmatpush1.bf16.msra.mxu0 %v2324
    %2402 = vmatprep.subr.bf16.mxu0 %v2331
    %2403 = vmatpush1.bf16.msra.mxu0 %v2330
    %2404 = vmatprep.subr.bf16.mxu0 %v2337
    %2405 = vmatpush1.bf16.msra.mxu0 %v2336
    %2406 = vmatprep.subr.bf16.mxu0 %v2343
    %2407 = vmatpush1.bf16.msra.mxu0 %v2342
    %2408 = vmatprep.subr.bf16.mxu0 %v2349
    %2409 = vmatpush1.bf16.msra.mxu0 %v2348
    %2410 = vmatprep.subr.bf16.mxu0 %v2355
    %2411 = vmatpush1.bf16.msra.mxu0 %v2354
    %2412 = vmatprep.subr.bf16.mxu0 %v2361
    %2413 = vmatpush1.bf16.msra.mxu0 %v2360
    %2414 = vmatprep.subr.bf16.mxu0 %v2367
    %2415 = vmatpush1.bf16.msra.mxu0 %v2366
    %2416 = vmatprep.subr.bf16.mxu0 %v2373
    %2417 = vmatpush1.bf16.msra.mxu0 %v2372
    %2418 = vmatprep.subr.bf16.mxu0 %v2379
    %2419 = vmatpush1.bf16.msra.mxu0 %v2378
    %2420 = vmatprep.subr.bf16.mxu0 %v2385
    %2421 = vmatpush1.bf16.msra.mxu0 %v2384
    %2422 = vmatprep.mubr.bf16.mxu0 0
    %2423 = vmatmul.mubr.bf16.gmra.mrb[0].mxu0 0
    %v2424 = vpop.f32.mrb[0].mxu0
    %v2425 = vadd.f32 0.0, %v2424
    %v2426 = vpop.f32.mrb[0].mxu0
    %v2427 = vadd.f32 0.0, %v2426
    %v2428 = vpop.f32.mrb[0].mxu0
    %v2429 = vpop.f32.mrb[0].mxu0
    %2430 = vdwg.mxu0
    %2431 = vmatprep.subr.bf16.mxu0 %v2297
    %2432 = vmatpush1.bf16.msra.mxu0 %v2296
    %2433 = vmatprep.subr.bf16.mxu0 %v2303
    %2434 = vmatpush1.bf16.msra.mxu0 %v2302
    %2435 = vmatprep.subr.bf16.mxu0 %v2309
    %2436 = vmatpush1.bf16.msra.mxu0 %v2308
    %2437 = vmatprep.subr.bf16.mxu0 %v2315
    %2438 = vmatpush1.bf16.msra.mxu0 %v2314
    %2439 = vmatprep.subr.bf16.mxu0 %v2321
    %2440 = vmatpush1.bf16.msra.mxu0 %v2320
    %2441 = vmatprep.subr.bf16.mxu0 %v2327
    %2442 = vmatpush1.bf16.msra.mxu0 %v2326
    %2443 = vmatprep.subr.bf16.mxu0 %v2333
    %2444 = vmatpush1.bf16.msra.mxu0 %v2332
    %2445 = vmatprep.subr.bf16.mxu0 %v2339
    %2446 = vmatpush1.bf16.msra.mxu0 %v2338
    %2447 = vmatprep.subr.bf16.mxu0 %v2345
    %2448 = vmatpush1.bf16.msra.mxu0 %v2344
    %2449 = vmatprep.subr.bf16.mxu0 %v2351
    %2450 = vmatpush1.bf16.msra.mxu0 %v2350
    %2451 = vmatprep.subr.bf16.mxu0 %v2357
    %2452 = vmatpush1.bf16.msra.mxu0 %v2356
    %2453 = vmatprep.subr.bf16.mxu0 %v2363
    %2454 = vmatpush1.bf16.msra.mxu0 %v2362
    %2455 = vmatprep.subr.bf16.mxu0 %v2369
    %2456 = vmatpush1.bf16.msra.mxu0 %v2368
    %2457 = vmatprep.subr.bf16.mxu0 %v2375
    %2458 = vmatpush1.bf16.msra.mxu0 %v2374
    %2459 = vmatprep.subr.bf16.mxu0 %v2381
    %2460 = vmatpush1.bf16.msra.mxu0 %v2380
    %2461 = vmatprep.subr.bf16.mxu0 %v2387
    %2462 = vmatpush1.bf16.msra.mxu0 %v2386
    %2463 = vmatprep.mubr.bf16.mxu0 0
    %2464 = vmatmul.mubr.bf16.gmra.mrb[0].mxu0 0
    %v2465 = vpop.f32.mrb[0].mxu0
    %v2466 = vadd.f32 0.0, %v2465
    %v2467 = vpop.f32.mrb[0].mxu0
    %v2468 = vadd.f32 0.0, %v2467
    %v2469 = vpop.f32.mrb[0].mxu0
    %v2470 = vpop.f32.mrb[0].mxu0
    %2471 = vdwg.mxu0
    %2472 = vmatprep.subr.bf16.mxu0 %v2299
    %2473 = vmatpush1.bf16.msra.mxu0 %v2298
    %2474 = vmatprep.subr.bf16.mxu0 %v2305
    %2475 = vmatpush1.bf16.msra.mxu0 %v2304
    %2476 = vmatprep.subr.bf16.mxu0 %v2311
    %2477 = vmatpush1.bf16.msra.mxu0 %v2310
    %2478 = vmatprep.subr.bf16.mxu0 %v2317
    %2479 = vmatpush1.bf16.msra.mxu0 %v2316
    %2480 = vmatprep.subr.bf16.mxu0 %v2323
    %2481 = vmatpush1.bf16.msra.mxu0 %v2322
    %2482 = vmatprep.subr.bf16.mxu0 %v2329
    %2483 = vmatpush1.bf16.msra.mxu0 %v2328
    %2484 = vmatprep.subr.bf16.mxu0 %v2335
    %2485 = vmatpush1.bf16.msra.mxu0 %v2334
    %2486 = vmatprep.subr.bf16.mxu0 %v2341
    %2487 = vmatpush1.bf16.msra.mxu0 %v2340
    %2488 = vmatprep.subr.bf16.mxu0 %v2347
    %2489 = vmatpush1.bf16.msra.mxu0 %v2346
    %2490 = vmatprep.subr.bf16.mxu0 %v2353
    %2491 = vmatpush1.bf16.msra.mxu0 %v2352
    %2492 = vmatprep.subr.bf16.mxu0 %v2359
    %2493 = vmatpush1.bf16.msra.mxu0 %v2358
    %2494 = vmatprep.subr.bf16.mxu0 %v2365
    %2495 = vmatpush1.bf16.msra.mxu0 %v2364
    %2496 = vmatprep.subr.bf16.mxu0 %v2371
    %2497 = vmatpush1.bf16.msra.mxu0 %v2370
    %2498 = vmatprep.subr.bf16.mxu0 %v2377
    %2499 = vmatpush1.bf16.msra.mxu0 %v2376
    %2500 = vmatprep.subr.bf16.mxu0 %v2383
    %2501 = vmatpush1.bf16.msra.mxu0 %v2382
    %2502 = vmatprep.subr.bf16.mxu0 %v2389
    %2503 = vmatpush1.bf16.msra.mxu0 %v2388
    %2504 = vmatprep.mubr.bf16.mxu0 0
    %2505 = vmatmul.mubr.bf16.gmra.mrb[0].mxu0 0
    %v2506 = vpop.f32.mrb[0].mxu0
    %v2507 = vadd.f32 0.0, %v2506
    %v2508 = vpop.f32.mrb[0].mxu0
    %v2509 = vadd.f32 0.0, %v2508
    %v2510 = vpop.f32.mrb[0].mxu0
    %v2511 = vpop.f32.mrb[0].mxu0
    %2512 = vdwg.mxu0
    %v2513 = vadd.f32 %v2206, %v2425
    %v2514 = vadd.f32 %v2208, %v2427
    %v2515 = vxor.u32 %v2513, 2147483648
    %v2516 = vxor.u32 %v2514, 2147483648
    %v2517 = vmul.f32 %v2515, 1.442695
    %v2518 = vpow.pop %v2517
    %v2519 = vmul.f32 %v2516, 1.442695
    %v2520 = vpow.pop %v2519
    %v2521 = vadd.f32 %v2518, 1.0
    %v2522 = vadd.f32 %v2520, 1.0
    %v2523 = vrcp.pop %v2521
    %v2524 = vmul.f32 1.0, %v2523
    %v2525 = vrcp.pop %v2522
    %v2526 = vmul.f32 1.0, %v2525
    %v2527 = vadd.f32 %v2247, %v2466
    %v2528 = vadd.f32 %v2249, %v2468
    %v2529 = vxor.u32 %v2527, 2147483648
    %v2530 = vxor.u32 %v2528, 2147483648
    %v2531 = vmul.f32 %v2529, 1.442695
    %v2532 = vpow.pop %v2531
    %v2533 = vmul.f32 %v2530, 1.442695
    %v2534 = vpow.pop %v2533
    %v2535 = vadd.f32 %v2532, 1.0
    %v2536 = vadd.f32 %v2534, 1.0
    %v2537 = vrcp.pop %v2535
    %v2538 = vmul.f32 1.0, %v2537
    %v2539 = vrcp.pop %v2536
    %v2540 = vmul.f32 1.0, %v2539
    %v2541 = vadd.f32 %v2507, %v1310
    %v2542 = vadd.f32 %v2509, %v1311
    %v2543 = vmul.f32 %v2524, %v2541
    %v2544 = vmul.f32 %v2526, %v2542
    %v2545 = vadd.f32 %v2288, %v2543
    %v2546 = vadd.f32 %v2290, %v2544
    %v2547 = vtanh.pop %v2545
    %v2548 = vtanh.pop %v2546
    %v2549 = vsub.f32 1.0, %v2538
    %v2550 = vsub.f32 1.0, %v2540
    %v2551 = vmul.f32 %v2549, %v2547
    %v2552 = vmul.f32 %v2550, %v2548
    %v2553 = vmul.f32 %v2538, 0.0
    %v2554 = vmul.f32 %v2540, 0.0
    %v2555 = vadd.f32 %v2551, %v2553
    %v2556 = vadd.f32 %v2552, %v2554
    %vm2557 = vcmp.gt.s32.totalorder %v1306, 0
    %vm2558 = vcmp.gt.s32.totalorder %v1307, 0
    %v2559 = vsel %vm2557, %v2065, 0.0
    %v2560 = vsel %vm2558, %v2066, 0.0
    %v2561 = vsel %vm2557, %v2555, 0.0
    %v2562 = vsel %vm2558, %v2556, 0.0
    %v2563 = vld [vmem:[#allocation2 + $0x30] sm:$0xff]
    %v2564 = vld [vmem:[#allocation2 + $0x38] sm:$0xff]
    %v2565 = vld [vmem:[#allocation2 + $0x40] sm:$0xff]
    %v2566 = vld [vmem:[#allocation2 + $0x48] sm:$0xff]
    %v2567 = vld [vmem:[#allocation2 + $0x50] sm:$0xff]
    %v2568 = vld [vmem:[#allocation2 + $0x58] sm:$0xff]
    %v2569 = vpack.c.bf16 %v2559, %v2559
    %v2570 = vpack.c.bf16 %v2560, %v2560
    %v2571 = vld [vmem:[#allocation11] sm:$0xff]
    %v2572 = vld [vmem:[#allocation11 + $0x8] sm:$0xff]
    %v2573 = vld [vmem:[#allocation11 + $0x10] sm:$0xff]
    %v2574 = vld [vmem:[#allocation11 + $0x18] sm:$0xff]
    %v2575 = vld [vmem:[#allocation11 + $0x20] sm:$0xff]
    %v2576 = vld [vmem:[#allocation11 + $0x28] sm:$0xff]
    %v2577 = vld [vmem:[#allocation11 + $0x30] sm:$0xff]
    %v2578 = vld [vmem:[#allocation11 + $0x38] sm:$0xff]
    %v2579 = vld [vmem:[#allocation11 + $0x40] sm:$0xff]
    %v2580 = vld [vmem:[#allocation11 + $0x48] sm:$0xff]
    %v2581 = vld [vmem:[#allocation11 + $0x50] sm:$0xff]
    %v2582 = vld [vmem:[#allocation11 + $0x58] sm:$0xff]
    %v2583 = vld [vmem:[#allocation11 + $0x60] sm:$0xff]
    %v2584 = vld [vmem:[#allocation11 + $0x68] sm:$0xff]
    %v2585 = vld [vmem:[#allocation11 + $0x70] sm:$0xff]
    %v2586 = vld [vmem:[#allocation11 + $0x78] sm:$0xff]
    %v2587 = vld [vmem:[#allocation11 + $0x80] sm:$0xff]
    %v2588 = vld [vmem:[#allocation11 + $0x88] sm:$0xff]
    %v2589 = vld [vmem:[#allocation11 + $0x90] sm:$0xff]
    %v2590 = vld [vmem:[#allocation11 + $0x98] sm:$0xff]
    %v2591 = vld [vmem:[#allocation11 + $0xa0] sm:$0xff]
    %v2592 = vld [vmem:[#allocation11 + $0xa8] sm:$0xff]
    %v2593 = vld [vmem:[#allocation11 + $0xb0] sm:$0xff]
    %v2594 = vld [vmem:[#allocation11 + $0xb8] sm:$0xff]
    %v2595 = vld [vmem:[#allocation11 + $0xc0] sm:$0xff]
    %v2596 = vld [vmem:[#allocation11 + $0xc8] sm:$0xff]
    %v2597 = vld [vmem:[#allocation11 + $0xd0] sm:$0xff]
    %v2598 = vld [vmem:[#allocation11 + $0xd8] sm:$0xff]
    %v2599 = vld [vmem:[#allocation11 + $0xe0] sm:$0xff]
    %v2600 = vld [vmem:[#allocation11 + $0xe8] sm:$0xff]
    %v2601 = vld [vmem:[#allocation11 + $0xf0] sm:$0xff]
    %v2602 = vld [vmem:[#allocation11 + $0xf8] sm:$0xff]
    %v2603 = vld [vmem:[#allocation11 + $0x100] sm:$0xff]
    %v2604 = vld [vmem:[#allocation11 + $0x108] sm:$0xff]
    %v2605 = vld [vmem:[#allocation11 + $0x110] sm:$0xff]
    %v2606 = vld [vmem:[#allocation11 + $0x118] sm:$0xff]
    %v2607 = vld [vmem:[#allocation11 + $0x120] sm:$0xff]
    %v2608 = vld [vmem:[#allocation11 + $0x128] sm:$0xff]
    %v2609 = vld [vmem:[#allocation11 + $0x130] sm:$0xff]
    %v2610 = vld [vmem:[#allocation11 + $0x138] sm:$0xff]
    %v2611 = vld [vmem:[#allocation11 + $0x140] sm:$0xff]
    %v2612 = vld [vmem:[#allocation11 + $0x148] sm:$0xff]
    %v2613 = vld [vmem:[#allocation11 + $0x150] sm:$0xff]
    %v2614 = vld [vmem:[#allocation11 + $0x158] sm:$0xff]
    %v2615 = vld [vmem:[#allocation11 + $0x160] sm:$0xff]
    %v2616 = vld [vmem:[#allocation11 + $0x168] sm:$0xff]
    %v2617 = vld [vmem:[#allocation11 + $0x170] sm:$0xff]
    %v2618 = vld [vmem:[#allocation11 + $0x178] sm:$0xff]
    %v2619 = vld [vmem:[#allocation11 + $0x180] sm:$0xff]
    %v2620 = vld [vmem:[#allocation11 + $0x188] sm:$0xff]
    %v2621 = vld [vmem:[#allocation11 + $0x190] sm:$0xff]
    %v2622 = vld [vmem:[#allocation11 + $0x198] sm:$0xff]
    %v2623 = vld [vmem:[#allocation11 + $0x1a0] sm:$0xff]
    %v2624 = vld [vmem:[#allocation11 + $0x1a8] sm:$0xff]
    %v2625 = vld [vmem:[#allocation11 + $0x1b0] sm:$0xff]
    %v2626 = vld [vmem:[#allocation11 + $0x1b8] sm:$0xff]
    %v2627 = vld [vmem:[#allocation11 + $0x1c0] sm:$0xff]
    %v2628 = vld [vmem:[#allocation11 + $0x1c8] sm:$0xff]
    %v2629 = vld [vmem:[#allocation11 + $0x1d0] sm:$0xff]
    %v2630 = vld [vmem:[#allocation11 + $0x1d8] sm:$0xff]
    %v2631 = vld [vmem:[#allocation11 + $0x1e0] sm:$0xff]
    %v2632 = vld [vmem:[#allocation11 + $0x1e8] sm:$0xff]
    %v2633 = vld [vmem:[#allocation11 + $0x1f0] sm:$0xff]
    %v2634 = vld [vmem:[#allocation11 + $0x1f8] sm:$0xff]
    %v2635 = vld [vmem:[#allocation11 + $0x200] sm:$0xff]
    %v2636 = vld [vmem:[#allocation11 + $0x208] sm:$0xff]
    %v2637 = vld [vmem:[#allocation11 + $0x210] sm:$0xff]
    %v2638 = vld [vmem:[#allocation11 + $0x218] sm:$0xff]
    %v2639 = vld [vmem:[#allocation11 + $0x220] sm:$0xff]
    %v2640 = vld [vmem:[#allocation11 + $0x228] sm:$0xff]
    %v2641 = vld [vmem:[#allocation11 + $0x230] sm:$0xff]
    %v2642 = vld [vmem:[#allocation11 + $0x238] sm:$0xff]
    %v2643 = vld [vmem:[#allocation11 + $0x240] sm:$0xff]
    %v2644 = vld [vmem:[#allocation11 + $0x248] sm:$0xff]
    %v2645 = vld [vmem:[#allocation11 + $0x250] sm:$0xff]
    %v2646 = vld [vmem:[#allocation11 + $0x258] sm:$0xff]
    %v2647 = vld [vmem:[#allocation11 + $0x260] sm:$0xff]
    %v2648 = vld [vmem:[#allocation11 + $0x268] sm:$0xff]
    %v2649 = vld [vmem:[#allocation11 + $0x270] sm:$0xff]
    %v2650 = vld [vmem:[#allocation11 + $0x278] sm:$0xff]
    %v2651 = vld [vmem:[#allocation11 + $0x280] sm:$0xff]
    %v2652 = vld [vmem:[#allocation11 + $0x288] sm:$0xff]
    %v2653 = vld [vmem:[#allocation11 + $0x290] sm:$0xff]
    %v2654 = vld [vmem:[#allocation11 + $0x298] sm:$0xff]
    %v2655 = vld [vmem:[#allocation11 + $0x2a0] sm:$0xff]
    %v2656 = vld [vmem:[#allocation11 + $0x2a8] sm:$0xff]
    %v2657 = vld [vmem:[#allocation11 + $0x2b0] sm:$0xff]
    %v2658 = vld [vmem:[#allocation11 + $0x2b8] sm:$0xff]
    %v2659 = vld [vmem:[#allocation11 + $0x2c0] sm:$0xff]
    %v2660 = vld [vmem:[#allocation11 + $0x2c8] sm:$0xff]
    %v2661 = vld [vmem:[#allocation11 + $0x2d0] sm:$0xff]
    %v2662 = vld [vmem:[#allocation11 + $0x2d8] sm:$0xff]
    %v2663 = vld [vmem:[#allocation11 + $0x2e0] sm:$0xff]
    %v2664 = vld [vmem:[#allocation11 + $0x2e8] sm:$0xff]
    %v2665 = vld [vmem:[#allocation11 + $0x2f0] sm:$0xff]
    %v2666 = vld [vmem:[#allocation11 + $0x2f8] sm:$0xff]
    %v2763 = vunpack.c.l.b16 %v2571
    %v2764 = vunpack.c.h.b16 %v2571
    %v2765 = vunpack.c.l.b16 %v2572
    %v2766 = vunpack.c.h.b16 %v2572
    %v2767 = vunpack.c.l.b16 %v2573
    %v2768 = vunpack.c.h.b16 %v2573
    %v2769 = vunpack.c.l.b16 %v2574
    %v2770 = vunpack.c.h.b16 %v2574
    %v2771 = vunpack.c.l.b16 %v2575
    %v2772 = vunpack.c.h.b16 %v2575
    %v2773 = vunpack.c.l.b16 %v2576
    %v2774 = vunpack.c.h.b16 %v2576
    %v2775 = vunpack.c.l.b16 %v2577
    %v2776 = vunpack.c.h.b16 %v2577
    %v2777 = vunpack.c.l.b16 %v2578
    %v2778 = vunpack.c.h.b16 %v2578
    %v2779 = vunpack.c.l.b16 %v2579
    %v2780 = vunpack.c.h.b16 %v2579
    %v2781 = vunpack.c.l.b16 %v2580
    %v2782 = vunpack.c.h.b16 %v2580
    %v2783 = vunpack.c.l.b16 %v2581
    %v2784 = vunpack.c.h.b16 %v2581
    %v2785 = vunpack.c.l.b16 %v2582
    %v2786 = vunpack.c.h.b16 %v2582
    %v2787 = vunpack.c.l.b16 %v2583
    %v2788 = vunpack.c.h.b16 %v2583
    %v2789 = vunpack.c.l.b16 %v2584
    %v2790 = vunpack.c.h.b16 %v2584
    %v2791 = vunpack.c.l.b16 %v2585
    %v2792 = vunpack.c.h.b16 %v2585
    %v2793 = vunpack.c.l.b16 %v2586
    %v2794 = vunpack.c.h.b16 %v2586
    %v2795 = vunpack.c.l.b16 %v2587
    %v2796 = vunpack.c.h.b16 %v2587
    %v2797 = vunpack.c.l.b16 %v2588
    %v2798 = vunpack.c.h.b16 %v2588
    %v2799 = vunpack.c.l.b16 %v2589
    %v2800 = vunpack.c.h.b16 %v2589
    %v2801 = vunpack.c.l.b16 %v2590
    %v2802 = vunpack.c.h.b16 %v2590
    %v2803 = vunpack.c.l.b16 %v2591
    %v2804 = vunpack.c.h.b16 %v2591
    %v2805 = vunpack.c.l.b16 %v2592
    %v2806 = vunpack.c.h.b16 %v2592
    %v2807 = vunpack.c.l.b16 %v2593
    %v2808 = vunpack.c.h.b16 %v2593
    %v2809 = vunpack.c.l.b16 %v2594
    %v2810 = vunpack.c.h.b16 %v2594
    %v2811 = vunpack.c.l.b16 %v2595
    %v2812 = vunpack.c.h.b16 %v2595
    %v2813 = vunpack.c.l.b16 %v2596
    %v2814 = vunpack.c.h.b16 %v2596
    %v2815 = vunpack.c.l.b16 %v2597
    %v2816 = vunpack.c.h.b16 %v2597
    %v2817 = vunpack.c.l.b16 %v2598
    %v2818 = vunpack.c.h.b16 %v2598
    %v2819 = vunpack.c.l.b16 %v2599
    %v2820 = vunpack.c.h.b16 %v2599
    %v2821 = vunpack.c.l.b16 %v2600
    %v2822 = vunpack.c.h.b16 %v2600
    %v2823 = vunpack.c.l.b16 %v2601
    %v2824 = vunpack.c.h.b16 %v2601
    %v2825 = vunpack.c.l.b16 %v2602
    %v2826 = vunpack.c.h.b16 %v2602
    %v2827 = vunpack.c.l.b16 %v2603
    %v2828 = vunpack.c.h.b16 %v2603
    %v2829 = vunpack.c.l.b16 %v2604
    %v2830 = vunpack.c.h.b16 %v2604
    %v2831 = vunpack.c.l.b16 %v2605
    %v2832 = vunpack.c.h.b16 %v2605
    %v2833 = vunpack.c.l.b16 %v2606
    %v2834 = vunpack.c.h.b16 %v2606
    %v2835 = vunpack.c.l.b16 %v2607
    %v2836 = vunpack.c.h.b16 %v2607
    %v2837 = vunpack.c.l.b16 %v2608
    %v2838 = vunpack.c.h.b16 %v2608
    %v2839 = vunpack.c.l.b16 %v2609
    %v2840 = vunpack.c.h.b16 %v2609
    %v2841 = vunpack.c.l.b16 %v2610
    %v2842 = vunpack.c.h.b16 %v2610
    %v2843 = vunpack.c.l.b16 %v2611
    %v2844 = vunpack.c.h.b16 %v2611
    %v2845 = vunpack.c.l.b16 %v2612
    %v2846 = vunpack.c.h.b16 %v2612
    %v2847 = vunpack.c.l.b16 %v2613
    %v2848 = vunpack.c.h.b16 %v2613
    %v2849 = vunpack.c.l.b16 %v2614
    %v2850 = vunpack.c.h.b16 %v2614
    %v2851 = vunpack.c.l.b16 %v2615
    %v2852 = vunpack.c.h.b16 %v2615
    %v2853 = vunpack.c.l.b16 %v2616
    %v2854 = vunpack.c.h.b16 %v2616
    %v2855 = vunpack.c.l.b16 %v2617
    %v2856 = vunpack.c.h.b16 %v2617
    %v2857 = vunpack.c.l.b16 %v2618
    %v2858 = vunpack.c.h.b16 %v2618
    %v2859 = vunpack.c.l.b16 %v2619
    %v2860 = vunpack.c.h.b16 %v2619
    %v2861 = vunpack.c.l.b16 %v2620
    %v2862 = vunpack.c.h.b16 %v2620
    %v2863 = vunpack.c.l.b16 %v2621
    %v2864 = vunpack.c.h.b16 %v2621
    %v2865 = vunpack.c.l.b16 %v2622
    %v2866 = vunpack.c.h.b16 %v2622
    %v2867 = vunpack.c.l.b16 %v2623
    %v2868 = vunpack.c.h.b16 %v2623
    %v2869 = vunpack.c.l.b16 %v2624
    %v2870 = vunpack.c.h.b16 %v2624
    %v2871 = vunpack.c.l.b16 %v2625
    %v2872 = vunpack.c.h.b16 %v2625
    %v2873 = vunpack.c.l.b16 %v2626
    %v2874 = vunpack.c.h.b16 %v2626
    %v2875 = vunpack.c.l.b16 %v2627
    %v2876 = vunpack.c.h.b16 %v2627
    %v2877 = vunpack.c.l.b16 %v2628
    %v2878 = vunpack.c.h.b16 %v2628
    %v2879 = vunpack.c.l.b16 %v2629
    %v2880 = vunpack.c.h.b16 %v2629
    %v2881 = vunpack.c.l.b16 %v2630
    %v2882 = vunpack.c.h.b16 %v2630
    %v2883 = vunpack.c.l.b16 %v2631
    %v2884 = vunpack.c.h.b16 %v2631
    %v2885 = vunpack.c.l.b16 %v2632
    %v2886 = vunpack.c.h.b16 %v2632
    %v2887 = vunpack.c.l.b16 %v2633
    %v2888 = vunpack.c.h.b16 %v2633
    %v2889 = vunpack.c.l.b16 %v2634
    %v2890 = vunpack.c.h.b16 %v2634
    %v2891 = vunpack.c.l.b16 %v2635
    %v2892 = vunpack.c.h.b16 %v2635
    %v2893 = vunpack.c.l.b16 %v2636
    %v2894 = vunpack.c.h.b16 %v2636
    %v2895 = vunpack.c.l.b16 %v2637
    %v2896 = vunpack.c.h.b16 %v2637
    %v2897 = vunpack.c.l.b16 %v2638
    %v2898 = vunpack.c.h.b16 %v2638
    %v2899 = vunpack.c.l.b16 %v2639
    %v2900 = vunpack.c.h.b16 %v2639
    %v2901 = vunpack.c.l.b16 %v2640
    %v2902 = vunpack.c.h.b16 %v2640
    %v2903 = vunpack.c.l.b16 %v2641
    %v2904 = vunpack.c.h.b16 %v2641
    %v2905 = vunpack.c.l.b16 %v2642
    %v2906 = vunpack.c.h.b16 %v2642
    %v2907 = vunpack.c.l.b16 %v2643
    %v2908 = vunpack.c.h.b16 %v2643
    %v2909 = vunpack.c.l.b16 %v2644
    %v2910 = vunpack.c.h.b16 %v2644
    %v2911 = vunpack.c.l.b16 %v2645
    %v2912 = vunpack.c.h.b16 %v2645
    %v2913 = vunpack.c.l.b16 %v2646
    %v2914 = vunpack.c.h.b16 %v2646
    %v2915 = vunpack.c.l.b16 %v2647
    %v2916 = vunpack.c.h.b16 %v2647
    %v2917 = vunpack.c.l.b16 %v2648
    %v2918 = vunpack.c.h.b16 %v2648
    %v2919 = vunpack.c.l.b16 %v2649
    %v2920 = vunpack.c.h.b16 %v2649
    %v2921 = vunpack.c.l.b16 %v2650
    %v2922 = vunpack.c.h.b16 %v2650
    %v2923 = vunpack.c.l.b16 %v2651
    %v2924 = vunpack.c.h.b16 %v2651
    %v2925 = vunpack.c.l.b16 %v2652
    %v2926 = vunpack.c.h.b16 %v2652
    %v2927 = vunpack.c.l.b16 %v2653
    %v2928 = vunpack.c.h.b16 %v2653
    %v2929 = vunpack.c.l.b16 %v2654
    %v2930 = vunpack.c.h.b16 %v2654
    %v2931 = vunpack.c.l.b16 %v2655
    %v2932 = vunpack.c.h.b16 %v2655
    %v2933 = vunpack.c.l.b16 %v2656
    %v2934 = vunpack.c.h.b16 %v2656
    %v2935 = vunpack.c.l.b16 %v2657
    %v2936 = vunpack.c.h.b16 %v2657
    %v2937 = vunpack.c.l.b16 %v2658
    %v2938 = vunpack.c.h.b16 %v2658
    %v2939 = vunpack.c.l.b16 %v2659
    %v2940 = vunpack.c.h.b16 %v2659
    %v2941 = vunpack.c.l.b16 %v2660
    %v2942 = vunpack.c.h.b16 %v2660
    %v2943 = vunpack.c.l.b16 %v2661
    %v2944 = vunpack.c.h.b16 %v2661
    %v2945 = vunpack.c.l.b16 %v2662
    %v2946 = vunpack.c.h.b16 %v2662
    %v2947 = vunpack.c.l.b16 %v2663
    %v2948 = vunpack.c.h.b16 %v2663
    %v2949 = vunpack.c.l.b16 %v2664
    %v2950 = vunpack.c.h.b16 %v2664
    %v2951 = vunpack.c.l.b16 %v2665
    %v2952 = vunpack.c.h.b16 %v2665
    %v2953 = vunpack.c.l.b16 %v2666
    %v2954 = vunpack.c.h.b16 %v2666
    %v2955 = vpack.c.b16 %v2769, %v2763
    %v2956 = vpack.c.b16 %v2770, %v2764
    %v2957 = vpack.c.b16 %v2771, %v2765
    %v2958 = vpack.c.b16 %v2772, %v2766
    %v2959 = vpack.c.b16 %v2773, %v2767
    %v2960 = vpack.c.b16 %v2774, %v2768
    %v2961 = vpack.c.b16 %v2781, %v2775
    %v2962 = vpack.c.b16 %v2782, %v2776
    %v2963 = vpack.c.b16 %v2783, %v2777
    %v2964 = vpack.c.b16 %v2784, %v2778
    %v2965 = vpack.c.b16 %v2785, %v2779
    %v2966 = vpack.c.b16 %v2786, %v2780
    %v2967 = vpack.c.b16 %v2793, %v2787
    %v2968 = vpack.c.b16 %v2794, %v2788
    %v2969 = vpack.c.b16 %v2795, %v2789
    %v2970 = vpack.c.b16 %v2796, %v2790
    %v2971 = vpack.c.b16 %v2797, %v2791
    %v2972 = vpack.c.b16 %v2798, %v2792
    %v2973 = vpack.c.b16 %v2805, %v2799
    %v2974 = vpack.c.b16 %v2806, %v2800
    %v2975 = vpack.c.b16 %v2807, %v2801
    %v2976 = vpack.c.b16 %v2808, %v2802
    %v2977 = vpack.c.b16 %v2809, %v2803
    %v2978 = vpack.c.b16 %v2810, %v2804
    %v2979 = vpack.c.b16 %v2817, %v2811
    %v2980 = vpack.c.b16 %v2818, %v2812
    %v2981 = vpack.c.b16 %v2819, %v2813
    %v2982 = vpack.c.b16 %v2820, %v2814
    %v2983 = vpack.c.b16 %v2821, %v2815
    %v2984 = vpack.c.b16 %v2822, %v2816
    %v2985 = vpack.c.b16 %v2829, %v2823
    %v2986 = vpack.c.b16 %v2830, %v2824
    %v2987 = vpack.c.b16 %v2831, %v2825
    %v2988 = vpack.c.b16 %v2832, %v2826
    %v2989 = vpack.c.b16 %v2833, %v2827
    %v2990 = vpack.c.b16 %v2834, %v2828
    %v2991 = vpack.c.b16 %v2841, %v2835
    %v2992 = vpack.c.b16 %v2842, %v2836
    %v2993 = vpack.c.b16 %v2843, %v2837
    %v2994 = vpack.c.b16 %v2844, %v2838
    %v2995 = vpack.c.b16 %v2845, %v2839
    %v2996 = vpack.c.b16 %v2846, %v2840
    %v2997 = vpack.c.b16 %v2853, %v2847
    %v2998 = vpack.c.b16 %v2854, %v2848
    %v2999 = vpack.c.b16 %v2855, %v2849
    %v3000 = vpack.c.b16 %v2856, %v2850
    %v3001 = vpack.c.b16 %v2857, %v2851
    %v3002 = vpack.c.b16 %v2858, %v2852
    %v3003 = vpack.c.b16 %v2865, %v2859
    %v3004 = vpack.c.b16 %v2866, %v2860
    %v3005 = vpack.c.b16 %v2867, %v2861
    %v3006 = vpack.c.b16 %v2868, %v2862
    %v3007 = vpack.c.b16 %v2869, %v2863
    %v3008 = vpack.c.b16 %v2870, %v2864
    %v3009 = vpack.c.b16 %v2877, %v2871
    %v3010 = vpack.c.b16 %v2878, %v2872
    %v3011 = vpack.c.b16 %v2879, %v2873
    %v3012 = vpack.c.b16 %v2880, %v2874
    %v3013 = vpack.c.b16 %v2881, %v2875
    %v3014 = vpack.c.b16 %v2882, %v2876
    %v3015 = vpack.c.b16 %v2889, %v2883
    %v3016 = vpack.c.b16 %v2890, %v2884
    %v3017 = vpack.c.b16 %v2891, %v2885
    %v3018 = vpack.c.b16 %v2892, %v2886
    %v3019 = vpack.c.b16 %v2893, %v2887
    %v3020 = vpack.c.b16 %v2894, %v2888
    %v3021 = vpack.c.b16 %v2901, %v2895
    %v3022 = vpack.c.b16 %v2902, %v2896
    %v3023 = vpack.c.b16 %v2903, %v2897
    %v3024 = vpack.c.b16 %v2904, %v2898
    %v3025 = vpack.c.b16 %v2905, %v2899
    %v3026 = vpack.c.b16 %v2906, %v2900
    %v3027 = vpack.c.b16 %v2913, %v2907
    %v3028 = vpack.c.b16 %v2914, %v2908
    %v3029 = vpack.c.b16 %v2915, %v2909
    %v3030 = vpack.c.b16 %v2916, %v2910
    %v3031 = vpack.c.b16 %v2917, %v2911
    %v3032 = vpack.c.b16 %v2918, %v2912
    %v3033 = vpack.c.b16 %v2925, %v2919
    %v3034 = vpack.c.b16 %v2926, %v2920
    %v3035 = vpack.c.b16 %v2927, %v2921
    %v3036 = vpack.c.b16 %v2928, %v2922
    %v3037 = vpack.c.b16 %v2929, %v2923
    %v3038 = vpack.c.b16 %v2930, %v2924
    %v3039 = vpack.c.b16 %v2937, %v2931
    %v3040 = vpack.c.b16 %v2938, %v2932
    %v3041 = vpack.c.b16 %v2939, %v2933
    %v3042 = vpack.c.b16 %v2940, %v2934
    %v3043 = vpack.c.b16 %v2941, %v2935
    %v3044 = vpack.c.b16 %v2942, %v2936
    %v3045 = vpack.c.b16 %v2949, %v2943
    %v3046 = vpack.c.b16 %v2950, %v2944
    %v3047 = vpack.c.b16 %v2951, %v2945
    %v3048 = vpack.c.b16 %v2952, %v2946
    %v3049 = vpack.c.b16 %v2953, %v2947
    %v3050 = vpack.c.b16 %v2954, %v2948
    %3147 = vmatprep.subr.bf16.mxu0 %v2956
    %3148 = vmatpush1.bf16.msra.mxu0 %v2955
    %3149 = vmatprep.subr.bf16.mxu0 %v2962
    %3150 = vmatpush1.bf16.msra.mxu0 %v2961
    %3151 = vmatprep.subr.bf16.mxu0 %v2968
    %3152 = vmatpush1.bf16.msra.mxu0 %v2967
    %3153 = vmatprep.subr.bf16.mxu0 %v2974
    %3154 = vmatpush1.bf16.msra.mxu0 %v2973
    %3155 = vmatprep.subr.bf16.mxu0 %v2980
    %3156 = vmatpush1.bf16.msra.mxu0 %v2979
    %3157 = vmatprep.subr.bf16.mxu0 %v2986
    %3158 = vmatpush1.bf16.msra.mxu0 %v2985
    %3159 = vmatprep.subr.bf16.mxu0 %v2992
    %3160 = vmatpush1.bf16.msra.mxu0 %v2991
    %3161 = vmatprep.subr.bf16.mxu0 %v2998
    %3162 = vmatpush1.bf16.msra.mxu0 %v2997
    %3163 = vmatprep.subr.bf16.mxu0 %v3004
    %3164 = vmatpush1.bf16.msra.mxu0 %v3003
    %3165 = vmatprep.subr.bf16.mxu0 %v3010
    %3166 = vmatpush1.bf16.msra.mxu0 %v3009
    %3167 = vmatprep.subr.bf16.mxu0 %v3016
    %3168 = vmatpush1.bf16.msra.mxu0 %v3015
    %3169 = vmatprep.subr.bf16.mxu0 %v3022
    %3170 = vmatpush1.bf16.msra.mxu0 %v3021
    %3171 = vmatprep.subr.bf16.mxu0 %v3028
    %3172 = vmatpush1.bf16.msra.mxu0 %v3027
    %3173 = vmatprep.subr.bf16.mxu0 %v3034
    %3174 = vmatpush1.bf16.msra.mxu0 %v3033
    %3175 = vmatprep.subr.bf16.mxu0 %v3040
    %3176 = vmatpush1.bf16.msra.mxu0 %v3039
    %3177 = vmatprep.subr.bf16.mxu0 %v3046
    %3178 = vmatpush1.bf16.msra.mxu0 %v3045
    %3179 = vmatprep.mubr.bf16.mxu0 %v2570
    %3180 = vmatmul.mubr.bf16.gmra.mrb[0].mxu0 %v2569
    %v3181 = vpop.f32.mrb[0].mxu0
    %v3182 = vadd.f32 0.0, %v3181
    %v3183 = vpop.f32.mrb[0].mxu0
    %v3184 = vadd.f32 0.0, %v3183
    %v3185 = vpop.f32.mrb[0].mxu0
    %v3186 = vpop.f32.mrb[0].mxu0
    %3187 = vdwg.mxu0
    %3188 = vmatprep.subr.bf16.mxu0 %v2958
    %3189 = vmatpush1.bf16.msra.mxu0 %v2957
    %3190 = vmatprep.subr.bf16.mxu0 %v2964
    %3191 = vmatpush1.bf16.msra.mxu0 %v2963
    %3192 = vmatprep.subr.bf16.mxu0 %v2970
    %3193 = vmatpush1.bf16.msra.mxu0 %v2969
    %3194 = vmatprep.subr.bf16.mxu0 %v2976
    %3195 = vmatpush1.bf16.msra.mxu0 %v2975
    %3196 = vmatprep.subr.bf16.mxu0 %v2982
    %3197 = vmatpush1.bf16.msra.mxu0 %v2981
    %3198 = vmatprep.subr.bf16.mxu0 %v2988
    %3199 = vmatpush1.bf16.msra.mxu0 %v2987
    %3200 = vmatprep.subr.bf16.mxu0 %v2994
    %3201 = vmatpush1.bf16.msra.mxu0 %v2993
    %3202 = vmatprep.subr.bf16.mxu0 %v3000
    %3203 = vmatpush1.bf16.msra.mxu0 %v2999
    %3204 = vmatprep.subr.bf16.mxu0 %v3006
    %3205 = vmatpush1.bf16.msra.mxu0 %v3005
    %3206 = vmatprep.subr.bf16.mxu0 %v3012
    %3207 = vmatpush1.bf16.msra.mxu0 %v3011
    %3208 = vmatprep.subr.bf16.mxu0 %v3018
    %3209 = vmatpush1.bf16.msra.mxu0 %v3017
    %3210 = vmatprep.subr.bf16.mxu0 %v3024
    %3211 = vmatpush1.bf16.msra.mxu0 %v3023
    %3212 = vmatprep.subr.bf16.mxu0 %v3030
    %3213 = vmatpush1.bf16.msra.mxu0 %v3029
    %3214 = vmatprep.subr.bf16.mxu0 %v3036
    %3215 = vmatpush1.bf16.msra.mxu0 %v3035
    %3216 = vmatprep.subr.bf16.mxu0 %v3042
    %3217 = vmatpush1.bf16.msra.mxu0 %v3041
    %3218 = vmatprep.subr.bf16.mxu0 %v3048
    %3219 = vmatpush1.bf16.msra.mxu0 %v3047
    %3220 = vmatprep.mubr.bf16.mxu0 %v2570
    %3221 = vmatmul.mubr.bf16.gmra.mrb[0].mxu0 %v2569
    %v3222 = vpop.f32.mrb[0].mxu0
    %v3223 = vadd.f32 0.0, %v3222
    %v3224 = vpop.f32.mrb[0].mxu0
    %v3225 = vadd.f32 0.0, %v3224
    %v3226 = vpop.f32.mrb[0].mxu0
    %v3227 = vpop.f32.mrb[0].mxu0
    %3228 = vdwg.mxu0
    %3229 = vmatprep.subr.bf16.mxu0 %v2960
    %3230 = vmatpush1.bf16.msra.mxu0 %v2959
    %3231 = vmatprep.subr.bf16.mxu0 %v2966
    %3232 = vmatpush1.bf16.msra.mxu0 %v2965
    %3233 = vmatprep.subr.bf16.mxu0 %v2972
    %3234 = vmatpush1.bf16.msra.mxu0 %v2971
    %3235 = vmatprep.subr.bf16.mxu0 %v2978
    %3236 = vmatpush1.bf16.msra.mxu0 %v2977
    %3237 = vmatprep.subr.bf16.mxu0 %v2984
    %3238 = vmatpush1.bf16.msra.mxu0 %v2983
    %3239 = vmatprep.subr.bf16.mxu0 %v2990
    %3240 = vmatpush1.bf16.msra.mxu0 %v2989
    %3241 = vmatprep.subr.bf16.mxu0 %v2996
    %3242 = vmatpush1.bf16.msra.mxu0 %v2995
    %3243 = vmatprep.subr.bf16.mxu0 %v3002
    %3244 = vmatpush1.bf16.msra.mxu0 %v3001
    %3245 = vmatprep.subr.bf16.mxu0 %v3008
    %3246 = vmatpush1.bf16.msra.mxu0 %v3007
    %3247 = vmatprep.subr.bf16.mxu0 %v3014
    %3248 = vmatpush1.bf16.msra.mxu0 %v3013
    %3249 = vmatprep.subr.bf16.mxu0 %v3020
    %3250 = vmatpush1.bf16.msra.mxu0 %v3019
    %3251 = vmatprep.subr.bf16.mxu0 %v3026
    %3252 = vmatpush1.bf16.msra.mxu0 %v3025
    %3253 = vmatprep.subr.bf16.mxu0 %v3032
    %3254 = vmatpush1.bf16.msra.mxu0 %v3031
    %3255 = vmatprep.subr.bf16.mxu0 %v3038
    %3256 = vmatpush1.bf16.msra.mxu0 %v3037
    %3257 = vmatprep.subr.bf16.mxu0 %v3044
    %3258 = vmatpush1.bf16.msra.mxu0 %v3043
    %3259 = vmatprep.subr.bf16.mxu0 %v3050
    %3260 = vmatpush1.bf16.msra.mxu0 %v3049
    %3261 = vmatprep.mubr.bf16.mxu0 %v2570
    %3262 = vmatmul.mubr.bf16.gmra.mrb[0].mxu0 %v2569
    %v3263 = vpop.f32.mrb[0].mxu0
    %v3264 = vadd.f32 0.0, %v3263
    %v3265 = vpop.f32.mrb[0].mxu0
    %v3266 = vadd.f32 0.0, %v3265
    %v3267 = vpop.f32.mrb[0].mxu0
    %v3268 = vpop.f32.mrb[0].mxu0
    %3269 = vdwg.mxu0
    %v3270 = vadd.f32 %v2563, %v3182
    %v3271 = vadd.f32 %v2564, %v3184
    %v3272 = vxor.u32 %v3270, 2147483648
    %v3273 = vxor.u32 %v3271, 2147483648
    %v3274 = vmul.f32 %v3272, 1.442695
    %v3275 = vpow.pop %v3274
    %v3276 = vmul.f32 %v3273, 1.442695
    %v3277 = vpow.pop %v3276
    %v3278 = vadd.f32 %v3275, 1.0
    %v3279 = vadd.f32 %v3277, 1.0
    %v3280 = vrcp.pop %v3278
    %v3281 = vmul.f32 1.0, %v3280
    %v3282 = vrcp.pop %v3279
    %v3283 = vmul.f32 1.0, %v3282
    %v3284 = vadd.f32 %v2565, %v3223
    %v3285 = vadd.f32 %v2566, %v3225
    %v3286 = vxor.u32 %v3284, 2147483648
    %v3287 = vxor.u32 %v3285, 2147483648
    %v3288 = vmul.f32 %v3286, 1.442695
    %v3289 = vpow.pop %v3288
    %v3290 = vmul.f32 %v3287, 1.442695
    %v3291 = vpow.pop %v3290
    %v3292 = vadd.f32 %v3289, 1.0
    %v3293 = vadd.f32 %v3291, 1.0
    %v3294 = vrcp.pop %v3292
    %v3295 = vmul.f32 1.0, %v3294
    %v3296 = vrcp.pop %v3293
    %v3297 = vmul.f32 1.0, %v3296
    %v3298 = vadd.f32 %v3264, %v1308
    %v3299 = vadd.f32 %v3266, %v1309
    %v3300 = vmul.f32 %v3281, %v3298
    %v3301 = vmul.f32 %v3283, %v3299
    %v3302 = vadd.f32 %v2567, %v3300
    %v3303 = vadd.f32 %v2568, %v3301
    %v3304 = vtanh.pop %v3302
    %v3305 = vtanh.pop %v3303
    %v3306 = vsub.f32 1.0, %v3295
    %v3307 = vsub.f32 1.0, %v3297
    %v3308 = vmul.f32 %v3306, %v3304
    %v3309 = vmul.f32 %v3307, %v3305
    %v3310 = vmul.f32 %v3295, %v2559
    %v3311 = vmul.f32 %v3297, %v2560
    %v3312 = vadd.f32 %v3308, %v3310
    %v3313 = vadd.f32 %v3309, %v3311
    %v3314 = vpack.c.bf16 %v3312, %v3312
    %v3315 = vpack.c.bf16 %v3313, %v3313
    %3316 = vmatprep.subr.bf16.mxu0 %v2076
    %3317 = vmatpush1.bf16.msra.mxu0 %v2075
    %3318 = vmatprep.subr.bf16.mxu0 %v2082
    %3319 = vmatpush1.bf16.msra.mxu0 %v2081
    %3320 = vmatprep.subr.bf16.mxu0 %v2088
    %3321 = vmatpush1.bf16.msra.mxu0 %v2087
    %3322 = vmatprep.subr.bf16.mxu0 %v2094
    %3323 = vmatpush1.bf16.msra.mxu0 %v2093
    %3324 = vmatprep.subr.bf16.mxu0 %v2100
    %3325 = vmatpush1.bf16.msra.mxu0 %v2099
    %3326 = vmatprep.subr.bf16.mxu0 %v2106
    %3327 = vmatpush1.bf16.msra.mxu0 %v2105
    %3328 = vmatprep.subr.bf16.mxu0 %v2112
    %3329 = vmatpush1.bf16.msra.mxu0 %v2111
    %3330 = vmatprep.subr.bf16.mxu0 %v2118
    %3331 = vmatpush1.bf16.msra.mxu0 %v2117
    %3332 = vmatprep.subr.bf16.mxu0 %v2124
    %3333 = vmatpush1.bf16.msra.mxu0 %v2123
    %3334 = vmatprep.subr.bf16.mxu0 %v2130
    %3335 = vmatpush1.bf16.msra.mxu0 %v2129
    %3336 = vmatprep.subr.bf16.mxu0 %v2136
    %3337 = vmatpush1.bf16.msra.mxu0 %v2135
    %3338 = vmatprep.subr.bf16.mxu0 %v2142
    %3339 = vmatpush1.bf16.msra.mxu0 %v2141
    %3340 = vmatprep.subr.bf16.mxu0 %v2148
    %3341 = vmatpush1.bf16.msra.mxu0 %v2147
    %3342 = vmatprep.subr.bf16.mxu0 %v2154
    %3343 = vmatpush1.bf16.msra.mxu0 %v2153
    %3344 = vmatprep.subr.bf16.mxu0 %v2160
    %3345 = vmatpush1.bf16.msra.mxu0 %v2159
    %3346 = vmatprep.subr.bf16.mxu0 %v2166
    %3347 = vmatpush1.bf16.msra.mxu0 %v2165
    %3348 = vmatprep.mubr.bf16.mxu0 %v3315
    %3349 = vmatmul.mubr.bf16.gmra.mrb[0].mxu0 %v3314
    %v3350 = vpop.f32.mrb[0].mxu0
    %v3351 = vadd.f32 %v1312, %v3350
    %v3352 = vpop.f32.mrb[0].mxu0
    %v3353 = vadd.f32 %v1313, %v3352
    %v3354 = vpop.f32.mrb[0].mxu0
    %v3355 = vpop.f32.mrb[0].mxu0
    %3356 = vdwg.mxu0
    %3357 = vmatprep.subr.bf16.mxu0 %v2078
    %3358 = vmatpush1.bf16.msra.mxu0 %v2077
    %3359 = vmatprep.subr.bf16.mxu0 %v2084
    %3360 = vmatpush1.bf16.msra.mxu0 %v2083
    %3361 = vmatprep.subr.bf16.mxu0 %v2090
    %3362 = vmatpush1.bf16.msra.mxu0 %v2089
    %3363 = vmatprep.subr.bf16.mxu0 %v2096
    %3364 = vmatpush1.bf16.msra.mxu0 %v2095
    %3365 = vmatprep.subr.bf16.mxu0 %v2102
    %3366 = vmatpush1.bf16.msra.mxu0 %v2101
    %3367 = vmatprep.subr.bf16.mxu0 %v2108
    %3368 = vmatpush1.bf16.msra.mxu0 %v2107
    %3369 = vmatprep.subr.bf16.mxu0 %v2114
    %3370 = vmatpush1.bf16.msra.mxu0 %v2113
    %3371 = vmatprep.subr.bf16.mxu0 %v2120
    %3372 = vmatpush1.bf16.msra.mxu0 %v2119
    %3373 = vmatprep.subr.bf16.mxu0 %v2126
    %3374 = vmatpush1.bf16.msra.mxu0 %v2125
    %3375 = vmatprep.subr.bf16.mxu0 %v2132
    %3376 = vmatpush1.bf16.msra.mxu0 %v2131
    %3377 = vmatprep.subr.bf16.mxu0 %v2138
    %3378 = vmatpush1.bf16.msra.mxu0 %v2137
    %3379 = vmatprep.subr.bf16.mxu0 %v2144
    %3380 = vmatpush1.bf16.msra.mxu0 %v2143
    %3381 = vmatprep.subr.bf16.mxu0 %v2150
    %3382 = vmatpush1.bf16.msra.mxu0 %v2149
    %3383 = vmatprep.subr.bf16.mxu0 %v2156
    %3384 = vmatpush1.bf16.msra.mxu0 %v2155
    %3385 = vmatprep.subr.bf16.mxu0 %v2162
    %3386 = vmatpush1.bf16.msra.mxu0 %v2161
    %3387 = vmatprep.subr.bf16.mxu0 %v2168
    %3388 = vmatpush1.bf16.msra.mxu0 %v2167
    %3389 = vmatprep.mubr.bf16.mxu0 %v3315
    %3390 = vmatmul.mubr.bf16.gmra.mrb[0].mxu0 %v3314
    %v3391 = vpop.f32.mrb[0].mxu0
    %v3392 = vadd.f32 %v1314, %v3391
    %v3393 = vpop.f32.mrb[0].mxu0
    %v3394 = vadd.f32 %v1315, %v3393
    %v3395 = vpop.f32.mrb[0].mxu0
    %v3396 = vpop.f32.mrb[0].mxu0
    %3397 = vdwg.mxu0
    %3398 = vmatprep.subr.bf16.mxu0 %v2080
    %3399 = vmatpush1.bf16.msra.mxu0 %v2079
    %3400 = vmatprep.subr.bf16.mxu0 %v2086
    %3401 = vmatpush1.bf16.msra.mxu0 %v2085
    %3402 = vmatprep.subr.bf16.mxu0 %v2092
    %3403 = vmatpush1.bf16.msra.mxu0 %v2091
    %3404 = vmatprep.subr.bf16.mxu0 %v2098
    %3405 = vmatpush1.bf16.msra.mxu0 %v2097
    %3406 = vmatprep.subr.bf16.mxu0 %v2104
    %3407 = vmatpush1.bf16.msra.mxu0 %v2103
    %3408 = vmatprep.subr.bf16.mxu0 %v2110
    %3409 = vmatpush1.bf16.msra.mxu0 %v2109
    %3410 = vmatprep.subr.bf16.mxu0 %v2116
    %3411 = vmatpush1.bf16.msra.mxu0 %v2115
    %3412 = vmatprep.subr.bf16.mxu0 %v2122
    %3413 = vmatpush1.bf16.msra.mxu0 %v2121
    %3414 = vmatprep.subr.bf16.mxu0 %v2128
    %3415 = vmatpush1.bf16.msra.mxu0 %v2127
    %3416 = vmatprep.subr.bf16.mxu0 %v2134
    %3417 = vmatpush1.bf16.msra.mxu0 %v2133
    %3418 = vmatprep.subr.bf16.mxu0 %v2140
    %3419 = vmatpush1.bf16.msra.mxu0 %v2139
    %3420 = vmatprep.subr.bf16.mxu0 %v2146
    %3421 = vmatpush1.bf16.msra.mxu0 %v2145
    %3422 = vmatprep.subr.bf16.mxu0 %v2152
    %3423 = vmatpush1.bf16.msra.mxu0 %v2151
    %3424 = vmatprep.subr.bf16.mxu0 %v2158
    %3425 = vmatpush1.bf16.msra.mxu0 %v2157
    %3426 = vmatprep.subr.bf16.mxu0 %v2164
    %3427 = vmatpush1.bf16.msra.mxu0 %v2163
    %3428 = vmatprep.subr.bf16.mxu0 %v2170
    %3429 = vmatpush1.bf16.msra.mxu0 %v2169
    %3430 = vmatprep.mubr.bf16.mxu0 %v3315
    %3431 = vmatmul.mubr.bf16.gmra.mrb[0].mxu0 %v3314
    %v3432 = vpop.f32.mrb[0].mxu0
    %v3433 = vadd.f32 %v1316, %v3432
    %v3434 = vpop.f32.mrb[0].mxu0
    %v3435 = vadd.f32 %v1317, %v3434
    %v3436 = vpop.f32.mrb[0].mxu0
    %v3437 = vpop.f32.mrb[0].mxu0
    %3438 = vdwg.mxu0
    %v3439 = vpack.c.bf16 %v2561, %v2561
    %v3440 = vpack.c.bf16 %v2562, %v2562
    %3441 = vmatprep.subr.bf16.mxu0 %v2295
    %3442 = vmatpush1.bf16.msra.mxu0 %v2294
    %3443 = vmatprep.subr.bf16.mxu0 %v2301
    %3444 = vmatpush1.bf16.msra.mxu0 %v2300
    %3445 = vmatprep.subr.bf16.mxu0 %v2307
    %3446 = vmatpush1.bf16.msra.mxu0 %v2306
    %3447 = vmatprep.subr.bf16.mxu0 %v2313
    %3448 = vmatpush1.bf16.msra.mxu0 %v2312
    %3449 = vmatprep.subr.bf16.mxu0 %v2319
    %3450 = vmatpush1.bf16.msra.mxu0 %v2318
    %3451 = vmatprep.subr.bf16.mxu0 %v2325
    %3452 = vmatpush1.bf16.msra.mxu0 %v2324
    %3453 = vmatprep.subr.bf16.mxu0 %v2331
    %3454 = vmatpush1.bf16.msra.mxu0 %v2330
    %3455 = vmatprep.subr.bf16.mxu0 %v2337
    %3456 = vmatpush1.bf16.msra.mxu0 %v2336
    %3457 = vmatprep.subr.bf16.mxu0 %v2343
    %3458 = vmatpush1.bf16.msra.mxu0 %v2342
    %3459 = vmatprep.subr.bf16.mxu0 %v2349
    %3460 = vmatpush1.bf16.msra.mxu0 %v2348
    %3461 = vmatprep.subr.bf16.mxu0 %v2355
    %3462 = vmatpush1.bf16.msra.mxu0 %v2354
    %3463 = vmatprep.subr.bf16.mxu0 %v2361
    %3464 = vmatpush1.bf16.msra.mxu0 %v2360
    %3465 = vmatprep.subr.bf16.mxu0 %v2367
    %3466 = vmatpush1.bf16.msra.mxu0 %v2366
    %3467 = vmatprep.subr.bf16.mxu0 %v2373
    %3468 = vmatpush1.bf16.msra.mxu0 %v2372
    %3469 = vmatprep.subr.bf16.mxu0 %v2379
    %3470 = vmatpush1.bf16.msra.mxu0 %v2378
    %3471 = vmatprep.subr.bf16.mxu0 %v2385
    %3472 = vmatpush1.bf16.msra.mxu0 %v2384
    %3473 = vmatprep.mubr.bf16.mxu0 %v3440
    %3474 = vmatmul.mubr.bf16.gmra.mrb[0].mxu0 %v3439
    %v3475 = vpop.f32.mrb[0].mxu0
    %v3476 = vadd.f32 0.0, %v3475
    %v3477 = vpop.f32.mrb[0].mxu0
    %v3478 = vadd.f32 0.0, %v3477
    %v3479 = vpop.f32.mrb[0].mxu0
    %v3480 = vpop.f32.mrb[0].mxu0
    %3481 = vdwg.mxu0
    %3482 = vmatprep.subr.bf16.mxu0 %v2297
    %3483 = vmatpush1.bf16.msra.mxu0 %v2296
    %3484 = vmatprep.subr.bf16.mxu0 %v2303
    %3485 = vmatpush1.bf16.msra.mxu0 %v2302
    %3486 = vmatprep.subr.bf16.mxu0 %v2309
    %3487 = vmatpush1.bf16.msra.mxu0 %v2308
    %3488 = vmatprep.subr.bf16.mxu0 %v2315
    %3489 = vmatpush1.bf16.msra.mxu0 %v2314
    %3490 = vmatprep.subr.bf16.mxu0 %v2321
    %3491 = vmatpush1.bf16.msra.mxu0 %v2320
    %3492 = vmatprep.subr.bf16.mxu0 %v2327
    %3493 = vmatpush1.bf16.msra.mxu0 %v2326
    %3494 = vmatprep.subr.bf16.mxu0 %v2333
    %3495 = vmatpush1.bf16.msra.mxu0 %v2332
    %3496 = vmatprep.subr.bf16.mxu0 %v2339
    %3497 = vmatpush1.bf16.msra.mxu0 %v2338
    %3498 = vmatprep.subr.bf16.mxu0 %v2345
    %3499 = vmatpush1.bf16.msra.mxu0 %v2344
    %3500 = vmatprep.subr.bf16.mxu0 %v2351
    %3501 = vmatpush1.bf16.msra.mxu0 %v2350
    %3502 = vmatprep.subr.bf16.mxu0 %v2357
    %3503 = vmatpush1.bf16.msra.mxu0 %v2356
    %3504 = vmatprep.subr.bf16.mxu0 %v2363
    %3505 = vmatpush1.bf16.msra.mxu0 %v2362
    %3506 = vmatprep.subr.bf16.mxu0 %v2369
    %3507 = vmatpush1.bf16.msra.mxu0 %v2368
    %3508 = vmatprep.subr.bf16.mxu0 %v2375
    %3509 = vmatpush1.bf16.msra.mxu0 %v2374
    %3510 = vmatprep.subr.bf16.mxu0 %v2381
    %3511 = vmatpush1.bf16.msra.mxu0 %v2380
    %3512 = vmatprep.subr.bf16.mxu0 %v2387
    %3513 = vmatpush1.bf16.msra.mxu0 %v2386
    %3514 = vmatprep.mubr.bf16.mxu0 %v3440
    %3515 = vmatmul.mubr.bf16.gmra.mrb[0].mxu0 %v3439
    %v3516 = vpop.f32.mrb[0].mxu0
    %v3517 = vadd.f32 0.0, %v3516
    %v3518 = vpop.f32.mrb[0].mxu0
    %v3519 = vadd.f32 0.0, %v3518
    %v3520 = vpop.f32.mrb[0].mxu0
    %v3521 = vpop.f32.mrb[0].mxu0
    %3522 = vdwg.mxu0
    %3523 = vmatprep.subr.bf16.mxu0 %v2299
    %3524 = vmatpush1.bf16.msra.mxu0 %v2298
    %3525 = vmatprep.subr.bf16.mxu0 %v2305
    %3526 = vmatpush1.bf16.msra.mxu0 %v2304
    %3527 = vmatprep.subr.bf16.mxu0 %v2311
    %3528 = vmatpush1.bf16.msra.mxu0 %v2310
    %3529 = vmatprep.subr.bf16.mxu0 %v2317
    %3530 = vmatpush1.bf16.msra.mxu0 %v2316
    %3531 = vmatprep.subr.bf16.mxu0 %v2323
    %3532 = vmatpush1.bf16.msra.mxu0 %v2322
    %3533 = vmatprep.subr.bf16.mxu0 %v2329
    %3534 = vmatpush1.bf16.msra.mxu0 %v2328
    %3535 = vmatprep.subr.bf16.mxu0 %v2335
    %3536 = vmatpush1.bf16.msra.mxu0 %v2334
    %3537 = vmatprep.subr.bf16.mxu0 %v2341
    %3538 = vmatpush1.bf16.msra.mxu0 %v2340
    %3539 = vmatprep.subr.bf16.mxu0 %v2347
    %3540 = vmatpush1.bf16.msra.mxu0 %v2346
    %3541 = vmatprep.subr.bf16.mxu0 %v2353
    %3542 = vmatpush1.bf16.msra.mxu0 %v2352
    %3543 = vmatprep.subr.bf16.mxu0 %v2359
    %3544 = vmatpush1.bf16.msra.mxu0 %v2358
    %3545 = vmatprep.subr.bf16.mxu0 %v2365
    %3546 = vmatpush1.bf16.msra.mxu0 %v2364
    %3547 = vmatprep.subr.bf16.mxu0 %v2371
    %3548 = vmatpush1.bf16.msra.mxu0 %v2370
    %3549 = vmatprep.subr.bf16.mxu0 %v2377
    %3550 = vmatpush1.bf16.msra.mxu0 %v2376
    %3551 = vmatprep.subr.bf16.mxu0 %v2383
    %3552 = vmatpush1.bf16.msra.mxu0 %v2382
    %3553 = vmatprep.subr.bf16.mxu0 %v2389
    %3554 = vmatpush1.bf16.msra.mxu0 %v2388
    %3555 = vmatprep.mubr.bf16.mxu0 %v3440
    %3556 = vmatmul.mubr.bf16.gmra.mrb[0].mxu0 %v3439
    %v3557 = vpop.f32.mrb[0].mxu0
    %v3558 = vadd.f32 0.0, %v3557
    %v3559 = vpop.f32.mrb[0].mxu0
    %v3560 = vadd.f32 0.0, %v3559
    %v3561 = vpop.f32.mrb[0].mxu0
    %v3562 = vpop.f32.mrb[0].mxu0
    %3563 = vdwg.mxu0
    %v3564 = vadd.f32 %v3351, %v3476
    %v3565 = vadd.f32 %v3353, %v3478
    %v3566 = vxor.u32 %v3564, 2147483648
    %v3567 = vxor.u32 %v3565, 2147483648
    %v3568 = vmul.f32 %v3566, 1.442695
    %v3569 = vpow.pop %v3568
    %v3570 = vmul.f32 %v3567, 1.442695
    %v3571 = vpow.pop %v3570
    %v3572 = vadd.f32 %v3569, 1.0
    %v3573 = vadd.f32 %v3571, 1.0
    %v3574 = vrcp.pop %v3572
    %v3575 = vmul.f32 1.0, %v3574
    %v3576 = vrcp.pop %v3573
    %v3577 = vmul.f32 1.0, %v3576
    %v3578 = vadd.f32 %v3392, %v3517
    %v3579 = vadd.f32 %v3394, %v3519
    %v3580 = vxor.u32 %v3578, 2147483648
    %v3581 = vxor.u32 %v3579, 2147483648
    %v3582 = vmul.f32 %v3580, 1.442695
    %v3583 = vpow.pop %v3582
    %v3584 = vmul.f32 %v3581, 1.442695
    %v3585 = vpow.pop %v3584
    %v3586 = vadd.f32 %v3583, 1.0
    %v3587 = vadd.f32 %v3585, 1.0
    %v3588 = vrcp.pop %v3586
    %v3589 = vmul.f32 1.0, %v3588
    %v3590 = vrcp.pop %v3587
    %v3591 = vmul.f32 1.0, %v3590
    %v3592 = vadd.f32 %v3558, %v1310
    %v3593 = vadd.f32 %v3560, %v1311
    %v3594 = vmul.f32 %v3575, %v3592
    %v3595 = vmul.f32 %v3577, %v3593
    %v3596 = vadd.f32 %v3433, %v3594
    %v3597 = vadd.f32 %v3435, %v3595
    %v3598 = vtanh.pop %v3596
    %v3599 = vtanh.pop %v3597
    %v3600 = vsub.f32 1.0, %v3589
    %v3601 = vsub.f32 1.0, %v3591
    %v3602 = vmul.f32 %v3600, %v3598
    %v3603 = vmul.f32 %v3601, %v3599
    %v3604 = vmul.f32 %v3589, %v2561
    %v3605 = vmul.f32 %v3591, %v2562
    %v3606 = vadd.f32 %v3602, %v3604
    %v3607 = vadd.f32 %v3603, %v3605
    %vm3608 = vcmp.gt.s32.totalorder %v1306, 1
    %vm3609 = vcmp.gt.s32.totalorder %v1307, 1
    %v3610 = vsel %vm3608, %v3312, %v2559
    %v3611 = vsel %vm3609, %v3313, %v2560
    %v3612 = vsel %vm3608, %v3606, %v2561
    %v3613 = vsel %vm3609, %v3607, %v2562
    %v3614 = vld [vmem:[#allocation2 + $0x60] sm:$0xff]
    %v3615 = vld [vmem:[#allocation2 + $0x68] sm:$0xff]
    %v3616 = vld [vmem:[#allocation2 + $0x70] sm:$0xff]
    %v3617 = vld [vmem:[#allocation2 + $0x78] sm:$0xff]
    %v3618 = vld [vmem:[#allocation2 + $0x80] sm:$0xff]
    %v3619 = vld [vmem:[#allocation2 + $0x88] sm:$0xff]
    %v3620 = vpack.c.bf16 %v3610, %v3610
    %v3621 = vpack.c.bf16 %v3611, %v3611
    %3622 = vmatprep.subr.bf16.mxu0 %v2956
    %3623 = vmatpush1.bf16.msra.mxu0 %v2955
    %3624 = vmatprep.subr.bf16.mxu0 %v2962
    %3625 = vmatpush1.bf16.msra.mxu0 %v2961
    %3626 = vmatprep.subr.bf16.mxu0 %v2968
    %3627 = vmatpush1.bf16.msra.mxu0 %v2967
    %3628 = vmatprep.subr.bf16.mxu0 %v2974
    %3629 = vmatpush1.bf16.msra.mxu0 %v2973
    %3630 = vmatprep.subr.bf16.mxu0 %v2980
    %3631 = vmatpush1.bf16.msra.mxu0 %v2979
    %3632 = vmatprep.subr.bf16.mxu0 %v2986
    %3633 = vmatpush1.bf16.msra.mxu0 %v2985
    %3634 = vmatprep.subr.bf16.mxu0 %v2992
    %3635 = vmatpush1.bf16.msra.mxu0 %v2991
    %3636 = vmatprep.subr.bf16.mxu0 %v2998
    %3637 = vmatpush1.bf16.msra.mxu0 %v2997
    %3638 = vmatprep.subr.bf16.mxu0 %v3004
    %3639 = vmatpush1.bf16.msra.mxu0 %v3003
    %3640 = vmatprep.subr.bf16.mxu0 %v3010
    %3641 = vmatpush1.bf16.msra.mxu0 %v3009
    %3642 = vmatprep.subr.bf16.mxu0 %v3016
    %3643 = vmatpush1.bf16.msra.mxu0 %v3015
    %3644 = vmatprep.subr.bf16.mxu0 %v3022
    %3645 = vmatpush1.bf16.msra.mxu0 %v3021
    %3646 = vmatprep.subr.bf16.mxu0 %v3028
    %3647 = vmatpush1.bf16.msra.mxu0 %v3027
    %3648 = vmatprep.subr.bf16.mxu0 %v3034
    %3649 = vmatpush1.bf16.msra.mxu0 %v3033
    %3650 = vmatprep.subr.bf16.mxu0 %v3040
    %3651 = vmatpush1.bf16.msra.mxu0 %v3039
    %3652 = vmatprep.subr.bf16.mxu0 %v3046
    %3653 = vmatpush1.bf16.msra.mxu0 %v3045
    %3654 = vmatprep.mubr.bf16.mxu0 %v3621
    %3655 = vmatmul.mubr.bf16.gmra.mrb[0].mxu0 %v3620
    %v3656 = vpop.f32.mrb[0].mxu0
    %v3657 = vadd.f32 0.0, %v3656
    %v3658 = vpop.f32.mrb[0].mxu0
    %v3659 = vadd.f32 0.0, %v3658
    %v3660 = vpop.f32.mrb[0].mxu0
    %v3661 = vpop.f32.mrb[0].mxu0
    %3662 = vdwg.mxu0
    %3663 = vmatprep.subr.bf16.mxu0 %v2958
    %3664 = vmatpush1.bf16.msra.mxu0 %v2957
    %3665 = vmatprep.subr.bf16.mxu0 %v2964
    %3666 = vmatpush1.bf16.msra.mxu0 %v2963
    %3667 = vmatprep.subr.bf16.mxu0 %v2970
    %3668 = vmatpush1.bf16.msra.mxu0 %v2969
    %3669 = vmatprep.subr.bf16.mxu0 %v2976
    %3670 = vmatpush1.bf16.msra.mxu0 %v2975
    %3671 = vmatprep.subr.bf16.mxu0 %v2982
    %3672 = vmatpush1.bf16.msra.mxu0 %v2981
    %3673 = vmatprep.subr.bf16.mxu0 %v2988
    %3674 = vmatpush1.bf16.msra.mxu0 %v2987
    %3675 = vmatprep.subr.bf16.mxu0 %v2994
    %3676 = vmatpush1.bf16.msra.mxu0 %v2993
    %3677 = vmatprep.subr.bf16.mxu0 %v3000
    %3678 = vmatpush1.bf16.msra.mxu0 %v2999
    %3679 = vmatprep.subr.bf16.mxu0 %v3006
    %3680 = vmatpush1.bf16.msra.mxu0 %v3005
    %3681 = vmatprep.subr.bf16.mxu0 %v3012
    %3682 = vmatpush1.bf16.msra.mxu0 %v3011
    %3683 = vmatprep.subr.bf16.mxu0 %v3018
    %3684 = vmatpush1.bf16.msra.mxu0 %v3017
    %3685 = vmatprep.subr.bf16.mxu0 %v3024
    %3686 = vmatpush1.bf16.msra.mxu0 %v3023
    %3687 = vmatprep.subr.bf16.mxu0 %v3030
    %3688 = vmatpush1.bf16.msra.mxu0 %v3029
    %3689 = vmatprep.subr.bf16.mxu0 %v3036
    %3690 = vmatpush1.bf16.msra.mxu0 %v3035
    %3691 = vmatprep.subr.bf16.mxu0 %v3042
    %3692 = vmatpush1.bf16.msra.mxu0 %v3041
    %3693 = vmatprep.subr.bf16.mxu0 %v3048
    %3694 = vmatpush1.bf16.msra.mxu0 %v3047
    %3695 = vmatprep.mubr.bf16.mxu0 %v3621
    %3696 = vmatmul.mubr.bf16.gmra.mrb[0].mxu0 %v3620
    %v3697 = vpop.f32.mrb[0].mxu0
    %v3698 = vadd.f32 0.0, %v3697
    %v3699 = vpop.f32.mrb[0].mxu0
    %v3700 = vadd.f32 0.0, %v3699
    %v3701 = vpop.f32.mrb[0].mxu0
    %v3702 = vpop.f32.mrb[0].mxu0
    %3703 = vdwg.mxu0
    %3704 = vmatprep.subr.bf16.mxu0 %v2960
    %3705 = vmatpush1.bf16.msra.mxu0 %v2959
    %3706 = vmatprep.subr.bf16.mxu0 %v2966
    %3707 = vmatpush1.bf16.msra.mxu0 %v2965
    %3708 = vmatprep.subr.bf16.mxu0 %v2972
    %3709 = vmatpush1.bf16.msra.mxu0 %v2971
    %3710 = vmatprep.subr.bf16.mxu0 %v2978
    %3711 = vmatpush1.bf16.msra.mxu0 %v2977
    %3712 = vmatprep.subr.bf16.mxu0 %v2984
    %3713 = vmatpush1.bf16.msra.mxu0 %v2983
    %3714 = vmatprep.subr.bf16.mxu0 %v2990
    %3715 = vmatpush1.bf16.msra.mxu0 %v2989
    %3716 = vmatprep.subr.bf16.mxu0 %v2996
    %3717 = vmatpush1.bf16.msra.mxu0 %v2995
    %3718 = vmatprep.subr.bf16.mxu0 %v3002
    %3719 = vmatpush1.bf16.msra.mxu0 %v3001
    %3720 = vmatprep.subr.bf16.mxu0 %v3008
    %3721 = vmatpush1.bf16.msra.mxu0 %v3007
    %3722 = vmatprep.subr.bf16.mxu0 %v3014
    %3723 = vmatpush1.bf16.msra.mxu0 %v3013
    %3724 = vmatprep.subr.bf16.mxu0 %v3020
    %3725 = vmatpush1.bf16.msra.mxu0 %v3019
    %3726 = vmatprep.subr.bf16.mxu0 %v3026
    %3727 = vmatpush1.bf16.msra.mxu0 %v3025
    %3728 = vmatprep.subr.bf16.mxu0 %v3032
    %3729 = vmatpush1.bf16.msra.mxu0 %v3031
    %3730 = vmatprep.subr.bf16.mxu0 %v3038
    %3731 = vmatpush1.bf16.msra.mxu0 %v3037
    %3732 = vmatprep.subr.bf16.mxu0 %v3044
    %3733 = vmatpush1.bf16.msra.mxu0 %v3043
    %3734 = vmatprep.subr.bf16.mxu0 %v3050
    %3735 = vmatpush1.bf16.msra.mxu0 %v3049
    %3736 = vmatprep.mubr.bf16.mxu0 %v3621
    %3737 = vmatmul.mubr.bf16.gmra.mrb[0].mxu0 %v3620
    %v3738 = vpop.f32.mrb[0].mxu0
    %v3739 = vadd.f32 0.0, %v3738
    %v3740 = vpop.f32.mrb[0].mxu0
    %v3741 = vadd.f32 0.0, %v3740
    %v3742 = vpop.f32.mrb[0].mxu0
    %v3743 = vpop.f32.mrb[0].mxu0
    %3744 = vdwg.mxu0
    %v3745 = vadd.f32 %v3614, %v3657
    %v3746 = vadd.f32 %v3615, %v3659
    %v3747 = vxor.u32 %v3745, 2147483648
    %v3748 = vxor.u32 %v3746, 2147483648
    %v3749 = vmul.f32 %v3747, 1.442695
    %v3750 = vpow.pop %v3749
    %v3751 = vmul.f32 %v3748, 1.442695
    %v3752 = vpow.pop %v3751
    %v3753 = vadd.f32 %v3750, 1.0
    %v3754 = vadd.f32 %v3752, 1.0
    %v3755 = vrcp.pop %v3753
    %v3756 = vmul.f32 1.0, %v3755
    %v3757 = vrcp.pop %v3754
    %v3758 = vmul.f32 1.0, %v3757
    %v3759 = vadd.f32 %v3616, %v3698
    %v3760 = vadd.f32 %v3617, %v3700
    %v3761 = vxor.u32 %v3759, 2147483648
    %v3762 = vxor.u32 %v3760, 2147483648
    %v3763 = vmul.f32 %v3761, 1.442695
    %v3764 = vpow.pop %v3763
    %v3765 = vmul.f32 %v3762, 1.442695
    %v3766 = vpow.pop %v3765
    %v3767 = vadd.f32 %v3764, 1.0
    %v3768 = vadd.f32 %v3766, 1.0
    %v3769 = vrcp.pop %v3767
    %v3770 = vmul.f32 1.0, %v3769
    %v3771 = vrcp.pop %v3768
    %v3772 = vmul.f32 1.0, %v3771
    %v3773 = vadd.f32 %v3739, %v1308
    %v3774 = vadd.f32 %v3741, %v1309
    %v3775 = vmul.f32 %v3756, %v3773
    %v3776 = vmul.f32 %v3758, %v3774
    %v3777 = vadd.f32 %v3618, %v3775
    %v3778 = vadd.f32 %v3619, %v3776
    %v3779 = vtanh.pop %v3777
    %v3780 = vtanh.pop %v3778
    %v3781 = vsub.f32 1.0, %v3770
    %v3782 = vsub.f32 1.0, %v3772
    %v3783 = vmul.f32 %v3781, %v3779
    %v3784 = vmul.f32 %v3782, %v3780
    %v3785 = vmul.f32 %v3770, %v3610
    %v3786 = vmul.f32 %v3772, %v3611
    %v3787 = vadd.f32 %v3783, %v3785
    %v3788 = vadd.f32 %v3784, %v3786
    %v3789 = vpack.c.bf16 %v3787, %v3787
    %v3790 = vpack.c.bf16 %v3788, %v3788
    %3791 = vmatprep.subr.bf16.mxu0 %v2076
    %3792 = vmatpush1.bf16.msra.mxu0 %v2075
    %3793 = vmatprep.subr.bf16.mxu0 %v2082
    %3794 = vmatpush1.bf16.msra.mxu0 %v2081
    %3795 = vmatprep.subr.bf16.mxu0 %v2088
    %3796 = vmatpush1.bf16.msra.mxu0 %v2087
    %3797 = vmatprep.subr.bf16.mxu0 %v2094
    %3798 = vmatpush1.bf16.msra.mxu0 %v2093
    %3799 = vmatprep.subr.bf16.mxu0 %v2100
    %3800 = vmatpush1.bf16.msra.mxu0 %v2099
    %3801 = vmatprep.subr.bf16.mxu0 %v2106
    %3802 = vmatpush1.bf16.msra.mxu0 %v2105
    %3803 = vmatprep.subr.bf16.mxu0 %v2112
    %3804 = vmatpush1.bf16.msra.mxu0 %v2111
    %3805 = vmatprep.subr.bf16.mxu0 %v2118
    %3806 = vmatpush1.bf16.msra.mxu0 %v2117
    %3807 = vmatprep.subr.bf16.mxu0 %v2124
    %3808 = vmatpush1.bf16.msra.mxu0 %v2123
    %3809 = vmatprep.subr.bf16.mxu0 %v2130
    %3810 = vmatpush1.bf16.msra.mxu0 %v2129
    %3811 = vmatprep.subr.bf16.mxu0 %v2136
    %3812 = vmatpush1.bf16.msra.mxu0 %v2135
    %3813 = vmatprep.subr.bf16.mxu0 %v2142
    %3814 = vmatpush1.bf16.msra.mxu0 %v2141
    %3815 = vmatprep.subr.bf16.mxu0 %v2148
    %3816 = vmatpush1.bf16.msra.mxu0 %v2147
    %3817 = vmatprep.subr.bf16.mxu0 %v2154
    %3818 = vmatpush1.bf16.msra.mxu0 %v2153
    %3819 = vmatprep.subr.bf16.mxu0 %v2160
    %3820 = vmatpush1.bf16.msra.mxu0 %v2159
    %3821 = vmatprep.subr.bf16.mxu0 %v2166
    %3822 = vmatpush1.bf16.msra.mxu0 %v2165
    %3823 = vmatprep.mubr.bf16.mxu0 %v3790
    %3824 = vmatmul.mubr.bf16.gmra.mrb[0].mxu0 %v3789
    %v3825 = vpop.f32.mrb[0].mxu0
    %v3826 = vadd.f32 %v1312, %v3825
    %v3827 = vpop.f32.mrb[0].mxu0
    %v3828 = vadd.f32 %v1313, %v3827
    %v3829 = vpop.f32.mrb[0].mxu0
    %v3830 = vpop.f32.mrb[0].mxu0
    %3831 = vdwg.mxu0
    %3832 = vmatprep.subr.bf16.mxu0 %v2078
    %3833 = vmatpush1.bf16.msra.mxu0 %v2077
    %3834 = vmatprep.subr.bf16.mxu0 %v2084
    %3835 = vmatpush1.bf16.msra.mxu0 %v2083
    %3836 = vmatprep.subr.bf16.mxu0 %v2090
    %3837 = vmatpush1.bf16.msra.mxu0 %v2089
    %3838 = vmatprep.subr.bf16.mxu0 %v2096
    %3839 = vmatpush1.bf16.msra.mxu0 %v2095
    %3840 = vmatprep.subr.bf16.mxu0 %v2102
    %3841 = vmatpush1.bf16.msra.mxu0 %v2101
    %3842 = vmatprep.subr.bf16.mxu0 %v2108
    %3843 = vmatpush1.bf16.msra.mxu0 %v2107
    %3844 = vmatprep.subr.bf16.mxu0 %v2114
    %3845 = vmatpush1.bf16.msra.mxu0 %v2113
    %3846 = vmatprep.subr.bf16.mxu0 %v2120
    %3847 = vmatpush1.bf16.msra.mxu0 %v2119
    %3848 = vmatprep.subr.bf16.mxu0 %v2126
    %3849 = vmatpush1.bf16.msra.mxu0 %v2125
    %3850 = vmatprep.subr.bf16.mxu0 %v2132
    %3851 = vmatpush1.bf16.msra.mxu0 %v2131
    %3852 = vmatprep.subr.bf16.mxu0 %v2138
    %3853 = vmatpush1.bf16.msra.mxu0 %v2137
    %3854 = vmatprep.subr.bf16.mxu0 %v2144
    %3855 = vmatpush1.bf16.msra.mxu0 %v2143
    %3856 = vmatprep.subr.bf16.mxu0 %v2150
    %3857 = vmatpush1.bf16.msra.mxu0 %v2149
    %3858 = vmatprep.subr.bf16.mxu0 %v2156
    %3859 = vmatpush1.bf16.msra.mxu0 %v2155
    %3860 = vmatprep.subr.bf16.mxu0 %v2162
    %3861 = vmatpush1.bf16.msra.mxu0 %v2161
    %3862 = vmatprep.subr.bf16.mxu0 %v2168
    %3863 = vmatpush1.bf16.msra.mxu0 %v2167
    %3864 = vmatprep.mubr.bf16.mxu0 %v3790
    %3865 = vmatmul.mubr.bf16.gmra.mrb[0].mxu0 %v3789
    %v3866 = vpop.f32.mrb[0].mxu0
    %v3867 = vadd.f32 %v1314, %v3866
    %v3868 = vpop.f32.mrb[0].mxu0
    %v3869 = vadd.f32 %v1315, %v3868
    %v3870 = vpop.f32.mrb[0].mxu0
    %v3871 = vpop.f32.mrb[0].mxu0
    %3872 = vdwg.mxu0
    %3873 = vmatprep.subr.bf16.mxu0 %v2080
    %3874 = vmatpush1.bf16.msra.mxu0 %v2079
    %3875 = vmatprep.subr.bf16.mxu0 %v2086
    %3876 = vmatpush1.bf16.msra.mxu0 %v2085
    %3877 = vmatprep.subr.bf16.mxu0 %v2092
    %3878 = vmatpush1.bf16.msra.mxu0 %v2091
    %3879 = vmatprep.subr.bf16.mxu0 %v2098
    %3880 = vmatpush1.bf16.msra.mxu0 %v2097
    %3881 = vmatprep.subr.bf16.mxu0 %v2104
    %3882 = vmatpush1.bf16.msra.mxu0 %v2103
    %3883 = vmatprep.subr.bf16.mxu0 %v2110
    %3884 = vmatpush1.bf16.msra.mxu0 %v2109
    %3885 = vmatprep.subr.bf16.mxu0 %v2116
    %3886 = vmatpush1.bf16.msra.mxu0 %v2115
    %3887 = vmatprep.subr.bf16.mxu0 %v2122
    %3888 = vmatpush1.bf16.msra.mxu0 %v2121
    %3889 = vmatprep.subr.bf16.mxu0 %v2128
    %3890 = vmatpush1.bf16.msra.mxu0 %v2127
    %3891 = vmatprep.subr.bf16.mxu0 %v2134
    %3892 = vmatpush1.bf16.msra.mxu0 %v2133
    %3893 = vmatprep.subr.bf16.mxu0 %v2140
    %3894 = vmatpush1.bf16.msra.mxu0 %v2139
    %3895 = vmatprep.subr.bf16.mxu0 %v2146
    %3896 = vmatpush1.bf16.msra.mxu0 %v2145
    %3897 = vmatprep.subr.bf16.mxu0 %v2152
    %3898 = vmatpush1.bf16.msra.mxu0 %v2151
    %3899 = vmatprep.subr.bf16.mxu0 %v2158
    %3900 = vmatpush1.bf16.msra.mxu0 %v2157
    %3901 = vmatprep.subr.bf16.mxu0 %v2164
    %3902 = vmatpush1.bf16.msra.mxu0 %v2163
    %3903 = vmatprep.subr.bf16.mxu0 %v2170
    %3904 = vmatpush1.bf16.msra.mxu0 %v2169
    %3905 = vmatprep.mubr.bf16.mxu0 %v3790
    %3906 = vmatmul.mubr.bf16.gmra.mrb[0].mxu0 %v3789
    %v3907 = vpop.f32.mrb[0].mxu0
    %v3908 = vadd.f32 %v1316, %v3907
    %v3909 = vpop.f32.mrb[0].mxu0
    %v3910 = vadd.f32 %v1317, %v3909
    %v3911 = vpop.f32.mrb[0].mxu0
    %v3912 = vpop.f32.mrb[0].mxu0
    %3913 = vdwg.mxu0
    %v3914 = vpack.c.bf16 %v3612, %v3612
    %v3915 = vpack.c.bf16 %v3613, %v3613
    %3916 = vmatprep.subr.bf16.mxu0 %v2295
    %3917 = vmatpush1.bf16.msra.mxu0 %v2294
    %3918 = vmatprep.subr.bf16.mxu0 %v2301
    %3919 = vmatpush1.bf16.msra.mxu0 %v2300
    %3920 = vmatprep.subr.bf16.mxu0 %v2307
    %3921 = vmatpush1.bf16.msra.mxu0 %v2306
    %3922 = vmatprep.subr.bf16.mxu0 %v2313
    %3923 = vmatpush1.bf16.msra.mxu0 %v2312
    %3924 = vmatprep.subr.bf16.mxu0 %v2319
    %3925 = vmatpush1.bf16.msra.mxu0 %v2318
    %3926 = vmatprep.subr.bf16.mxu0 %v2325
    %3927 = vmatpush1.bf16.msra.mxu0 %v2324
    %3928 = vmatprep.subr.bf16.mxu0 %v2331
    %3929 = vmatpush1.bf16.msra.mxu0 %v2330
    %3930 = vmatprep.subr.bf16.mxu0 %v2337
    %3931 = vmatpush1.bf16.msra.mxu0 %v2336
    %3932 = vmatprep.subr.bf16.mxu0 %v2343
    %3933 = vmatpush1.bf16.msra.mxu0 %v2342
    %3934 = vmatprep.subr.bf16.mxu0 %v2349
    %3935 = vmatpush1.bf16.msra.mxu0 %v2348
    %3936 = vmatprep.subr.bf16.mxu0 %v2355
    %3937 = vmatpush1.bf16.msra.mxu0 %v2354
    %3938 = vmatprep.subr.bf16.mxu0 %v2361
    %3939 = vmatpush1.bf16.msra.mxu0 %v2360
    %3940 = vmatprep.subr.bf16.mxu0 %v2367
    %3941 = vmatpush1.bf16.msra.mxu0 %v2366
    %3942 = vmatprep.subr.bf16.mxu0 %v2373
    %3943 = vmatpush1.bf16.msra.mxu0 %v2372
    %3944 = vmatprep.subr.bf16.mxu0 %v2379
    %3945 = vmatpush1.bf16.msra.mxu0 %v2378
    %3946 = vmatprep.subr.bf16.mxu0 %v2385
    %3947 = vmatpush1.bf16.msra.mxu0 %v2384
    %3948 = vmatprep.mubr.bf16.mxu0 %v3915
    %3949 = vmatmul.mubr.bf16.gmra.mrb[0].mxu0 %v3914
    %v3950 = vpop.f32.mrb[0].mxu0
    %v3951 = vadd.f32 0.0, %v3950
    %v3952 = vpop.f32.mrb[0].mxu0
    %v3953 = vadd.f32 0.0, %v3952
    %v3954 = vpop.f32.mrb[0].mxu0
    %v3955 = vpop.f32.mrb[0].mxu0
    %3956 = vdwg.mxu0
    %3957 = vmatprep.subr.bf16.mxu0 %v2297
    %3958 = vmatpush1.bf16.msra.mxu0 %v2296
    %3959 = vmatprep.subr.bf16.mxu0 %v2303
    %3960 = vmatpush1.bf16.msra.mxu0 %v2302
    %3961 = vmatprep.subr.bf16.mxu0 %v2309
    %3962 = vmatpush1.bf16.msra.mxu0 %v2308
    %3963 = vmatprep.subr.bf16.mxu0 %v2315
    %3964 = vmatpush1.bf16.msra.mxu0 %v2314
    %3965 = vmatprep.subr.bf16.mxu0 %v2321
    %3966 = vmatpush1.bf16.msra.mxu0 %v2320
    %3967 = vmatprep.subr.bf16.mxu0 %v2327
    %3968 = vmatpush1.bf16.msra.mxu0 %v2326
    %3969 = vmatprep.subr.bf16.mxu0 %v2333
    %3970 = vmatpush1.bf16.msra.mxu0 %v2332
    %3971 = vmatprep.subr.bf16.mxu0 %v2339
    %3972 = vmatpush1.bf16.msra.mxu0 %v2338
    %3973 = vmatprep.subr.bf16.mxu0 %v2345
    %3974 = vmatpush1.bf16.msra.mxu0 %v2344
    %3975 = vmatprep.subr.bf16.mxu0 %v2351
    %3976 = vmatpush1.bf16.msra.mxu0 %v2350
    %3977 = vmatprep.subr.bf16.mxu0 %v2357
    %3978 = vmatpush1.bf16.msra.mxu0 %v2356
    %3979 = vmatprep.subr.bf16.mxu0 %v2363
    %3980 = vmatpush1.bf16.msra.mxu0 %v2362
    %3981 = vmatprep.subr.bf16.mxu0 %v2369
    %3982 = vmatpush1.bf16.msra.mxu0 %v2368
    %3983 = vmatprep.subr.bf16.mxu0 %v2375
    %3984 = vmatpush1.bf16.msra.mxu0 %v2374
    %3985 = vmatprep.subr.bf16.mxu0 %v2381
    %3986 = vmatpush1.bf16.msra.mxu0 %v2380
    %3987 = vmatprep.subr.bf16.mxu0 %v2387
    %3988 = vmatpush1.bf16.msra.mxu0 %v2386
    %3989 = vmatprep.mubr.bf16.mxu0 %v3915
    %3990 = vmatmul.mubr.bf16.gmra.mrb[0].mxu0 %v3914
    %v3991 = vpop.f32.mrb[0].mxu0
    %v3992 = vadd.f32 0.0, %v3991
    %v3993 = vpop.f32.mrb[0].mxu0
    %v3994 = vadd.f32 0.0, %v3993
    %v3995 = vpop.f32.mrb[0].mxu0
    %v3996 = vpop.f32.mrb[0].mxu0
    %3997 = vdwg.mxu0
    %3998 = vmatprep.subr.bf16.mxu0 %v2299
    %3999 = vmatpush1.bf16.msra.mxu0 %v2298
    %4000 = vmatprep.subr.bf16.mxu0 %v2305
    %4001 = vmatpush1.bf16.msra.mxu0 %v2304
    %4002 = vmatprep.subr.bf16.mxu0 %v2311
    %4003 = vmatpush1.bf16.msra.mxu0 %v2310
    %4004 = vmatprep.subr.bf16.mxu0 %v2317
    %4005 = vmatpush1.bf16.msra.mxu0 %v2316
    %4006 = vmatprep.subr.bf16.mxu0 %v2323
    %4007 = vmatpush1.bf16.msra.mxu0 %v2322
    %4008 = vmatprep.subr.bf16.mxu0 %v2329
    %4009 = vmatpush1.bf16.msra.mxu0 %v2328
    %4010 = vmatprep.subr.bf16.mxu0 %v2335
    %4011 = vmatpush1.bf16.msra.mxu0 %v2334
    %4012 = vmatprep.subr.bf16.mxu0 %v2341
    %4013 = vmatpush1.bf16.msra.mxu0 %v2340
    %4014 = vmatprep.subr.bf16.mxu0 %v2347
    %4015 = vmatpush1.bf16.msra.mxu0 %v2346
    %4016 = vmatprep.subr.bf16.mxu0 %v2353
    %4017 = vmatpush1.bf16.msra.mxu0 %v2352
    %4018 = vmatprep.subr.bf16.mxu0 %v2359
    %4019 = vmatpush1.bf16.msra.mxu0 %v2358
    %4020 = vmatprep.subr.bf16.mxu0 %v2365
    %4021 = vmatpush1.bf16.msra.mxu0 %v2364
    %4022 = vmatprep.subr.bf16.mxu0 %v2371
    %4023 = vmatpush1.bf16.msra.mxu0 %v2370
    %4024 = vmatprep.subr.bf16.mxu0 %v2377
    %4025 = vmatpush1.bf16.msra.mxu0 %v2376
    %4026 = vmatprep.subr.bf16.mxu0 %v2383
    %4027 = vmatpush1.bf16.msra.mxu0 %v2382
    %4028 = vmatprep.subr.bf16.mxu0 %v2389
    %4029 = vmatpush1.bf16.msra.mxu0 %v2388
    %4030 = vmatprep.mubr.bf16.mxu0 %v3915
    %4031 = vmatmul.mubr.bf16.gmra.mrb[0].mxu0 %v3914
    %v4032 = vpop.f32.mrb[0].mxu0
    %v4033 = vadd.f32 0.0, %v4032
    %v4034 = vpop.f32.mrb[0].mxu0
    %v4035 = vadd.f32 0.0, %v4034
    %v4036 = vpop.f32.mrb[0].mxu0
    %v4037 = vpop.f32.mrb[0].mxu0
    %4038 = vdwg.mxu0
    %v4039 = vadd.f32 %v3826, %v3951
    %v4040 = vadd.f32 %v3828, %v3953
    %v4041 = vxor.u32 %v4039, 2147483648
    %v4042 = vxor.u32 %v4040, 2147483648
    %v4043 = vmul.f32 %v4041, 1.442695
    %v4044 = vpow.pop %v4043
    %v4045 = vmul.f32 %v4042, 1.442695
    %v4046 = vpow.pop %v4045
    %v4047 = vadd.f32 %v4044, 1.0
    %v4048 = vadd.f32 %v4046, 1.0
    %v4049 = vrcp.pop %v4047
    %v4050 = vmul.f32 1.0, %v4049
    %v4051 = vrcp.pop %v4048
    %v4052 = vmul.f32 1.0, %v4051
    %v4053 = vadd.f32 %v3867, %v3992
    %v4054 = vadd.f32 %v3869, %v3994
    %v4055 = vxor.u32 %v4053, 2147483648
    %v4056 = vxor.u32 %v4054, 2147483648
    %v4057 = vmul.f32 %v4055, 1.442695
    %v4058 = vpow.pop %v4057
    %v4059 = vmul.f32 %v4056, 1.442695
    %v4060 = vpow.pop %v4059
    %v4061 = vadd.f32 %v4058, 1.0
    %v4062 = vadd.f32 %v4060, 1.0
    %v4063 = vrcp.pop %v4061
    %v4064 = vmul.f32 1.0, %v4063
    %v4065 = vrcp.pop %v4062
    %v4066 = vmul.f32 1.0, %v4065
    %v4067 = vadd.f32 %v4033, %v1310
    %v4068 = vadd.f32 %v4035, %v1311
    %v4069 = vmul.f32 %v4050, %v4067
    %v4070 = vmul.f32 %v4052, %v4068
    %v4071 = vadd.f32 %v3908, %v4069
    %v4072 = vadd.f32 %v3910, %v4070
    %v4073 = vtanh.pop %v4071
    %v4074 = vtanh.pop %v4072
    %v4075 = vsub.f32 1.0, %v4064
    %v4076 = vsub.f32 1.0, %v4066
    %v4077 = vmul.f32 %v4075, %v4073
    %v4078 = vmul.f32 %v4076, %v4074
    %v4079 = vmul.f32 %v4064, %v3612
    %v4080 = vmul.f32 %v4066, %v3613
    %v4081 = vadd.f32 %v4077, %v4079
    %v4082 = vadd.f32 %v4078, %v4080
    %vm4083 = vcmp.gt.s32.totalorder %v1306, 2
    %vm4084 = vcmp.gt.s32.totalorder %v1307, 2
    %v4085 = vsel %vm4083, %v3787, %v3610
    %v4086 = vsel %vm4084, %v3788, %v3611
    %v4087 = vsel %vm4083, %v4081, %v3612
    %v4088 = vsel %vm4084, %v4082, %v3613
    %v4089 = vld [vmem:[#allocation2 + $0x90] sm:$0xff]
    %v4090 = vld [vmem:[#allocation2 + $0x98] sm:$0xff]
    %v4091 = vld [vmem:[#allocation2 + $0xa0] sm:$0xff]
    %v4092 = vld [vmem:[#allocation2 + $0xa8] sm:$0xff]
    %v4093 = vld [vmem:[#allocation2 + $0xb0] sm:$0xff]
    %v4094 = vld [vmem:[#allocation2 + $0xb8] sm:$0xff]
    %v4095 = vpack.c.bf16 %v4085, %v4085
    %v4096 = vpack.c.bf16 %v4086, %v4086
    %4097 = vmatprep.subr.bf16.mxu0 %v2956
    %4098 = vmatpush1.bf16.msra.mxu0 %v2955
    %4099 = vmatprep.subr.bf16.mxu0 %v2962
    %4100 = vmatpush1.bf16.msra.mxu0 %v2961
    %4101 = vmatprep.subr.bf16.mxu0 %v2968
    %4102 = vmatpush1.bf16.msra.mxu0 %v2967
    %4103 = vmatprep.subr.bf16.mxu0 %v2974
    %4104 = vmatpush1.bf16.msra.mxu0 %v2973
    %4105 = vmatprep.subr.bf16.mxu0 %v2980
    %4106 = vmatpush1.bf16.msra.mxu0 %v2979
    %4107 = vmatprep.subr.bf16.mxu0 %v2986
    %4108 = vmatpush1.bf16.msra.mxu0 %v2985
    %4109 = vmatprep.subr.bf16.mxu0 %v2992
    %4110 = vmatpush1.bf16.msra.mxu0 %v2991
    %4111 = vmatprep.subr.bf16.mxu0 %v2998
    %4112 = vmatpush1.bf16.msra.mxu0 %v2997
    %4113 = vmatprep.subr.bf16.mxu0 %v3004
    %4114 = vmatpush1.bf16.msra.mxu0 %v3003
    %4115 = vmatprep.subr.bf16.mxu0 %v3010
    %4116 = vmatpush1.bf16.msra.mxu0 %v3009
    %4117 = vmatprep.subr.bf16.mxu0 %v3016
    %4118 = vmatpush1.bf16.msra.mxu0 %v3015
    %4119 = vmatprep.subr.bf16.mxu0 %v3022
    %4120 = vmatpush1.bf16.msra.mxu0 %v3021
    %4121 = vmatprep.subr.bf16.mxu0 %v3028
    %4122 = vmatpush1.bf16.msra.mxu0 %v3027
    %4123 = vmatprep.subr.bf16.mxu0 %v3034
    %4124 = vmatpush1.bf16.msra.mxu0 %v3033
    %4125 = vmatprep.subr.bf16.mxu0 %v3040
    %4126 = vmatpush1.bf16.msra.mxu0 %v3039
    %4127 = vmatprep.subr.bf16.mxu0 %v3046
    %4128 = vmatpush1.bf16.msra.mxu0 %v3045
    %4129 = vmatprep.mubr.bf16.mxu0 %v4096
    %4130 = vmatmul.mubr.bf16.gmra.mrb[0].mxu0 %v4095
    %v4131 = vpop.f32.mrb[0].mxu0
    %v4132 = vadd.f32 0.0, %v4131
    %v4133 = vpop.f32.mrb[0].mxu0
    %v4134 = vadd.f32 0.0, %v4133
    %v4135 = vpop.f32.mrb[0].mxu0
    %v4136 = vpop.f32.mrb[0].mxu0
    %4137 = vdwg.mxu0
    %4138 = vmatprep.subr.bf16.mxu0 %v2958
    %4139 = vmatpush1.bf16.msra.mxu0 %v2957
    %4140 = vmatprep.subr.bf16.mxu0 %v2964
    %4141 = vmatpush1.bf16.msra.mxu0 %v2963
    %4142 = vmatprep.subr.bf16.mxu0 %v2970
    %4143 = vmatpush1.bf16.msra.mxu0 %v2969
    %4144 = vmatprep.subr.bf16.mxu0 %v2976
    %4145 = vmatpush1.bf16.msra.mxu0 %v2975
    %4146 = vmatprep.subr.bf16.mxu0 %v2982
    %4147 = vmatpush1.bf16.msra.mxu0 %v2981
    %4148 = vmatprep.subr.bf16.mxu0 %v2988
    %4149 = vmatpush1.bf16.msra.mxu0 %v2987
    %4150 = vmatprep.subr.bf16.mxu0 %v2994
    %4151 = vmatpush1.bf16.msra.mxu0 %v2993
    %4152 = vmatprep.subr.bf16.mxu0 %v3000
    %4153 = vmatpush1.bf16.msra.mxu0 %v2999
    %4154 = vmatprep.subr.bf16.mxu0 %v3006
    %4155 = vmatpush1.bf16.msra.mxu0 %v3005
    %4156 = vmatprep.subr.bf16.mxu0 %v3012
    %4157 = vmatpush1.bf16.msra.mxu0 %v3011
    %4158 = vmatprep.subr.bf16.mxu0 %v3018
    %4159 = vmatpush1.bf16.msra.mxu0 %v3017
    %4160 = vmatprep.subr.bf16.mxu0 %v3024
    %4161 = vmatpush1.bf16.msra.mxu0 %v3023
    %4162 = vmatprep.subr.bf16.mxu0 %v3030
    %4163 = vmatpush1.bf16.msra.mxu0 %v3029
    %4164 = vmatprep.subr.bf16.mxu0 %v3036
    %4165 = vmatpush1.bf16.msra.mxu0 %v3035
    %4166 = vmatprep.subr.bf16.mxu0 %v3042
    %4167 = vmatpush1.bf16.msra.mxu0 %v3041
    %4168 = vmatprep.subr.bf16.mxu0 %v3048
    %4169 = vmatpush1.bf16.msra.mxu0 %v3047
    %4170 = vmatprep.mubr.bf16.mxu0 %v4096
    %4171 = vmatmul.mubr.bf16.gmra.mrb[0].mxu0 %v4095
    %v4172 = vpop.f32.mrb[0].mxu0
    %v4173 = vadd.f32 0.0, %v4172
    %v4174 = vpop.f32.mrb[0].mxu0
    %v4175 = vadd.f32 0.0, %v4174
    %v4176 = vpop.f32.mrb[0].mxu0
    %v4177 = vpop.f32.mrb[0].mxu0
    %4178 = vdwg.mxu0
    %4179 = vmatprep.subr.bf16.mxu0 %v2960
    %4180 = vmatpush1.bf16.msra.mxu0 %v2959
    %4181 = vmatprep.subr.bf16.mxu0 %v2966
    %4182 = vmatpush1.bf16.msra.mxu0 %v2965
    %4183 = vmatprep.subr.bf16.mxu0 %v2972
    %4184 = vmatpush1.bf16.msra.mxu0 %v2971
    %4185 = vmatprep.subr.bf16.mxu0 %v2978
    %4186 = vmatpush1.bf16.msra.mxu0 %v2977
    %4187 = vmatprep.subr.bf16.mxu0 %v2984
    %4188 = vmatpush1.bf16.msra.mxu0 %v2983
    %4189 = vmatprep.subr.bf16.mxu0 %v2990
    %4190 = vmatpush1.bf16.msra.mxu0 %v2989
    %4191 = vmatprep.subr.bf16.mxu0 %v2996
    %4192 = vmatpush1.bf16.msra.mxu0 %v2995
    %4193 = vmatprep.subr.bf16.mxu0 %v3002
    %4194 = vmatpush1.bf16.msra.mxu0 %v3001
    %4195 = vmatprep.subr.bf16.mxu0 %v3008
    %4196 = vmatpush1.bf16.msra.mxu0 %v3007
    %4197 = vmatprep.subr.bf16.mxu0 %v3014
    %4198 = vmatpush1.bf16.msra.mxu0 %v3013
    %4199 = vmatprep.subr.bf16.mxu0 %v3020
    %4200 = vmatpush1.bf16.msra.mxu0 %v3019
    %4201 = vmatprep.subr.bf16.mxu0 %v3026
    %4202 = vmatpush1.bf16.msra.mxu0 %v3025
    %4203 = vmatprep.subr.bf16.mxu0 %v3032
    %4204 = vmatpush1.bf16.msra.mxu0 %v3031
    %4205 = vmatprep.subr.bf16.mxu0 %v3038
    %4206 = vmatpush1.bf16.msra.mxu0 %v3037
    %4207 = vmatprep.subr.bf16.mxu0 %v3044
    %4208 = vmatpush1.bf16.msra.mxu0 %v3043
    %4209 = vmatprep.subr.bf16.mxu0 %v3050
    %4210 = vmatpush1.bf16.msra.mxu0 %v3049
    %4211 = vmatprep.mubr.bf16.mxu0 %v4096
    %4212 = vmatmul.mubr.bf16.gmra.mrb[0].mxu0 %v4095
    %v4213 = vpop.f32.mrb[0].mxu0
    %v4214 = vadd.f32 0.0, %v4213
    %v4215 = vpop.f32.mrb[0].mxu0
    %v4216 = vadd.f32 0.0, %v4215
    %v4217 = vpop.f32.mrb[0].mxu0
    %v4218 = vpop.f32.mrb[0].mxu0
    %4219 = vdwg.mxu0
    %v4220 = vadd.f32 %v4089, %v4132
    %v4221 = vadd.f32 %v4090, %v4134
    %v4222 = vxor.u32 %v4220, 2147483648
    %v4223 = vxor.u32 %v4221, 2147483648
    %v4224 = vmul.f32 %v4222, 1.442695
    %v4225 = vpow.pop %v4224
    %v4226 = vmul.f32 %v4223, 1.442695
    %v4227 = vpow.pop %v4226
    %v4228 = vadd.f32 %v4225, 1.0
    %v4229 = vadd.f32 %v4227, 1.0
    %v4230 = vrcp.pop %v4228
    %v4231 = vmul.f32 1.0, %v4230
    %v4232 = vrcp.pop %v4229
    %v4233 = vmul.f32 1.0, %v4232
    %v4234 = vadd.f32 %v4091, %v4173
    %v4235 = vadd.f32 %v4092, %v4175
    %v4236 = vxor.u32 %v4234, 2147483648
    %v4237 = vxor.u32 %v4235, 2147483648
    %v4238 = vmul.f32 %v4236, 1.442695
    %v4239 = vpow.pop %v4238
    %v4240 = vmul.f32 %v4237, 1.442695
    %v4241 = vpow.pop %v4240
    %v4242 = vadd.f32 %v4239, 1.0
    %v4243 = vadd.f32 %v4241, 1.0
    %v4244 = vrcp.pop %v4242
    %v4245 = vmul.f32 1.0, %v4244
    %v4246 = vrcp.pop %v4243
    %v4247 = vmul.f32 1.0, %v4246
    %v4248 = vadd.f32 %v4214, %v1308
    %v4249 = vadd.f32 %v4216, %v1309
    %v4250 = vmul.f32 %v4231, %v4248
    %v4251 = vmul.f32 %v4233, %v4249
    %v4252 = vadd.f32 %v4093, %v4250
    %v4253 = vadd.f32 %v4094, %v4251
    %v4254 = vtanh.pop %v4252
    %v4255 = vtanh.pop %v4253
    %v4256 = vsub.f32 1.0, %v4245
    %v4257 = vsub.f32 1.0, %v4247
    %v4258 = vmul.f32 %v4256, %v4254
    %v4259 = vmul.f32 %v4257, %v4255
    %v4260 = vmul.f32 %v4245, %v4085
    %v4261 = vmul.f32 %v4247, %v4086
    %v4262 = vadd.f32 %v4258, %v4260
    %v4263 = vadd.f32 %v4259, %v4261
    %v4264 = vpack.c.bf16 %v4262, %v4262
    %v4265 = vpack.c.bf16 %v4263, %v4263
    %4266 = vmatprep.subr.bf16.mxu0 %v2076
    %4267 = vmatpush1.bf16.msra.mxu0 %v2075
    %4268 = vmatprep.subr.bf16.mxu0 %v2082
    %4269 = vmatpush1.bf16.msra.mxu0 %v2081
    %4270 = vmatprep.subr.bf16.mxu0 %v2088
    %4271 = vmatpush1.bf16.msra.mxu0 %v2087
    %4272 = vmatprep.subr.bf16.mxu0 %v2094
    %4273 = vmatpush1.bf16.msra.mxu0 %v2093
    %4274 = vmatprep.subr.bf16.mxu0 %v2100
    %4275 = vmatpush1.bf16.msra.mxu0 %v2099
    %4276 = vmatprep.subr.bf16.mxu0 %v2106
    %4277 = vmatpush1.bf16.msra.mxu0 %v2105
    %4278 = vmatprep.subr.bf16.mxu0 %v2112
    %4279 = vmatpush1.bf16.msra.mxu0 %v2111
    %4280 = vmatprep.subr.bf16.mxu0 %v2118
    %4281 = vmatpush1.bf16.msra.mxu0 %v2117
    %4282 = vmatprep.subr.bf16.mxu0 %v2124
    %4283 = vmatpush1.bf16.msra.mxu0 %v2123
    %4284 = vmatprep.subr.bf16.mxu0 %v2130
    %4285 = vmatpush1.bf16.msra.mxu0 %v2129
    %4286 = vmatprep.subr.bf16.mxu0 %v2136
    %4287 = vmatpush1.bf16.msra.mxu0 %v2135
    %4288 = vmatprep.subr.bf16.mxu0 %v2142
    %4289 = vmatpush1.bf16.msra.mxu0 %v2141
    %4290 = vmatprep.subr.bf16.mxu0 %v2148
    %4291 = vmatpush1.bf16.msra.mxu0 %v2147
    %4292 = vmatprep.subr.bf16.mxu0 %v2154
    %4293 = vmatpush1.bf16.msra.mxu0 %v2153
    %4294 = vmatprep.subr.bf16.mxu0 %v2160
    %4295 = vmatpush1.bf16.msra.mxu0 %v2159
    %4296 = vmatprep.subr.bf16.mxu0 %v2166
    %4297 = vmatpush1.bf16.msra.mxu0 %v2165
    %4298 = vmatprep.mubr.bf16.mxu0 %v4265
    %4299 = vmatmul.mubr.bf16.gmra.mrb[0].mxu0 %v4264
    %v4300 = vpop.f32.mrb[0].mxu0
    %v4301 = vadd.f32 %v1312, %v4300
    %v4302 = vpop.f32.mrb[0].mxu0
    %v4303 = vadd.f32 %v1313, %v4302
    %v4304 = vpop.f32.mrb[0].mxu0
    %v4305 = vpop.f32.mrb[0].mxu0
    %4306 = vdwg.mxu0
    %4307 = vmatprep.subr.bf16.mxu0 %v2078
    %4308 = vmatpush1.bf16.msra.mxu0 %v2077
    %4309 = vmatprep.subr.bf16.mxu0 %v2084
    %4310 = vmatpush1.bf16.msra.mxu0 %v2083
    %4311 = vmatprep.subr.bf16.mxu0 %v2090
    %4312 = vmatpush1.bf16.msra.mxu0 %v2089
    %4313 = vmatprep.subr.bf16.mxu0 %v2096
    %4314 = vmatpush1.bf16.msra.mxu0 %v2095
    %4315 = vmatprep.subr.bf16.mxu0 %v2102
    %4316 = vmatpush1.bf16.msra.mxu0 %v2101
    %4317 = vmatprep.subr.bf16.mxu0 %v2108
    %4318 = vmatpush1.bf16.msra.mxu0 %v2107
    %4319 = vmatprep.subr.bf16.mxu0 %v2114
    %4320 = vmatpush1.bf16.msra.mxu0 %v2113
    %4321 = vmatprep.subr.bf16.mxu0 %v2120
    %4322 = vmatpush1.bf16.msra.mxu0 %v2119
    %4323 = vmatprep.subr.bf16.mxu0 %v2126
    %4324 = vmatpush1.bf16.msra.mxu0 %v2125
    %4325 = vmatprep.subr.bf16.mxu0 %v2132
    %4326 = vmatpush1.bf16.msra.mxu0 %v2131
    %4327 = vmatprep.subr.bf16.mxu0 %v2138
    %4328 = vmatpush1.bf16.msra.mxu0 %v2137
    %4329 = vmatprep.subr.bf16.mxu0 %v2144
    %4330 = vmatpush1.bf16.msra.mxu0 %v2143
    %4331 = vmatprep.subr.bf16.mxu0 %v2150
    %4332 = vmatpush1.bf16.msra.mxu0 %v2149
    %4333 = vmatprep.subr.bf16.mxu0 %v2156
    %4334 = vmatpush1.bf16.msra.mxu0 %v2155
    %4335 = vmatprep.subr.bf16.mxu0 %v2162
    %4336 = vmatpush1.bf16.msra.mxu0 %v2161
    %4337 = vmatprep.subr.bf16.mxu0 %v2168
    %4338 = vmatpush1.bf16.msra.mxu0 %v2167
    %4339 = vmatprep.mubr.bf16.mxu0 %v4265
    %4340 = vmatmul.mubr.bf16.gmra.mrb[0].mxu0 %v4264
    %v4341 = vpop.f32.mrb[0].mxu0
    %v4342 = vadd.f32 %v1314, %v4341
    %v4343 = vpop.f32.mrb[0].mxu0
    %v4344 = vadd.f32 %v1315, %v4343
    %v4345 = vpop.f32.mrb[0].mxu0
    %v4346 = vpop.f32.mrb[0].mxu0
    %4347 = vdwg.mxu0
    %4348 = vmatprep.subr.bf16.mxu0 %v2080
    %4349 = vmatpush1.bf16.msra.mxu0 %v2079
    %4350 = vmatprep.subr.bf16.mxu0 %v2086
    %4351 = vmatpush1.bf16.msra.mxu0 %v2085
    %4352 = vmatprep.subr.bf16.mxu0 %v2092
    %4353 = vmatpush1.bf16.msra.mxu0 %v2091
    %4354 = vmatprep.subr.bf16.mxu0 %v2098
    %4355 = vmatpush1.bf16.msra.mxu0 %v2097
    %4356 = vmatprep.subr.bf16.mxu0 %v2104
    %4357 = vmatpush1.bf16.msra.mxu0 %v2103
    %4358 = vmatprep.subr.bf16.mxu0 %v2110
    %4359 = vmatpush1.bf16.msra.mxu0 %v2109
    %4360 = vmatprep.subr.bf16.mxu0 %v2116
    %4361 = vmatpush1.bf16.msra.mxu0 %v2115
    %4362 = vmatprep.subr.bf16.mxu0 %v2122
    %4363 = vmatpush1.bf16.msra.mxu0 %v2121
    %4364 = vmatprep.subr.bf16.mxu0 %v2128
    %4365 = vmatpush1.bf16.msra.mxu0 %v2127
    %4366 = vmatprep.subr.bf16.mxu0 %v2134
    %4367 = vmatpush1.bf16.msra.mxu0 %v2133
    %4368 = vmatprep.subr.bf16.mxu0 %v2140
    %4369 = vmatpush1.bf16.msra.mxu0 %v2139
    %4370 = vmatprep.subr.bf16.mxu0 %v2146
    %4371 = vmatpush1.bf16.msra.mxu0 %v2145
    %4372 = vmatprep.subr.bf16.mxu0 %v2152
    %4373 = vmatpush1.bf16.msra.mxu0 %v2151
    %4374 = vmatprep.subr.bf16.mxu0 %v2158
    %4375 = vmatpush1.bf16.msra.mxu0 %v2157
    %4376 = vmatprep.subr.bf16.mxu0 %v2164
    %4377 = vmatpush1.bf16.msra.mxu0 %v2163
    %4378 = vmatprep.subr.bf16.mxu0 %v2170
    %4379 = vmatpush1.bf16.msra.mxu0 %v2169
    %4380 = vmatprep.mubr.bf16.mxu0 %v4265
    %4381 = vmatmul.mubr.bf16.gmra.mrb[0].mxu0 %v4264
    %v4382 = vpop.f32.mrb[0].mxu0
    %v4383 = vadd.f32 %v1316, %v4382
    %v4384 = vpop.f32.mrb[0].mxu0
    %v4385 = vadd.f32 %v1317, %v4384
    %v4386 = vpop.f32.mrb[0].mxu0
    %v4387 = vpop.f32.mrb[0].mxu0
    %4388 = vdwg.mxu0
    %v4389 = vpack.c.bf16 %v4087, %v4087
    %v4390 = vpack.c.bf16 %v4088, %v4088
    %4391 = vmatprep.subr.bf16.mxu0 %v2295
    %4392 = vmatpush1.bf16.msra.mxu0 %v2294
    %4393 = vmatprep.subr.bf16.mxu0 %v2301
    %4394 = vmatpush1.bf16.msra.mxu0 %v2300
    %4395 = vmatprep.subr.bf16.mxu0 %v2307
    %4396 = vmatpush1.bf16.msra.mxu0 %v2306
    %4397 = vmatprep.subr.bf16.mxu0 %v2313
    %4398 = vmatpush1.bf16.msra.mxu0 %v2312
    %4399 = vmatprep.subr.bf16.mxu0 %v2319
    %4400 = vmatpush1.bf16.msra.mxu0 %v2318
    %4401 = vmatprep.subr.bf16.mxu0 %v2325
    %4402 = vmatpush1.bf16.msra.mxu0 %v2324
    %4403 = vmatprep.subr.bf16.mxu0 %v2331
    %4404 = vmatpush1.bf16.msra.mxu0 %v2330
    %4405 = vmatprep.subr.bf16.mxu0 %v2337
    %4406 = vmatpush1.bf16.msra.mxu0 %v2336
    %4407 = vmatprep.subr.bf16.mxu0 %v2343
    %4408 = vmatpush1.bf16.msra.mxu0 %v2342
    %4409 = vmatprep.subr.bf16.mxu0 %v2349
    %4410 = vmatpush1.bf16.msra.mxu0 %v2348
    %4411 = vmatprep.subr.bf16.mxu0 %v2355
    %4412 = vmatpush1.bf16.msra.mxu0 %v2354
    %4413 = vmatprep.subr.bf16.mxu0 %v2361
    %4414 = vmatpush1.bf16.msra.mxu0 %v2360
    %4415 = vmatprep.subr.bf16.mxu0 %v2367
    %4416 = vmatpush1.bf16.msra.mxu0 %v2366
    %4417 = vmatprep.subr.bf16.mxu0 %v2373
    %4418 = vmatpush1.bf16.msra.mxu0 %v2372
    %4419 = vmatprep.subr.bf16.mxu0 %v2379
    %4420 = vmatpush1.bf16.msra.mxu0 %v2378
    %4421 = vmatprep.subr.bf16.mxu0 %v2385
    %4422 = vmatpush1.bf16.msra.mxu0 %v2384
    %4423 = vmatprep.mubr.bf16.mxu0 %v4390
    %4424 = vmatmul.mubr.bf16.gmra.mrb[0].mxu0 %v4389
    %v4425 = vpop.f32.mrb[0].mxu0
    %v4426 = vadd.f32 0.0, %v4425
    %v4427 = vpop.f32.mrb[0].mxu0
    %v4428 = vadd.f32 0.0, %v4427
    %v4429 = vpop.f32.mrb[0].mxu0
    %v4430 = vpop.f32.mrb[0].mxu0
    %4431 = vdwg.mxu0
    %4432 = vmatprep.subr.bf16.mxu0 %v2297
    %4433 = vmatpush1.bf16.msra.mxu0 %v2296
    %4434 = vmatprep.subr.bf16.mxu0 %v2303
    %4435 = vmatpush1.bf16.msra.mxu0 %v2302
    %4436 = vmatprep.subr.bf16.mxu0 %v2309
    %4437 = vmatpush1.bf16.msra.mxu0 %v2308
    %4438 = vmatprep.subr.bf16.mxu0 %v2315
    %4439 = vmatpush1.bf16.msra.mxu0 %v2314
    %4440 = vmatprep.subr.bf16.mxu0 %v2321
    %4441 = vmatpush1.bf16.msra.mxu0 %v2320
    %4442 = vmatprep.subr.bf16.mxu0 %v2327
    %4443 = vmatpush1.bf16.msra.mxu0 %v2326
    %4444 = vmatprep.subr.bf16.mxu0 %v2333
    %4445 = vmatpush1.bf16.msra.mxu0 %v2332
    %4446 = vmatprep.subr.bf16.mxu0 %v2339
    %4447 = vmatpush1.bf16.msra.mxu0 %v2338
    %4448 = vmatprep.subr.bf16.mxu0 %v2345
    %4449 = vmatpush1.bf16.msra.mxu0 %v2344
    %4450 = vmatprep.subr.bf16.mxu0 %v2351
    %4451 = vmatpush1.bf16.msra.mxu0 %v2350
    %4452 = vmatprep.subr.bf16.mxu0 %v2357
    %4453 = vmatpush1.bf16.msra.mxu0 %v2356
    %4454 = vmatprep.subr.bf16.mxu0 %v2363
    %4455 = vmatpush1.bf16.msra.mxu0 %v2362
    %4456 = vmatprep.subr.bf16.mxu0 %v2369
    %4457 = vmatpush1.bf16.msra.mxu0 %v2368
    %4458 = vmatprep.subr.bf16.mxu0 %v2375
    %4459 = vmatpush1.bf16.msra.mxu0 %v2374
    %4460 = vmatprep.subr.bf16.mxu0 %v2381
    %4461 = vmatpush1.bf16.msra.mxu0 %v2380
    %4462 = vmatprep.subr.bf16.mxu0 %v2387
    %4463 = vmatpush1.bf16.msra.mxu0 %v2386
    %4464 = vmatprep.mubr.bf16.mxu0 %v4390
    %4465 = vmatmul.mubr.bf16.gmra.mrb[0].mxu0 %v4389
    %v4466 = vpop.f32.mrb[0].mxu0
    %v4467 = vadd.f32 0.0, %v4466
    %v4468 = vpop.f32.mrb[0].mxu0
    %v4469 = vadd.f32 0.0, %v4468
    %v4470 = vpop.f32.mrb[0].mxu0
    %v4471 = vpop.f32.mrb[0].mxu0
    %4472 = vdwg.mxu0
    %4473 = vmatprep.subr.bf16.mxu0 %v2299
    %4474 = vmatpush1.bf16.msra.mxu0 %v2298
    %4475 = vmatprep.subr.bf16.mxu0 %v2305
    %4476 = vmatpush1.bf16.msra.mxu0 %v2304
    %4477 = vmatprep.subr.bf16.mxu0 %v2311
    %4478 = vmatpush1.bf16.msra.mxu0 %v2310
    %4479 = vmatprep.subr.bf16.mxu0 %v2317
    %4480 = vmatpush1.bf16.msra.mxu0 %v2316
    %4481 = vmatprep.subr.bf16.mxu0 %v2323
    %4482 = vmatpush1.bf16.msra.mxu0 %v2322
    %4483 = vmatprep.subr.bf16.mxu0 %v2329
    %4484 = vmatpush1.bf16.msra.mxu0 %v2328
    %4485 = vmatprep.subr.bf16.mxu0 %v2335
    %4486 = vmatpush1.bf16.msra.mxu0 %v2334
    %4487 = vmatprep.subr.bf16.mxu0 %v2341
    %4488 = vmatpush1.bf16.msra.mxu0 %v2340
    %4489 = vmatprep.subr.bf16.mxu0 %v2347
    %4490 = vmatpush1.bf16.msra.mxu0 %v2346
    %4491 = vmatprep.subr.bf16.mxu0 %v2353
    %4492 = vmatpush1.bf16.msra.mxu0 %v2352
    %4493 = vmatprep.subr.bf16.mxu0 %v2359
    %4494 = vmatpush1.bf16.msra.mxu0 %v2358
    %4495 = vmatprep.subr.bf16.mxu0 %v2365
    %4496 = vmatpush1.bf16.msra.mxu0 %v2364
    %4497 = vmatprep.subr.bf16.mxu0 %v2371
    %4498 = vmatpush1.bf16.msra.mxu0 %v2370
    %4499 = vmatprep.subr.bf16.mxu0 %v2377
    %4500 = vmatpush1.bf16.msra.mxu0 %v2376
    %4501 = vmatprep.subr.bf16.mxu0 %v2383
    %4502 = vmatpush1.bf16.msra.mxu0 %v2382
    %4503 = vmatprep.subr.bf16.mxu0 %v2389
    %4504 = vmatpush1.bf16.msra.mxu0 %v2388
    %4505 = vmatprep.mubr.bf16.mxu0 %v4390
    %4506 = vmatmul.mubr.bf16.gmra.mrb[0].mxu0 %v4389
    %v4507 = vpop.f32.mrb[0].mxu0
    %v4508 = vadd.f32 0.0, %v4507
    %v4509 = vpop.f32.mrb[0].mxu0
    %v4510 = vadd.f32 0.0, %v4509
    %v4511 = vpop.f32.mrb[0].mxu0
    %v4512 = vpop.f32.mrb[0].mxu0
    %4513 = vdwg.mxu0
    %v4514 = vadd.f32 %v4301, %v4426
    %v4515 = vadd.f32 %v4303, %v4428
    %v4516 = vxor.u32 %v4514, 2147483648
    %v4517 = vxor.u32 %v4515, 2147483648
    %v4518 = vmul.f32 %v4516, 1.442695
    %v4519 = vpow.pop %v4518
    %v4520 = vmul.f32 %v4517, 1.442695
    %v4521 = vpow.pop %v4520
    %v4522 = vadd.f32 %v4519, 1.0
    %v4523 = vadd.f32 %v4521, 1.0
    %v4524 = vrcp.pop %v4522
    %v4525 = vmul.f32 1.0, %v4524
    %v4526 = vrcp.pop %v4523
    %v4527 = vmul.f32 1.0, %v4526
    %v4528 = vadd.f32 %v4342, %v4467
    %v4529 = vadd.f32 %v4344, %v4469
    %v4530 = vxor.u32 %v4528, 2147483648
    %v4531 = vxor.u32 %v4529, 2147483648
    %v4532 = vmul.f32 %v4530, 1.442695
    %v4533 = vpow.pop %v4532
    %v4534 = vmul.f32 %v4531, 1.442695
    %v4535 = vpow.pop %v4534
    %v4536 = vadd.f32 %v4533, 1.0
    %v4537 = vadd.f32 %v4535, 1.0
    %v4538 = vrcp.pop %v4536
    %v4539 = vmul.f32 1.0, %v4538
    %v4540 = vrcp.pop %v4537
    %v4541 = vmul.f32 1.0, %v4540
    %v4542 = vadd.f32 %v4508, %v1310
    %v4543 = vadd.f32 %v4510, %v1311
    %v4544 = vmul.f32 %v4525, %v4542
    %v4545 = vmul.f32 %v4527, %v4543
    %v4546 = vadd.f32 %v4383, %v4544
    %v4547 = vadd.f32 %v4385, %v4545
    %v4548 = vtanh.pop %v4546
    %v4549 = vtanh.pop %v4547
    %v4550 = vsub.f32 1.0, %v4539
    %v4551 = vsub.f32 1.0, %v4541
    %v4552 = vmul.f32 %v4550, %v4548
    %v4553 = vmul.f32 %v4551, %v4549
    %v4554 = vmul.f32 %v4539, %v4087
    %v4555 = vmul.f32 %v4541, %v4088
    %v4556 = vadd.f32 %v4552, %v4554
    %v4557 = vadd.f32 %v4553, %v4555
    %vm4558 = vcmp.gt.s32.totalorder %v1306, 3
    %vm4559 = vcmp.gt.s32.totalorder %v1307, 3
    %v4560 = vsel %vm4558, %v4262, %v4085
    %v4561 = vsel %vm4559, %v4263, %v4086
    %v4562 = vsel %vm4558, %v4556, %v4087
    %v4563 = vsel %vm4559, %v4557, %v4088
    %v4564 = vld [vmem:[#allocation2 + $0xc0] sm:$0xff]
    %v4565 = vld [vmem:[#allocation2 + $0xc8] sm:$0xff]
    %v4566 = vld [vmem:[#allocation2 + $0xd0] sm:$0xff]
    %v4567 = vld [vmem:[#allocation2 + $0xd8] sm:$0xff]
    %v4568 = vld [vmem:[#allocation2 + $0xe0] sm:$0xff]
    %v4569 = vld [vmem:[#allocation2 + $0xe8] sm:$0xff]
    %v4570 = vpack.c.bf16 %v4560, %v4560
    %v4571 = vpack.c.bf16 %v4561, %v4561
    %4572 = vmatprep.subr.bf16.mxu0 %v2956
    %4573 = vmatpush1.bf16.msra.mxu0 %v2955
    %4574 = vmatprep.subr.bf16.mxu0 %v2962
    %4575 = vmatpush1.bf16.msra.mxu0 %v2961
    %4576 = vmatprep.subr.bf16.mxu0 %v2968
    %4577 = vmatpush1.bf16.msra.mxu0 %v2967
    %4578 = vmatprep.subr.bf16.mxu0 %v2974
    %4579 = vmatpush1.bf16.msra.mxu0 %v2973
    %4580 = vmatprep.subr.bf16.mxu0 %v2980
    %4581 = vmatpush1.bf16.msra.mxu0 %v2979
    %4582 = vmatprep.subr.bf16.mxu0 %v2986
    %4583 = vmatpush1.bf16.msra.mxu0 %v2985
    %4584 = vmatprep.subr.bf16.mxu0 %v2992
    %4585 = vmatpush1.bf16.msra.mxu0 %v2991
    %4586 = vmatprep.subr.bf16.mxu0 %v2998
    %4587 = vmatpush1.bf16.msra.mxu0 %v2997
    %4588 = vmatprep.subr.bf16.mxu0 %v3004
    %4589 = vmatpush1.bf16.msra.mxu0 %v3003
    %4590 = vmatprep.subr.bf16.mxu0 %v3010
    %4591 = vmatpush1.bf16.msra.mxu0 %v3009
    %4592 = vmatprep.subr.bf16.mxu0 %v3016
    %4593 = vmatpush1.bf16.msra.mxu0 %v3015
    %4594 = vmatprep.subr.bf16.mxu0 %v3022
    %4595 = vmatpush1.bf16.msra.mxu0 %v3021
    %4596 = vmatprep.subr.bf16.mxu0 %v3028
    %4597 = vmatpush1.bf16.msra.mxu0 %v3027
    %4598 = vmatprep.subr.bf16.mxu0 %v3034
    %4599 = vmatpush1.bf16.msra.mxu0 %v3033
    %4600 = vmatprep.subr.bf16.mxu0 %v3040
    %4601 = vmatpush1.bf16.msra.mxu0 %v3039
    %4602 = vmatprep.subr.bf16.mxu0 %v3046
    %4603 = vmatpush1.bf16.msra.mxu0 %v3045
    %4604 = vmatprep.mubr.bf16.mxu0 %v4571
    %4605 = vmatmul.mubr.bf16.gmra.mrb[0].mxu0 %v4570
    %v4606 = vpop.f32.mrb[0].mxu0
    %v4607 = vadd.f32 0.0, %v4606
    %v4608 = vpop.f32.mrb[0].mxu0
    %v4609 = vadd.f32 0.0, %v4608
    %v4610 = vpop.f32.mrb[0].mxu0
    %v4611 = vpop.f32.mrb[0].mxu0
    %4612 = vdwg.mxu0
    %4613 = vmatprep.subr.bf16.mxu0 %v2958
    %4614 = vmatpush1.bf16.msra.mxu0 %v2957
    %4615 = vmatprep.subr.bf16.mxu0 %v2964
    %4616 = vmatpush1.bf16.msra.mxu0 %v2963
    %4617 = vmatprep.subr.bf16.mxu0 %v2970
    %4618 = vmatpush1.bf16.msra.mxu0 %v2969
    %4619 = vmatprep.subr.bf16.mxu0 %v2976
    %4620 = vmatpush1.bf16.msra.mxu0 %v2975
    %4621 = vmatprep.subr.bf16.mxu0 %v2982
    %4622 = vmatpush1.bf16.msra.mxu0 %v2981
    %4623 = vmatprep.subr.bf16.mxu0 %v2988
    %4624 = vmatpush1.bf16.msra.mxu0 %v2987
    %4625 = vmatprep.subr.bf16.mxu0 %v2994
    %4626 = vmatpush1.bf16.msra.mxu0 %v2993
    %4627 = vmatprep.subr.bf16.mxu0 %v3000
    %4628 = vmatpush1.bf16.msra.mxu0 %v2999
    %4629 = vmatprep.subr.bf16.mxu0 %v3006
    %4630 = vmatpush1.bf16.msra.mxu0 %v3005
    %4631 = vmatprep.subr.bf16.mxu0 %v3012
    %4632 = vmatpush1.bf16.msra.mxu0 %v3011
    %4633 = vmatprep.subr.bf16.mxu0 %v3018
    %4634 = vmatpush1.bf16.msra.mxu0 %v3017
    %4635 = vmatprep.subr.bf16.mxu0 %v3024
    %4636 = vmatpush1.bf16.msra.mxu0 %v3023
    %4637 = vmatprep.subr.bf16.mxu0 %v3030
    %4638 = vmatpush1.bf16.msra.mxu0 %v3029
    %4639 = vmatprep.subr.bf16.mxu0 %v3036
    %4640 = vmatpush1.bf16.msra.mxu0 %v3035
    %4641 = vmatprep.subr.bf16.mxu0 %v3042
    %4642 = vmatpush1.bf16.msra.mxu0 %v3041
    %4643 = vmatprep.subr.bf16.mxu0 %v3048
    %4644 = vmatpush1.bf16.msra.mxu0 %v3047
    %4645 = vmatprep.mubr.bf16.mxu0 %v4571
    %4646 = vmatmul.mubr.bf16.gmra.mrb[0].mxu0 %v4570
    %v4647 = vpop.f32.mrb[0].mxu0
    %v4648 = vadd.f32 0.0, %v4647
    %v4649 = vpop.f32.mrb[0].mxu0
    %v4650 = vadd.f32 0.0, %v4649
    %v4651 = vpop.f32.mrb[0].mxu0
    %v4652 = vpop.f32.mrb[0].mxu0
    %4653 = vdwg.mxu0
    %4654 = vmatprep.subr.bf16.mxu0 %v2960
    %4655 = vmatpush1.bf16.msra.mxu0 %v2959
    %4656 = vmatprep.subr.bf16.mxu0 %v2966
    %4657 = vmatpush1.bf16.msra.mxu0 %v2965
    %4658 = vmatprep.subr.bf16.mxu0 %v2972
    %4659 = vmatpush1.bf16.msra.mxu0 %v2971
    %4660 = vmatprep.subr.bf16.mxu0 %v2978
    %4661 = vmatpush1.bf16.msra.mxu0 %v2977
    %4662 = vmatprep.subr.bf16.mxu0 %v2984
    %4663 = vmatpush1.bf16.msra.mxu0 %v2983
    %4664 = vmatprep.subr.bf16.mxu0 %v2990
    %4665 = vmatpush1.bf16.msra.mxu0 %v2989
    %4666 = vmatprep.subr.bf16.mxu0 %v2996
    %4667 = vmatpush1.bf16.msra.mxu0 %v2995
    %4668 = vmatprep.subr.bf16.mxu0 %v3002
    %4669 = vmatpush1.bf16.msra.mxu0 %v3001
    %4670 = vmatprep.subr.bf16.mxu0 %v3008
    %4671 = vmatpush1.bf16.msra.mxu0 %v3007
    %4672 = vmatprep.subr.bf16.mxu0 %v3014
    %4673 = vmatpush1.bf16.msra.mxu0 %v3013
    %4674 = vmatprep.subr.bf16.mxu0 %v3020
    %4675 = vmatpush1.bf16.msra.mxu0 %v3019
    %4676 = vmatprep.subr.bf16.mxu0 %v3026
    %4677 = vmatpush1.bf16.msra.mxu0 %v3025
    %4678 = vmatprep.subr.bf16.mxu0 %v3032
    %4679 = vmatpush1.bf16.msra.mxu0 %v3031
    %4680 = vmatprep.subr.bf16.mxu0 %v3038
    %4681 = vmatpush1.bf16.msra.mxu0 %v3037
    %4682 = vmatprep.subr.bf16.mxu0 %v3044
    %4683 = vmatpush1.bf16.msra.mxu0 %v3043
    %4684 = vmatprep.subr.bf16.mxu0 %v3050
    %4685 = vmatpush1.bf16.msra.mxu0 %v3049
    %4686 = vmatprep.mubr.bf16.mxu0 %v4571
    %4687 = vmatmul.mubr.bf16.gmra.mrb[0].mxu0 %v4570
    %v4688 = vpop.f32.mrb[0].mxu0
    %v4689 = vadd.f32 0.0, %v4688
    %v4690 = vpop.f32.mrb[0].mxu0
    %v4691 = vadd.f32 0.0, %v4690
    %v4692 = vpop.f32.mrb[0].mxu0
    %v4693 = vpop.f32.mrb[0].mxu0
    %4694 = vdwg.mxu0
    %v4695 = vadd.f32 %v4564, %v4607
    %v4696 = vadd.f32 %v4565, %v4609
    %v4697 = vxor.u32 %v4695, 2147483648
    %v4698 = vxor.u32 %v4696, 2147483648
    %v4699 = vmul.f32 %v4697, 1.442695
    %v4700 = vpow.pop %v4699
    %v4701 = vmul.f32 %v4698, 1.442695
    %v4702 = vpow.pop %v4701
    %v4703 = vadd.f32 %v4700, 1.0
    %v4704 = vadd.f32 %v4702, 1.0
    %v4705 = vrcp.pop %v4703
    %v4706 = vmul.f32 1.0, %v4705
    %v4707 = vrcp.pop %v4704
    %v4708 = vmul.f32 1.0, %v4707
    %v4709 = vadd.f32 %v4566, %v4648
    %v4710 = vadd.f32 %v4567, %v4650
    %v4711 = vxor.u32 %v4709, 2147483648
    %v4712 = vxor.u32 %v4710, 2147483648
    %v4713 = vmul.f32 %v4711, 1.442695
    %v4714 = vpow.pop %v4713
    %v4715 = vmul.f32 %v4712, 1.442695
    %v4716 = vpow.pop %v4715
    %v4717 = vadd.f32 %v4714, 1.0
    %v4718 = vadd.f32 %v4716, 1.0
    %v4719 = vrcp.pop %v4717
    %v4720 = vmul.f32 1.0, %v4719
    %v4721 = vrcp.pop %v4718
    %v4722 = vmul.f32 1.0, %v4721
    %v4723 = vadd.f32 %v4689, %v1308
    %v4724 = vadd.f32 %v4691, %v1309
    %v4725 = vmul.f32 %v4706, %v4723
    %v4726 = vmul.f32 %v4708, %v4724
    %v4727 = vadd.f32 %v4568, %v4725
    %v4728 = vadd.f32 %v4569, %v4726
    %v4729 = vtanh.pop %v4727
    %v4730 = vtanh.pop %v4728
    %v4731 = vsub.f32 1.0, %v4720
    %v4732 = vsub.f32 1.0, %v4722
    %v4733 = vmul.f32 %v4731, %v4729
    %v4734 = vmul.f32 %v4732, %v4730
    %v4735 = vmul.f32 %v4720, %v4560
    %v4736 = vmul.f32 %v4722, %v4561
    %v4737 = vadd.f32 %v4733, %v4735
    %v4738 = vadd.f32 %v4734, %v4736
    %v4739 = vpack.c.bf16 %v4737, %v4737
    %v4740 = vpack.c.bf16 %v4738, %v4738
    %4741 = vmatprep.subr.bf16.mxu0 %v2076
    %4742 = vmatpush1.bf16.msra.mxu0 %v2075
    %4743 = vmatprep.subr.bf16.mxu0 %v2082
    %4744 = vmatpush1.bf16.msra.mxu0 %v2081
    %4745 = vmatprep.subr.bf16.mxu0 %v2088
    %4746 = vmatpush1.bf16.msra.mxu0 %v2087
    %4747 = vmatprep.subr.bf16.mxu0 %v2094
    %4748 = vmatpush1.bf16.msra.mxu0 %v2093
    %4749 = vmatprep.subr.bf16.mxu0 %v2100
    %4750 = vmatpush1.bf16.msra.mxu0 %v2099
    %4751 = vmatprep.subr.bf16.mxu0 %v2106
    %4752 = vmatpush1.bf16.msra.mxu0 %v2105
    %4753 = vmatprep.subr.bf16.mxu0 %v2112
    %4754 = vmatpush1.bf16.msra.mxu0 %v2111
    %4755 = vmatprep.subr.bf16.mxu0 %v2118
    %4756 = vmatpush1.bf16.msra.mxu0 %v2117
    %4757 = vmatprep.subr.bf16.mxu0 %v2124
    %4758 = vmatpush1.bf16.msra.mxu0 %v2123
    %4759 = vmatprep.subr.bf16.mxu0 %v2130
    %4760 = vmatpush1.bf16.msra.mxu0 %v2129
    %4761 = vmatprep.subr.bf16.mxu0 %v2136
    %4762 = vmatpush1.bf16.msra.mxu0 %v2135
    %4763 = vmatprep.subr.bf16.mxu0 %v2142
    %4764 = vmatpush1.bf16.msra.mxu0 %v2141
    %4765 = vmatprep.subr.bf16.mxu0 %v2148
    %4766 = vmatpush1.bf16.msra.mxu0 %v2147
    %4767 = vmatprep.subr.bf16.mxu0 %v2154
    %4768 = vmatpush1.bf16.msra.mxu0 %v2153
    %4769 = vmatprep.subr.bf16.mxu0 %v2160
    %4770 = vmatpush1.bf16.msra.mxu0 %v2159
    %4771 = vmatprep.subr.bf16.mxu0 %v2166
    %4772 = vmatpush1.bf16.msra.mxu0 %v2165
    %4773 = vmatprep.mubr.bf16.mxu0 %v4740
    %4774 = vmatmul.mubr.bf16.gmra.mrb[0].mxu0 %v4739
    %v4775 = vpop.f32.mrb[0].mxu0
    %v4776 = vadd.f32 %v1312, %v4775
    %v4777 = vpop.f32.mrb[0].mxu0
    %v4778 = vadd.f32 %v1313, %v4777
    %v4779 = vpop.f32.mrb[0].mxu0
    %v4780 = vpop.f32.mrb[0].mxu0
    %4781 = vdwg.mxu0
    %4782 = vmatprep.subr.bf16.mxu0 %v2078
    %4783 = vmatpush1.bf16.msra.mxu0 %v2077
    %4784 = vmatprep.subr.bf16.mxu0 %v2084
    %4785 = vmatpush1.bf16.msra.mxu0 %v2083
    %4786 = vmatprep.subr.bf16.mxu0 %v2090
    %4787 = vmatpush1.bf16.msra.mxu0 %v2089
    %4788 = vmatprep.subr.bf16.mxu0 %v2096
    %4789 = vmatpush1.bf16.msra.mxu0 %v2095
    %4790 = vmatprep.subr.bf16.mxu0 %v2102
    %4791 = vmatpush1.bf16.msra.mxu0 %v2101
    %4792 = vmatprep.subr.bf16.mxu0 %v2108
    %4793 = vmatpush1.bf16.msra.mxu0 %v2107
    %4794 = vmatprep.subr.bf16.mxu0 %v2114
    %4795 = vmatpush1.bf16.msra.mxu0 %v2113
    %4796 = vmatprep.subr.bf16.mxu0 %v2120
    %4797 = vmatpush1.bf16.msra.mxu0 %v2119
    %4798 = vmatprep.subr.bf16.mxu0 %v2126
    %4799 = vmatpush1.bf16.msra.mxu0 %v2125
    %4800 = vmatprep.subr.bf16.mxu0 %v2132
    %4801 = vmatpush1.bf16.msra.mxu0 %v2131
    %4802 = vmatprep.subr.bf16.mxu0 %v2138
    %4803 = vmatpush1.bf16.msra.mxu0 %v2137
    %4804 = vmatprep.subr.bf16.mxu0 %v2144
    %4805 = vmatpush1.bf16.msra.mxu0 %v2143
    %4806 = vmatprep.subr.bf16.mxu0 %v2150
    %4807 = vmatpush1.bf16.msra.mxu0 %v2149
    %4808 = vmatprep.subr.bf16.mxu0 %v2156
    %4809 = vmatpush1.bf16.msra.mxu0 %v2155
    %4810 = vmatprep.subr.bf16.mxu0 %v2162
    %4811 = vmatpush1.bf16.msra.mxu0 %v2161
    %4812 = vmatprep.subr.bf16.mxu0 %v2168
    %4813 = vmatpush1.bf16.msra.mxu0 %v2167
    %4814 = vmatprep.mubr.bf16.mxu0 %v4740
    %4815 = vmatmul.mubr.bf16.gmra.mrb[0].mxu0 %v4739
    %v4816 = vpop.f32.mrb[0].mxu0
    %v4817 = vadd.f32 %v1314, %v4816
    %v4818 = vpop.f32.mrb[0].mxu0
    %v4819 = vadd.f32 %v1315, %v4818
    %v4820 = vpop.f32.mrb[0].mxu0
    %v4821 = vpop.f32.mrb[0].mxu0
    %4822 = vdwg.mxu0
    %4823 = vmatprep.subr.bf16.mxu0 %v2080
    %4824 = vmatpush1.bf16.msra.mxu0 %v2079
    %4825 = vmatprep.subr.bf16.mxu0 %v2086
    %4826 = vmatpush1.bf16.msra.mxu0 %v2085
    %4827 = vmatprep.subr.bf16.mxu0 %v2092
    %4828 = vmatpush1.bf16.msra.mxu0 %v2091
    %4829 = vmatprep.subr.bf16.mxu0 %v2098
    %4830 = vmatpush1.bf16.msra.mxu0 %v2097
    %4831 = vmatprep.subr.bf16.mxu0 %v2104
    %4832 = vmatpush1.bf16.msra.mxu0 %v2103
    %4833 = vmatprep.subr.bf16.mxu0 %v2110
    %4834 = vmatpush1.bf16.msra.mxu0 %v2109
    %4835 = vmatprep.subr.bf16.mxu0 %v2116
    %4836 = vmatpush1.bf16.msra.mxu0 %v2115
    %4837 = vmatprep.subr.bf16.mxu0 %v2122
    %4838 = vmatpush1.bf16.msra.mxu0 %v2121
    %4839 = vmatprep.subr.bf16.mxu0 %v2128
    %4840 = vmatpush1.bf16.msra.mxu0 %v2127
    %4841 = vmatprep.subr.bf16.mxu0 %v2134
    %4842 = vmatpush1.bf16.msra.mxu0 %v2133
    %4843 = vmatprep.subr.bf16.mxu0 %v2140
    %4844 = vmatpush1.bf16.msra.mxu0 %v2139
    %4845 = vmatprep.subr.bf16.mxu0 %v2146
    %4846 = vmatpush1.bf16.msra.mxu0 %v2145
    %4847 = vmatprep.subr.bf16.mxu0 %v2152
    %4848 = vmatpush1.bf16.msra.mxu0 %v2151
    %4849 = vmatprep.subr.bf16.mxu0 %v2158
    %4850 = vmatpush1.bf16.msra.mxu0 %v2157
    %4851 = vmatprep.subr.bf16.mxu0 %v2164
    %4852 = vmatpush1.bf16.msra.mxu0 %v2163
    %4853 = vmatprep.subr.bf16.mxu0 %v2170
    %4854 = vmatpush1.bf16.msra.mxu0 %v2169
    %4855 = vmatprep.mubr.bf16.mxu0 %v4740
    %4856 = vmatmul.mubr.bf16.gmra.mrb[0].mxu0 %v4739
    %v4857 = vpop.f32.mrb[0].mxu0
    %v4858 = vadd.f32 %v1316, %v4857
    %v4859 = vpop.f32.mrb[0].mxu0
    %v4860 = vadd.f32 %v1317, %v4859
    %v4861 = vpop.f32.mrb[0].mxu0
    %v4862 = vpop.f32.mrb[0].mxu0
    %4863 = vdwg.mxu0
    %v4864 = vpack.c.bf16 %v4562, %v4562
    %v4865 = vpack.c.bf16 %v4563, %v4563
    %4866 = vmatprep.subr.bf16.mxu0 %v2295
    %4867 = vmatpush1.bf16.msra.mxu0 %v2294
    %4868 = vmatprep.subr.bf16.mxu0 %v2301
    %4869 = vmatpush1.bf16.msra.mxu0 %v2300
    %4870 = vmatprep.subr.bf16.mxu0 %v2307
    %4871 = vmatpush1.bf16.msra.mxu0 %v2306
    %4872 = vmatprep.subr.bf16.mxu0 %v2313
    %4873 = vmatpush1.bf16.msra.mxu0 %v2312
    %4874 = vmatprep.subr.bf16.mxu0 %v2319
    %4875 = vmatpush1.bf16.msra.mxu0 %v2318
    %4876 = vmatprep.subr.bf16.mxu0 %v2325
    %4877 = vmatpush1.bf16.msra.mxu0 %v2324
    %4878 = vmatprep.subr.bf16.mxu0 %v2331
    %4879 = vmatpush1.bf16.msra.mxu0 %v2330
    %4880 = vmatprep.subr.bf16.mxu0 %v2337
    %4881 = vmatpush1.bf16.msra.mxu0 %v2336
    %4882 = vmatprep.subr.bf16.mxu0 %v2343
    %4883 = vmatpush1.bf16.msra.mxu0 %v2342
    %4884 = vmatprep.subr.bf16.mxu0 %v2349
    %4885 = vmatpush1.bf16.msra.mxu0 %v2348
    %4886 = vmatprep.subr.bf16.mxu0 %v2355
    %4887 = vmatpush1.bf16.msra.mxu0 %v2354
    %4888 = vmatprep.subr.bf16.mxu0 %v2361
    %4889 = vmatpush1.bf16.msra.mxu0 %v2360
    %4890 = vmatprep.subr.bf16.mxu0 %v2367
    %4891 = vmatpush1.bf16.msra.mxu0 %v2366
    %4892 = vmatprep.subr.bf16.mxu0 %v2373
    %4893 = vmatpush1.bf16.msra.mxu0 %v2372
    %4894 = vmatprep.subr.bf16.mxu0 %v2379
    %4895 = vmatpush1.bf16.msra.mxu0 %v2378
    %4896 = vmatprep.subr.bf16.mxu0 %v2385
    %4897 = vmatpush1.bf16.msra.mxu0 %v2384
    %4898 = vmatprep.mubr.bf16.mxu0 %v4865
    %4899 = vmatmul.mubr.bf16.gmra.mrb[0].mxu0 %v4864
    %v4900 = vpop.f32.mrb[0].mxu0
    %v4901 = vadd.f32 0.0, %v4900
    %v4902 = vpop.f32.mrb[0].mxu0
    %v4903 = vadd.f32 0.0, %v4902
    %v4904 = vpop.f32.mrb[0].mxu0
    %v4905 = vpop.f32.mrb[0].mxu0
    %4906 = vdwg.mxu0
    %4907 = vmatprep.subr.bf16.mxu0 %v2297
    %4908 = vmatpush1.bf16.msra.mxu0 %v2296
    %4909 = vmatprep.subr.bf16.mxu0 %v2303
    %4910 = vmatpush1.bf16.msra.mxu0 %v2302
    %4911 = vmatprep.subr.bf16.mxu0 %v2309
    %4912 = vmatpush1.bf16.msra.mxu0 %v2308
    %4913 = vmatprep.subr.bf16.mxu0 %v2315
    %4914 = vmatpush1.bf16.msra.mxu0 %v2314
    %4915 = vmatprep.subr.bf16.mxu0 %v2321
    %4916 = vmatpush1.bf16.msra.mxu0 %v2320
    %4917 = vmatprep.subr.bf16.mxu0 %v2327
    %4918 = vmatpush1.bf16.msra.mxu0 %v2326
    %4919 = vmatprep.subr.bf16.mxu0 %v2333
    %4920 = vmatpush1.bf16.msra.mxu0 %v2332
    %4921 = vmatprep.subr.bf16.mxu0 %v2339
    %4922 = vmatpush1.bf16.msra.mxu0 %v2338
    %4923 = vmatprep.subr.bf16.mxu0 %v2345
    %4924 = vmatpush1.bf16.msra.mxu0 %v2344
    %4925 = vmatprep.subr.bf16.mxu0 %v2351
    %4926 = vmatpush1.bf16.msra.mxu0 %v2350
    %4927 = vmatprep.subr.bf16.mxu0 %v2357
    %4928 = vmatpush1.bf16.msra.mxu0 %v2356
    %4929 = vmatprep.subr.bf16.mxu0 %v2363
    %4930 = vmatpush1.bf16.msra.mxu0 %v2362
    %4931 = vmatprep.subr.bf16.mxu0 %v2369
    %4932 = vmatpush1.bf16.msra.mxu0 %v2368
    %4933 = vmatprep.subr.bf16.mxu0 %v2375
    %4934 = vmatpush1.bf16.msra.mxu0 %v2374
    %4935 = vmatprep.subr.bf16.mxu0 %v2381
    %4936 = vmatpush1.bf16.msra.mxu0 %v2380
    %4937 = vmatprep.subr.bf16.mxu0 %v2387
    %4938 = vmatpush1.bf16.msra.mxu0 %v2386
    %4939 = vmatprep.mubr.bf16.mxu0 %v4865
    %4940 = vmatmul.mubr.bf16.gmra.mrb[0].mxu0 %v4864
    %v4941 = vpop.f32.mrb[0].mxu0
    %v4942 = vadd.f32 0.0, %v4941
    %v4943 = vpop.f32.mrb[0].mxu0
    %v4944 = vadd.f32 0.0, %v4943
    %v4945 = vpop.f32.mrb[0].mxu0
    %v4946 = vpop.f32.mrb[0].mxu0
    %4947 = vdwg.mxu0
    %4948 = vmatprep.subr.bf16.mxu0 %v2299
    %4949 = vmatpush1.bf16.msra.mxu0 %v2298
    %4950 = vmatprep.subr.bf16.mxu0 %v2305
    %4951 = vmatpush1.bf16.msra.mxu0 %v2304
    %4952 = vmatprep.subr.bf16.mxu0 %v2311
    %4953 = vmatpush1.bf16.msra.mxu0 %v2310
    %4954 = vmatprep.subr.bf16.mxu0 %v2317
    %4955 = vmatpush1.bf16.msra.mxu0 %v2316
    %4956 = vmatprep.subr.bf16.mxu0 %v2323
    %4957 = vmatpush1.bf16.msra.mxu0 %v2322
    %4958 = vmatprep.subr.bf16.mxu0 %v2329
    %4959 = vmatpush1.bf16.msra.mxu0 %v2328
    %4960 = vmatprep.subr.bf16.mxu0 %v2335
    %4961 = vmatpush1.bf16.msra.mxu0 %v2334
    %4962 = vmatprep.subr.bf16.mxu0 %v2341
    %4963 = vmatpush1.bf16.msra.mxu0 %v2340
    %4964 = vmatprep.subr.bf16.mxu0 %v2347
    %4965 = vmatpush1.bf16.msra.mxu0 %v2346
    %4966 = vmatprep.subr.bf16.mxu0 %v2353
    %4967 = vmatpush1.bf16.msra.mxu0 %v2352
    %4968 = vmatprep.subr.bf16.mxu0 %v2359
    %4969 = vmatpush1.bf16.msra.mxu0 %v2358
    %4970 = vmatprep.subr.bf16.mxu0 %v2365
    %4971 = vmatpush1.bf16.msra.mxu0 %v2364
    %4972 = vmatprep.subr.bf16.mxu0 %v2371
    %4973 = vmatpush1.bf16.msra.mxu0 %v2370
    %4974 = vmatprep.subr.bf16.mxu0 %v2377
    %4975 = vmatpush1.bf16.msra.mxu0 %v2376
    %4976 = vmatprep.subr.bf16.mxu0 %v2383
    %4977 = vmatpush1.bf16.msra.mxu0 %v2382
    %4978 = vmatprep.subr.bf16.mxu0 %v2389
    %4979 = vmatpush1.bf16.msra.mxu0 %v2388
    %4980 = vmatprep.mubr.bf16.mxu0 %v4865
    %4981 = vmatmul.mubr.bf16.gmra.mrb[0].mxu0 %v4864
    %v4982 = vpop.f32.mrb[0].mxu0
    %v4983 = vadd.f32 0.0, %v4982
    %v4984 = vpop.f32.mrb[0].mxu0
    %v4985 = vadd.f32 0.0, %v4984
    %v4986 = vpop.f32.mrb[0].mxu0
    %v4987 = vpop.f32.mrb[0].mxu0
    %4988 = vdwg.mxu0
    %v4989 = vadd.f32 %v4776, %v4901
    %v4990 = vadd.f32 %v4778, %v4903
    %v4991 = vxor.u32 %v4989, 2147483648
    %v4992 = vxor.u32 %v4990, 2147483648
    %v4993 = vmul.f32 %v4991, 1.442695
    %v4994 = vpow.pop %v4993
    %v4995 = vmul.f32 %v4992, 1.442695
    %v4996 = vpow.pop %v4995
    %v4997 = vadd.f32 %v4994, 1.0
    %v4998 = vadd.f32 %v4996, 1.0
    %v4999 = vrcp.pop %v4997
    %v5000 = vmul.f32 1.0, %v4999
    %v5001 = vrcp.pop %v4998
    %v5002 = vmul.f32 1.0, %v5001
    %v5003 = vadd.f32 %v4817, %v4942
    %v5004 = vadd.f32 %v4819, %v4944
    %v5005 = vxor.u32 %v5003, 2147483648
    %v5006 = vxor.u32 %v5004, 2147483648
    %v5007 = vmul.f32 %v5005, 1.442695
    %v5008 = vpow.pop %v5007
    %v5009 = vmul.f32 %v5006, 1.442695
    %v5010 = vpow.pop %v5009
    %v5011 = vadd.f32 %v5008, 1.0
    %v5012 = vadd.f32 %v5010, 1.0
    %v5013 = vrcp.pop %v5011
    %v5014 = vmul.f32 1.0, %v5013
    %v5015 = vrcp.pop %v5012
    %v5016 = vmul.f32 1.0, %v5015
    %v5017 = vadd.f32 %v4983, %v1310
    %v5018 = vadd.f32 %v4985, %v1311
    %v5019 = vmul.f32 %v5000, %v5017
    %v5020 = vmul.f32 %v5002, %v5018
    %v5021 = vadd.f32 %v4858, %v5019
    %v5022 = vadd.f32 %v4860, %v5020
    %v5023 = vtanh.pop %v5021
    %v5024 = vtanh.pop %v5022
    %v5025 = vsub.f32 1.0, %v5014
    %v5026 = vsub.f32 1.0, %v5016
    %v5027 = vmul.f32 %v5025, %v5023
    %v5028 = vmul.f32 %v5026, %v5024
    %v5029 = vmul.f32 %v5014, %v4562
    %v5030 = vmul.f32 %v5016, %v4563
    %v5031 = vadd.f32 %v5027, %v5029
    %v5032 = vadd.f32 %v5028, %v5030
    %vm5033 = vcmp.gt.s32.totalorder %v1306, 4
    %vm5034 = vcmp.gt.s32.totalorder %v1307, 4
    %v5035 = vsel %vm5033, %v4737, %v4560
    %v5036 = vsel %vm5034, %v4738, %v4561
    %v5037 = vsel %vm5033, %v5031, %v4562
    %v5038 = vsel %vm5034, %v5032, %v4563
    %v5039 = vld [vmem:[#allocation2 + $0xf0] sm:$0xff]
    %v5040 = vld [vmem:[#allocation2 + $0xf8] sm:$0xff]
    %v5041 = vld [vmem:[#allocation2 + $0x100] sm:$0xff]
    %v5042 = vld [vmem:[#allocation2 + $0x108] sm:$0xff]
    %v5043 = vld [vmem:[#allocation2 + $0x110] sm:$0xff]
    %v5044 = vld [vmem:[#allocation2 + $0x118] sm:$0xff]
    %v5045 = vpack.c.bf16 %v5035, %v5035
    %v5046 = vpack.c.bf16 %v5036, %v5036
    %5047 = vmatprep.subr.bf16.mxu0 %v2956
    %5048 = vmatpush1.bf16.msra.mxu0 %v2955
    %5049 = vmatprep.subr.bf16.mxu0 %v2962
    %5050 = vmatpush1.bf16.msra.mxu0 %v2961
    %5051 = vmatprep.subr.bf16.mxu0 %v2968
    %5052 = vmatpush1.bf16.msra.mxu0 %v2967
    %5053 = vmatprep.subr.bf16.mxu0 %v2974
    %5054 = vmatpush1.bf16.msra.mxu0 %v2973
    %5055 = vmatprep.subr.bf16.mxu0 %v2980
    %5056 = vmatpush1.bf16.msra.mxu0 %v2979
    %5057 = vmatprep.subr.bf16.mxu0 %v2986
    %5058 = vmatpush1.bf16.msra.mxu0 %v2985
    %5059 = vmatprep.subr.bf16.mxu0 %v2992
    %5060 = vmatpush1.bf16.msra.mxu0 %v2991
    %5061 = vmatprep.subr.bf16.mxu0 %v2998
    %5062 = vmatpush1.bf16.msra.mxu0 %v2997
    %5063 = vmatprep.subr.bf16.mxu0 %v3004
    %5064 = vmatpush1.bf16.msra.mxu0 %v3003
    %5065 = vmatprep.subr.bf16.mxu0 %v3010
    %5066 = vmatpush1.bf16.msra.mxu0 %v3009
    %5067 = vmatprep.subr.bf16.mxu0 %v3016
    %5068 = vmatpush1.bf16.msra.mxu0 %v3015
    %5069 = vmatprep.subr.bf16.mxu0 %v3022
    %5070 = vmatpush1.bf16.msra.mxu0 %v3021
    %5071 = vmatprep.subr.bf16.mxu0 %v3028
    %5072 = vmatpush1.bf16.msra.mxu0 %v3027
    %5073 = vmatprep.subr.bf16.mxu0 %v3034
    %5074 = vmatpush1.bf16.msra.mxu0 %v3033
    %5075 = vmatprep.subr.bf16.mxu0 %v3040
    %5076 = vmatpush1.bf16.msra.mxu0 %v3039
    %5077 = vmatprep.subr.bf16.mxu0 %v3046
    %5078 = vmatpush1.bf16.msra.mxu0 %v3045
    %5079 = vmatprep.mubr.bf16.mxu0 %v5046
    %5080 = vmatmul.mubr.bf16.gmra.mrb[0].mxu0 %v5045
    %v5081 = vpop.f32.mrb[0].mxu0
    %v5082 = vadd.f32 0.0, %v5081
    %v5083 = vpop.f32.mrb[0].mxu0
    %v5084 = vadd.f32 0.0, %v5083
    %v5085 = vpop.f32.mrb[0].mxu0
    %v5086 = vpop.f32.mrb[0].mxu0
    %5087 = vdwg.mxu0
    %5088 = vmatprep.subr.bf16.mxu0 %v2958
    %5089 = vmatpush1.bf16.msra.mxu0 %v2957
    %5090 = vmatprep.subr.bf16.mxu0 %v2964
    %5091 = vmatpush1.bf16.msra.mxu0 %v2963
    %5092 = vmatprep.subr.bf16.mxu0 %v2970
    %5093 = vmatpush1.bf16.msra.mxu0 %v2969
    %5094 = vmatprep.subr.bf16.mxu0 %v2976
    %5095 = vmatpush1.bf16.msra.mxu0 %v2975
    %5096 = vmatprep.subr.bf16.mxu0 %v2982
    %5097 = vmatpush1.bf16.msra.mxu0 %v2981
    %5098 = vmatprep.subr.bf16.mxu0 %v2988
    %5099 = vmatpush1.bf16.msra.mxu0 %v2987
    %5100 = vmatprep.subr.bf16.mxu0 %v2994
    %5101 = vmatpush1.bf16.msra.mxu0 %v2993
    %5102 = vmatprep.subr.bf16.mxu0 %v3000
    %5103 = vmatpush1.bf16.msra.mxu0 %v2999
    %5104 = vmatprep.subr.bf16.mxu0 %v3006
    %5105 = vmatpush1.bf16.msra.mxu0 %v3005
    %5106 = vmatprep.subr.bf16.mxu0 %v3012
    %5107 = vmatpush1.bf16.msra.mxu0 %v3011
    %5108 = vmatprep.subr.bf16.mxu0 %v3018
    %5109 = vmatpush1.bf16.msra.mxu0 %v3017
    %5110 = vmatprep.subr.bf16.mxu0 %v3024
    %5111 = vmatpush1.bf16.msra.mxu0 %v3023
    %5112 = vmatprep.subr.bf16.mxu0 %v3030
    %5113 = vmatpush1.bf16.msra.mxu0 %v3029
    %5114 = vmatprep.subr.bf16.mxu0 %v3036
    %5115 = vmatpush1.bf16.msra.mxu0 %v3035
    %5116 = vmatprep.subr.bf16.mxu0 %v3042
    %5117 = vmatpush1.bf16.msra.mxu0 %v3041
    %5118 = vmatprep.subr.bf16.mxu0 %v3048
    %5119 = vmatpush1.bf16.msra.mxu0 %v3047
    %5120 = vmatprep.mubr.bf16.mxu0 %v5046
    %5121 = vmatmul.mubr.bf16.gmra.mrb[0].mxu0 %v5045
    %v5122 = vpop.f32.mrb[0].mxu0
    %v5123 = vadd.f32 0.0, %v5122
    %v5124 = vpop.f32.mrb[0].mxu0
    %v5125 = vadd.f32 0.0, %v5124
    %v5126 = vpop.f32.mrb[0].mxu0
    %v5127 = vpop.f32.mrb[0].mxu0
    %5128 = vdwg.mxu0
    %5129 = vmatprep.subr.bf16.mxu0 %v2960
    %5130 = vmatpush1.bf16.msra.mxu0 %v2959
    %5131 = vmatprep.subr.bf16.mxu0 %v2966
    %5132 = vmatpush1.bf16.msra.mxu0 %v2965
    %5133 = vmatprep.subr.bf16.mxu0 %v2972
    %5134 = vmatpush1.bf16.msra.mxu0 %v2971
    %5135 = vmatprep.subr.bf16.mxu0 %v2978
    %5136 = vmatpush1.bf16.msra.mxu0 %v2977
    %5137 = vmatprep.subr.bf16.mxu0 %v2984
    %5138 = vmatpush1.bf16.msra.mxu0 %v2983
    %5139 = vmatprep.subr.bf16.mxu0 %v2990
    %5140 = vmatpush1.bf16.msra.mxu0 %v2989
    %5141 = vmatprep.subr.bf16.mxu0 %v2996
    %5142 = vmatpush1.bf16.msra.mxu0 %v2995
    %5143 = vmatprep.subr.bf16.mxu0 %v3002
    %5144 = vmatpush1.bf16.msra.mxu0 %v3001
    %5145 = vmatprep.subr.bf16.mxu0 %v3008
    %5146 = vmatpush1.bf16.msra.mxu0 %v3007
    %5147 = vmatprep.subr.bf16.mxu0 %v3014
    %5148 = vmatpush1.bf16.msra.mxu0 %v3013
    %5149 = vmatprep.subr.bf16.mxu0 %v3020
    %5150 = vmatpush1.bf16.msra.mxu0 %v3019
    %5151 = vmatprep.subr.bf16.mxu0 %v3026
    %5152 = vmatpush1.bf16.msra.mxu0 %v3025
    %5153 = vmatprep.subr.bf16.mxu0 %v3032
    %5154 = vmatpush1.bf16.msra.mxu0 %v3031
    %5155 = vmatprep.subr.bf16.mxu0 %v3038
    %5156 = vmatpush1.bf16.msra.mxu0 %v3037
    %5157 = vmatprep.subr.bf16.mxu0 %v3044
    %5158 = vmatpush1.bf16.msra.mxu0 %v3043
    %5159 = vmatprep.subr.bf16.mxu0 %v3050
    %5160 = vmatpush1.bf16.msra.mxu0 %v3049
    %5161 = vmatprep.mubr.bf16.mxu0 %v5046
    %5162 = vmatmul.mubr.bf16.gmra.mrb[0].mxu0 %v5045
    %v5163 = vpop.f32.mrb[0].mxu0
    %v5164 = vadd.f32 0.0, %v5163
    %v5165 = vpop.f32.mrb[0].mxu0
    %v5166 = vadd.f32 0.0, %v5165
    %v5167 = vpop.f32.mrb[0].mxu0
    %v5168 = vpop.f32.mrb[0].mxu0
    %5169 = vdwg.mxu0
    %v5170 = vadd.f32 %v5039, %v5082
    %v5171 = vadd.f32 %v5040, %v5084
    %v5172 = vxor.u32 %v5170, 2147483648
    %v5173 = vxor.u32 %v5171, 2147483648
    %v5174 = vmul.f32 %v5172, 1.442695
    %v5175 = vpow.pop %v5174
    %v5176 = vmul.f32 %v5173, 1.442695
    %v5177 = vpow.pop %v5176
    %v5178 = vadd.f32 %v5175, 1.0
    %v5179 = vadd.f32 %v5177, 1.0
    %v5180 = vrcp.pop %v5178
    %v5181 = vmul.f32 1.0, %v5180
    %v5182 = vrcp.pop %v5179
    %v5183 = vmul.f32 1.0, %v5182
    %v5184 = vadd.f32 %v5041, %v5123
    %v5185 = vadd.f32 %v5042, %v5125
    %v5186 = vxor.u32 %v5184, 2147483648
    %v5187 = vxor.u32 %v5185, 2147483648
    %v5188 = vmul.f32 %v5186, 1.442695
    %v5189 = vpow.pop %v5188
    %v5190 = vmul.f32 %v5187, 1.442695
    %v5191 = vpow.pop %v5190
    %v5192 = vadd.f32 %v5189, 1.0
    %v5193 = vadd.f32 %v5191, 1.0
    %v5194 = vrcp.pop %v5192
    %v5195 = vmul.f32 1.0, %v5194
    %v5196 = vrcp.pop %v5193
    %v5197 = vmul.f32 1.0, %v5196
    %v5198 = vadd.f32 %v5164, %v1308
    %v5199 = vadd.f32 %v5166, %v1309
    %v5200 = vmul.f32 %v5181, %v5198
    %v5201 = vmul.f32 %v5183, %v5199
    %v5202 = vadd.f32 %v5043, %v5200
    %v5203 = vadd.f32 %v5044, %v5201
    %v5204 = vtanh.pop %v5202
    %v5205 = vtanh.pop %v5203
    %v5206 = vsub.f32 1.0, %v5195
    %v5207 = vsub.f32 1.0, %v5197
    %v5208 = vmul.f32 %v5206, %v5204
    %v5209 = vmul.f32 %v5207, %v5205
    %v5210 = vmul.f32 %v5195, %v5035
    %v5211 = vmul.f32 %v5197, %v5036
    %v5212 = vadd.f32 %v5208, %v5210
    %v5213 = vadd.f32 %v5209, %v5211
    %v5214 = vpack.c.bf16 %v5212, %v5212
    %v5215 = vpack.c.bf16 %v5213, %v5213
    %5216 = vmatprep.subr.bf16.mxu0 %v2076
    %5217 = vmatpush1.bf16.msra.mxu0 %v2075
    %5218 = vmatprep.subr.bf16.mxu0 %v2082
    %5219 = vmatpush1.bf16.msra.mxu0 %v2081
    %5220 = vmatprep.subr.bf16.mxu0 %v2088
    %5221 = vmatpush1.bf16.msra.mxu0 %v2087
    %5222 = vmatprep.subr.bf16.mxu0 %v2094
    %5223 = vmatpush1.bf16.msra.mxu0 %v2093
    %5224 = vmatprep.subr.bf16.mxu0 %v2100
    %5225 = vmatpush1.bf16.msra.mxu0 %v2099
    %5226 = vmatprep.subr.bf16.mxu0 %v2106
    %5227 = vmatpush1.bf16.msra.mxu0 %v2105
    %5228 = vmatprep.subr.bf16.mxu0 %v2112
    %5229 = vmatpush1.bf16.msra.mxu0 %v2111
    %5230 = vmatprep.subr.bf16.mxu0 %v2118
    %5231 = vmatpush1.bf16.msra.mxu0 %v2117
    %5232 = vmatprep.subr.bf16.mxu0 %v2124
    %5233 = vmatpush1.bf16.msra.mxu0 %v2123
    %5234 = vmatprep.subr.bf16.mxu0 %v2130
    %5235 = vmatpush1.bf16.msra.mxu0 %v2129
    %5236 = vmatprep.subr.bf16.mxu0 %v2136
    %5237 = vmatpush1.bf16.msra.mxu0 %v2135
    %5238 = vmatprep.subr.bf16.mxu0 %v2142
    %5239 = vmatpush1.bf16.msra.mxu0 %v2141
    %5240 = vmatprep.subr.bf16.mxu0 %v2148
    %5241 = vmatpush1.bf16.msra.mxu0 %v2147
    %5242 = vmatprep.subr.bf16.mxu0 %v2154
    %5243 = vmatpush1.bf16.msra.mxu0 %v2153
    %5244 = vmatprep.subr.bf16.mxu0 %v2160
    %5245 = vmatpush1.bf16.msra.mxu0 %v2159
    %5246 = vmatprep.subr.bf16.mxu0 %v2166
    %5247 = vmatpush1.bf16.msra.mxu0 %v2165
    %5248 = vmatprep.mubr.bf16.mxu0 %v5215
    %5249 = vmatmul.mubr.bf16.gmra.mrb[0].mxu0 %v5214
    %v5250 = vpop.f32.mrb[0].mxu0
    %v5251 = vadd.f32 %v1312, %v5250
    %v5252 = vpop.f32.mrb[0].mxu0
    %v5253 = vadd.f32 %v1313, %v5252
    %v5254 = vpop.f32.mrb[0].mxu0
    %v5255 = vpop.f32.mrb[0].mxu0
    %5256 = vdwg.mxu0
    %5257 = vmatprep.subr.bf16.mxu0 %v2078
    %5258 = vmatpush1.bf16.msra.mxu0 %v2077
    %5259 = vmatprep.subr.bf16.mxu0 %v2084
    %5260 = vmatpush1.bf16.msra.mxu0 %v2083
    %5261 = vmatprep.subr.bf16.mxu0 %v2090
    %5262 = vmatpush1.bf16.msra.mxu0 %v2089
    %5263 = vmatprep.subr.bf16.mxu0 %v2096
    %5264 = vmatpush1.bf16.msra.mxu0 %v2095
    %5265 = vmatprep.subr.bf16.mxu0 %v2102
    %5266 = vmatpush1.bf16.msra.mxu0 %v2101
    %5267 = vmatprep.subr.bf16.mxu0 %v2108
    %5268 = vmatpush1.bf16.msra.mxu0 %v2107
    %5269 = vmatprep.subr.bf16.mxu0 %v2114
    %5270 = vmatpush1.bf16.msra.mxu0 %v2113
    %5271 = vmatprep.subr.bf16.mxu0 %v2120
    %5272 = vmatpush1.bf16.msra.mxu0 %v2119
    %5273 = vmatprep.subr.bf16.mxu0 %v2126
    %5274 = vmatpush1.bf16.msra.mxu0 %v2125
    %5275 = vmatprep.subr.bf16.mxu0 %v2132
    %5276 = vmatpush1.bf16.msra.mxu0 %v2131
    %5277 = vmatprep.subr.bf16.mxu0 %v2138
    %5278 = vmatpush1.bf16.msra.mxu0 %v2137
    %5279 = vmatprep.subr.bf16.mxu0 %v2144
    %5280 = vmatpush1.bf16.msra.mxu0 %v2143
    %5281 = vmatprep.subr.bf16.mxu0 %v2150
    %5282 = vmatpush1.bf16.msra.mxu0 %v2149
    %5283 = vmatprep.subr.bf16.mxu0 %v2156
    %5284 = vmatpush1.bf16.msra.mxu0 %v2155
    %5285 = vmatprep.subr.bf16.mxu0 %v2162
    %5286 = vmatpush1.bf16.msra.mxu0 %v2161
    %5287 = vmatprep.subr.bf16.mxu0 %v2168
    %5288 = vmatpush1.bf16.msra.mxu0 %v2167
    %5289 = vmatprep.mubr.bf16.mxu0 %v5215
    %5290 = vmatmul.mubr.bf16.gmra.mrb[0].mxu0 %v5214
    %v5291 = vpop.f32.mrb[0].mxu0
    %v5292 = vadd.f32 %v1314, %v5291
    %v5293 = vpop.f32.mrb[0].mxu0
    %v5294 = vadd.f32 %v1315, %v5293
    %v5295 = vpop.f32.mrb[0].mxu0
    %v5296 = vpop.f32.mrb[0].mxu0
    %5297 = vdwg.mxu0
    %5298 = vmatprep.subr.bf16.mxu0 %v2080
    %5299 = vmatpush1.bf16.msra.mxu0 %v2079
    %5300 = vmatprep.subr.bf16.mxu0 %v2086
    %5301 = vmatpush1.bf16.msra.mxu0 %v2085
    %5302 = vmatprep.subr.bf16.mxu0 %v2092
    %5303 = vmatpush1.bf16.msra.mxu0 %v2091
    %5304 = vmatprep.subr.bf16.mxu0 %v2098
    %5305 = vmatpush1.bf16.msra.mxu0 %v2097
    %5306 = vmatprep.subr.bf16.mxu0 %v2104
    %5307 = vmatpush1.bf16.msra.mxu0 %v2103
    %5308 = vmatprep.subr.bf16.mxu0 %v2110
    %5309 = vmatpush1.bf16.msra.mxu0 %v2109
    %5310 = vmatprep.subr.bf16.mxu0 %v2116
    %5311 = vmatpush1.bf16.msra.mxu0 %v2115
    %5312 = vmatprep.subr.bf16.mxu0 %v2122
    %5313 = vmatpush1.bf16.msra.mxu0 %v2121
    %5314 = vmatprep.subr.bf16.mxu0 %v2128
    %5315 = vmatpush1.bf16.msra.mxu0 %v2127
    %5316 = vmatprep.subr.bf16.mxu0 %v2134
    %5317 = vmatpush1.bf16.msra.mxu0 %v2133
    %5318 = vmatprep.subr.bf16.mxu0 %v2140
    %5319 = vmatpush1.bf16.msra.mxu0 %v2139
    %5320 = vmatprep.subr.bf16.mxu0 %v2146
    %5321 = vmatpush1.bf16.msra.mxu0 %v2145
    %5322 = vmatprep.subr.bf16.mxu0 %v2152
    %5323 = vmatpush1.bf16.msra.mxu0 %v2151
    %5324 = vmatprep.subr.bf16.mxu0 %v2158
    %5325 = vmatpush1.bf16.msra.mxu0 %v2157
    %5326 = vmatprep.subr.bf16.mxu0 %v2164
    %5327 = vmatpush1.bf16.msra.mxu0 %v2163
    %5328 = vmatprep.subr.bf16.mxu0 %v2170
    %5329 = vmatpush1.bf16.msra.mxu0 %v2169
    %5330 = vmatprep.mubr.bf16.mxu0 %v5215
    %5331 = vmatmul.mubr.bf16.gmra.mrb[0].mxu0 %v5214
    %v5332 = vpop.f32.mrb[0].mxu0
    %v5333 = vadd.f32 %v1316, %v5332
    %v5334 = vpop.f32.mrb[0].mxu0
    %v5335 = vadd.f32 %v1317, %v5334
    %v5336 = vpop.f32.mrb[0].mxu0
    %v5337 = vpop.f32.mrb[0].mxu0
    %5338 = vdwg.mxu0
    %v5339 = vpack.c.bf16 %v5037, %v5037
    %v5340 = vpack.c.bf16 %v5038, %v5038
    %5341 = vmatprep.subr.bf16.mxu0 %v2295
    %5342 = vmatpush1.bf16.msra.mxu0 %v2294
    %5343 = vmatprep.subr.bf16.mxu0 %v2301
    %5344 = vmatpush1.bf16.msra.mxu0 %v2300
    %5345 = vmatprep.subr.bf16.mxu0 %v2307
    %5346 = vmatpush1.bf16.msra.mxu0 %v2306
    %5347 = vmatprep.subr.bf16.mxu0 %v2313
    %5348 = vmatpush1.bf16.msra.mxu0 %v2312
    %5349 = vmatprep.subr.bf16.mxu0 %v2319
    %5350 = vmatpush1.bf16.msra.mxu0 %v2318
    %5351 = vmatprep.subr.bf16.mxu0 %v2325
    %5352 = vmatpush1.bf16.msra.mxu0 %v2324
    %5353 = vmatprep.subr.bf16.mxu0 %v2331
    %5354 = vmatpush1.bf16.msra.mxu0 %v2330
    %5355 = vmatprep.subr.bf16.mxu0 %v2337
    %5356 = vmatpush1.bf16.msra.mxu0 %v2336
    %5357 = vmatprep.subr.bf16.mxu0 %v2343
    %5358 = vmatpush1.bf16.msra.mxu0 %v2342
    %5359 = vmatprep.subr.bf16.mxu0 %v2349
    %5360 = vmatpush1.bf16.msra.mxu0 %v2348
    %5361 = vmatprep.subr.bf16.mxu0 %v2355
    %5362 = vmatpush1.bf16.msra.mxu0 %v2354
    %5363 = vmatprep.subr.bf16.mxu0 %v2361
    %5364 = vmatpush1.bf16.msra.mxu0 %v2360
    %5365 = vmatprep.subr.bf16.mxu0 %v2367
    %5366 = vmatpush1.bf16.msra.mxu0 %v2366
    %5367 = vmatprep.subr.bf16.mxu0 %v2373
    %5368 = vmatpush1.bf16.msra.mxu0 %v2372
    %5369 = vmatprep.subr.bf16.mxu0 %v2379
    %5370 = vmatpush1.bf16.msra.mxu0 %v2378
    %5371 = vmatprep.subr.bf16.mxu0 %v2385
    %5372 = vmatpush1.bf16.msra.mxu0 %v2384
    %5373 = vmatprep.mubr.bf16.mxu0 %v5340
    %5374 = vmatmul.mubr.bf16.gmra.mrb[0].mxu0 %v5339
    %v5375 = vpop.f32.mrb[0].mxu0
    %v5376 = vadd.f32 0.0, %v5375
    %v5377 = vpop.f32.mrb[0].mxu0
    %v5378 = vadd.f32 0.0, %v5377
    %v5379 = vpop.f32.mrb[0].mxu0
    %v5380 = vpop.f32.mrb[0].mxu0
    %5381 = vdwg.mxu0
    %5382 = vmatprep.subr.bf16.mxu0 %v2297
    %5383 = vmatpush1.bf16.msra.mxu0 %v2296
    %5384 = vmatprep.subr.bf16.mxu0 %v2303
    %5385 = vmatpush1.bf16.msra.mxu0 %v2302
    %5386 = vmatprep.subr.bf16.mxu0 %v2309
    %5387 = vmatpush1.bf16.msra.mxu0 %v2308
    %5388 = vmatprep.subr.bf16.mxu0 %v2315
    %5389 = vmatpush1.bf16.msra.mxu0 %v2314
    %5390 = vmatprep.subr.bf16.mxu0 %v2321
    %5391 = vmatpush1.bf16.msra.mxu0 %v2320
    %5392 = vmatprep.subr.bf16.mxu0 %v2327
    %5393 = vmatpush1.bf16.msra.mxu0 %v2326
    %5394 = vmatprep.subr.bf16.mxu0 %v2333
    %5395 = vmatpush1.bf16.msra.mxu0 %v2332
    %5396 = vmatprep.subr.bf16.mxu0 %v2339
    %5397 = vmatpush1.bf16.msra.mxu0 %v2338
    %5398 = vmatprep.subr.bf16.mxu0 %v2345
    %5399 = vmatpush1.bf16.msra.mxu0 %v2344
    %5400 = vmatprep.subr.bf16.mxu0 %v2351
    %5401 = vmatpush1.bf16.msra.mxu0 %v2350
    %5402 = vmatprep.subr.bf16.mxu0 %v2357
    %5403 = vmatpush1.bf16.msra.mxu0 %v2356
    %5404 = vmatprep.subr.bf16.mxu0 %v2363
    %5405 = vmatpush1.bf16.msra.mxu0 %v2362
    %5406 = vmatprep.subr.bf16.mxu0 %v2369
    %5407 = vmatpush1.bf16.msra.mxu0 %v2368
    %5408 = vmatprep.subr.bf16.mxu0 %v2375
    %5409 = vmatpush1.bf16.msra.mxu0 %v2374
    %5410 = vmatprep.subr.bf16.mxu0 %v2381
    %5411 = vmatpush1.bf16.msra.mxu0 %v2380
    %5412 = vmatprep.subr.bf16.mxu0 %v2387
    %5413 = vmatpush1.bf16.msra.mxu0 %v2386
    %5414 = vmatprep.mubr.bf16.mxu0 %v5340
    %5415 = vmatmul.mubr.bf16.gmra.mrb[0].mxu0 %v5339
    %v5416 = vpop.f32.mrb[0].mxu0
    %v5417 = vadd.f32 0.0, %v5416
    %v5418 = vpop.f32.mrb[0].mxu0
    %v5419 = vadd.f32 0.0, %v5418
    %v5420 = vpop.f32.mrb[0].mxu0
    %v5421 = vpop.f32.mrb[0].mxu0
    %5422 = vdwg.mxu0
    %5423 = vmatprep.subr.bf16.mxu0 %v2299
    %5424 = vmatpush1.bf16.msra.mxu0 %v2298
    %5425 = vmatprep.subr.bf16.mxu0 %v2305
    %5426 = vmatpush1.bf16.msra.mxu0 %v2304
    %5427 = vmatprep.subr.bf16.mxu0 %v2311
    %5428 = vmatpush1.bf16.msra.mxu0 %v2310
    %5429 = vmatprep.subr.bf16.mxu0 %v2317
    %5430 = vmatpush1.bf16.msra.mxu0 %v2316
    %5431 = vmatprep.subr.bf16.mxu0 %v2323
    %5432 = vmatpush1.bf16.msra.mxu0 %v2322
    %5433 = vmatprep.subr.bf16.mxu0 %v2329
    %5434 = vmatpush1.bf16.msra.mxu0 %v2328
    %5435 = vmatprep.subr.bf16.mxu0 %v2335
    %5436 = vmatpush1.bf16.msra.mxu0 %v2334
    %5437 = vmatprep.subr.bf16.mxu0 %v2341
    %5438 = vmatpush1.bf16.msra.mxu0 %v2340
    %5439 = vmatprep.subr.bf16.mxu0 %v2347
    %5440 = vmatpush1.bf16.msra.mxu0 %v2346
    %5441 = vmatprep.subr.bf16.mxu0 %v2353
    %5442 = vmatpush1.bf16.msra.mxu0 %v2352
    %5443 = vmatprep.subr.bf16.mxu0 %v2359
    %5444 = vmatpush1.bf16.msra.mxu0 %v2358
    %5445 = vmatprep.subr.bf16.mxu0 %v2365
    %5446 = vmatpush1.bf16.msra.mxu0 %v2364
    %5447 = vmatprep.subr.bf16.mxu0 %v2371
    %5448 = vmatpush1.bf16.msra.mxu0 %v2370
    %5449 = vmatprep.subr.bf16.mxu0 %v2377
    %5450 = vmatpush1.bf16.msra.mxu0 %v2376
    %5451 = vmatprep.subr.bf16.mxu0 %v2383
    %5452 = vmatpush1.bf16.msra.mxu0 %v2382
    %5453 = vmatprep.subr.bf16.mxu0 %v2389
    %5454 = vmatpush1.bf16.msra.mxu0 %v2388
    %5455 = vmatprep.mubr.bf16.mxu0 %v5340
    %5456 = vmatmul.mubr.bf16.gmra.mrb[0].mxu0 %v5339
    %v5457 = vpop.f32.mrb[0].mxu0
    %v5458 = vadd.f32 0.0, %v5457
    %v5459 = vpop.f32.mrb[0].mxu0
    %v5460 = vadd.f32 0.0, %v5459
    %v5461 = vpop.f32.mrb[0].mxu0
    %v5462 = vpop.f32.mrb[0].mxu0
    %5463 = vdwg.mxu0
    %v5464 = vadd.f32 %v5251, %v5376
    %v5465 = vadd.f32 %v5253, %v5378
    %v5466 = vxor.u32 %v5464, 2147483648
    %v5467 = vxor.u32 %v5465, 2147483648
    %v5468 = vmul.f32 %v5466, 1.442695
    %v5469 = vpow.pop %v5468
    %v5470 = vmul.f32 %v5467, 1.442695
    %v5471 = vpow.pop %v5470
    %v5472 = vadd.f32 %v5469, 1.0
    %v5473 = vadd.f32 %v5471, 1.0
    %v5474 = vrcp.pop %v5472
    %v5475 = vmul.f32 1.0, %v5474
    %v5476 = vrcp.pop %v5473
    %v5477 = vmul.f32 1.0, %v5476
    %v5478 = vadd.f32 %v5292, %v5417
    %v5479 = vadd.f32 %v5294, %v5419
    %v5480 = vxor.u32 %v5478, 2147483648
    %v5481 = vxor.u32 %v5479, 2147483648
    %v5482 = vmul.f32 %v5480, 1.442695
    %v5483 = vpow.pop %v5482
    %v5484 = vmul.f32 %v5481, 1.442695
    %v5485 = vpow.pop %v5484
    %v5486 = vadd.f32 %v5483, 1.0
    %v5487 = vadd.f32 %v5485, 1.0
    %v5488 = vrcp.pop %v5486
    %v5489 = vmul.f32 1.0, %v5488
    %v5490 = vrcp.pop %v5487
    %v5491 = vmul.f32 1.0, %v5490
    %v5492 = vadd.f32 %v5458, %v1310
    %v5493 = vadd.f32 %v5460, %v1311
    %v5494 = vmul.f32 %v5475, %v5492
    %v5495 = vmul.f32 %v5477, %v5493
    %v5496 = vadd.f32 %v5333, %v5494
    %v5497 = vadd.f32 %v5335, %v5495
    %v5498 = vtanh.pop %v5496
    %v5499 = vtanh.pop %v5497
    %v5500 = vsub.f32 1.0, %v5489
    %v5501 = vsub.f32 1.0, %v5491
    %v5502 = vmul.f32 %v5500, %v5498
    %v5503 = vmul.f32 %v5501, %v5499
    %v5504 = vmul.f32 %v5489, %v5037
    %v5505 = vmul.f32 %v5491, %v5038
    %v5506 = vadd.f32 %v5502, %v5504
    %v5507 = vadd.f32 %v5503, %v5505
    %vm5508 = vcmp.gt.s32.totalorder %v1306, 5
    %vm5509 = vcmp.gt.s32.totalorder %v1307, 5
    %v5510 = vsel %vm5508, %v5212, %v5035
    %v5511 = vsel %vm5509, %v5213, %v5036
    %v5512 = vsel %vm5508, %v5506, %v5037
    %v5513 = vsel %vm5509, %v5507, %v5038
    %v5514 = vld [vmem:[#allocation2 + $0x120] sm:$0xff]
    %v5515 = vld [vmem:[#allocation2 + $0x128] sm:$0xff]
    %v5516 = vld [vmem:[#allocation2 + $0x130] sm:$0xff]
    %v5517 = vld [vmem:[#allocation2 + $0x138] sm:$0xff]
    %v5518 = vld [vmem:[#allocation2 + $0x140] sm:$0xff]
    %v5519 = vld [vmem:[#allocation2 + $0x148] sm:$0xff]
    %v5520 = vpack.c.bf16 %v5510, %v5510
    %v5521 = vpack.c.bf16 %v5511, %v5511
    %5522 = vmatprep.subr.bf16.mxu0 %v2956
    %5523 = vmatpush1.bf16.msra.mxu0 %v2955
    %5524 = vmatprep.subr.bf16.mxu0 %v2962
    %5525 = vmatpush1.bf16.msra.mxu0 %v2961
    %5526 = vmatprep.subr.bf16.mxu0 %v2968
    %5527 = vmatpush1.bf16.msra.mxu0 %v2967
    %5528 = vmatprep.subr.bf16.mxu0 %v2974
    %5529 = vmatpush1.bf16.msra.mxu0 %v2973
    %5530 = vmatprep.subr.bf16.mxu0 %v2980
    %5531 = vmatpush1.bf16.msra.mxu0 %v2979
    %5532 = vmatprep.subr.bf16.mxu0 %v2986
    %5533 = vmatpush1.bf16.msra.mxu0 %v2985
    %5534 = vmatprep.subr.bf16.mxu0 %v2992
    %5535 = vmatpush1.bf16.msra.mxu0 %v2991
    %5536 = vmatprep.subr.bf16.mxu0 %v2998
    %5537 = vmatpush1.bf16.msra.mxu0 %v2997
    %5538 = vmatprep.subr.bf16.mxu0 %v3004
    %5539 = vmatpush1.bf16.msra.mxu0 %v3003
    %5540 = vmatprep.subr.bf16.mxu0 %v3010
    %5541 = vmatpush1.bf16.msra.mxu0 %v3009
    %5542 = vmatprep.subr.bf16.mxu0 %v3016
    %5543 = vmatpush1.bf16.msra.mxu0 %v3015
    %5544 = vmatprep.subr.bf16.mxu0 %v3022
    %5545 = vmatpush1.bf16.msra.mxu0 %v3021
    %5546 = vmatprep.subr.bf16.mxu0 %v3028
    %5547 = vmatpush1.bf16.msra.mxu0 %v3027
    %5548 = vmatprep.subr.bf16.mxu0 %v3034
    %5549 = vmatpush1.bf16.msra.mxu0 %v3033
    %5550 = vmatprep.subr.bf16.mxu0 %v3040
    %5551 = vmatpush1.bf16.msra.mxu0 %v3039
    %5552 = vmatprep.subr.bf16.mxu0 %v3046
    %5553 = vmatpush1.bf16.msra.mxu0 %v3045
    %5554 = vmatprep.mubr.bf16.mxu0 %v5521
    %5555 = vmatmul.mubr.bf16.gmra.mrb[0].mxu0 %v5520
    %v5556 = vpop.f32.mrb[0].mxu0
    %v5557 = vadd.f32 0.0, %v5556
    %v5558 = vpop.f32.mrb[0].mxu0
    %v5559 = vadd.f32 0.0, %v5558
    %v5560 = vpop.f32.mrb[0].mxu0
    %v5561 = vpop.f32.mrb[0].mxu0
    %5562 = vdwg.mxu0
    %5563 = vmatprep.subr.bf16.mxu0 %v2958
    %5564 = vmatpush1.bf16.msra.mxu0 %v2957
    %5565 = vmatprep.subr.bf16.mxu0 %v2964
    %5566 = vmatpush1.bf16.msra.mxu0 %v2963
    %5567 = vmatprep.subr.bf16.mxu0 %v2970
    %5568 = vmatpush1.bf16.msra.mxu0 %v2969
    %5569 = vmatprep.subr.bf16.mxu0 %v2976
    %5570 = vmatpush1.bf16.msra.mxu0 %v2975
    %5571 = vmatprep.subr.bf16.mxu0 %v2982
    %5572 = vmatpush1.bf16.msra.mxu0 %v2981
    %5573 = vmatprep.subr.bf16.mxu0 %v2988
    %5574 = vmatpush1.bf16.msra.mxu0 %v2987
    %5575 = vmatprep.subr.bf16.mxu0 %v2994
    %5576 = vmatpush1.bf16.msra.mxu0 %v2993
    %5577 = vmatprep.subr.bf16.mxu0 %v3000
    %5578 = vmatpush1.bf16.msra.mxu0 %v2999
    %5579 = vmatprep.subr.bf16.mxu0 %v3006
    %5580 = vmatpush1.bf16.msra.mxu0 %v3005
    %5581 = vmatprep.subr.bf16.mxu0 %v3012
    %5582 = vmatpush1.bf16.msra.mxu0 %v3011
    %5583 = vmatprep.subr.bf16.mxu0 %v3018
    %5584 = vmatpush1.bf16.msra.mxu0 %v3017
    %5585 = vmatprep.subr.bf16.mxu0 %v3024
    %5586 = vmatpush1.bf16.msra.mxu0 %v3023
    %5587 = vmatprep.subr.bf16.mxu0 %v3030
    %5588 = vmatpush1.bf16.msra.mxu0 %v3029
    %5589 = vmatprep.subr.bf16.mxu0 %v3036
    %5590 = vmatpush1.bf16.msra.mxu0 %v3035
    %5591 = vmatprep.subr.bf16.mxu0 %v3042
    %5592 = vmatpush1.bf16.msra.mxu0 %v3041
    %5593 = vmatprep.subr.bf16.mxu0 %v3048
    %5594 = vmatpush1.bf16.msra.mxu0 %v3047
    %5595 = vmatprep.mubr.bf16.mxu0 %v5521
    %5596 = vmatmul.mubr.bf16.gmra.mrb[0].mxu0 %v5520
    %v5597 = vpop.f32.mrb[0].mxu0
    %v5598 = vadd.f32 0.0, %v5597
    %v5599 = vpop.f32.mrb[0].mxu0
    %v5600 = vadd.f32 0.0, %v5599
    %v5601 = vpop.f32.mrb[0].mxu0
    %v5602 = vpop.f32.mrb[0].mxu0
    %5603 = vdwg.mxu0
    %5604 = vmatprep.subr.bf16.mxu0 %v2960
    %5605 = vmatpush1.bf16.msra.mxu0 %v2959
    %5606 = vmatprep.subr.bf16.mxu0 %v2966
    %5607 = vmatpush1.bf16.msra.mxu0 %v2965
    %5608 = vmatprep.subr.bf16.mxu0 %v2972
    %5609 = vmatpush1.bf16.msra.mxu0 %v2971
    %5610 = vmatprep.subr.bf16.mxu0 %v2978
    %5611 = vmatpush1.bf16.msra.mxu0 %v2977
    %5612 = vmatprep.subr.bf16.mxu0 %v2984
    %5613 = vmatpush1.bf16.msra.mxu0 %v2983
    %5614 = vmatprep.subr.bf16.mxu0 %v2990
    %5615 = vmatpush1.bf16.msra.mxu0 %v2989
    %5616 = vmatprep.subr.bf16.mxu0 %v2996
    %5617 = vmatpush1.bf16.msra.mxu0 %v2995
    %5618 = vmatprep.subr.bf16.mxu0 %v3002
    %5619 = vmatpush1.bf16.msra.mxu0 %v3001
    %5620 = vmatprep.subr.bf16.mxu0 %v3008
    %5621 = vmatpush1.bf16.msra.mxu0 %v3007
    %5622 = vmatprep.subr.bf16.mxu0 %v3014
    %5623 = vmatpush1.bf16.msra.mxu0 %v3013
    %5624 = vmatprep.subr.bf16.mxu0 %v3020
    %5625 = vmatpush1.bf16.msra.mxu0 %v3019
    %5626 = vmatprep.subr.bf16.mxu0 %v3026
    %5627 = vmatpush1.bf16.msra.mxu0 %v3025
    %5628 = vmatprep.subr.bf16.mxu0 %v3032
    %5629 = vmatpush1.bf16.msra.mxu0 %v3031
    %5630 = vmatprep.subr.bf16.mxu0 %v3038
    %5631 = vmatpush1.bf16.msra.mxu0 %v3037
    %5632 = vmatprep.subr.bf16.mxu0 %v3044
    %5633 = vmatpush1.bf16.msra.mxu0 %v3043
    %5634 = vmatprep.subr.bf16.mxu0 %v3050
    %5635 = vmatpush1.bf16.msra.mxu0 %v3049
    %5636 = vmatprep.mubr.bf16.mxu0 %v5521
    %5637 = vmatmul.mubr.bf16.gmra.mrb[0].mxu0 %v5520
    %v5638 = vpop.f32.mrb[0].mxu0
    %v5639 = vadd.f32 0.0, %v5638
    %v5640 = vpop.f32.mrb[0].mxu0
    %v5641 = vadd.f32 0.0, %v5640
    %v5642 = vpop.f32.mrb[0].mxu0
    %v5643 = vpop.f32.mrb[0].mxu0
    %5644 = vdwg.mxu0
    %v5645 = vadd.f32 %v5514, %v5557
    %v5646 = vadd.f32 %v5515, %v5559
    %v5647 = vxor.u32 %v5645, 2147483648
    %v5648 = vxor.u32 %v5646, 2147483648
    %v5649 = vmul.f32 %v5647, 1.442695
    %v5650 = vpow.pop %v5649
    %v5651 = vmul.f32 %v5648, 1.442695
    %v5652 = vpow.pop %v5651
    %v5653 = vadd.f32 %v5650, 1.0
    %v5654 = vadd.f32 %v5652, 1.0
    %v5655 = vrcp.pop %v5653
    %v5656 = vmul.f32 1.0, %v5655
    %v5657 = vrcp.pop %v5654
    %v5658 = vmul.f32 1.0, %v5657
    %v5659 = vadd.f32 %v5516, %v5598
    %v5660 = vadd.f32 %v5517, %v5600
    %v5661 = vxor.u32 %v5659, 2147483648
    %v5662 = vxor.u32 %v5660, 2147483648
    %v5663 = vmul.f32 %v5661, 1.442695
    %v5664 = vpow.pop %v5663
    %v5665 = vmul.f32 %v5662, 1.442695
    %v5666 = vpow.pop %v5665
    %v5667 = vadd.f32 %v5664, 1.0
    %v5668 = vadd.f32 %v5666, 1.0
    %v5669 = vrcp.pop %v5667
    %v5670 = vmul.f32 1.0, %v5669
    %v5671 = vrcp.pop %v5668
    %v5672 = vmul.f32 1.0, %v5671
    %v5673 = vadd.f32 %v5639, %v1308
    %v5674 = vadd.f32 %v5641, %v1309
    %v5675 = vmul.f32 %v5656, %v5673
    %v5676 = vmul.f32 %v5658, %v5674
    %v5677 = vadd.f32 %v5518, %v5675
    %v5678 = vadd.f32 %v5519, %v5676
    %v5679 = vtanh.pop %v5677
    %v5680 = vtanh.pop %v5678
    %v5681 = vsub.f32 1.0, %v5670
    %v5682 = vsub.f32 1.0, %v5672
    %v5683 = vmul.f32 %v5681, %v5679
    %v5684 = vmul.f32 %v5682, %v5680
    %v5685 = vmul.f32 %v5670, %v5510
    %v5686 = vmul.f32 %v5672, %v5511
    %v5687 = vadd.f32 %v5683, %v5685
    %v5688 = vadd.f32 %v5684, %v5686
    %v5689 = vpack.c.bf16 %v5687, %v5687
    %v5690 = vpack.c.bf16 %v5688, %v5688
    %5691 = vmatprep.subr.bf16.mxu0 %v2076
    %5692 = vmatpush1.bf16.msra.mxu0 %v2075
    %5693 = vmatprep.subr.bf16.mxu0 %v2082
    %5694 = vmatpush1.bf16.msra.mxu0 %v2081
    %5695 = vmatprep.subr.bf16.mxu0 %v2088
    %5696 = vmatpush1.bf16.msra.mxu0 %v2087
    %5697 = vmatprep.subr.bf16.mxu0 %v2094
    %5698 = vmatpush1.bf16.msra.mxu0 %v2093
    %5699 = vmatprep.subr.bf16.mxu0 %v2100
    %5700 = vmatpush1.bf16.msra.mxu0 %v2099
    %5701 = vmatprep.subr.bf16.mxu0 %v2106
    %5702 = vmatpush1.bf16.msra.mxu0 %v2105
    %5703 = vmatprep.subr.bf16.mxu0 %v2112
    %5704 = vmatpush1.bf16.msra.mxu0 %v2111
    %5705 = vmatprep.subr.bf16.mxu0 %v2118
    %5706 = vmatpush1.bf16.msra.mxu0 %v2117
    %5707 = vmatprep.subr.bf16.mxu0 %v2124
    %5708 = vmatpush1.bf16.msra.mxu0 %v2123
    %5709 = vmatprep.subr.bf16.mxu0 %v2130
    %5710 = vmatpush1.bf16.msra.mxu0 %v2129
    %5711 = vmatprep.subr.bf16.mxu0 %v2136
    %5712 = vmatpush1.bf16.msra.mxu0 %v2135
    %5713 = vmatprep.subr.bf16.mxu0 %v2142
    %5714 = vmatpush1.bf16.msra.mxu0 %v2141
    %5715 = vmatprep.subr.bf16.mxu0 %v2148
    %5716 = vmatpush1.bf16.msra.mxu0 %v2147
    %5717 = vmatprep.subr.bf16.mxu0 %v2154
    %5718 = vmatpush1.bf16.msra.mxu0 %v2153
    %5719 = vmatprep.subr.bf16.mxu0 %v2160
    %5720 = vmatpush1.bf16.msra.mxu0 %v2159
    %5721 = vmatprep.subr.bf16.mxu0 %v2166
    %5722 = vmatpush1.bf16.msra.mxu0 %v2165
    %5723 = vmatprep.mubr.bf16.mxu0 %v5690
    %5724 = vmatmul.mubr.bf16.gmra.mrb[0].mxu0 %v5689
    %v5725 = vpop.f32.mrb[0].mxu0
    %v5726 = vadd.f32 %v1312, %v5725
    %v5727 = vpop.f32.mrb[0].mxu0
    %v5728 = vadd.f32 %v1313, %v5727
    %v5729 = vpop.f32.mrb[0].mxu0
    %v5730 = vpop.f32.mrb[0].mxu0
    %5731 = vdwg.mxu0
    %5732 = vmatprep.subr.bf16.mxu0 %v2078
    %5733 = vmatpush1.bf16.msra.mxu0 %v2077
    %5734 = vmatprep.subr.bf16.mxu0 %v2084
    %5735 = vmatpush1.bf16.msra.mxu0 %v2083
    %5736 = vmatprep.subr.bf16.mxu0 %v2090
    %5737 = vmatpush1.bf16.msra.mxu0 %v2089
    %5738 = vmatprep.subr.bf16.mxu0 %v2096
    %5739 = vmatpush1.bf16.msra.mxu0 %v2095
    %5740 = vmatprep.subr.bf16.mxu0 %v2102
    %5741 = vmatpush1.bf16.msra.mxu0 %v2101
    %5742 = vmatprep.subr.bf16.mxu0 %v2108
    %5743 = vmatpush1.bf16.msra.mxu0 %v2107
    %5744 = vmatprep.subr.bf16.mxu0 %v2114
    %5745 = vmatpush1.bf16.msra.mxu0 %v2113
    %5746 = vmatprep.subr.bf16.mxu0 %v2120
    %5747 = vmatpush1.bf16.msra.mxu0 %v2119
    %5748 = vmatprep.subr.bf16.mxu0 %v2126
    %5749 = vmatpush1.bf16.msra.mxu0 %v2125
    %5750 = vmatprep.subr.bf16.mxu0 %v2132
    %5751 = vmatpush1.bf16.msra.mxu0 %v2131
    %5752 = vmatprep.subr.bf16.mxu0 %v2138
    %5753 = vmatpush1.bf16.msra.mxu0 %v2137
    %5754 = vmatprep.subr.bf16.mxu0 %v2144
    %5755 = vmatpush1.bf16.msra.mxu0 %v2143
    %5756 = vmatprep.subr.bf16.mxu0 %v2150
    %5757 = vmatpush1.bf16.msra.mxu0 %v2149
    %5758 = vmatprep.subr.bf16.mxu0 %v2156
    %5759 = vmatpush1.bf16.msra.mxu0 %v2155
    %5760 = vmatprep.subr.bf16.mxu0 %v2162
    %5761 = vmatpush1.bf16.msra.mxu0 %v2161
    %5762 = vmatprep.subr.bf16.mxu0 %v2168
    %5763 = vmatpush1.bf16.msra.mxu0 %v2167
    %5764 = vmatprep.mubr.bf16.mxu0 %v5690
    %5765 = vmatmul.mubr.bf16.gmra.mrb[0].mxu0 %v5689
    %v5766 = vpop.f32.mrb[0].mxu0
    %v5767 = vadd.f32 %v1314, %v5766
    %v5768 = vpop.f32.mrb[0].mxu0
    %v5769 = vadd.f32 %v1315, %v5768
    %v5770 = vpop.f32.mrb[0].mxu0
    %v5771 = vpop.f32.mrb[0].mxu0
    %5772 = vdwg.mxu0
    %5773 = vmatprep.subr.bf16.mxu0 %v2080
    %5774 = vmatpush1.bf16.msra.mxu0 %v2079
    %5775 = vmatprep.subr.bf16.mxu0 %v2086
    %5776 = vmatpush1.bf16.msra.mxu0 %v2085
    %5777 = vmatprep.subr.bf16.mxu0 %v2092
    %5778 = vmatpush1.bf16.msra.mxu0 %v2091
    %5779 = vmatprep.subr.bf16.mxu0 %v2098
    %5780 = vmatpush1.bf16.msra.mxu0 %v2097
    %5781 = vmatprep.subr.bf16.mxu0 %v2104
    %5782 = vmatpush1.bf16.msra.mxu0 %v2103
    %5783 = vmatprep.subr.bf16.mxu0 %v2110
    %5784 = vmatpush1.bf16.msra.mxu0 %v2109
    %5785 = vmatprep.subr.bf16.mxu0 %v2116
    %5786 = vmatpush1.bf16.msra.mxu0 %v2115
    %5787 = vmatprep.subr.bf16.mxu0 %v2122
    %5788 = vmatpush1.bf16.msra.mxu0 %v2121
    %5789 = vmatprep.subr.bf16.mxu0 %v2128
    %5790 = vmatpush1.bf16.msra.mxu0 %v2127
    %5791 = vmatprep.subr.bf16.mxu0 %v2134
    %5792 = vmatpush1.bf16.msra.mxu0 %v2133
    %5793 = vmatprep.subr.bf16.mxu0 %v2140
    %5794 = vmatpush1.bf16.msra.mxu0 %v2139
    %5795 = vmatprep.subr.bf16.mxu0 %v2146
    %5796 = vmatpush1.bf16.msra.mxu0 %v2145
    %5797 = vmatprep.subr.bf16.mxu0 %v2152
    %5798 = vmatpush1.bf16.msra.mxu0 %v2151
    %5799 = vmatprep.subr.bf16.mxu0 %v2158
    %5800 = vmatpush1.bf16.msra.mxu0 %v2157
    %5801 = vmatprep.subr.bf16.mxu0 %v2164
    %5802 = vmatpush1.bf16.msra.mxu0 %v2163
    %5803 = vmatprep.subr.bf16.mxu0 %v2170
    %5804 = vmatpush1.bf16.msra.mxu0 %v2169
    %5805 = vmatprep.mubr.bf16.mxu0 %v5690
    %5806 = vmatmul.mubr.bf16.gmra.mrb[0].mxu0 %v5689
    %v5807 = vpop.f32.mrb[0].mxu0
    %v5808 = vadd.f32 %v1316, %v5807
    %v5809 = vpop.f32.mrb[0].mxu0
    %v5810 = vadd.f32 %v1317, %v5809
    %v5811 = vpop.f32.mrb[0].mxu0
    %v5812 = vpop.f32.mrb[0].mxu0
    %5813 = vdwg.mxu0
    %v5814 = vpack.c.bf16 %v5512, %v5512
    %v5815 = vpack.c.bf16 %v5513, %v5513
    %5816 = vmatprep.subr.bf16.mxu0 %v2295
    %5817 = vmatpush1.bf16.msra.mxu0 %v2294
    %5818 = vmatprep.subr.bf16.mxu0 %v2301
    %5819 = vmatpush1.bf16.msra.mxu0 %v2300
    %5820 = vmatprep.subr.bf16.mxu0 %v2307
    %5821 = vmatpush1.bf16.msra.mxu0 %v2306
    %5822 = vmatprep.subr.bf16.mxu0 %v2313
    %5823 = vmatpush1.bf16.msra.mxu0 %v2312
    %5824 = vmatprep.subr.bf16.mxu0 %v2319
    %5825 = vmatpush1.bf16.msra.mxu0 %v2318
    %5826 = vmatprep.subr.bf16.mxu0 %v2325
    %5827 = vmatpush1.bf16.msra.mxu0 %v2324
    %5828 = vmatprep.subr.bf16.mxu0 %v2331
    %5829 = vmatpush1.bf16.msra.mxu0 %v2330
    %5830 = vmatprep.subr.bf16.mxu0 %v2337
    %5831 = vmatpush1.bf16.msra.mxu0 %v2336
    %5832 = vmatprep.subr.bf16.mxu0 %v2343
    %5833 = vmatpush1.bf16.msra.mxu0 %v2342
    %5834 = vmatprep.subr.bf16.mxu0 %v2349
    %5835 = vmatpush1.bf16.msra.mxu0 %v2348
    %5836 = vmatprep.subr.bf16.mxu0 %v2355
    %5837 = vmatpush1.bf16.msra.mxu0 %v2354
    %5838 = vmatprep.subr.bf16.mxu0 %v2361
    %5839 = vmatpush1.bf16.msra.mxu0 %v2360
    %5840 = vmatprep.subr.bf16.mxu0 %v2367
    %5841 = vmatpush1.bf16.msra.mxu0 %v2366
    %5842 = vmatprep.subr.bf16.mxu0 %v2373
    %5843 = vmatpush1.bf16.msra.mxu0 %v2372
    %5844 = vmatprep.subr.bf16.mxu0 %v2379
    %5845 = vmatpush1.bf16.msra.mxu0 %v2378
    %5846 = vmatprep.subr.bf16.mxu0 %v2385
    %5847 = vmatpush1.bf16.msra.mxu0 %v2384
    %5848 = vmatprep.mubr.bf16.mxu0 %v5815
    %5849 = vmatmul.mubr.bf16.gmra.mrb[0].mxu0 %v5814
    %v5850 = vpop.f32.mrb[0].mxu0
    %v5851 = vadd.f32 0.0, %v5850
    %v5852 = vpop.f32.mrb[0].mxu0
    %v5853 = vadd.f32 0.0, %v5852
    %v5854 = vpop.f32.mrb[0].mxu0
    %v5855 = vpop.f32.mrb[0].mxu0
    %5856 = vdwg.mxu0
    %5857 = vmatprep.subr.bf16.mxu0 %v2297
    %5858 = vmatpush1.bf16.msra.mxu0 %v2296
    %5859 = vmatprep.subr.bf16.mxu0 %v2303
    %5860 = vmatpush1.bf16.msra.mxu0 %v2302
    %5861 = vmatprep.subr.bf16.mxu0 %v2309
    %5862 = vmatpush1.bf16.msra.mxu0 %v2308
    %5863 = vmatprep.subr.bf16.mxu0 %v2315
    %5864 = vmatpush1.bf16.msra.mxu0 %v2314
    %5865 = vmatprep.subr.bf16.mxu0 %v2321
    %5866 = vmatpush1.bf16.msra.mxu0 %v2320
    %5867 = vmatprep.subr.bf16.mxu0 %v2327
    %5868 = vmatpush1.bf16.msra.mxu0 %v2326
    %5869 = vmatprep.subr.bf16.mxu0 %v2333
    %5870 = vmatpush1.bf16.msra.mxu0 %v2332
    %5871 = vmatprep.subr.bf16.mxu0 %v2339
    %5872 = vmatpush1.bf16.msra.mxu0 %v2338
    %5873 = vmatprep.subr.bf16.mxu0 %v2345
    %5874 = vmatpush1.bf16.msra.mxu0 %v2344
    %5875 = vmatprep.subr.bf16.mxu0 %v2351
    %5876 = vmatpush1.bf16.msra.mxu0 %v2350
    %5877 = vmatprep.subr.bf16.mxu0 %v2357
    %5878 = vmatpush1.bf16.msra.mxu0 %v2356
    %5879 = vmatprep.subr.bf16.mxu0 %v2363
    %5880 = vmatpush1.bf16.msra.mxu0 %v2362
    %5881 = vmatprep.subr.bf16.mxu0 %v2369
    %5882 = vmatpush1.bf16.msra.mxu0 %v2368
    %5883 = vmatprep.subr.bf16.mxu0 %v2375
    %5884 = vmatpush1.bf16.msra.mxu0 %v2374
    %5885 = vmatprep.subr.bf16.mxu0 %v2381
    %5886 = vmatpush1.bf16.msra.mxu0 %v2380
    %5887 = vmatprep.subr.bf16.mxu0 %v2387
    %5888 = vmatpush1.bf16.msra.mxu0 %v2386
    %5889 = vmatprep.mubr.bf16.mxu0 %v5815
    %5890 = vmatmul.mubr.bf16.gmra.mrb[0].mxu0 %v5814
    %v5891 = vpop.f32.mrb[0].mxu0
    %v5892 = vadd.f32 0.0, %v5891
    %v5893 = vpop.f32.mrb[0].mxu0
    %v5894 = vadd.f32 0.0, %v5893
    %v5895 = vpop.f32.mrb[0].mxu0
    %v5896 = vpop.f32.mrb[0].mxu0
    %5897 = vdwg.mxu0
    %5898 = vmatprep.subr.bf16.mxu0 %v2299
    %5899 = vmatpush1.bf16.msra.mxu0 %v2298
    %5900 = vmatprep.subr.bf16.mxu0 %v2305
    %5901 = vmatpush1.bf16.msra.mxu0 %v2304
    %5902 = vmatprep.subr.bf16.mxu0 %v2311
    %5903 = vmatpush1.bf16.msra.mxu0 %v2310
    %5904 = vmatprep.subr.bf16.mxu0 %v2317
    %5905 = vmatpush1.bf16.msra.mxu0 %v2316
    %5906 = vmatprep.subr.bf16.mxu0 %v2323
    %5907 = vmatpush1.bf16.msra.mxu0 %v2322
    %5908 = vmatprep.subr.bf16.mxu0 %v2329
    %5909 = vmatpush1.bf16.msra.mxu0 %v2328
    %5910 = vmatprep.subr.bf16.mxu0 %v2335
    %5911 = vmatpush1.bf16.msra.mxu0 %v2334
    %5912 = vmatprep.subr.bf16.mxu0 %v2341
    %5913 = vmatpush1.bf16.msra.mxu0 %v2340
    %5914 = vmatprep.subr.bf16.mxu0 %v2347
    %5915 = vmatpush1.bf16.msra.mxu0 %v2346
    %5916 = vmatprep.subr.bf16.mxu0 %v2353
    %5917 = vmatpush1.bf16.msra.mxu0 %v2352
    %5918 = vmatprep.subr.bf16.mxu0 %v2359
    %5919 = vmatpush1.bf16.msra.mxu0 %v2358
    %5920 = vmatprep.subr.bf16.mxu0 %v2365
    %5921 = vmatpush1.bf16.msra.mxu0 %v2364
    %5922 = vmatprep.subr.bf16.mxu0 %v2371
    %5923 = vmatpush1.bf16.msra.mxu0 %v2370
    %5924 = vmatprep.subr.bf16.mxu0 %v2377
    %5925 = vmatpush1.bf16.msra.mxu0 %v2376
    %5926 = vmatprep.subr.bf16.mxu0 %v2383
    %5927 = vmatpush1.bf16.msra.mxu0 %v2382
    %5928 = vmatprep.subr.bf16.mxu0 %v2389
    %5929 = vmatpush1.bf16.msra.mxu0 %v2388
    %5930 = vmatprep.mubr.bf16.mxu0 %v5815
    %5931 = vmatmul.mubr.bf16.gmra.mrb[0].mxu0 %v5814
    %v5932 = vpop.f32.mrb[0].mxu0
    %v5933 = vadd.f32 0.0, %v5932
    %v5934 = vpop.f32.mrb[0].mxu0
    %v5935 = vadd.f32 0.0, %v5934
    %v5936 = vpop.f32.mrb[0].mxu0
    %v5937 = vpop.f32.mrb[0].mxu0
    %5938 = vdwg.mxu0
    %v5939 = vadd.f32 %v5726, %v5851
    %v5940 = vadd.f32 %v5728, %v5853
    %v5941 = vxor.u32 %v5939, 2147483648
    %v5942 = vxor.u32 %v5940, 2147483648
    %v5943 = vmul.f32 %v5941, 1.442695
    %v5944 = vpow.pop %v5943
    %v5945 = vmul.f32 %v5942, 1.442695
    %v5946 = vpow.pop %v5945
    %v5947 = vadd.f32 %v5944, 1.0
    %v5948 = vadd.f32 %v5946, 1.0
    %v5949 = vrcp.pop %v5947
    %v5950 = vmul.f32 1.0, %v5949
    %v5951 = vrcp.pop %v5948
    %v5952 = vmul.f32 1.0, %v5951
    %v5953 = vadd.f32 %v5767, %v5892
    %v5954 = vadd.f32 %v5769, %v5894
    %v5955 = vxor.u32 %v5953, 2147483648
    %v5956 = vxor.u32 %v5954, 2147483648
    %v5957 = vmul.f32 %v5955, 1.442695
    %v5958 = vpow.pop %v5957
    %v5959 = vmul.f32 %v5956, 1.442695
    %v5960 = vpow.pop %v5959
    %v5961 = vadd.f32 %v5958, 1.0
    %v5962 = vadd.f32 %v5960, 1.0
    %v5963 = vrcp.pop %v5961
    %v5964 = vmul.f32 1.0, %v5963
    %v5965 = vrcp.pop %v5962
    %v5966 = vmul.f32 1.0, %v5965
    %v5967 = vadd.f32 %v5933, %v1310
    %v5968 = vadd.f32 %v5935, %v1311
    %v5969 = vmul.f32 %v5950, %v5967
    %v5970 = vmul.f32 %v5952, %v5968
    %v5971 = vadd.f32 %v5808, %v5969
    %v5972 = vadd.f32 %v5810, %v5970
    %v5973 = vtanh.pop %v5971
    %v5974 = vtanh.pop %v5972
    %v5975 = vsub.f32 1.0, %v5964
    %v5976 = vsub.f32 1.0, %v5966
    %v5977 = vmul.f32 %v5975, %v5973
    %v5978 = vmul.f32 %v5976, %v5974
    %v5979 = vmul.f32 %v5964, %v5512
    %v5980 = vmul.f32 %v5966, %v5513
    %v5981 = vadd.f32 %v5977, %v5979
    %v5982 = vadd.f32 %v5978, %v5980
    %vm5983 = vcmp.gt.s32.totalorder %v1306, 6
    %vm5984 = vcmp.gt.s32.totalorder %v1307, 6
    %v5985 = vsel %vm5983, %v5687, %v5510
    %v5986 = vsel %vm5984, %v5688, %v5511
    %v5987 = vsel %vm5983, %v5981, %v5512
    %v5988 = vsel %vm5984, %v5982, %v5513
    %v5989 = vld [vmem:[#allocation2 + $0x150] sm:$0xff]
    %v5990 = vld [vmem:[#allocation2 + $0x158] sm:$0xff]
    %v5991 = vld [vmem:[#allocation2 + $0x160] sm:$0xff]
    %v5992 = vld [vmem:[#allocation2 + $0x168] sm:$0xff]
    %v5993 = vld [vmem:[#allocation2 + $0x170] sm:$0xff]
    %v5994 = vld [vmem:[#allocation2 + $0x178] sm:$0xff]
    %v5995 = vpack.c.bf16 %v5985, %v5985
    %v5996 = vpack.c.bf16 %v5986, %v5986
    %5997 = vmatprep.subr.bf16.mxu0 %v2956
    %5998 = vmatpush1.bf16.msra.mxu0 %v2955
    %5999 = vmatprep.subr.bf16.mxu0 %v2962
    %6000 = vmatpush1.bf16.msra.mxu0 %v2961
    %6001 = vmatprep.subr.bf16.mxu0 %v2968
    %6002 = vmatpush1.bf16.msra.mxu0 %v2967
    %6003 = vmatprep.subr.bf16.mxu0 %v2974
    %6004 = vmatpush1.bf16.msra.mxu0 %v2973
    %6005 = vmatprep.subr.bf16.mxu0 %v2980
    %6006 = vmatpush1.bf16.msra.mxu0 %v2979
    %6007 = vmatprep.subr.bf16.mxu0 %v2986
    %6008 = vmatpush1.bf16.msra.mxu0 %v2985
    %6009 = vmatprep.subr.bf16.mxu0 %v2992
    %6010 = vmatpush1.bf16.msra.mxu0 %v2991
    %6011 = vmatprep.subr.bf16.mxu0 %v2998
    %6012 = vmatpush1.bf16.msra.mxu0 %v2997
    %6013 = vmatprep.subr.bf16.mxu0 %v3004
    %6014 = vmatpush1.bf16.msra.mxu0 %v3003
    %6015 = vmatprep.subr.bf16.mxu0 %v3010
    %6016 = vmatpush1.bf16.msra.mxu0 %v3009
    %6017 = vmatprep.subr.bf16.mxu0 %v3016
    %6018 = vmatpush1.bf16.msra.mxu0 %v3015
    %6019 = vmatprep.subr.bf16.mxu0 %v3022
    %6020 = vmatpush1.bf16.msra.mxu0 %v3021
    %6021 = vmatprep.subr.bf16.mxu0 %v3028
    %6022 = vmatpush1.bf16.msra.mxu0 %v3027
    %6023 = vmatprep.subr.bf16.mxu0 %v3034
    %6024 = vmatpush1.bf16.msra.mxu0 %v3033
    %6025 = vmatprep.subr.bf16.mxu0 %v3040
    %6026 = vmatpush1.bf16.msra.mxu0 %v3039
    %6027 = vmatprep.subr.bf16.mxu0 %v3046
    %6028 = vmatpush1.bf16.msra.mxu0 %v3045
    %6029 = vmatprep.mubr.bf16.mxu0 %v5996
    %6030 = vmatmul.mubr.bf16.gmra.mrb[0].mxu0 %v5995
    %v6031 = vpop.f32.mrb[0].mxu0
    %v6032 = vadd.f32 0.0, %v6031
    %v6033 = vpop.f32.mrb[0].mxu0
    %v6034 = vadd.f32 0.0, %v6033
    %v6035 = vpop.f32.mrb[0].mxu0
    %v6036 = vpop.f32.mrb[0].mxu0
    %6037 = vdwg.mxu0
    %6038 = vmatprep.subr.bf16.mxu0 %v2958
    %6039 = vmatpush1.bf16.msra.mxu0 %v2957
    %6040 = vmatprep.subr.bf16.mxu0 %v2964
    %6041 = vmatpush1.bf16.msra.mxu0 %v2963
    %6042 = vmatprep.subr.bf16.mxu0 %v2970
    %6043 = vmatpush1.bf16.msra.mxu0 %v2969
    %6044 = vmatprep.subr.bf16.mxu0 %v2976
    %6045 = vmatpush1.bf16.msra.mxu0 %v2975
    %6046 = vmatprep.subr.bf16.mxu0 %v2982
    %6047 = vmatpush1.bf16.msra.mxu0 %v2981
    %6048 = vmatprep.subr.bf16.mxu0 %v2988
    %6049 = vmatpush1.bf16.msra.mxu0 %v2987
    %6050 = vmatprep.subr.bf16.mxu0 %v2994
    %6051 = vmatpush1.bf16.msra.mxu0 %v2993
    %6052 = vmatprep.subr.bf16.mxu0 %v3000
    %6053 = vmatpush1.bf16.msra.mxu0 %v2999
    %6054 = vmatprep.subr.bf16.mxu0 %v3006
    %6055 = vmatpush1.bf16.msra.mxu0 %v3005
    %6056 = vmatprep.subr.bf16.mxu0 %v3012
    %6057 = vmatpush1.bf16.msra.mxu0 %v3011
    %6058 = vmatprep.subr.bf16.mxu0 %v3018
    %6059 = vmatpush1.bf16.msra.mxu0 %v3017
    %6060 = vmatprep.subr.bf16.mxu0 %v3024
    %6061 = vmatpush1.bf16.msra.mxu0 %v3023
    %6062 = vmatprep.subr.bf16.mxu0 %v3030
    %6063 = vmatpush1.bf16.msra.mxu0 %v3029
    %6064 = vmatprep.subr.bf16.mxu0 %v3036
    %6065 = vmatpush1.bf16.msra.mxu0 %v3035
    %6066 = vmatprep.subr.bf16.mxu0 %v3042
    %6067 = vmatpush1.bf16.msra.mxu0 %v3041
    %6068 = vmatprep.subr.bf16.mxu0 %v3048
    %6069 = vmatpush1.bf16.msra.mxu0 %v3047
    %6070 = vmatprep.mubr.bf16.mxu0 %v5996
    %6071 = vmatmul.mubr.bf16.gmra.mrb[0].mxu0 %v5995
    %v6072 = vpop.f32.mrb[0].mxu0
    %v6073 = vadd.f32 0.0, %v6072
    %v6074 = vpop.f32.mrb[0].mxu0
    %v6075 = vadd.f32 0.0, %v6074
    %v6076 = vpop.f32.mrb[0].mxu0
    %v6077 = vpop.f32.mrb[0].mxu0
    %6078 = vdwg.mxu0
    %6079 = vmatprep.subr.bf16.mxu0 %v2960
    %6080 = vmatpush1.bf16.msra.mxu0 %v2959
    %6081 = vmatprep.subr.bf16.mxu0 %v2966
    %6082 = vmatpush1.bf16.msra.mxu0 %v2965
    %6083 = vmatprep.subr.bf16.mxu0 %v2972
    %6084 = vmatpush1.bf16.msra.mxu0 %v2971
    %6085 = vmatprep.subr.bf16.mxu0 %v2978
    %6086 = vmatpush1.bf16.msra.mxu0 %v2977
    %6087 = vmatprep.subr.bf16.mxu0 %v2984
    %6088 = vmatpush1.bf16.msra.mxu0 %v2983
    %6089 = vmatprep.subr.bf16.mxu0 %v2990
    %6090 = vmatpush1.bf16.msra.mxu0 %v2989
    %6091 = vmatprep.subr.bf16.mxu0 %v2996
    %6092 = vmatpush1.bf16.msra.mxu0 %v2995
    %6093 = vmatprep.subr.bf16.mxu0 %v3002
    %6094 = vmatpush1.bf16.msra.mxu0 %v3001
    %6095 = vmatprep.subr.bf16.mxu0 %v3008
    %6096 = vmatpush1.bf16.msra.mxu0 %v3007
    %6097 = vmatprep.subr.bf16.mxu0 %v3014
    %6098 = vmatpush1.bf16.msra.mxu0 %v3013
    %6099 = vmatprep.subr.bf16.mxu0 %v3020
    %6100 = vmatpush1.bf16.msra.mxu0 %v3019
    %6101 = vmatprep.subr.bf16.mxu0 %v3026
    %6102 = vmatpush1.bf16.msra.mxu0 %v3025
    %6103 = vmatprep.subr.bf16.mxu0 %v3032
    %6104 = vmatpush1.bf16.msra.mxu0 %v3031
    %6105 = vmatprep.subr.bf16.mxu0 %v3038
    %6106 = vmatpush1.bf16.msra.mxu0 %v3037
    %6107 = vmatprep.subr.bf16.mxu0 %v3044
    %6108 = vmatpush1.bf16.msra.mxu0 %v3043
    %6109 = vmatprep.subr.bf16.mxu0 %v3050
    %6110 = vmatpush1.bf16.msra.mxu0 %v3049
    %6111 = vmatprep.mubr.bf16.mxu0 %v5996
    %6112 = vmatmul.mubr.bf16.gmra.mrb[0].mxu0 %v5995
    %v6113 = vpop.f32.mrb[0].mxu0
    %v6114 = vadd.f32 0.0, %v6113
    %v6115 = vpop.f32.mrb[0].mxu0
    %v6116 = vadd.f32 0.0, %v6115
    %v6117 = vpop.f32.mrb[0].mxu0
    %v6118 = vpop.f32.mrb[0].mxu0
    %6119 = vdwg.mxu0
    %v6120 = vadd.f32 %v5989, %v6032
    %v6121 = vadd.f32 %v5990, %v6034
    %v6122 = vxor.u32 %v6120, 2147483648
    %v6123 = vxor.u32 %v6121, 2147483648
    %v6124 = vmul.f32 %v6122, 1.442695
    %v6125 = vpow.pop %v6124
    %v6126 = vmul.f32 %v6123, 1.442695
    %v6127 = vpow.pop %v6126
    %v6128 = vadd.f32 %v6125, 1.0
    %v6129 = vadd.f32 %v6127, 1.0
    %v6130 = vrcp.pop %v6128
    %v6131 = vmul.f32 1.0, %v6130
    %v6132 = vrcp.pop %v6129
    %v6133 = vmul.f32 1.0, %v6132
    %v6134 = vadd.f32 %v5991, %v6073
    %v6135 = vadd.f32 %v5992, %v6075
    %v6136 = vxor.u32 %v6134, 2147483648
    %v6137 = vxor.u32 %v6135, 2147483648
    %v6138 = vmul.f32 %v6136, 1.442695
    %v6139 = vpow.pop %v6138
    %v6140 = vmul.f32 %v6137, 1.442695
    %v6141 = vpow.pop %v6140
    %v6142 = vadd.f32 %v6139, 1.0
    %v6143 = vadd.f32 %v6141, 1.0
    %v6144 = vrcp.pop %v6142
    %v6145 = vmul.f32 1.0, %v6144
    %v6146 = vrcp.pop %v6143
    %v6147 = vmul.f32 1.0, %v6146
    %v6148 = vadd.f32 %v6114, %v1308
    %v6149 = vadd.f32 %v6116, %v1309
    %v6150 = vmul.f32 %v6131, %v6148
    %v6151 = vmul.f32 %v6133, %v6149
    %v6152 = vadd.f32 %v5993, %v6150
    %v6153 = vadd.f32 %v5994, %v6151
    %v6154 = vtanh.pop %v6152
    %v6155 = vtanh.pop %v6153
    %v6156 = vsub.f32 1.0, %v6145
    %v6157 = vsub.f32 1.0, %v6147
    %v6158 = vmul.f32 %v6156, %v6154
    %v6159 = vmul.f32 %v6157, %v6155
    %v6160 = vmul.f32 %v6145, %v5985
    %v6161 = vmul.f32 %v6147, %v5986
    %v6162 = vadd.f32 %v6158, %v6160
    %v6163 = vadd.f32 %v6159, %v6161
    %v6164 = vpack.c.bf16 %v6162, %v6162
    %v6165 = vpack.c.bf16 %v6163, %v6163
    %6166 = vmatprep.subr.bf16.mxu0 %v2076
    %6167 = vmatpush1.bf16.msra.mxu0 %v2075
    %6168 = vmatprep.subr.bf16.mxu0 %v2082
    %6169 = vmatpush1.bf16.msra.mxu0 %v2081
    %6170 = vmatprep.subr.bf16.mxu0 %v2088
    %6171 = vmatpush1.bf16.msra.mxu0 %v2087
    %6172 = vmatprep.subr.bf16.mxu0 %v2094
    %6173 = vmatpush1.bf16.msra.mxu0 %v2093
    %6174 = vmatprep.subr.bf16.mxu0 %v2100
    %6175 = vmatpush1.bf16.msra.mxu0 %v2099
    %6176 = vmatprep.subr.bf16.mxu0 %v2106
    %6177 = vmatpush1.bf16.msra.mxu0 %v2105
    %6178 = vmatprep.subr.bf16.mxu0 %v2112
    %6179 = vmatpush1.bf16.msra.mxu0 %v2111
    %6180 = vmatprep.subr.bf16.mxu0 %v2118
    %6181 = vmatpush1.bf16.msra.mxu0 %v2117
    %6182 = vmatprep.subr.bf16.mxu0 %v2124
    %6183 = vmatpush1.bf16.msra.mxu0 %v2123
    %6184 = vmatprep.subr.bf16.mxu0 %v2130
    %6185 = vmatpush1.bf16.msra.mxu0 %v2129
    %6186 = vmatprep.subr.bf16.mxu0 %v2136
    %6187 = vmatpush1.bf16.msra.mxu0 %v2135
    %6188 = vmatprep.subr.bf16.mxu0 %v2142
    %6189 = vmatpush1.bf16.msra.mxu0 %v2141
    %6190 = vmatprep.subr.bf16.mxu0 %v2148
    %6191 = vmatpush1.bf16.msra.mxu0 %v2147
    %6192 = vmatprep.subr.bf16.mxu0 %v2154
    %6193 = vmatpush1.bf16.msra.mxu0 %v2153
    %6194 = vmatprep.subr.bf16.mxu0 %v2160
    %6195 = vmatpush1.bf16.msra.mxu0 %v2159
    %6196 = vmatprep.subr.bf16.mxu0 %v2166
    %6197 = vmatpush1.bf16.msra.mxu0 %v2165
    %6198 = vmatprep.mubr.bf16.mxu0 %v6165
    %6199 = vmatmul.mubr.bf16.gmra.mrb[0].mxu0 %v6164
    %v6200 = vpop.f32.mrb[0].mxu0
    %v6201 = vadd.f32 %v1312, %v6200
    %v6202 = vpop.f32.mrb[0].mxu0
    %v6203 = vadd.f32 %v1313, %v6202
    %v6204 = vpop.f32.mrb[0].mxu0
    %v6205 = vpop.f32.mrb[0].mxu0
    %6206 = vdwg.mxu0
    %6207 = vmatprep.subr.bf16.mxu0 %v2078
    %6208 = vmatpush1.bf16.msra.mxu0 %v2077
    %6209 = vmatprep.subr.bf16.mxu0 %v2084
    %6210 = vmatpush1.bf16.msra.mxu0 %v2083
    %6211 = vmatprep.subr.bf16.mxu0 %v2090
    %6212 = vmatpush1.bf16.msra.mxu0 %v2089
    %6213 = vmatprep.subr.bf16.mxu0 %v2096
    %6214 = vmatpush1.bf16.msra.mxu0 %v2095
    %6215 = vmatprep.subr.bf16.mxu0 %v2102
    %6216 = vmatpush1.bf16.msra.mxu0 %v2101
    %6217 = vmatprep.subr.bf16.mxu0 %v2108
    %6218 = vmatpush1.bf16.msra.mxu0 %v2107
    %6219 = vmatprep.subr.bf16.mxu0 %v2114
    %6220 = vmatpush1.bf16.msra.mxu0 %v2113
    %6221 = vmatprep.subr.bf16.mxu0 %v2120
    %6222 = vmatpush1.bf16.msra.mxu0 %v2119
    %6223 = vmatprep.subr.bf16.mxu0 %v2126
    %6224 = vmatpush1.bf16.msra.mxu0 %v2125
    %6225 = vmatprep.subr.bf16.mxu0 %v2132
    %6226 = vmatpush1.bf16.msra.mxu0 %v2131
    %6227 = vmatprep.subr.bf16.mxu0 %v2138
    %6228 = vmatpush1.bf16.msra.mxu0 %v2137
    %6229 = vmatprep.subr.bf16.mxu0 %v2144
    %6230 = vmatpush1.bf16.msra.mxu0 %v2143
    %6231 = vmatprep.subr.bf16.mxu0 %v2150
    %6232 = vmatpush1.bf16.msra.mxu0 %v2149
    %6233 = vmatprep.subr.bf16.mxu0 %v2156
    %6234 = vmatpush1.bf16.msra.mxu0 %v2155
    %6235 = vmatprep.subr.bf16.mxu0 %v2162
    %6236 = vmatpush1.bf16.msra.mxu0 %v2161
    %6237 = vmatprep.subr.bf16.mxu0 %v2168
    %6238 = vmatpush1.bf16.msra.mxu0 %v2167
    %6239 = vmatprep.mubr.bf16.mxu0 %v6165
    %6240 = vmatmul.mubr.bf16.gmra.mrb[0].mxu0 %v6164
    %v6241 = vpop.f32.mrb[0].mxu0
    %v6242 = vadd.f32 %v1314, %v6241
    %v6243 = vpop.f32.mrb[0].mxu0
    %v6244 = vadd.f32 %v1315, %v6243
    %v6245 = vpop.f32.mrb[0].mxu0
    %v6246 = vpop.f32.mrb[0].mxu0
    %6247 = vdwg.mxu0
    %6248 = vmatprep.subr.bf16.mxu0 %v2080
    %6249 = vmatpush1.bf16.msra.mxu0 %v2079
    %6250 = vmatprep.subr.bf16.mxu0 %v2086
    %6251 = vmatpush1.bf16.msra.mxu0 %v2085
    %6252 = vmatprep.subr.bf16.mxu0 %v2092
    %6253 = vmatpush1.bf16.msra.mxu0 %v2091
    %6254 = vmatprep.subr.bf16.mxu0 %v2098
    %6255 = vmatpush1.bf16.msra.mxu0 %v2097
    %6256 = vmatprep.subr.bf16.mxu0 %v2104
    %6257 = vmatpush1.bf16.msra.mxu0 %v2103
    %6258 = vmatprep.subr.bf16.mxu0 %v2110
    %6259 = vmatpush1.bf16.msra.mxu0 %v2109
    %6260 = vmatprep.subr.bf16.mxu0 %v2116
    %6261 = vmatpush1.bf16.msra.mxu0 %v2115
    %6262 = vmatprep.subr.bf16.mxu0 %v2122
    %6263 = vmatpush1.bf16.msra.mxu0 %v2121
    %6264 = vmatprep.subr.bf16.mxu0 %v2128
    %6265 = vmatpush1.bf16.msra.mxu0 %v2127
    %6266 = vmatprep.subr.bf16.mxu0 %v2134
    %6267 = vmatpush1.bf16.msra.mxu0 %v2133
    %6268 = vmatprep.subr.bf16.mxu0 %v2140
    %6269 = vmatpush1.bf16.msra.mxu0 %v2139
    %6270 = vmatprep.subr.bf16.mxu0 %v2146
    %6271 = vmatpush1.bf16.msra.mxu0 %v2145
    %6272 = vmatprep.subr.bf16.mxu0 %v2152
    %6273 = vmatpush1.bf16.msra.mxu0 %v2151
    %6274 = vmatprep.subr.bf16.mxu0 %v2158
    %6275 = vmatpush1.bf16.msra.mxu0 %v2157
    %6276 = vmatprep.subr.bf16.mxu0 %v2164
    %6277 = vmatpush1.bf16.msra.mxu0 %v2163
    %6278 = vmatprep.subr.bf16.mxu0 %v2170
    %6279 = vmatpush1.bf16.msra.mxu0 %v2169
    %6280 = vmatprep.mubr.bf16.mxu0 %v6165
    %6281 = vmatmul.mubr.bf16.gmra.mrb[0].mxu0 %v6164
    %v6282 = vpop.f32.mrb[0].mxu0
    %v6283 = vadd.f32 %v1316, %v6282
    %v6284 = vpop.f32.mrb[0].mxu0
    %v6285 = vadd.f32 %v1317, %v6284
    %v6286 = vpop.f32.mrb[0].mxu0
    %v6287 = vpop.f32.mrb[0].mxu0
    %6288 = vdwg.mxu0
    %v6289 = vpack.c.bf16 %v5987, %v5987
    %v6290 = vpack.c.bf16 %v5988, %v5988
    %6291 = vmatprep.subr.bf16.mxu0 %v2295
    %6292 = vmatpush1.bf16.msra.mxu0 %v2294
    %6293 = vmatprep.subr.bf16.mxu0 %v2301
    %6294 = vmatpush1.bf16.msra.mxu0 %v2300
    %6295 = vmatprep.subr.bf16.mxu0 %v2307
    %6296 = vmatpush1.bf16.msra.mxu0 %v2306
    %6297 = vmatprep.subr.bf16.mxu0 %v2313
    %6298 = vmatpush1.bf16.msra.mxu0 %v2312
    %6299 = vmatprep.subr.bf16.mxu0 %v2319
    %6300 = vmatpush1.bf16.msra.mxu0 %v2318
    %6301 = vmatprep.subr.bf16.mxu0 %v2325
    %6302 = vmatpush1.bf16.msra.mxu0 %v2324
    %6303 = vmatprep.subr.bf16.mxu0 %v2331
    %6304 = vmatpush1.bf16.msra.mxu0 %v2330
    %6305 = vmatprep.subr.bf16.mxu0 %v2337
    %6306 = vmatpush1.bf16.msra.mxu0 %v2336
    %6307 = vmatprep.subr.bf16.mxu0 %v2343
    %6308 = vmatpush1.bf16.msra.mxu0 %v2342
    %6309 = vmatprep.subr.bf16.mxu0 %v2349
    %6310 = vmatpush1.bf16.msra.mxu0 %v2348
    %6311 = vmatprep.subr.bf16.mxu0 %v2355
    %6312 = vmatpush1.bf16.msra.mxu0 %v2354
    %6313 = vmatprep.subr.bf16.mxu0 %v2361
    %6314 = vmatpush1.bf16.msra.mxu0 %v2360
    %6315 = vmatprep.subr.bf16.mxu0 %v2367
    %6316 = vmatpush1.bf16.msra.mxu0 %v2366
    %6317 = vmatprep.subr.bf16.mxu0 %v2373
    %6318 = vmatpush1.bf16.msra.mxu0 %v2372
    %6319 = vmatprep.subr.bf16.mxu0 %v2379
    %6320 = vmatpush1.bf16.msra.mxu0 %v2378
    %6321 = vmatprep.subr.bf16.mxu0 %v2385
    %6322 = vmatpush1.bf16.msra.mxu0 %v2384
    %6323 = vmatprep.mubr.bf16.mxu0 %v6290
    %6324 = vmatmul.mubr.bf16.gmra.mrb[0].mxu0 %v6289
    %v6325 = vpop.f32.mrb[0].mxu0
    %v6326 = vadd.f32 0.0, %v6325
    %v6327 = vpop.f32.mrb[0].mxu0
    %v6328 = vadd.f32 0.0, %v6327
    %v6329 = vpop.f32.mrb[0].mxu0
    %v6330 = vpop.f32.mrb[0].mxu0
    %6331 = vdwg.mxu0
    %6332 = vmatprep.subr.bf16.mxu0 %v2297
    %6333 = vmatpush1.bf16.msra.mxu0 %v2296
    %6334 = vmatprep.subr.bf16.mxu0 %v2303
    %6335 = vmatpush1.bf16.msra.mxu0 %v2302
    %6336 = vmatprep.subr.bf16.mxu0 %v2309
    %6337 = vmatpush1.bf16.msra.mxu0 %v2308
    %6338 = vmatprep.subr.bf16.mxu0 %v2315
    %6339 = vmatpush1.bf16.msra.mxu0 %v2314
    %6340 = vmatprep.subr.bf16.mxu0 %v2321
    %6341 = vmatpush1.bf16.msra.mxu0 %v2320
    %6342 = vmatprep.subr.bf16.mxu0 %v2327
    %6343 = vmatpush1.bf16.msra.mxu0 %v2326
    %6344 = vmatprep.subr.bf16.mxu0 %v2333
    %6345 = vmatpush1.bf16.msra.mxu0 %v2332
    %6346 = vmatprep.subr.bf16.mxu0 %v2339
    %6347 = vmatpush1.bf16.msra.mxu0 %v2338
    %6348 = vmatprep.subr.bf16.mxu0 %v2345
    %6349 = vmatpush1.bf16.msra.mxu0 %v2344
    %6350 = vmatprep.subr.bf16.mxu0 %v2351
    %6351 = vmatpush1.bf16.msra.mxu0 %v2350
    %6352 = vmatprep.subr.bf16.mxu0 %v2357
    %6353 = vmatpush1.bf16.msra.mxu0 %v2356
    %6354 = vmatprep.subr.bf16.mxu0 %v2363
    %6355 = vmatpush1.bf16.msra.mxu0 %v2362
    %6356 = vmatprep.subr.bf16.mxu0 %v2369
    %6357 = vmatpush1.bf16.msra.mxu0 %v2368
    %6358 = vmatprep.subr.bf16.mxu0 %v2375
    %6359 = vmatpush1.bf16.msra.mxu0 %v2374
    %6360 = vmatprep.subr.bf16.mxu0 %v2381
    %6361 = vmatpush1.bf16.msra.mxu0 %v2380
    %6362 = vmatprep.subr.bf16.mxu0 %v2387
    %6363 = vmatpush1.bf16.msra.mxu0 %v2386
    %6364 = vmatprep.mubr.bf16.mxu0 %v6290
    %6365 = vmatmul.mubr.bf16.gmra.mrb[0].mxu0 %v6289
    %v6366 = vpop.f32.mrb[0].mxu0
    %v6367 = vadd.f32 0.0, %v6366
    %v6368 = vpop.f32.mrb[0].mxu0
    %v6369 = vadd.f32 0.0, %v6368
    %v6370 = vpop.f32.mrb[0].mxu0
    %v6371 = vpop.f32.mrb[0].mxu0
    %6372 = vdwg.mxu0
    %6373 = vmatprep.subr.bf16.mxu0 %v2299
    %6374 = vmatpush1.bf16.msra.mxu0 %v2298
    %6375 = vmatprep.subr.bf16.mxu0 %v2305
    %6376 = vmatpush1.bf16.msra.mxu0 %v2304
    %6377 = vmatprep.subr.bf16.mxu0 %v2311
    %6378 = vmatpush1.bf16.msra.mxu0 %v2310
    %6379 = vmatprep.subr.bf16.mxu0 %v2317
    %6380 = vmatpush1.bf16.msra.mxu0 %v2316
    %6381 = vmatprep.subr.bf16.mxu0 %v2323
    %6382 = vmatpush1.bf16.msra.mxu0 %v2322
    %6383 = vmatprep.subr.bf16.mxu0 %v2329
    %6384 = vmatpush1.bf16.msra.mxu0 %v2328
    %6385 = vmatprep.subr.bf16.mxu0 %v2335
    %6386 = vmatpush1.bf16.msra.mxu0 %v2334
    %6387 = vmatprep.subr.bf16.mxu0 %v2341
    %6388 = vmatpush1.bf16.msra.mxu0 %v2340
    %6389 = vmatprep.subr.bf16.mxu0 %v2347
    %6390 = vmatpush1.bf16.msra.mxu0 %v2346
    %6391 = vmatprep.subr.bf16.mxu0 %v2353
    %6392 = vmatpush1.bf16.msra.mxu0 %v2352
    %6393 = vmatprep.subr.bf16.mxu0 %v2359
    %6394 = vmatpush1.bf16.msra.mxu0 %v2358
    %6395 = vmatprep.subr.bf16.mxu0 %v2365
    %6396 = vmatpush1.bf16.msra.mxu0 %v2364
    %6397 = vmatprep.subr.bf16.mxu0 %v2371
    %6398 = vmatpush1.bf16.msra.mxu0 %v2370
    %6399 = vmatprep.subr.bf16.mxu0 %v2377
    %6400 = vmatpush1.bf16.msra.mxu0 %v2376
    %6401 = vmatprep.subr.bf16.mxu0 %v2383
    %6402 = vmatpush1.bf16.msra.mxu0 %v2382
    %6403 = vmatprep.subr.bf16.mxu0 %v2389
    %6404 = vmatpush1.bf16.msra.mxu0 %v2388
    %6405 = vmatprep.mubr.bf16.mxu0 %v6290
    %6406 = vmatmul.mubr.bf16.gmra.mrb[0].mxu0 %v6289
    %v6407 = vpop.f32.mrb[0].mxu0
    %v6408 = vadd.f32 0.0, %v6407
    %v6409 = vpop.f32.mrb[0].mxu0
    %v6410 = vadd.f32 0.0, %v6409
    %v6411 = vpop.f32.mrb[0].mxu0
    %v6412 = vpop.f32.mrb[0].mxu0
    %6413 = vdwg.mxu0
    %v6414 = vadd.f32 %v6201, %v6326
    %v6415 = vadd.f32 %v6203, %v6328
    %v6416 = vxor.u32 %v6414, 2147483648
    %v6417 = vxor.u32 %v6415, 2147483648
    %v6418 = vmul.f32 %v6416, 1.442695
    %v6419 = vpow.pop %v6418
    %v6420 = vmul.f32 %v6417, 1.442695
    %v6421 = vpow.pop %v6420
    %v6422 = vadd.f32 %v6419, 1.0
    %v6423 = vadd.f32 %v6421, 1.0
    %v6424 = vrcp.pop %v6422
    %v6425 = vmul.f32 1.0, %v6424
    %v6426 = vrcp.pop %v6423
    %v6427 = vmul.f32 1.0, %v6426
    %v6428 = vadd.f32 %v6242, %v6367
    %v6429 = vadd.f32 %v6244, %v6369
    %v6430 = vxor.u32 %v6428, 2147483648
    %v6431 = vxor.u32 %v6429, 2147483648
    %v6432 = vmul.f32 %v6430, 1.442695
    %v6433 = vpow.pop %v6432
    %v6434 = vmul.f32 %v6431, 1.442695
    %v6435 = vpow.pop %v6434
    %v6436 = vadd.f32 %v6433, 1.0
    %v6437 = vadd.f32 %v6435, 1.0
    %v6438 = vrcp.pop %v6436
    %v6439 = vmul.f32 1.0, %v6438
    %v6440 = vrcp.pop %v6437
    %v6441 = vmul.f32 1.0, %v6440
    %v6442 = vadd.f32 %v6408, %v1310
    %v6443 = vadd.f32 %v6410, %v1311
    %v6444 = vmul.f32 %v6425, %v6442
    %v6445 = vmul.f32 %v6427, %v6443
    %v6446 = vadd.f32 %v6283, %v6444
    %v6447 = vadd.f32 %v6285, %v6445
    %v6448 = vtanh.pop %v6446
    %v6449 = vtanh.pop %v6447
    %v6450 = vsub.f32 1.0, %v6439
    %v6451 = vsub.f32 1.0, %v6441
    %v6452 = vmul.f32 %v6450, %v6448
    %v6453 = vmul.f32 %v6451, %v6449
    %v6454 = vmul.f32 %v6439, %v5987
    %v6455 = vmul.f32 %v6441, %v5988
    %v6456 = vadd.f32 %v6452, %v6454
    %v6457 = vadd.f32 %v6453, %v6455
    %vm6458 = vcmp.gt.s32.totalorder %v1306, 7
    %vm6459 = vcmp.gt.s32.totalorder %v1307, 7
    %v6460 = vsel %vm6458, %v6456, %v5987
    %v6461 = vsel %vm6459, %v6457, %v5988
    %s6462 = smul.u32 %s2067, 2
    %s6463 = sshll.u32 %s6462, 4
    %6464 = dma.done %s165, %s6463
    %s6465 = smul.u32 %s2067, 1
    %s6466 = sshll.u32 %s6465, 4
    %6467 = dma.done %s470, %s6466
    %v6468 = vpack.c.bf16 %v6460, %v6460
    %v6469 = vpack.c.bf16 %v6461, %v6461
    %v6470 = vld [vmem:[#allocation5] sm:$0xff]
    %v6471 = vld [vmem:[#allocation5 + $0x8] sm:$0xff]
    %v6472 = vld [vmem:[#allocation5 + $0x10] sm:$0xff]
    %v6473 = vld [vmem:[#allocation5 + $0x18] sm:$0xff]
    %v6474 = vld [vmem:[#allocation5 + $0x20] sm:$0xff]
    %v6475 = vld [vmem:[#allocation5 + $0x28] sm:$0xff]
    %v6476 = vld [vmem:[#allocation5 + $0x30] sm:$0xff]
    %v6477 = vld [vmem:[#allocation5 + $0x38] sm:$0xff]
    %v6478 = vld [vmem:[#allocation5 + $0x40] sm:$0xff]
    %v6479 = vld [vmem:[#allocation5 + $0x48] sm:$0xff]
    %v6480 = vld [vmem:[#allocation5 + $0x50] sm:$0xff]
    %v6481 = vld [vmem:[#allocation5 + $0x58] sm:$0xff]
    %v6482 = vld [vmem:[#allocation5 + $0x60] sm:$0xff]
    %v6483 = vld [vmem:[#allocation5 + $0x68] sm:$0xff]
    %v6484 = vld [vmem:[#allocation5 + $0x70] sm:$0xff]
    %v6485 = vld [vmem:[#allocation5 + $0x78] sm:$0xff]
    %v6486 = vld [vmem:[#allocation5 + $0x80] sm:$0xff]
    %v6487 = vld [vmem:[#allocation5 + $0x88] sm:$0xff]
    %v6488 = vld [vmem:[#allocation5 + $0x90] sm:$0xff]
    %v6489 = vld [vmem:[#allocation5 + $0x98] sm:$0xff]
    %v6490 = vld [vmem:[#allocation5 + $0xa0] sm:$0xff]
    %v6491 = vld [vmem:[#allocation5 + $0xa8] sm:$0xff]
    %v6492 = vld [vmem:[#allocation5 + $0xb0] sm:$0xff]
    %v6493 = vld [vmem:[#allocation5 + $0xb8] sm:$0xff]
    %v6494 = vld [vmem:[#allocation5 + $0xc0] sm:$0xff]
    %v6495 = vld [vmem:[#allocation5 + $0xc8] sm:$0xff]
    %v6496 = vld [vmem:[#allocation5 + $0xd0] sm:$0xff]
    %v6497 = vld [vmem:[#allocation5 + $0xd8] sm:$0xff]
    %v6498 = vld [vmem:[#allocation5 + $0xe0] sm:$0xff]
    %v6499 = vld [vmem:[#allocation5 + $0xe8] sm:$0xff]
    %v6500 = vld [vmem:[#allocation5 + $0xf0] sm:$0xff]
    %v6501 = vld [vmem:[#allocation5 + $0xf8] sm:$0xff]
    %v6502 = vld [vmem:[#allocation13] sm:$0x3]
    %v6504 = vlaneseq
    %v6505 = vshrl.u32 %v6504, 7
    %v6506 = vsub.s32 0, %v6505
    %v6507 = vrot.slane %v6502, %v6506
    %v6508 = vlaneseq
    %v6509 = vshrl.u32 %v6508, 7
    %v6510 = vsub.s32 1, %v6509
    %v6511 = vrot.slane %v6502, %v6510
    %6514 = vmatprep.subr.bf16.mxu0 %v6471
    %6515 = vmatpush1.bf16.msra.mxu0 %v6470
    %6516 = vmatprep.subr.bf16.mxu0 %v6473
    %6517 = vmatpush1.bf16.msra.mxu0 %v6472
    %6518 = vmatprep.subr.bf16.mxu0 %v6475
    %6519 = vmatpush1.bf16.msra.mxu0 %v6474
    %6520 = vmatprep.subr.bf16.mxu0 %v6477
    %6521 = vmatpush1.bf16.msra.mxu0 %v6476
    %6522 = vmatprep.subr.bf16.mxu0 %v6479
    %6523 = vmatpush1.bf16.msra.mxu0 %v6478
    %6524 = vmatprep.subr.bf16.mxu0 %v6481
    %6525 = vmatpush1.bf16.msra.mxu0 %v6480
    %6526 = vmatprep.subr.bf16.mxu0 %v6483
    %6527 = vmatpush1.bf16.msra.mxu0 %v6482
    %6528 = vmatprep.subr.bf16.mxu0 %v6485
    %6529 = vmatpush1.bf16.msra.mxu0 %v6484
    %6530 = vmatprep.subr.bf16.mxu0 %v6487
    %6531 = vmatpush1.bf16.msra.mxu0 %v6486
    %6532 = vmatprep.subr.bf16.mxu0 %v6489
    %6533 = vmatpush1.bf16.msra.mxu0 %v6488
    %6534 = vmatprep.subr.bf16.mxu0 %v6491
    %6535 = vmatpush1.bf16.msra.mxu0 %v6490
    %6536 = vmatprep.subr.bf16.mxu0 %v6493
    %6537 = vmatpush1.bf16.msra.mxu0 %v6492
    %6538 = vmatprep.subr.bf16.mxu0 %v6495
    %6539 = vmatpush1.bf16.msra.mxu0 %v6494
    %6540 = vmatprep.subr.bf16.mxu0 %v6497
    %6541 = vmatpush1.bf16.msra.mxu0 %v6496
    %6542 = vmatprep.subr.bf16.mxu0 %v6499
    %6543 = vmatpush1.bf16.msra.mxu0 %v6498
    %6544 = vmatprep.subr.bf16.mxu0 %v6501
    %6545 = vmatpush1.bf16.msra.mxu0 %v6500
    %6546 = vmatprep.mubr.bf16.mxu0 %v6469
    %6547 = vmatmul.mubr.bf16.gmra.mrb[0].mxu0 %v6468
    %v6548 = vpop.f32.mrb[0].mxu0
    %v6549 = vadd.f32 %v6507, %v6548
    %v6550 = vpop.f32.mrb[0].mxu0
    %v6551 = vadd.f32 %v6511, %v6550
    %v6552 = vpop.f32.mrb[0].mxu0
    %v6553 = vpop.f32.mrb[0].mxu0
    %6554 = vdwg.mxu0
    %vm6555 = vcmp.gt.f32.partialorder %v6549, 0.0
    %vm6556 = vcmp.gt.f32.partialorder %v6551, 0.0
    %v6557 = vmul.f32 %v6549, 1.442695
    %v6558 = vpow.pop %v6557
    %v6559 = vmul.f32 %v6551, 1.442695
    %v6560 = vpow.pop %v6559
    %v6561 = vsub.f32 %v6558, 1.0
    %v6562 = vsub.f32 %v6560, 1.0
    %v6563 = vmul.f32 %v6561, 1.6732632
    %v6564 = vmul.f32 %v6562, 1.6732632
    %v6565 = vsel %vm6555, %v6549, %v6563
    %v6566 = vsel %vm6556, %v6551, %v6564
    %v6567 = vmul.f32 %v6565, 1.050701
    %v6568 = vmul.f32 %v6566, 1.050701
    %v6569 = vpack.c.bf16 %v6567, %v6567
    %v6570 = vpack.c.bf16 %v6568, %v6568
    %v6571 = vld [vmem:[#allocation6] sm:$0xff]
    %v6572 = vld [vmem:[#allocation6 + $0x8] sm:$0xff]
    %v6573 = vld [vmem:[#allocation6 + $0x10] sm:$0xff]
    %v6574 = vld [vmem:[#allocation6 + $0x18] sm:$0xff]
    %v6575 = vld [vmem:[#allocation6 + $0x20] sm:$0xff]
    %v6576 = vld [vmem:[#allocation6 + $0x28] sm:$0xff]
    %v6577 = vld [vmem:[#allocation6 + $0x30] sm:$0xff]
    %v6578 = vld [vmem:[#allocation6 + $0x38] sm:$0xff]
    %v6579 = vld [vmem:[#allocation6 + $0x40] sm:$0xff]
    %v6580 = vld [vmem:[#allocation6 + $0x48] sm:$0xff]
    %v6581 = vld [vmem:[#allocation6 + $0x50] sm:$0xff]
    %v6582 = vld [vmem:[#allocation6 + $0x58] sm:$0xff]
    %v6583 = vld [vmem:[#allocation6 + $0x60] sm:$0xff]
    %v6584 = vld [vmem:[#allocation6 + $0x68] sm:$0xff]
    %v6585 = vld [vmem:[#allocation6 + $0x70] sm:$0xff]
    %v6586 = vld [vmem:[#allocation6 + $0x78] sm:$0xff]
    %v6587 = vld [vmem:[#allocation14] sm:$0x1]
    %v6589 = vlaneseq
    %v6590 = vshrl.u32 %v6589, 7
    %v6591 = vsub.s32 0, %v6590
    %v6592 = vrot.slane %v6587, %v6591
    %6594 = vmatprep.subr.bf16.mxu0 0
    %6595 = vmatpush1.bf16.msra.mxu0 %v6571
    %6596 = vmatprep.subr.bf16.mxu0 0
    %6597 = vmatpush1.bf16.msra.mxu0 %v6572
    %6598 = vmatprep.subr.bf16.mxu0 0
    %6599 = vmatpush1.bf16.msra.mxu0 %v6573
    %6600 = vmatprep.subr.bf16.mxu0 0
    %6601 = vmatpush1.bf16.msra.mxu0 %v6574
    %6602 = vmatprep.subr.bf16.mxu0 0
    %6603 = vmatpush1.bf16.msra.mxu0 %v6575
    %6604 = vmatprep.subr.bf16.mxu0 0
    %6605 = vmatpush1.bf16.msra.mxu0 %v6576
    %6606 = vmatprep.subr.bf16.mxu0 0
    %6607 = vmatpush1.bf16.msra.mxu0 %v6577
    %6608 = vmatprep.subr.bf16.mxu0 0
    %6609 = vmatpush1.bf16.msra.mxu0 %v6578
    %6610 = vmatprep.subr.bf16.mxu0 0
    %6611 = vmatpush1.bf16.msra.mxu0 %v6579
    %6612 = vmatprep.subr.bf16.mxu0 0
    %6613 = vmatpush1.bf16.msra.mxu0 %v6580
    %6614 = vmatprep.subr.bf16.mxu0 0
    %6615 = vmatpush1.bf16.msra.mxu0 %v6581
    %6616 = vmatprep.subr.bf16.mxu0 0
    %6617 = vmatpush1.bf16.msra.mxu0 %v6582
    %6618 = vmatprep.subr.bf16.mxu0 0
    %6619 = vmatpush1.bf16.msra.mxu0 %v6583
    %6620 = vmatprep.subr.bf16.mxu0 0
    %6621 = vmatpush1.bf16.msra.mxu0 %v6584
    %6622 = vmatprep.subr.bf16.mxu0 0
    %6623 = vmatpush1.bf16.msra.mxu0 %v6585
    %6624 = vmatprep.subr.bf16.mxu0 0
    %6625 = vmatpush1.bf16.msra.mxu0 %v6586
    %6626 = vmatprep.mubr.bf16.mxu0 %v6570
    %6627 = vmatmul.mubr.bf16.gmra.mrb[0].mxu0 %v6569
    %v6628 = vpop.f32.mrb[0].mxu0
    %v6629 = vadd.f32 %v6592, %v6628
    %v6630 = vpop.f32.mrb[0].mxu0
    %v6631 = vpop.f32.mrb[0].mxu0
    %v6632 = vpop.f32.mrb[0].mxu0
    %6633 = vdwg.mxu0
    %vm6634 = vcmask 392192
    %v6635 = vsel %vm6634, %v6629, -inf
    %6636 = vmax.xlane.f32.xlu0 %v6635
    %v6637 = vpop.xlane.xlu0 %6636
    %v6638 = vsub.f32 %v6629, %v6637
    %v6639 = vmul.f32 %v6638, 1.442695
    %v6640 = vpow.pop %v6639
    %v6641 = vsel %vm6634, %v6640, 0.0
    %6642 = vadd.xlane.f32.xlu0 %v6641
    %v6643 = vpop.xlane.xlu0 %6642
    %v6644 = vlog2.pop %v6643
    %v6645 = vmul.f32 %v6644, 0.6931472
    %v6646 = vadd.f32 %v6637, %v6645
    %v6647 = vsub.f32 %v6629, %v6646
    %6648 = vst.msk [vmem:[#allocation16] sm:$0xff] %vm6634, %v6647
    // Predicated region
    $region133: #{transfered_classifier_forward.1} parent=1 // pred_check
      _
    $region134: #{transfered_classifier_forward.1} parent=1 // pred_check_branch
      %6650 = sbr.rel (0) target = $region136
    $region135: #{transfered_classifier_forward.1} parent=1 // pred_region
      %s6652 = ssub.s32 128, 128
      %6653 = vsyncadd [#allocation10], %s6652
      %s6655 = sshll.u32 [#allocation16], 4
      %s6656 = int_to_ptr.vmem [resolvable:$true] %s6655
      %6658 = dma.vmem_to_hbm [thread:$0]  %s6656, 128, %s15, [#allocation10]
    $region136: #{transfered_classifier_forward.1} parent=1 // pred_fallthru
      _
    // Predicated region
    $region137: #{transfered_classifier_forward.1} parent=1 // pred_check
      _
    $region138: #{transfered_classifier_forward.1} parent=1 // pred_check_branch
      %6660 = sbr.rel (0) target = $region140
    $region139: #{transfered_classifier_forward.1} parent=1 // pred_region
      %6661 = dma.done [#allocation10], 128
    $region140: #{transfered_classifier_forward.1} parent=1 // pred_fallthru
      _
    %6662 = vsyncpa [#allocation9], 1
    %6663 = vsyncpa [#allocation12], 1
    %6664 = vsyncpa [#allocation15], 1
    %6665 = vsyncpa [#allocation10], 1
  %6666 = vsyncmov [#allocation7]
  %s6667 = vpop.sfrf %6666
  %p6668 = scmp.eq.s32.totalorder %s6667, 0
  %p6669 = pneg %p6668
  %6671 = shalt.err (%p6669)
  %s6672 = scalar_lea.sflag [#allocation7], 1
  %6673 = vsyncmov %s6672
  %s6674 = vpop.sfrf %6673
  %p6675 = scmp.eq.s32.totalorder %s6674, 0
  %p6676 = pneg %p6675
  %6678 = shalt.err (%p6676)
  %s6679 = scalar_lea.sflag [#allocation7], 2
  %6680 = vsyncmov %s6679
  %s6681 = vpop.sfrf %6680
  %p6682 = scmp.eq.s32.totalorder %s6681, 0
  %p6683 = pneg %p6682
  %6685 = shalt.err (%p6683)
  %s6686 = scalar_lea.sflag [#allocation7], 3
  %6687 = vsyncmov %s6686
  %s6688 = vpop.sfrf %6687
  %p6689 = scmp.eq.s32.totalorder %s6688, 0
  %p6690 = pneg %p6689
  %6692 = shalt.err (%p6690)

</llo_original>
